<compile_context>
chip_gen: v7x
topology: tpu7x:2x2x1
jax: 0.10.0
libtpu: 0.0.40
codegen_flags: <defaults>
</compile_context>

<pallas_src>
import functools

import numpy as np

import jax
import jax.numpy as jnp
from jax.experimental import pallas as pl
from jax.experimental.pallas import tpu as pltpu


# -----------------------------------------------------------------------------
# Hardware / tiling helpers
# -----------------------------------------------------------------------------
@functools.lru_cache(maxsize=1)
def _vmem_budget_bytes():
    """Per-TensorCore VMEM budget (generation-aware), minus headroom."""
    try:
        cap = int(getattr(pltpu.get_tpu_info(), "vmem_capacity_bytes"))
    except Exception:
        cap = 64 << 20  # conservative fallback (v7x per-TC capacity)
    return max(cap - (8 << 20), 16 << 20)


def _block_vmem_bytes(Np, tN, C, C_out, H0, H1):
    """Estimated VMEM footprint of one DiffusionNet block grid step."""
    weights = (4 * C * C                       # folded A (2C, 2C)
               + H0 * 3 * C + H0 + H1 * H0 + H1 + C * H1 + C
               + C_out * C + C_out)            # fused last_lin
    per_step = (C * tN * 4                     # x tile (f32)
                + C * tN * 4                   # x_diffuse tile (f32)
                + C * Np * 2                   # x_diffuse full (bf16, cached)
                + 2 * Np * tN * 2              # gradX^T / gradY^T tiles (bf16)
                + tN * 4                       # mask tile
                + max(C, C_out) * tN * 4       # output tile
                + weights * 4)
    # double-buffered pipeline blocks + compiler scratch margin
    return 2 * per_step + (2 << 20)


def _pick_vertex_tile(Np, C, C_out, H0, H1, budget):
    # Largest lane-aligned tile that divides Np, leaves >= 2 grid steps on the
    # vertex axis (pipelining + v7x megacore split), and fits the VMEM budget.
    cands = [t for t in (512, 384, 256, 128) if Np % t == 0 and Np // t >= 2]
    if not cands:
        return Np
    for t in cands:
        if _block_vmem_bytes(Np, t, C, C_out, H0, H1) <= budget:
            return t
    return cands[-1]


# -----------------------------------------------------------------------------
# Pallas kernels
# -----------------------------------------------------------------------------
def _linear_t_kernel(xT_ref, w_ref, b_ref, o_ref):
    # xT: (1, Cin, tN), w: (Cout, Cin), b: (Cout, 1) -> o: (1, Cout, tN)
    o_ref[0] = (jnp.dot(w_ref[...], xT_ref[0],
                        preferred_element_type=jnp.float32) + b_ref[...])


def _linear_mask_t_kernel(xT_ref, w_ref, b_ref, mask_ref, o_ref):
    # Same, fused with the verts_mask multiply (used only when N_block == 0).
    o_ref[0] = (jnp.dot(w_ref[...], xT_ref[0],
                        preferred_element_type=jnp.float32)
                + b_ref[...]) * mask_ref[0]


def _spectral_diffusion_kernel(xT_ref, mass_ref, evals_ref, evecs_ref,
                               evecsT_ref, time_ref, xd_ref, xdbf_ref):
    # LearnedTimeDiffusion (spectral), transposed layout, once per batch elem.
    # xT: (1,C,N)  mass: (1,1,N)  evals: (1,1,K)  evecs: (1,N,K)  evecsT:(1,K,N)
    x_spec = jnp.dot(xT_ref[0] * mass_ref[0], evecs_ref[0],
                     preferred_element_type=jnp.float32)             # (C, K)
    coefs = jnp.exp(-time_ref[...] * evals_ref[0])                   # (C, K)
    xd = jnp.dot(coefs * x_spec, evecsT_ref[0],
                 preferred_element_type=jnp.float32)                 # (C, N)
    xd_ref[0] = xd
    xdbf_ref[0] = xd.astype(jnp.bfloat16)   # cached bf16 copy (cast once)


def _block_body(x_ref, xd_ref, xdbf_ref, gxT_ref, gyT_ref, a2_ref,
                w0_ref, b0_ref, w1_ref, b1_ref, w2_ref, b2_ref):
    """Shared DiffusionNetBlock compute for one (batch, vertex-tile) step."""
    C = x_ref.shape[1]
    xd_bf = xdbf_ref[0]                                              # (C, N) bf16

    # SpatialGradientFeatures: bf16 MXU matmuls against the N x N operators.
    gX = jnp.dot(xd_bf, gxT_ref[0], preferred_element_type=jnp.float32)
    gY = jnp.dot(xd_bf, gyT_ref[0], preferred_element_type=jnp.float32)
    gXY = jnp.concatenate([gX, gY], axis=0)                          # (2C, tN)
    bri = jnp.dot(a2_ref[...], gXY, preferred_element_type=jnp.float32)
    gfeat = jnp.tanh(gX * bri[:C] + gY * bri[C:])                    # (C, tN)

    # MiniMLP on [x, x_diffuse, grad_features] + residual.
    # TODO(synk): nn.Dropout(p=0.5) layers are identity (eval/inference mode).
    x_tile = x_ref[0]
    feat = jnp.concatenate([x_tile, xd_ref[0], gfeat], axis=0)       # (3C, tN)
    h = jnp.maximum(
        jnp.dot(w0_ref[...], feat, preferred_element_type=jnp.float32)
        + b0_ref[...], 0.0)
    h = jnp.maximum(
        jnp.dot(w1_ref[...], h, preferred_element_type=jnp.float32)
        + b1_ref[...], 0.0)
    out = (jnp.dot(w2_ref[...], h, preferred_element_type=jnp.float32)
           + b2_ref[...])
    return out + x_tile


def _block_kernel(x_ref, xd_ref, xdbf_ref, gxT_ref, gyT_ref, a2_ref,
                  w0_ref, b0_ref, w1_ref, b1_ref, w2_ref, b2_ref, o_ref):
    o_ref[0] = _block_body(x_ref, xd_ref, xdbf_ref, gxT_ref, gyT_ref, a2_ref,
                           w0_ref, b0_ref, w1_ref, b1_ref, w2_ref, b2_ref)


def _block_last_kernel(x_ref, xd_ref, xdbf_ref, gxT_ref, gyT_ref, a2_ref,
                       w0_ref, b0_ref, w1_ref, b1_ref, w2_ref, b2_ref,
                       wl_ref, bl_ref, mask_ref, o_ref):
    # Final block: fuse last_lin + verts_mask into the output store.
    out = _block_body(x_ref, xd_ref, xdbf_ref, gxT_ref, gyT_ref, a2_ref,
                      w0_ref, b0_ref, w1_ref, b1_ref, w2_ref, b2_ref)
    o_ref[0] = (jnp.dot(wl_ref[...], out, preferred_element_type=jnp.float32)
                + bl_ref[...]) * mask_ref[0]


# -----------------------------------------------------------------------------
# Pallas wrappers
# -----------------------------------------------------------------------------
def pallas_linear_t(xT, W, b, tN, mask2=None):
    """y^T = W @ x^T + b (optionally * verts_mask), tiled over vertex tiles."""
    B, Cin, Np = xT.shape
    Cout = W.shape[0]
    nT = Np // tN

    in_specs = [
        pl.BlockSpec((1, Cin, tN), lambda bb, j: (bb, 0, j)),
        pl.BlockSpec((Cout, Cin), lambda bb, j: (0, 0)),
        pl.BlockSpec((Cout, 1), lambda bb, j: (0, 0)),
    ]
    args = [xT, W, b.reshape(Cout, 1)]
    kernel = _linear_t_kernel
    if mask2 is not None:
        in_specs.append(pl.BlockSpec((1, 1, tN), lambda bb, j: (bb, 0, j)))
        args.append(mask2)
        kernel = _linear_mask_t_kernel

    return pl.pallas_call(
        kernel,
        out_shape=jax.ShapeDtypeStruct((B, Cout, Np), jnp.float32),
        grid=(B, nT),
        in_specs=in_specs,
        out_specs=pl.BlockSpec((1, Cout, tN), lambda bb, j: (bb, 0, j)),
        compiler_params=pltpu.CompilerParams(
            dimension_semantics=("parallel", "parallel")),
    )(*args)


def pallas_spectral_diffusion(xT, mass2, evals2, evecs, evecsT, time, budget):
    """x_diffuse^T (f32) and its cached bf16 copy, one grid step per batch."""
    B, C, Np = xT.shape
    K = evecs.shape[-1]
    est = 2 * (C * Np * 4 + Np * 4 + K * 4 + 2 * Np * K * 4 + C * 4
               + C * Np * 4 + C * Np * 2) + (2 << 20)
    vmem_limit = int(min(max(est, 32 << 20), budget))

    return pl.pallas_call(
        _spectral_diffusion_kernel,
        out_shape=(jax.ShapeDtypeStruct((B, C, Np), jnp.float32),
                   jax.ShapeDtypeStruct((B, C, Np), jnp.bfloat16)),
        grid=(B,),
        in_specs=[
            pl.BlockSpec((1, C, Np), lambda b: (b, 0, 0)),   # x^T
            pl.BlockSpec((1, 1, Np), lambda b: (b, 0, 0)),   # mass
            pl.BlockSpec((1, 1, K), lambda b: (b, 0, 0)),    # evals
            pl.BlockSpec((1, Np, K), lambda b: (b, 0, 0)),   # evecs
            pl.BlockSpec((1, K, Np), lambda b: (b, 0, 0)),   # evecs^T
            pl.BlockSpec((C, 1), lambda b: (0, 0)),          # diffusion time
        ],
        out_specs=(pl.BlockSpec((1, C, Np), lambda b: (b, 0, 0)),
                   pl.BlockSpec((1, C, Np), lambda b: (b, 0, 0))),
        compiler_params=pltpu.CompilerParams(
            dimension_semantics=("parallel",),
            vmem_limit_bytes=vmem_limit),
    )(xT, mass2, evals2, evecs, evecsT, time)


def pallas_diffusionnet_block(xT, xd, xd_bf, gxT, gyT, bp, tN, budget,
                              last=None):
    """One DiffusionNetBlock in transposed layout (spectral part precomputed).

    If `last=(W_last, b_last, mask2)` is given, last_lin + verts_mask are fused
    into the output store (final block only).
    """
    B, C, Np = xT.shape
    H0 = bp["b0"].shape[0]
    H1 = bp["b1"].shape[0]
    nT = Np // tN

    # Fold A_re / A_im into one weight: [breal; bimag] = A2 @ [gX; gY].
    a2 = jnp.concatenate(
        [jnp.concatenate([bp["A_re"], -bp["A_im"]], axis=1),
         jnp.concatenate([bp["A_im"], bp["A_re"]], axis=1)], axis=0)

    in_specs = [
        pl.BlockSpec((1, C, tN), lambda b, j: (b, 0, j)),     # x tile
        pl.BlockSpec((1, C, tN), lambda b, j: (b, 0, j)),     # x_diffuse tile
        pl.BlockSpec((1, C, Np), lambda b, j: (b, 0, 0)),     # x_diffuse bf16
        pl.BlockSpec((1, Np, tN), lambda b, j: (b, 0, j)),    # gradX^T tile
        pl.BlockSpec((1, Np, tN), lambda b, j: (b, 0, j)),    # gradY^T tile
        pl.BlockSpec((2 * C, 2 * C), lambda b, j: (0, 0)),    # folded A
        pl.BlockSpec((H0, 3 * C), lambda b, j: (0, 0)),       # W0
        pl.BlockSpec((H0, 1), lambda b, j: (0, 0)),           # b0
        pl.BlockSpec((H1, H0), lambda b, j: (0, 0)),          # W1
        pl.BlockSpec((H1, 1), lambda b, j: (0, 0)),           # b1
        pl.BlockSpec((C, H1), lambda b, j: (0, 0)),           # W2
        pl.BlockSpec((C, 1), lambda b, j: (0, 0)),            # b2
    ]
    args = [xT, xd, xd_bf, gxT, gyT, a2,
            bp["W0"], bp["b0"].reshape(H0, 1),
            bp["W1"], bp["b1"].reshape(H1, 1),
            bp["W2"], bp["b2"].reshape(C, 1)]

    if last is None:
        kernel = _block_kernel
        C_out = C
    else:
        W_last, b_last, mask2 = last
        C_out = W_last.shape[0]
        kernel = _block_last_kernel
        in_specs += [
            pl.BlockSpec((C_out, C), lambda b, j: (0, 0)),    # W_last
            pl.BlockSpec((C_out, 1), lambda b, j: (0, 0)),    # b_last
            pl.BlockSpec((1, 1, tN), lambda b, j: (b, 0, j)), # verts_mask tile
        ]
        args += [W_last, b_last.reshape(C_out, 1), mask2]

    vmem_limit = int(min(max(_block_vmem_bytes(Np, tN, C, C_out, H0, H1),
                             32 << 20), budget))

    return pl.pallas_call(
        kernel,
        out_shape=jax.ShapeDtypeStruct((B, C_out, Np), jnp.float32),
        grid=(B, nT),
        in_specs=in_specs,
        out_specs=pl.BlockSpec((1, C_out, tN), lambda b, j: (b, 0, j)),
        compiler_params=pltpu.CompilerParams(
            dimension_semantics=("parallel", "parallel"),
            vmem_limit_bytes=vmem_limit),
    )(*args)


# -----------------------------------------------------------------------------
# Parameter initialization (deterministic, PyTorch-Linear-style uniform)
# -----------------------------------------------------------------------------
def _init_linear(key, fan_in, fan_out, bias=True):
    k1, k2 = jax.random.split(key)
    bound = 1.0 / float(np.sqrt(fan_in))
    W = jax.random.uniform(k1, (fan_out, fan_in), jnp.float32, -bound, bound)
    if bias:
        b = jax.random.uniform(k2, (fan_out,), jnp.float32, -bound, bound)
        return W, b
    return W


def init_params(key, C_in, C_out, C_width, N_block):
    keys = jax.random.split(key, 2 + N_block)
    first_W, first_b = _init_linear(keys[0], C_in, C_width)
    last_W, last_b = _init_linear(keys[1], C_width, C_out)
    blocks = []
    for i in range(N_block):
        bks = jax.random.split(keys[2 + i], 6)
        W0, b0 = _init_linear(bks[0], 3 * C_width, C_width)
        W1, b1 = _init_linear(bks[1], C_width, C_width)
        W2, b2 = _init_linear(bks[2], C_width, C_width)
        blocks.append(dict(
            diffusion_time=jnp.zeros((C_width,), jnp.float32),  # constant_(0.0)
            A_re=_init_linear(bks[3], C_width, C_width, bias=False),
            A_im=_init_linear(bks[4], C_width, C_width, bias=False),
            W0=W0, b0=b0, W1=W1, b1=b1, W2=W2, b2=b2,
        ))
    return dict(first_W=first_W, first_b=first_b,
                last_W=last_W, last_b=last_b, blocks=blocks)


# -----------------------------------------------------------------------------
# Full forward (Pallas)
# -----------------------------------------------------------------------------
@jax.jit
def diffusionnet_forward(params, x_in, verts_mask, mass, evals, evecs,
                         gradX, gradY):
    B, N, _ = x_in.shape
    C = params["first_b"].shape[0]
    C_out = params["last_b"].shape[0]
    n_blocks = len(params["blocks"])
    H0 = params["blocks"][0]["b0"].shape[0] if n_blocks else C
    H1 = params["blocks"][0]["b1"].shape[0] if n_blocks else C

    budget = _vmem_budget_bytes()

    # Pad the vertex axis to a lane multiple so every store is a full,
    # unmasked lane-dense store; padded vertices are masked / sliced off.
    Np = ((N + 127) // 128) * 128
    pad = Np - N
    if pad:
        x_in = jnp.pad(x_in, ((0, 0), (0, pad), (0, 0)))
        verts_mask = jnp.pad(verts_mask, ((0, 0), (0, pad)))
        mass = jnp.pad(mass, ((0, 0), (0, pad)))
        evecs = jnp.pad(evecs, ((0, 0), (0, pad), (0, 0)))
        gradX = jnp.pad(gradX, ((0, 0), (0, pad), (0, pad)))
        gradY = jnp.pad(gradY, ((0, 0), (0, pad), (0, pad)))

    tN = _pick_vertex_tile(Np, C, C_out, H0, H1, budget)

    # Transposed (channels-on-sublanes, vertices-on-lanes) working layout and
    # lane-dense auxiliary inputs.
    xT = jnp.transpose(x_in, (0, 2, 1)).astype(jnp.float32)       # (B, C_in, Np)
    mass2 = mass[:, None, :].astype(jnp.float32)                  # (B, 1, Np)
    evals2 = evals[:, None, :].astype(jnp.float32)                # (B, 1, K)
    mask2 = verts_mask[:, None, :].astype(jnp.float32)            # (B, 1, Np)
    evecs_f = evecs.astype(jnp.float32)                           # (B, Np, K)
    evecsT = jnp.transpose(evecs_f, (0, 2, 1))                    # (B, K, Np)

    # gradX^T / gradY^T as bf16 operator matrices (cast BEFORE the transpose
    # so the one-time repack moves half the bytes).
    # TODO(synk): int8 (v5e/v6e) / fp8 (v7x) quantization with per-row scales
    # would halve the dominant HBM stream again but needs accuracy validation.
    gxT = jnp.transpose(gradX.astype(jnp.bfloat16), (0, 2, 1))    # (B, Np, Np)
    gyT = jnp.transpose(gradY.astype(jnp.bfloat16), (0, 2, 1))    # (B, Np, Np)

    # first_lin
    xT = pallas_linear_t(xT, params["first_W"], params["first_b"], tN)

    if n_blocks == 0:
        outT = pallas_linear_t(xT, params["last_W"], params["last_b"], tN,
                               mask2=mask2)
    else:
        for i, bp in enumerate(params["blocks"]):
            time = jnp.maximum(bp["diffusion_time"], 1e-8).reshape(C, 1)
            xd, xd_bf = pallas_spectral_diffusion(
                xT, mass2, evals2, evecs_f, evecsT, time, budget)
            last = None
            if i == n_blocks - 1:
                last = (params["last_W"], params["last_b"], mask2)
            xT = pallas_diffusionnet_block(xT, xd, xd_bf, gxT, gyT, bp, tN,
                                           budget, last=last)
        outT = xT                                                  # (B, C_out, Np)

    out = jnp.transpose(outT, (0, 2, 1))                           # (B, Np, C_out)
    if pad:
        out = out[:, :N, :]
    return out


# -----------------------------------------------------------------------------
# Pure-JAX reference (for correctness check)
# -----------------------------------------------------------------------------
def diffusionnet_reference(params, x_in, verts_mask, mass, evals, evecs,
                           gradX, gradY):
    x = x_in @ params["first_W"].T + params["first_b"]
    for bp in params["blocks"]:
        t = jnp.maximum(bp["diffusion_time"], 1e-8)
        x_spec = jnp.einsum("bnk,bnc->bkc", evecs, mass[..., None] * x)
        coefs = jnp.exp(-evals[..., None] * t[None, None, :])
        x_diff = jnp.einsum("bnk,bkc->bnc", evecs, coefs * x_spec)
        gX = jnp.einsum("bnm,bmc->bnc", gradX, x_diff)
        gY = jnp.einsum("bnm,bmc->bnc", gradY, x_diff)
        breal = gX @ bp["A_re"].T - gY @ bp["A_im"].T
        bimag = gY @ bp["A_re"].T + gX @ bp["A_im"].T
        gfeat = jnp.tanh(gX * breal + gY * bimag)
        feat = jnp.concatenate([x, x_diff, gfeat], axis=-1)
        h = jax.nn.relu(feat @ bp["W0"].T + bp["b0"])
        h = jax.nn.relu(h @ bp["W1"].T + bp["b1"])
        x = (h @ bp["W2"].T + bp["b2"]) + x
    x = x @ params["last_W"].T + params["last_b"]
    return x * verts_mask[..., None]


# -----------------------------------------------------------------------------
if __name__ == "__main__":
    B, N, K = 2, 256, 32
    C_in, C_out, C_width, N_block = 6, 5, 32, 2

    key = jax.random.PRNGKey(0)
    kp, kx, km, ke, kv, kgx, kgy = jax.random.split(key, 7)

    params = init_params(kp, C_in, C_out, C_width, N_block)

    x_in = jax.random.normal(kx, (B, N, C_in), jnp.float32)
    verts_mask = (jnp.arange(N)[None, :] < (N - 16)).astype(jnp.float32)
    verts_mask = jnp.broadcast_to(verts_mask, (B, N))
    mass = jax.random.uniform(km, (B, N), jnp.float32, 0.5, 1.5)
    evals = jax.random.uniform(ke, (B, K), jnp.float32, 0.0, 2.0)
    evecs = jax.random.normal(kv, (B, N, K), jnp.float32) * 0.2
    gradX = jax.random.normal(kgx, (B, N, N), jnp.float32) * 0.05
    gradY = jax.random.normal(kgy, (B, N, N), jnp.float32) * 0.05

    out = diffusionnet_forward(params, x_in, verts_mask, mass, evals, evecs,
                               gradX, gradY)
    out = jax.block_until_ready(out)

    ref = diffusionnet_reference(params, x_in, verts_mask, mass, evals, evecs,
                                 gradX, gradY)
    ref = jax.block_until_ready(ref)

    # Tolerance accounts for the bf16 (f32-accumulated) gradX/gradY matmuls.
    np.testing.assert_allclose(np.asarray(out), np.asarray(ref),
                               rtol=5e-2, atol=5e-2)
    assert out.shape == (B, N, C_out)
    print("KERNEL_OK")
</pallas_src>

<mosaic_0001>
module attributes {stable_mosaic.version = 11 : i64} {
  func.func @_linear_t_kernel(%arg0: i32, %arg1: i32, %arg2: memref<1x6x128xf32, #tpu.memory_space<vmem>>, %arg3: memref<32x6xf32, #tpu.memory_space<vmem>>, %arg4: memref<32x1xf32, #tpu.memory_space<vmem>>, %arg5: memref<1x32x128xf32, #tpu.memory_space<vmem>>) attributes {dimension_semantics = [#tpu.dimension_semantics<parallel>, #tpu.dimension_semantics<parallel>], iteration_bounds = array<i64: 2, 2>, scalar_prefetch = 0 : i64, scratch_operands = 0 : i64, tpu.core_type = #tpu.core_type<tc>, window_params = [{transform_indices = @transform_0, window_bounds = array<i64: 1, 6, 128>}, {pipeline_mode = #tpu.pipeline_mode<synchronous>, transform_indices = @transform_1, window_bounds = array<i64: 32, 6>}, {pipeline_mode = #tpu.pipeline_mode<synchronous>, transform_indices = @transform_2, window_bounds = array<i64: 32, 1>}, {transform_indices = @transform_3, window_bounds = array<i64: 1, 32, 128>}]} {
    %c0 = arith.constant 0 : index
    %c0_0 = arith.constant 0 : index
    %0 = vector.load %arg3[%c0, %c0_0] : memref<32x6xf32, #tpu.memory_space<vmem>>, vector<32x6xf32>
    %c0_1 = arith.constant 0 : index
    %c0_2 = arith.constant 0 : index
    %c0_3 = arith.constant 0 : index
    %1 = vector.load %arg2[%c0_1, %c0_2, %c0_3] : memref<1x6x128xf32, #tpu.memory_space<vmem>>, vector<1x6x128xf32>
    %2 = vector.shape_cast %1 : vector<1x6x128xf32> to vector<6x128xf32>
    %cst = arith.constant dense<0.000000e+00> : vector<32x128xf32>
    %3 = tpu.matmul %0, %2, %cst {dimension_numbers = #tpu.dot_dimension_numbers<[1], [0], [0], [1], [0, 0, 1, 1], [], []>} : vector<32x6xf32>, vector<6x128xf32>, vector<32x128xf32> -> vector<32x128xf32>
    %c0_4 = arith.constant 0 : index
    %c0_5 = arith.constant 0 : index
    %4 = vector.load %arg4[%c0_4, %c0_5] : memref<32x1xf32, #tpu.memory_space<vmem>>, vector<32x1xf32>
    %5 = vector.broadcast %4 : vector<32x1xf32> to vector<32x128xf32>
    %6 = arith.addf %3, %5 : vector<32x128xf32>
    %c0_6 = arith.constant 0 : index
    %c0_7 = arith.constant 0 : index
    %c0_8 = arith.constant 0 : index
    %7 = vector.load %arg5[%c0_6, %c0_7, %c0_8] : memref<1x32x128xf32, #tpu.memory_space<vmem>>, vector<1x32x128xf32>
    %8 = vector.shape_cast %7 : vector<1x32x128xf32> to vector<32x128xf32>
    %9 = vector.shape_cast %6 : vector<32x128xf32> to vector<1x32x128xf32>
    tpu.vector_store %arg5[%c0_6, %c0_7, %c0_8], %9 {strides = array<i32>} : memref<1x32x128xf32, #tpu.memory_space<vmem>>, vector<1x32x128xf32>,
    return
  }
  func.func @transform_0(%arg0: i32, %arg1: i32) -> (i32, i32, i32) {
    %c0_i32 = arith.constant 0 : i32
    %c0_i32_0 = arith.constant 0 : i32
    return %arg0, %c0_i32, %arg1 : i32, i32, i32
  }
  func.func @transform_1(%arg0: i32, %arg1: i32) -> (i32, i32) {
    %c0_i32 = arith.constant 0 : i32
    %c0_i32_0 = arith.constant 0 : i32
    %c0_i32_1 = arith.constant 0 : i32
    return %c0_i32, %c0_i32_0 : i32, i32
  }
  func.func @transform_2(%arg0: i32, %arg1: i32) -> (i32, i32) {
    %c0_i32 = arith.constant 0 : i32
    %c0_i32_0 = arith.constant 0 : i32
    %c0_i32_1 = arith.constant 0 : i32
    return %c0_i32, %c0_i32_0 : i32, i32
  }
  func.func @transform_3(%arg0: i32, %arg1: i32) -> (i32, i32, i32) {
    %c0_i32 = arith.constant 0 : i32
    %c0_i32_0 = arith.constant 0 : i32
    return %arg0, %c0_i32, %arg1 : i32, i32, i32
  }
}

module attributes {stable_mosaic.version = 11 : i64} {
  func.func @_spectral_diffusion_kernel(%arg0: i32, %arg1: memref<1x32x256xf32, #tpu.memory_space<vmem>>, %arg2: memref<1x1x256xf32, #tpu.memory_space<vmem>>, %arg3: memref<1x1x32xf32, #tpu.memory_space<vmem>>, %arg4: memref<1x256x32xf32, #tpu.memory_space<vmem>>, %arg5: memref<1x32x256xf32, #tpu.memory_space<vmem>>, %arg6: memref<32x1xf32, #tpu.memory_space<vmem>>, %arg7: memref<1x32x256xf32, #tpu.memory_space<vmem>>, %arg8: memref<1x32x256xbf16, #tpu.memory_space<vmem>>) attributes {dimension_semantics = [#tpu.dimension_semantics<parallel>], iteration_bounds = array<i64: 2>, scalar_prefetch = 0 : i64, scratch_operands = 0 : i64, tpu.core_type = #tpu.core_type<tc>, window_params = [{transform_indices = @transform_0, window_bounds = array<i64: 1, 32, 256>}, {transform_indices = @transform_1, window_bounds = array<i64: 1, 1, 256>}, {transform_indices = @transform_2, window_bounds = array<i64: 1, 1, 32>}, {transform_indices = @transform_3, window_bounds = array<i64: 1, 256, 32>}, {transform_indices = @transform_4, window_bounds = array<i64: 1, 32, 256>}, {pipeline_mode = #tpu.pipeline_mode<synchronous>, transform_indices = @transform_5, window_bounds = array<i64: 32, 1>}, {transform_indices = @transform_6, window_bounds = array<i64: 1, 32, 256>}, {transform_indices = @transform_7, window_bounds = array<i64: 1, 32, 256>}]} {
    %c0 = arith.constant 0 : index
    %c0_0 = arith.constant 0 : index
    %c0_1 = arith.constant 0 : index
    %0 = vector.load %arg1[%c0, %c0_0, %c0_1] : memref<1x32x256xf32, #tpu.memory_space<vmem>>, vector<1x32x256xf32>
    %1 = vector.shape_cast %0 : vector<1x32x256xf32> to vector<32x256xf32>
    %c0_2 = arith.constant 0 : index
    %c0_3 = arith.constant 0 : index
    %c0_4 = arith.constant 0 : index
    %2 = vector.load %arg2[%c0_2, %c0_3, %c0_4] : memref<1x1x256xf32, #tpu.memory_space<vmem>>, vector<1x1x256xf32>
    %3 = vector.shape_cast %2 : vector<1x1x256xf32> to vector<1x256xf32>
    %4 = vector.broadcast %3 : vector<1x256xf32> to vector<32x256xf32>
    %5 = arith.mulf %1, %4 : vector<32x256xf32>
    %c0_5 = arith.constant 0 : index
    %c0_6 = arith.constant 0 : index
    %c0_7 = arith.constant 0 : index
    %6 = vector.load %arg4[%c0_5, %c0_6, %c0_7] : memref<1x256x32xf32, #tpu.memory_space<vmem>>, vector<1x256x32xf32>
    %7 = vector.shape_cast %6 : vector<1x256x32xf32> to vector<256x32xf32>
    %cst = arith.constant dense<0.000000e+00> : vector<32x32xf32>
    %8 = tpu.matmul %5, %7, %cst {dimension_numbers = #tpu.dot_dimension_numbers<[1], [0], [0], [1], [0, 0, 1, 1], [], []>} : vector<32x256xf32>, vector<256x32xf32>, vector<32x32xf32> -> vector<32x32xf32>
    %c0_8 = arith.constant 0 : index
    %c0_9 = arith.constant 0 : index
    %9 = vector.load %arg6[%c0_8, %c0_9] : memref<32x1xf32, #tpu.memory_space<vmem>>, vector<32x1xf32>
    %cst_10 = arith.constant 0.000000e+00 : f32
    %10 = vector.broadcast %cst_10 : f32 to vector<32x1xf32>
    %11 = arith.subf %10, %9 : vector<32x1xf32>
    %c0_11 = arith.constant 0 : index
    %c0_12 = arith.constant 0 : index
    %c0_13 = arith.constant 0 : index
    %12 = vector.load %arg3[%c0_11, %c0_12, %c0_13] : memref<1x1x32xf32, #tpu.memory_space<vmem>>, vector<1x1x32xf32>
    %13 = vector.shape_cast %12 : vector<1x1x32xf32> to vector<1x32xf32>
    %14 = vector.broadcast %11 : vector<32x1xf32> to vector<32x32xf32>
    %15 = vector.broadcast %13 : vector<1x32xf32> to vector<32x32xf32>
    %16 = arith.mulf %14, %15 : vector<32x32xf32>
    %17 = math.exp %16 : vector<32x32xf32>
    %18 = arith.mulf %17, %8 : vector<32x32xf32>
    %c0_14 = arith.constant 0 : index
    %c0_15 = arith.constant 0 : index
    %c0_16 = arith.constant 0 : index
    %19 = vector.load %arg5[%c0_14, %c0_15, %c0_16] : memref<1x32x256xf32, #tpu.memory_space<vmem>>, vector<1x32x256xf32>
    %20 = vector.shape_cast %19 : vector<1x32x256xf32> to vector<32x256xf32>
    %cst_17 = arith.constant dense<0.000000e+00> : vector<32x256xf32>
    %21 = tpu.matmul %18, %20, %cst_17 {dimension_numbers = #tpu.dot_dimension_numbers<[1], [0], [0], [1], [0, 0, 1, 1], [], []>} : vector<32x32xf32>, vector<32x256xf32>, vector<32x256xf32> -> vector<32x256xf32>
    %c0_18 = arith.constant 0 : index
    %c0_19 = arith.constant 0 : index
    %c0_20 = arith.constant 0 : index
    %22 = vector.load %arg7[%c0_18, %c0_19, %c0_20] : memref<1x32x256xf32, #tpu.memory_space<vmem>>, vector<1x32x256xf32>
    %23 = vector.shape_cast %22 : vector<1x32x256xf32> to vector<32x256xf32>
    %24 = vector.shape_cast %21 : vector<32x256xf32> to vector<1x32x256xf32>
    tpu.vector_store %arg7[%c0_18, %c0_19, %c0_20], %24 {strides = array<i32>} : memref<1x32x256xf32, #tpu.memory_space<vmem>>, vector<1x32x256xf32>,
    %25 = arith.truncf %21 : vector<32x256xf32> to vector<32x256xbf16>
    %c0_21 = arith.constant 0 : index
    %c0_22 = arith.constant 0 : index
    %c0_23 = arith.constant 0 : index
    %26 = vector.load %arg8[%c0_21, %c0_22, %c0_23] : memref<1x32x256xbf16, #tpu.memory_space<vmem>>, vector<1x32x256xbf16>
    %27 = vector.shape_cast %26 : vector<1x32x256xbf16> to vector<32x256xbf16>
    %28 = vector.shape_cast %25 : vector<32x256xbf16> to vector<1x32x256xbf16>
    tpu.vector_store %arg8[%c0_21, %c0_22, %c0_23], %28 {strides = array<i32>} : memref<1x32x256xbf16, #tpu.memory_space<vmem>>, vector<1x32x256xbf16>,
    return
  }
  func.func @transform_0(%arg0: i32) -> (i32, i32, i32) {
    %c0_i32 = arith.constant 0 : i32
    %c0_i32_0 = arith.constant 0 : i32
    %c0_i32_1 = arith.constant 0 : i32
    return %arg0, %c0_i32, %c0_i32_0 : i32, i32, i32
  }
  func.func @transform_1(%arg0: i32) -> (i32, i32, i32) {
    %c0_i32 = arith.constant 0 : i32
    %c0_i32_0 = arith.constant 0 : i32
    %c0_i32_1 = arith.constant 0 : i32
    return %arg0, %c0_i32, %c0_i32_0 : i32, i32, i32
  }
  func.func @transform_2(%arg0: i32) -> (i32, i32, i32) {
    %c0_i32 = arith.constant 0 : i32
    %c0_i32_0 = arith.constant 0 : i32
    %c0_i32_1 = arith.constant 0 : i32
    return %arg0, %c0_i32, %c0_i32_0 : i32, i32, i32
  }
  func.func @transform_3(%arg0: i32) -> (i32, i32, i32) {
    %c0_i32 = arith.constant 0 : i32
    %c0_i32_0 = arith.constant 0 : i32
    %c0_i32_1 = arith.constant 0 : i32
    return %arg0, %c0_i32, %c0_i32_0 : i32, i32, i32
  }
  func.func @transform_4(%arg0: i32) -> (i32, i32, i32) {
    %c0_i32 = arith.constant 0 : i32
    %c0_i32_0 = arith.constant 0 : i32
    %c0_i32_1 = arith.constant 0 : i32
    return %arg0, %c0_i32, %c0_i32_0 : i32, i32, i32
  }
  func.func @transform_5(%arg0: i32) -> (i32, i32) {
    %c0_i32 = arith.constant 0 : i32
    %c0_i32_0 = arith.constant 0 : i32
    %c0_i32_1 = arith.constant 0 : i32
    return %c0_i32, %c0_i32_0 : i32, i32
  }
  func.func @transform_6(%arg0: i32) -> (i32, i32, i32) {
    %c0_i32 = arith.constant 0 : i32
    %c0_i32_0 = arith.constant 0 : i32
    %c0_i32_1 = arith.constant 0 : i32
    return %arg0, %c0_i32, %c0_i32_0 : i32, i32, i32
  }
  func.func @transform_7(%arg0: i32) -> (i32, i32, i32) {
    %c0_i32 = arith.constant 0 : i32
    %c0_i32_0 = arith.constant 0 : i32
    %c0_i32_1 = arith.constant 0 : i32
    return %arg0, %c0_i32, %c0_i32_0 : i32, i32, i32
  }
}

module attributes {stable_mosaic.version = 11 : i64} {
  func.func @_block_kernel(%arg0: i32, %arg1: i32, %arg2: memref<1x32x128xf32, #tpu.memory_space<vmem>>, %arg3: memref<1x32x128xf32, #tpu.memory_space<vmem>>, %arg4: memref<1x32x256xbf16, #tpu.memory_space<vmem>>, %arg5: memref<1x256x128xbf16, #tpu.memory_space<vmem>>, %arg6: memref<1x256x128xbf16, #tpu.memory_space<vmem>>, %arg7: memref<64x64xf32, #tpu.memory_space<vmem>>, %arg8: memref<32x96xf32, #tpu.memory_space<vmem>>, %arg9: memref<32x1xf32, #tpu.memory_space<vmem>>, %arg10: memref<32x32xf32, #tpu.memory_space<vmem>>, %arg11: memref<32x1xf32, #tpu.memory_space<vmem>>, %arg12: memref<32x32xf32, #tpu.memory_space<vmem>>, %arg13: memref<32x1xf32, #tpu.memory_space<vmem>>, %arg14: memref<1x32x128xf32, #tpu.memory_space<vmem>>) attributes {dimension_semantics = [#tpu.dimension_semantics<parallel>, #tpu.dimension_semantics<parallel>], iteration_bounds = array<i64: 2, 2>, scalar_prefetch = 0 : i64, scratch_operands = 0 : i64, tpu.core_type = #tpu.core_type<tc>, window_params = [{transform_indices = @transform_0, window_bounds = array<i64: 1, 32, 128>}, {transform_indices = @transform_1, window_bounds = array<i64: 1, 32, 128>}, {transform_indices = @transform_2, window_bounds = array<i64: 1, 32, 256>}, {transform_indices = @transform_3, window_bounds = array<i64: 1, 256, 128>}, {transform_indices = @transform_4, window_bounds = array<i64: 1, 256, 128>}, {pipeline_mode = #tpu.pipeline_mode<synchronous>, transform_indices = @transform_5, window_bounds = array<i64: 64, 64>}, {pipeline_mode = #tpu.pipeline_mode<synchronous>, transform_indices = @transform_6, window_bounds = array<i64: 32, 96>}, {pipeline_mode = #tpu.pipeline_mode<synchronous>, transform_indices = @transform_7, window_bounds = array<i64: 32, 1>}, {pipeline_mode = #tpu.pipeline_mode<synchronous>, transform_indices = @transform_8, window_bounds = array<i64: 32, 32>}, {pipeline_mode = #tpu.pipeline_mode<synchronous>, transform_indices = @transform_9, window_bounds = array<i64: 32, 1>}, {pipeline_mode = #tpu.pipeline_mode<synchronous>, transform_indices = @transform_10, window_bounds = array<i64: 32, 32>}, {pipeline_mode = #tpu.pipeline_mode<synchronous>, transform_indices = @transform_11, window_bounds = array<i64: 32, 1>}, {transform_indices = @transform_12, window_bounds = array<i64: 1, 32, 128>}]} {
    %c0 = arith.constant 0 : index
    %c0_0 = arith.constant 0 : index
    %c0_1 = arith.constant 0 : index
    %0 = vector.load %arg4[%c0, %c0_0, %c0_1] : memref<1x32x256xbf16, #tpu.memory_space<vmem>>, vector<1x32x256xbf16>
    %1 = vector.shape_cast %0 : vector<1x32x256xbf16> to vector<32x256xbf16>
    %c0_2 = arith.constant 0 : index
    %c0_3 = arith.constant 0 : index
    %c0_4 = arith.constant 0 : index
    %2 = vector.load %arg5[%c0_2, %c0_3, %c0_4] : memref<1x256x128xbf16, #tpu.memory_space<vmem>>, vector<1x256x128xbf16>
    %3 = vector.shape_cast %2 : vector<1x256x128xbf16> to vector<256x128xbf16>
    %cst = arith.constant dense<0.000000e+00> : vector<32x128xf32>
    %4 = tpu.matmul %1, %3, %cst {dimension_numbers = #tpu.dot_dimension_numbers<[1], [0], [0], [1], [0, 0, 1, 1], [], []>} : vector<32x256xbf16>, vector<256x128xbf16>, vector<32x128xf32> -> vector<32x128xf32>
    %c0_5 = arith.constant 0 : index
    %c0_6 = arith.constant 0 : index
    %c0_7 = arith.constant 0 : index
    %5 = vector.load %arg6[%c0_5, %c0_6, %c0_7] : memref<1x256x128xbf16, #tpu.memory_space<vmem>>, vector<1x256x128xbf16>
    %6 = vector.shape_cast %5 : vector<1x256x128xbf16> to vector<256x128xbf16>
    %cst_8 = arith.constant dense<0.000000e+00> : vector<32x128xf32>
    %7 = tpu.matmul %1, %6, %cst_8 {dimension_numbers = #tpu.dot_dimension_numbers<[1], [0], [0], [1], [0, 0, 1, 1], [], []>} : vector<32x256xbf16>, vector<256x128xbf16>, vector<32x128xf32> -> vector<32x128xf32>
    %8 = tpu.concatenate %4, %7 in 0 : vector<32x128xf32>, vector<32x128xf32> -> vector<64x128xf32>
    %c0_9 = arith.constant 0 : index
    %c0_10 = arith.constant 0 : index
    %9 = vector.load %arg7[%c0_9, %c0_10] : memref<64x64xf32, #tpu.memory_space<vmem>>, vector<64x64xf32>
    %cst_11 = arith.constant dense<0.000000e+00> : vector<64x128xf32>
    %10 = tpu.matmul %9, %8, %cst_11 {dimension_numbers = #tpu.dot_dimension_numbers<[1], [0], [0], [1], [0, 0, 1, 1], [], []>} : vector<64x64xf32>, vector<64x128xf32>, vector<64x128xf32> -> vector<64x128xf32>
    %11 = vector.extract_strided_slice %10 {offsets = [0, 0], sizes = [32, 128], strides = [1, 1]} : vector<64x128xf32> to vector<32x128xf32>
    %12 = arith.mulf %4, %11 : vector<32x128xf32>
    %13 = vector.extract_strided_slice %10 {offsets = [32, 0], sizes = [32, 128], strides = [1, 1]} : vector<64x128xf32> to vector<32x128xf32>
    %14 = arith.mulf %7, %13 : vector<32x128xf32>
    %15 = arith.addf %12, %14 : vector<32x128xf32>
    %16 = math.tanh %15 : vector<32x128xf32>
    %c0_12 = arith.constant 0 : index
    %c0_13 = arith.constant 0 : index
    %c0_14 = arith.constant 0 : index
    %17 = vector.load %arg2[%c0_12, %c0_13, %c0_14] : memref<1x32x128xf32, #tpu.memory_space<vmem>>, vector<1x32x128xf32>
    %18 = vector.shape_cast %17 : vector<1x32x128xf32> to vector<32x128xf32>
    %c0_15 = arith.constant 0 : index
    %c0_16 = arith.constant 0 : index
    %c0_17 = arith.constant 0 : index
    %19 = vector.load %arg3[%c0_15, %c0_16, %c0_17] : memref<1x32x128xf32, #tpu.memory_space<vmem>>, vector<1x32x128xf32>
    %20 = vector.shape_cast %19 : vector<1x32x128xf32> to vector<32x128xf32>
    %21 = tpu.concatenate %18, %20, %16 in 0 : vector<32x128xf32>, vector<32x128xf32>, vector<32x128xf32> -> vector<96x128xf32>
    %c0_18 = arith.constant 0 : index
    %c0_19 = arith.constant 0 : index
    %22 = vector.load %arg8[%c0_18, %c0_19] : memref<32x96xf32, #tpu.memory_space<vmem>>, vector<32x96xf32>
    %cst_20 = arith.constant dense<0.000000e+00> : vector<32x128xf32>
    %23 = tpu.matmul %22, %21, %cst_20 {dimension_numbers = #tpu.dot_dimension_numbers<[1], [0], [0], [1], [0, 0, 1, 1], [], []>} : vector<32x96xf32>, vector<96x128xf32>, vector<32x128xf32> -> vector<32x128xf32>
    %c0_21 = arith.constant 0 : index
    %c0_22 = arith.constant 0 : index
    %24 = vector.load %arg9[%c0_21, %c0_22] : memref<32x1xf32, #tpu.memory_space<vmem>>, vector<32x1xf32>
    %25 = vector.broadcast %24 : vector<32x1xf32> to vector<32x128xf32>
    %26 = arith.addf %23, %25 : vector<32x128xf32>
    %cst_23 = arith.constant 0.000000e+00 : f32
    %27 = vector.broadcast %cst_23 : f32 to vector<32x128xf32>
    %28 = arith.maximumf %26, %27 : vector<32x128xf32>
    %c0_24 = arith.constant 0 : index
    %c0_25 = arith.constant 0 : index
    %29 = vector.load %arg10[%c0_24, %c0_25] : memref<32x32xf32, #tpu.memory_space<vmem>>, vector<32x32xf32>
    %cst_26 = arith.constant dense<0.000000e+00> : vector<32x128xf32>
    %30 = tpu.matmul %29, %28, %cst_26 {dimension_numbers = #tpu.dot_dimension_numbers<[1], [0], [0], [1], [0, 0, 1, 1], [], []>} : vector<32x32xf32>, vector<32x128xf32>, vector<32x128xf32> -> vector<32x128xf32>
    %c0_27 = arith.constant 0 : index
    %c0_28 = arith.constant 0 : index
    %31 = vector.load %arg11[%c0_27, %c0_28] : memref<32x1xf32, #tpu.memory_space<vmem>>, vector<32x1xf32>
    %32 = vector.broadcast %31 : vector<32x1xf32> to vector<32x128xf32>
    %33 = arith.addf %30, %32 : vector<32x128xf32>
    %cst_29 = arith.constant 0.000000e+00 : f32
    %34 = vector.broadcast %cst_29 : f32 to vector<32x128xf32>
    %35 = arith.maximumf %33, %34 : vector<32x128xf32>
    %c0_30 = arith.constant 0 : index
    %c0_31 = arith.constant 0 : index
    %36 = vector.load %arg12[%c0_30, %c0_31] : memref<32x32xf32, #tpu.memory_space<vmem>>, vector<32x32xf32>
    %cst_32 = arith.constant dense<0.000000e+00> : vector<32x128xf32>
    %37 = tpu.matmul %36, %35, %cst_32 {dimension_numbers = #tpu.dot_dimension_numbers<[1], [0], [0], [1], [0, 0, 1, 1], [], []>} : vector<32x32xf32>, vector<32x128xf32>, vector<32x128xf32> -> vector<32x128xf32>
    %c0_33 = arith.constant 0 : index
    %c0_34 = arith.constant 0 : index
    %38 = vector.load %arg13[%c0_33, %c0_34] : memref<32x1xf32, #tpu.memory_space<vmem>>, vector<32x1xf32>
    %39 = vector.broadcast %38 : vector<32x1xf32> to vector<32x128xf32>
    %40 = arith.addf %37, %39 : vector<32x128xf32>
    %41 = arith.addf %40, %18 : vector<32x128xf32>
    %c0_35 = arith.constant 0 : index
    %c0_36 = arith.constant 0 : index
    %c0_37 = arith.constant 0 : index
    %42 = vector.load %arg14[%c0_35, %c0_36, %c0_37] : memref<1x32x128xf32, #tpu.memory_space<vmem>>, vector<1x32x128xf32>
    %43 = vector.shape_cast %42 : vector<1x32x128xf32> to vector<32x128xf32>
    %44 = vector.shape_cast %41 : vector<32x128xf32> to vector<1x32x128xf32>
    tpu.vector_store %arg14[%c0_35, %c0_36, %c0_37], %44 {strides = array<i32>} : memref<1x32x128xf32, #tpu.memory_space<vmem>>, vector<1x32x128xf32>,
    return
  }
  func.func @transform_0(%arg0: i32, %arg1: i32) -> (i32, i32, i32) {
    %c0_i32 = arith.constant 0 : i32
    %c0_i32_0 = arith.constant 0 : i32
    return %arg0, %c0_i32, %arg1 : i32, i32, i32
  }
  func.func @transform_1(%arg0: i32, %arg1: i32) -> (i32, i32, i32) {
    %c0_i32 = arith.constant 0 : i32
    %c0_i32_0 = arith.constant 0 : i32
    return %arg0, %c0_i32, %arg1 : i32, i32, i32
  }
  func.func @transform_2(%arg0: i32, %arg1: i32) -> (i32, i32, i32) {
    %c0_i32 = arith.constant 0 : i32
    %c0_i32_0 = arith.constant 0 : i32
    %c0_i32_1 = arith.constant 0 : i32
    return %arg0, %c0_i32, %c0_i32_0 : i32, i32, i32
  }
  func.func @transform_3(%arg0: i32, %arg1: i32) -> (i32, i32, i32) {
    %c0_i32 = arith.constant 0 : i32
    %c0_i32_0 = arith.constant 0 : i32
    return %arg0, %c0_i32, %arg1 : i32, i32, i32
  }
  func.func @transform_4(%arg0: i32, %arg1: i32) -> (i32, i32, i32) {
    %c0_i32 = arith.constant 0 : i32
    %c0_i32_0 = arith.constant 0 : i32
    return %arg0, %c0_i32, %arg1 : i32, i32, i32
  }
  func.func @transform_5(%arg0: i32, %arg1: i32) -> (i32, i32) {
    %c0_i32 = arith.constant 0 : i32
    %c0_i32_0 = arith.constant 0 : i32
    %c0_i32_1 = arith.constant 0 : i32
    return %c0_i32, %c0_i32_0 : i32, i32
  }
  func.func @transform_6(%arg0: i32, %arg1: i32) -> (i32, i32) {
    %c0_i32 = arith.constant 0 : i32
    %c0_i32_0 = arith.constant 0 : i32
    %c0_i32_1 = arith.constant 0 : i32
    return %c0_i32, %c0_i32_0 : i32, i32
  }
  func.func @transform_7(%arg0: i32, %arg1: i32) -> (i32, i32) {
    %c0_i32 = arith.constant 0 : i32
    %c0_i32_0 = arith.constant 0 : i32
    %c0_i32_1 = arith.constant 0 : i32
    return %c0_i32, %c0_i32_0 : i32, i32
  }
  func.func @transform_8(%arg0: i32, %arg1: i32) -> (i32, i32) {
    %c0_i32 = arith.constant 0 : i32
    %c0_i32_0 = arith.constant 0 : i32
    %c0_i32_1 = arith.constant 0 : i32
    return %c0_i32, %c0_i32_0 : i32, i32
  }
  func.func @transform_9(%arg0: i32, %arg1: i32) -> (i32, i32) {
    %c0_i32 = arith.constant 0 : i32
    %c0_i32_0 = arith.constant 0 : i32
    %c0_i32_1 = arith.constant 0 : i32
    return %c0_i32, %c0_i32_0 : i32, i32
  }
  func.func @transform_10(%arg0: i32, %arg1: i32) -> (i32, i32) {
    %c0_i32 = arith.constant 0 : i32
    %c0_i32_0 = arith.constant 0 : i32
    %c0_i32_1 = arith.constant 0 : i32
    return %c0_i32, %c0_i32_0 : i32, i32
  }
  func.func @transform_11(%arg0: i32, %arg1: i32) -> (i32, i32) {
    %c0_i32 = arith.constant 0 : i32
    %c0_i32_0 = arith.constant 0 : i32
    %c0_i32_1 = arith.constant 0 : i32
    return %c0_i32, %c0_i32_0 : i32, i32
  }
  func.func @transform_12(%arg0: i32, %arg1: i32) -> (i32, i32, i32) {
    %c0_i32 = arith.constant 0 : i32
    %c0_i32_0 = arith.constant 0 : i32
    return %arg0, %c0_i32, %arg1 : i32, i32, i32
  }
}

module attributes {stable_mosaic.version = 11 : i64} {
  func.func @_block_last_kernel(%arg0: i32, %arg1: i32, %arg2: memref<1x32x128xf32, #tpu.memory_space<vmem>>, %arg3: memref<1x32x128xf32, #tpu.memory_space<vmem>>, %arg4: memref<1x32x256xbf16, #tpu.memory_space<vmem>>, %arg5: memref<1x256x128xbf16, #tpu.memory_space<vmem>>, %arg6: memref<1x256x128xbf16, #tpu.memory_space<vmem>>, %arg7: memref<64x64xf32, #tpu.memory_space<vmem>>, %arg8: memref<32x96xf32, #tpu.memory_space<vmem>>, %arg9: memref<32x1xf32, #tpu.memory_space<vmem>>, %arg10: memref<32x32xf32, #tpu.memory_space<vmem>>, %arg11: memref<32x1xf32, #tpu.memory_space<vmem>>, %arg12: memref<32x32xf32, #tpu.memory_space<vmem>>, %arg13: memref<32x1xf32, #tpu.memory_space<vmem>>, %arg14: memref<5x32xf32, #tpu.memory_space<vmem>>, %arg15: memref<5x1xf32, #tpu.memory_space<vmem>>, %arg16: memref<1x1x128xf32, #tpu.memory_space<vmem>>, %arg17: memref<1x5x128xf32, #tpu.memory_space<vmem>>) attributes {dimension_semantics = [#tpu.dimension_semantics<parallel>, #tpu.dimension_semantics<parallel>], iteration_bounds = array<i64: 2, 2>, scalar_prefetch = 0 : i64, scratch_operands = 0 : i64, tpu.core_type = #tpu.core_type<tc>, window_params = [{transform_indices = @transform_0, window_bounds = array<i64: 1, 32, 128>}, {transform_indices = @transform_1, window_bounds = array<i64: 1, 32, 128>}, {transform_indices = @transform_2, window_bounds = array<i64: 1, 32, 256>}, {transform_indices = @transform_3, window_bounds = array<i64: 1, 256, 128>}, {transform_indices = @transform_4, window_bounds = array<i64: 1, 256, 128>}, {pipeline_mode = #tpu.pipeline_mode<synchronous>, transform_indices = @transform_5, window_bounds = array<i64: 64, 64>}, {pipeline_mode = #tpu.pipeline_mode<synchronous>, transform_indices = @transform_6, window_bounds = array<i64: 32, 96>}, {pipeline_mode = #tpu.pipeline_mode<synchronous>, transform_indices = @transform_7, window_bounds = array<i64: 32, 1>}, {pipeline_mode = #tpu.pipeline_mode<synchronous>, transform_indices = @transform_8, window_bounds = array<i64: 32, 32>}, {pipeline_mode = #tpu.pipeline_mode<synchronous>, transform_indices = @transform_9, window_bounds = array<i64: 32, 1>}, {pipeline_mode = #tpu.pipeline_mode<synchronous>, transform_indices = @transform_10, window_bounds = array<i64: 32, 32>}, {pipeline_mode = #tpu.pipeline_mode<synchronous>, transform_indices = @transform_11, window_bounds = array<i64: 32, 1>}, {pipeline_mode = #tpu.pipeline_mode<synchronous>, transform_indices = @transform_12, window_bounds = array<i64: 5, 32>}, {pipeline_mode = #tpu.pipeline_mode<synchronous>, transform_indices = @transform_13, window_bounds = array<i64: 5, 1>}, {transform_indices = @transform_14, window_bounds = array<i64: 1, 1, 128>}, {transform_indices = @transform_15, window_bounds = array<i64: 1, 5, 128>}]} {
    %c0 = arith.constant 0 : index
    %c0_0 = arith.constant 0 : index
    %c0_1 = arith.constant 0 : index
    %0 = vector.load %arg4[%c0, %c0_0, %c0_1] : memref<1x32x256xbf16, #tpu.memory_space<vmem>>, vector<1x32x256xbf16>
    %1 = vector.shape_cast %0 : vector<1x32x256xbf16> to vector<32x256xbf16>
    %c0_2 = arith.constant 0 : index
    %c0_3 = arith.constant 0 : index
    %c0_4 = arith.constant 0 : index
    %2 = vector.load %arg5[%c0_2, %c0_3, %c0_4] : memref<1x256x128xbf16, #tpu.memory_space<vmem>>, vector<1x256x128xbf16>
    %3 = vector.shape_cast %2 : vector<1x256x128xbf16> to vector<256x128xbf16>
    %cst = arith.constant dense<0.000000e+00> : vector<32x128xf32>
    %4 = tpu.matmul %1, %3, %cst {dimension_numbers = #tpu.dot_dimension_numbers<[1], [0], [0], [1], [0, 0, 1, 1], [], []>} : vector<32x256xbf16>, vector<256x128xbf16>, vector<32x128xf32> -> vector<32x128xf32>
    %c0_5 = arith.constant 0 : index
    %c0_6 = arith.constant 0 : index
    %c0_7 = arith.constant 0 : index
    %5 = vector.load %arg6[%c0_5, %c0_6, %c0_7] : memref<1x256x128xbf16, #tpu.memory_space<vmem>>, vector<1x256x128xbf16>
    %6 = vector.shape_cast %5 : vector<1x256x128xbf16> to vector<256x128xbf16>
    %cst_8 = arith.constant dense<0.000000e+00> : vector<32x128xf32>
    %7 = tpu.matmul %1, %6, %cst_8 {dimension_numbers = #tpu.dot_dimension_numbers<[1], [0], [0], [1], [0, 0, 1, 1], [], []>} : vector<32x256xbf16>, vector<256x128xbf16>, vector<32x128xf32> -> vector<32x128xf32>
    %8 = tpu.concatenate %4, %7 in 0 : vector<32x128xf32>, vector<32x128xf32> -> vector<64x128xf32>
    %c0_9 = arith.constant 0 : index
    %c0_10 = arith.constant 0 : index
    %9 = vector.load %arg7[%c0_9, %c0_10] : memref<64x64xf32, #tpu.memory_space<vmem>>, vector<64x64xf32>
    %cst_11 = arith.constant dense<0.000000e+00> : vector<64x128xf32>
    %10 = tpu.matmul %9, %8, %cst_11 {dimension_numbers = #tpu.dot_dimension_numbers<[1], [0], [0], [1], [0, 0, 1, 1], [], []>} : vector<64x64xf32>, vector<64x128xf32>, vector<64x128xf32> -> vector<64x128xf32>
    %11 = vector.extract_strided_slice %10 {offsets = [0, 0], sizes = [32, 128], strides = [1, 1]} : vector<64x128xf32> to vector<32x128xf32>
    %12 = arith.mulf %4, %11 : vector<32x128xf32>
    %13 = vector.extract_strided_slice %10 {offsets = [32, 0], sizes = [32, 128], strides = [1, 1]} : vector<64x128xf32> to vector<32x128xf32>
    %14 = arith.mulf %7, %13 : vector<32x128xf32>
    %15 = arith.addf %12, %14 : vector<32x128xf32>
    %16 = math.tanh %15 : vector<32x128xf32>
    %c0_12 = arith.constant 0 : index
    %c0_13 = arith.constant 0 : index
    %c0_14 = arith.constant 0 : index
    %17 = vector.load %arg2[%c0_12, %c0_13, %c0_14] : memref<1x32x128xf32, #tpu.memory_space<vmem>>, vector<1x32x128xf32>
    %18 = vector.shape_cast %17 : vector<1x32x128xf32> to vector<32x128xf32>
    %c0_15 = arith.constant 0 : index
    %c0_16 = arith.constant 0 : index
    %c0_17 = arith.constant 0 : index
    %19 = vector.load %arg3[%c0_15, %c0_16, %c0_17] : memref<1x32x128xf32, #tpu.memory_space<vmem>>, vector<1x32x128xf32>
    %20 = vector.shape_cast %19 : vector<1x32x128xf32> to vector<32x128xf32>
    %21 = tpu.concatenate %18, %20, %16 in 0 : vector<32x128xf32>, vector<32x128xf32>, vector<32x128xf32> -> vector<96x128xf32>
    %c0_18 = arith.constant 0 : index
    %c0_19 = arith.constant 0 : index
    %22 = vector.load %arg8[%c0_18, %c0_19] : memref<32x96xf32, #tpu.memory_space<vmem>>, vector<32x96xf32>
    %cst_20 = arith.constant dense<0.000000e+00> : vector<32x128xf32>
    %23 = tpu.matmul %22, %21, %cst_20 {dimension_numbers = #tpu.dot_dimension_numbers<[1], [0], [0], [1], [0, 0, 1, 1], [], []>} : vector<32x96xf32>, vector<96x128xf32>, vector<32x128xf32> -> vector<32x128xf32>
    %c0_21 = arith.constant 0 : index
    %c0_22 = arith.constant 0 : index
    %24 = vector.load %arg9[%c0_21, %c0_22] : memref<32x1xf32, #tpu.memory_space<vmem>>, vector<32x1xf32>
    %25 = vector.broadcast %24 : vector<32x1xf32> to vector<32x128xf32>
    %26 = arith.addf %23, %25 : vector<32x128xf32>
    %cst_23 = arith.constant 0.000000e+00 : f32
    %27 = vector.broadcast %cst_23 : f32 to vector<32x128xf32>
    %28 = arith.maximumf %26, %27 : vector<32x128xf32>
    %c0_24 = arith.constant 0 : index
    %c0_25 = arith.constant 0 : index
    %29 = vector.load %arg10[%c0_24, %c0_25] : memref<32x32xf32, #tpu.memory_space<vmem>>, vector<32x32xf32>
    %cst_26 = arith.constant dense<0.000000e+00> : vector<32x128xf32>
    %30 = tpu.matmul %29, %28, %cst_26 {dimension_numbers = #tpu.dot_dimension_numbers<[1], [0], [0], [1], [0, 0, 1, 1], [], []>} : vector<32x32xf32>, vector<32x128xf32>, vector<32x128xf32> -> vector<32x128xf32>
    %c0_27 = arith.constant 0 : index
    %c0_28 = arith.constant 0 : index
    %31 = vector.load %arg11[%c0_27, %c0_28] : memref<32x1xf32, #tpu.memory_space<vmem>>, vector<32x1xf32>
    %32 = vector.broadcast %31 : vector<32x1xf32> to vector<32x128xf32>
    %33 = arith.addf %30, %32 : vector<32x128xf32>
    %cst_29 = arith.constant 0.000000e+00 : f32
    %34 = vector.broadcast %cst_29 : f32 to vector<32x128xf32>
    %35 = arith.maximumf %33, %34 : vector<32x128xf32>
    %c0_30 = arith.constant 0 : index
    %c0_31 = arith.constant 0 : index
    %36 = vector.load %arg12[%c0_30, %c0_31] : memref<32x32xf32, #tpu.memory_space<vmem>>, vector<32x32xf32>
    %cst_32 = arith.constant dense<0.000000e+00> : vector<32x128xf32>
    %37 = tpu.matmul %36, %35, %cst_32 {dimension_numbers = #tpu.dot_dimension_numbers<[1], [0], [0], [1], [0, 0, 1, 1], [], []>} : vector<32x32xf32>, vector<32x128xf32>, vector<32x128xf32> -> vector<32x128xf32>
    %c0_33 = arith.constant 0 : index
    %c0_34 = arith.constant 0 : index
    %38 = vector.load %arg13[%c0_33, %c0_34] : memref<32x1xf32, #tpu.memory_space<vmem>>, vector<32x1xf32>
    %39 = vector.broadcast %38 : vector<32x1xf32> to vector<32x128xf32>
    %40 = arith.addf %37, %39 : vector<32x128xf32>
    %41 = arith.addf %40, %18 : vector<32x128xf32>
    %c0_35 = arith.constant 0 : index
    %c0_36 = arith.constant 0 : index
    %42 = vector.load %arg14[%c0_35, %c0_36] : memref<5x32xf32, #tpu.memory_space<vmem>>, vector<5x32xf32>
    %cst_37 = arith.constant dense<0.000000e+00> : vector<5x128xf32>
    %43 = tpu.matmul %42, %41, %cst_37 {dimension_numbers = #tpu.dot_dimension_numbers<[1], [0], [0], [1], [0, 0, 1, 1], [], []>} : vector<5x32xf32>, vector<32x128xf32>, vector<5x128xf32> -> vector<5x128xf32>
    %c0_38 = arith.constant 0 : index
    %c0_39 = arith.constant 0 : index
    %44 = vector.load %arg15[%c0_38, %c0_39] : memref<5x1xf32, #tpu.memory_space<vmem>>, vector<5x1xf32>
    %45 = vector.broadcast %44 : vector<5x1xf32> to vector<5x128xf32>
    %46 = arith.addf %43, %45 : vector<5x128xf32>
    %c0_40 = arith.constant 0 : index
    %c0_41 = arith.constant 0 : index
    %c0_42 = arith.constant 0 : index
    %47 = vector.load %arg16[%c0_40, %c0_41, %c0_42] : memref<1x1x128xf32, #tpu.memory_space<vmem>>, vector<1x1x128xf32>
    %48 = vector.shape_cast %47 : vector<1x1x128xf32> to vector<1x128xf32>
    %49 = vector.broadcast %48 : vector<1x128xf32> to vector<5x128xf32>
    %50 = arith.mulf %46, %49 : vector<5x128xf32>
    %c0_43 = arith.constant 0 : index
    %c0_44 = arith.constant 0 : index
    %c0_45 = arith.constant 0 : index
    %51 = vector.load %arg17[%c0_43, %c0_44, %c0_45] : memref<1x5x128xf32, #tpu.memory_space<vmem>>, vector<1x5x128xf32>
    %52 = vector.shape_cast %51 : vector<1x5x128xf32> to vector<5x128xf32>
    %53 = vector.shape_cast %50 : vector<5x128xf32> to vector<1x5x128xf32>
    tpu.vector_store %arg17[%c0_43, %c0_44, %c0_45], %53 {strides = array<i32>} : memref<1x5x128xf32, #tpu.memory_space<vmem>>, vector<1x5x128xf32>,
    return
  }
  func.func @transform_0(%arg0: i32, %arg1: i32) -> (i32, i32, i32) {
    %c0_i32 = arith.constant 0 : i32
    %c0_i32_0 = arith.constant 0 : i32
    return %arg0, %c0_i32, %arg1 : i32, i32, i32
  }
  func.func @transform_1(%arg0: i32, %arg1: i32) -> (i32, i32, i32) {
    %c0_i32 = arith.constant 0 : i32
    %c0_i32_0 = arith.constant 0 : i32
    return %arg0, %c0_i32, %arg1 : i32, i32, i32
  }
  func.func @transform_2(%arg0: i32, %arg1: i32) -> (i32, i32, i32) {
    %c0_i32 = arith.constant 0 : i32
    %c0_i32_0 = arith.constant 0 : i32
    %c0_i32_1 = arith.constant 0 : i32
    return %arg0, %c0_i32, %c0_i32_0 : i32, i32, i32
  }
  func.func @transform_3(%arg0: i32, %arg1: i32) -> (i32, i32, i32) {
    %c0_i32 = arith.constant 0 : i32
    %c0_i32_0 = arith.constant 0 : i32
    return %arg0, %c0_i32, %arg1 : i32, i32, i32
  }
  func.func @transform_4(%arg0: i32, %arg1: i32) -> (i32, i32, i32) {
    %c0_i32 = arith.constant 0 : i32
    %c0_i32_0 = arith.constant 0 : i32
    return %arg0, %c0_i32, %arg1 : i32, i32, i32
  }
  func.func @transform_5(%arg0: i32, %arg1: i32) -> (i32, i32) {
    %c0_i32 = arith.constant 0 : i32
    %c0_i32_0 = arith.constant 0 : i32
    %c0_i32_1 = arith.constant 0 : i32
    return %c0_i32, %c0_i32_0 : i32, i32
  }
  func.func @transform_6(%arg0: i32, %arg1: i32) -> (i32, i32) {
    %c0_i32 = arith.constant 0 : i32
    %c0_i32_0 = arith.constant 0 : i32
    %c0_i32_1 = arith.constant 0 : i32
    return %c0_i32, %c0_i32_0 : i32, i32
  }
  func.func @transform_7(%arg0: i32, %arg1: i32) -> (i32, i32) {
    %c0_i32 = arith.constant 0 : i32
    %c0_i32_0 = arith.constant 0 : i32
    %c0_i32_1 = arith.constant 0 : i32
    return %c0_i32, %c0_i32_0 : i32, i32
  }
  func.func @transform_8(%arg0: i32, %arg1: i32) -> (i32, i32) {
    %c0_i32 = arith.constant 0 : i32
    %c0_i32_0 = arith.constant 0 : i32
    %c0_i32_1 = arith.constant 0 : i32
    return %c0_i32, %c0_i32_0 : i32, i32
  }
  func.func @transform_9(%arg0: i32, %arg1: i32) -> (i32, i32) {
    %c0_i32 = arith.constant 0 : i32
    %c0_i32_0 = arith.constant 0 : i32
    %c0_i32_1 = arith.constant 0 : i32
    return %c0_i32, %c0_i32_0 : i32, i32
  }
  func.func @transform_10(%arg0: i32, %arg1: i32) -> (i32, i32) {
    %c0_i32 = arith.constant 0 : i32
    %c0_i32_0 = arith.constant 0 : i32
    %c0_i32_1 = arith.constant 0 : i32
    return %c0_i32, %c0_i32_0 : i32, i32
  }
  func.func @transform_11(%arg0: i32, %arg1: i32) -> (i32, i32) {
    %c0_i32 = arith.constant 0 : i32
    %c0_i32_0 = arith.constant 0 : i32
    %c0_i32_1 = arith.constant 0 : i32
    return %c0_i32, %c0_i32_0 : i32, i32
  }
  func.func @transform_12(%arg0: i32, %arg1: i32) -> (i32, i32) {
    %c0_i32 = arith.constant 0 : i32
    %c0_i32_0 = arith.constant 0 : i32
    %c0_i32_1 = arith.constant 0 : i32
    return %c0_i32, %c0_i32_0 : i32, i32
  }
  func.func @transform_13(%arg0: i32, %arg1: i32) -> (i32, i32) {
    %c0_i32 = arith.constant 0 : i32
    %c0_i32_0 = arith.constant 0 : i32
    %c0_i32_1 = arith.constant 0 : i32
    return %c0_i32, %c0_i32_0 : i32, i32
  }
  func.func @transform_14(%arg0: i32, %arg1: i32) -> (i32, i32, i32) {
    %c0_i32 = arith.constant 0 : i32
    %c0_i32_0 = arith.constant 0 : i32
    return %arg0, %c0_i32, %arg1 : i32, i32, i32
  }
  func.func @transform_15(%arg0: i32, %arg1: i32) -> (i32, i32, i32) {
    %c0_i32 = arith.constant 0 : i32
    %c0_i32_0 = arith.constant 0 : i32
    return %arg0, %c0_i32, %arg1 : i32, i32, i32
  }
}

</mosaic_0001>

<llo_original>
// kernel: neg.2
$region0: #{neg.2}
  #allocation0 [shape = 's32[1]{0}', space=sflag, size = 0x4, scoped, tag = 'scoped memory for neg.2']
  %s0 = inlined_call_operand.vmem [shape: f32[32,32], index: 0, kind: input, shape index: {}]
  %s1 = inlined_call_operand.vmem [shape: f32[32,32], index: 1, kind: output, shape index: {}]
  %v2 = vld [vmem:[%s0] sm:$0xff]
  %3 = xla_tuple %v2
  %4 = xla_tuple %3
  %v5 = vxor.u32 %v2, 2147483648
  %6 = xla_tuple %v5
  %7 = vst [vmem:[%s1] sm:$0xff] %v5
  %s8 = scalar_lea.vmem %s0, 8
  %v9 = vld [vmem:[%s8] sm:$0xff]
  %10 = xla_tuple %v9
  %11 = xla_tuple %10
  %v12 = vxor.u32 %v9, 2147483648
  %13 = xla_tuple %v12
  %s14 = scalar_lea.vmem %s1, 8
  %15 = vst [vmem:[%s14] sm:$0xff] %v12
  %s16 = scalar_lea.vmem %s0, 16
  %v17 = vld [vmem:[%s16] sm:$0xff]
  %18 = xla_tuple %v17
  %19 = xla_tuple %18
  %v20 = vxor.u32 %v17, 2147483648
  %21 = xla_tuple %v20
  %s22 = scalar_lea.vmem %s1, 16
  %23 = vst [vmem:[%s22] sm:$0xff] %v20
  %s24 = scalar_lea.vmem %s0, 24
  %v25 = vld [vmem:[%s24] sm:$0xff]
  %26 = xla_tuple %v25
  %27 = xla_tuple %26
  %v28 = vxor.u32 %v25, 2147483648
  %29 = xla_tuple %v28
  %s30 = scalar_lea.vmem %s1, 24
  %31 = vst [vmem:[%s30] sm:$0xff] %v28

// kernel: diffusionnet_forward.5
$region0: #{diffusionnet_forward.5}
  #allocation0 [shape = 'u32[]', space=smem, size = 0x4, offset = 0x4, fixed_abs, tag = 'smem constant byte address 0x4 - core index']
  #allocation1 [shape = 'u32[144,128]{1,0:T(1,128)}', space=vmem, size = 0x12000, scoped, tag = 'internal scratch']
  %s0 = inlined_call_operand.vmem [shape: f32[2,6,256], index: 0, kind: input, shape index: {}]
  %s1 = inlined_call_operand.vmem [shape: f32[32,6], index: 1, kind: input, shape index: {}]
  %s2 = inlined_call_operand.vmem [shape: f32[32,1], index: 2, kind: input, shape index: {}]
  %s3 = inlined_call_operand.vmem [shape: f32[2,32,256], index: 3, kind: output, shape index: {}]
  %s4 = sld [smem:[#allocation0]]
  $region79: #{diffusionnet_forward.5} parent=0
    _
  %s6 = ssub.s32 1, %s4
  %s7 = scalar_select 0, %s6, %s4
  $region1: #{diffusionnet_forward.5} parent=0
    #allocation2 [shape = 'u8[32768]{0}', space=vmem, size = 0x8000, scoped, tag = 'output window, operand 0']
    loop: start=0, step=1, limit=6
    $region2: #{diffusionnet_forward.5} parent=1 // loop_pre_header
      _
    $region3: #{diffusionnet_forward.5} parent=1 // loop_header
      %s9 = sphi 0, %s13
      %p10 = scmp.ge.s32.totalorder %s9, 6
      %s16 = sphi 0, %s28
      %s17 = sphi 0, %s24
      %s18 = sphi 0, %s16
      %s19 = sphi 0, %s17
      %s20 = sphi 0, %s18
      %s21 = sphi 0, %s19
      %s33 = sphi 0, %s35
      %s36 = sphi 0, %s33
      %s37 = sphi 0, %s36
      %s53 = sphi 0, %s37
      %s57 = sphi 0, %s57
      %s59 = sphi 0, %s57
      %s60 = sphi 0, %s59
      %s74 = sphi 0, %s60
      %s78 = sphi 0, %s78
      %s80 = sphi 0, %s78
      %s81 = sphi 0, %s80
      %s95 = sphi 0, %s81
      %s103 = sphi 0, %s105
      %s106 = sphi 0, %s103
      %s107 = sphi 0, %s106
      %s123 = sphi 0, %s107
    $region4: #{diffusionnet_forward.5} parent=1 // loop_header_branch
      %12 = sbr.rel (%p10) target = $region8
    $region5: #{diffusionnet_forward.5} parent=1 // loop_body
      %s14 = ssub.s32 %s9, 1
      %s15 = ssub.s32 %s9, 2
      %s22 = sadd.s32 1, %s17
      %p23 = scmp.ge.s32.totalorder %s22, 2
      %s24 = scalar_select %p23, 0, %s22
      %s25 = sadd.s32 1, %s16
      %s26 = scalar_select %p23, %s25, %s16
      %p27 = scmp.ge.s32.totalorder %s26, 2
      %s28 = scalar_select %p27, 0, %s26
      %s29 = ssub.s32 %s16, %s28
      %s30 = ssub.s32 %s17, %s24
      %s31 = sor.u32 %s29, %s30
      %p32 = scmp.eq.s32.totalorder %s31, 0
      %s34 = sadd.s32 %s33, 1
      %s35 = scalar_select %p32, %s33, %s34
      %p38 = pneg %p32
      %p39 = scmp.eq.s32.totalorder %s9, 3
      %p40 = por %p38, %p39
      %p41 = scmp.ne.s32.totalorder %s33, %s36
      %p42 = scmp.eq.s32.totalorder %s9, 0
      %p43 = por %p41, %p42
      %p44 = scmp.ne.s32.totalorder %s33, %s36
      %p45 = scmp.eq.s32.totalorder %s14, 3
      %p46 = por %p44, %p45
      %p47 = scmp.ne.s32.totalorder %s36, %s37
      %p48 = scmp.eq.s32.totalorder %s14, 0
      %p49 = por %p47, %p48
      %p50 = scmp.ne.s32.totalorder %s36, %s37
      %p51 = scmp.eq.s32.totalorder %s15, 3
      %p52 = por %p50, %p51
      %p54 = scmp.ne.s32.totalorder %s37, %s53
      %p55 = scmp.eq.s32.totalorder %s15, 0
      %p56 = por %p54, %p55
      %s58 = sadd.s32 %s57, 1
      %p61 = scmp.eq.s32.totalorder %s9, 3
      %p62 = scmp.ne.s32.totalorder %s57, %s59
      %p63 = scmp.eq.s32.totalorder %s9, 0
      %p64 = por %p62, %p63
      %p65 = scmp.ne.s32.totalorder %s57, %s59
      %p66 = scmp.eq.s32.totalorder %s14, 3
      %p67 = por %p65, %p66
      %p68 = scmp.ne.s32.totalorder %s59, %s60
      %p69 = scmp.eq.s32.totalorder %s14, 0
      %p70 = por %p68, %p69
      %p71 = scmp.ne.s32.totalorder %s59, %s60
      %p72 = scmp.eq.s32.totalorder %s15, 3
      %p73 = por %p71, %p72
      %p75 = scmp.ne.s32.totalorder %s60, %s74
      %p76 = scmp.eq.s32.totalorder %s15, 0
      %p77 = por %p75, %p76
      %s79 = sadd.s32 %s78, 1
      %p82 = scmp.eq.s32.totalorder %s9, 3
      %p83 = scmp.ne.s32.totalorder %s78, %s80
      %p84 = scmp.eq.s32.totalorder %s9, 0
      %p85 = por %p83, %p84
      %p86 = scmp.ne.s32.totalorder %s78, %s80
      %p87 = scmp.eq.s32.totalorder %s14, 3
      %p88 = por %p86, %p87
      %p89 = scmp.ne.s32.totalorder %s80, %s81
      %p90 = scmp.eq.s32.totalorder %s14, 0
      %p91 = por %p89, %p90
      %p92 = scmp.ne.s32.totalorder %s80, %s81
      %p93 = scmp.eq.s32.totalorder %s15, 3
      %p94 = por %p92, %p93
      %p96 = scmp.ne.s32.totalorder %s81, %s95
      %p97 = scmp.eq.s32.totalorder %s15, 0
      %p98 = por %p96, %p97
      %s99 = ssub.s32 %s16, %s28
      %s100 = ssub.s32 %s17, %s24
      %s101 = sor.u32 %s99, %s100
      %p102 = scmp.eq.s32.totalorder %s101, 0
      %s104 = sadd.s32 %s103, 1
      %s105 = scalar_select %p102, %s103, %s104
      %p108 = pneg %p102
      %p109 = scmp.eq.s32.totalorder %s9, 3
      %p110 = por %p108, %p109
      %p111 = scmp.ne.s32.totalorder %s103, %s106
      %p112 = scmp.eq.s32.totalorder %s9, 0
      %p113 = por %p111, %p112
      %p114 = scmp.ne.s32.totalorder %s103, %s106
      %p115 = scmp.eq.s32.totalorder %s14, 3
      %p116 = por %p114, %p115
      %p117 = scmp.ne.s32.totalorder %s106, %s107
      %p118 = scmp.eq.s32.totalorder %s14, 0
      %p119 = por %p117, %p118
      %p120 = scmp.ne.s32.totalorder %s106, %s107
      %p121 = scmp.eq.s32.totalorder %s15, 3
      %p122 = por %p120, %p121
      %p124 = scmp.ne.s32.totalorder %s107, %s123
      %p125 = scmp.eq.s32.totalorder %s15, 0
      %p126 = por %p124, %p125
      %p127 = scmp.le.s32.totalorder 1, %s9
      %p128 = scmp.lt.s32.totalorder %s9, 5
      %p129 = pnand %p127, %p128
      %p130 = pneg %p129
      // Predicated region
      $region9: #{diffusionnet_forward.5} parent=5 // pred_check
        _
      $region10: #{diffusionnet_forward.5} parent=5 // pred_check_branch
        %132 = sbr.rel (%p129) target = $region12
      $region11: #{diffusionnet_forward.5} parent=5 // pred_region
        %s133 = ssub.s32 %s9, 1
        // Predicated region
        $region13: #{diffusionnet_forward.5} parent=11 // pred_check
          %p134 = pneg %p70
        $region14: #{diffusionnet_forward.5} parent=11 // pred_check_branch
          %136 = sbr.rel (%p134) target = $region16
        $region15: #{diffusionnet_forward.5} parent=11 // pred_region
          _
        $region16: #{diffusionnet_forward.5} parent=11 // pred_fallthru
          _
        // Predicated region
        $region17: #{diffusionnet_forward.5} parent=11 // pred_check
          %p137 = pneg %p91
        $region18: #{diffusionnet_forward.5} parent=11 // pred_check_branch
          %139 = sbr.rel (%p137) target = $region20
        $region19: #{diffusionnet_forward.5} parent=11 // pred_region
          _
        $region20: #{diffusionnet_forward.5} parent=11 // pred_fallthru
          _
      $region12: #{diffusionnet_forward.5} parent=5 // pred_fallthru
        _
      %p140 = scmp.lt.s32.totalorder %s9, 4
      // Predicated region
      $region21: #{diffusionnet_forward.5} parent=5 // pred_check
        %p141 = pneg %p140
      $region22: #{diffusionnet_forward.5} parent=5 // pred_check_branch
        %143 = sbr.rel (%p141) target = $region24
      $region23: #{diffusionnet_forward.5} parent=5 // pred_region
        // Predicated region
        $region25: #{diffusionnet_forward.5} parent=23 // pred_check
          %p144 = pneg %p43
        $region26: #{diffusionnet_forward.5} parent=23 // pred_check_branch
          %146 = sbr.rel (%p144) target = $region28
        $region27: #{diffusionnet_forward.5} parent=23 // pred_region
          %p147 = scmp.lt.s32.totalorder %s16, 1
          %s148 = scalar_select %p147, %s16, 1
          %p149 = scmp.lt.s32.totalorder %s17, 1
          %s150 = scalar_select %p149, %s17, 1
          %s151 = smul.addr %s148, 2
          %s152 = sadd.s32 %s150, %s151
          %s153 = smul.addr %s152, 8
          %s154 = scalar_lea.vmem %s0, %s153
        $region28: #{diffusionnet_forward.5} parent=23 // pred_fallthru
          _
      $region24: #{diffusionnet_forward.5} parent=5 // pred_fallthru
        _
      %p155 = scmp.le.s32.totalorder 1, %s9
      %p156 = scmp.lt.s32.totalorder %s9, 5
      %p157 = pnand %p155, %p156
      %p158 = pneg %p157
      // Predicated region
      $region29: #{diffusionnet_forward.5} parent=5 // pred_check
        _
      $region30: #{diffusionnet_forward.5} parent=5 // pred_check_branch
        %160 = sbr.rel (%p157) target = $region32
      $region31: #{diffusionnet_forward.5} parent=5 // pred_region
        %s161 = ssub.s32 %s9, 1
        %p162 = scmp.lt.s32.totalorder %s18, 1
        %s163 = scalar_select %p162, %s18, 1
        %p164 = scmp.lt.s32.totalorder %s19, 1
        %s165 = scalar_select %p164, %s19, 1
        %s166 = smul.addr %s163, 2
        %s167 = sadd.s32 %s165, %s166
        %s168 = smul.addr %s167, 8
        %s169 = scalar_lea.vmem %s0, %s168
        %p170 = pneg %p49
        %p171 = pneg %p46
        %p172 = pneg %p70
        %p173 = pneg %p67
        %p174 = pneg %p91
        %p175 = pneg %p88
        %p176 = pneg %p119
        %p177 = pneg %p116
        %s178 = sand.u32 %s106, 1
        %s179 = sand.u32 %s106, 1
        %s180 = smul.addr %s179, 32
        %s181 = scalar_lea.vmem [#allocation2], %s180
        %p182 = scmp.lt.s32.totalorder %s18, 1
        %s183 = scalar_select %p182, %s18, 1
        %p184 = scmp.lt.s32.totalorder %s19, 1
        %s185 = scalar_select %p184, %s19, 1
        %s186 = smul.addr %s183, 2
        %s187 = sadd.s32 %s185, %s186
        %s188 = smul.addr %s187, 8
        %s189 = scalar_lea.vmem %s0, %s188
        %v190 = vld [vmem:[%s1] sm:$0xff]
        %v191 = vld [vmem:[%s1 + $0x8] sm:$0xff]
        %v192 = vld [vmem:[%s1 + $0x10] sm:$0xff]
        %v193 = vld [vmem:[%s1 + $0x18] sm:$0xff]
        %v194 = vld [vmem:[%s189] sm:$0x3f]
        %v195 = vld [vmem:[%s2] sm:$0xff]
        %v196 = vld [vmem:[%s2 + $0x8] sm:$0xff]
        %v197 = vld [vmem:[%s2 + $0x10] sm:$0xff]
        %v198 = vld [vmem:[%s2 + $0x18] sm:$0xff]
        %200 = vset.pattern.permute.xlu0 0
        %201 = vperm.xlu0 %200, %v195
        %v202 = vpop.permute.xlu0 %201
        %205 = vset.pattern.permute.xlu0 0
        %206 = vperm.xlu0 %205, %v196
        %v207 = vpop.permute.xlu0 %206
        %210 = vset.pattern.permute.xlu0 0
        %211 = vperm.xlu0 %210, %v197
        %v212 = vpop.permute.xlu0 %211
        %215 = vset.pattern.permute.xlu0 0
        %216 = vperm.xlu0 %215, %v198
        %v217 = vpop.permute.xlu0 %216
        %vm219 = vcmask 48128
        %v221 = vsel %vm219, %v190, 0
        %v224 = vsel %vm219, %v191, 0
        %v227 = vsel %vm219, %v192, 0
        %v230 = vsel %vm219, %v193, 0
        %vm232 = vcmask 1045504
        %v234 = vsel %vm232, %v194, 0
        %236 = vmatprep.subr.mxu0 0.0
        %237 = vmatpush1.msra.mxu0 %v234
        %238 = vmatprep.subr.mxu0 0.0
        %239 = vmatpush1.msra.mxu0 0.0
        %240 = vmatprep.subr.mxu0 0.0
        %241 = vmatpush1.msra.mxu0 0.0
        %242 = vmatprep.subr.mxu0 0.0
        %243 = vmatpush1.msra.mxu0 0.0
        %244 = vmatprep.subr.mxu0 0.0
        %245 = vmatpush1.msra.mxu0 0.0
        %246 = vmatprep.subr.mxu0 0.0
        %247 = vmatpush1.msra.mxu0 0.0
        %248 = vmatprep.subr.mxu0 0.0
        %249 = vmatpush1.msra.mxu0 0.0
        %250 = vmatprep.subr.mxu0 0.0
        %251 = vmatpush1.msra.mxu0 0.0
        %252 = vmatprep.subr.mxu0 0.0
        %253 = vmatpush1.msra.mxu0 0.0
        %254 = vmatprep.subr.mxu0 0.0
        %255 = vmatpush1.msra.mxu0 0.0
        %256 = vmatprep.subr.mxu0 0.0
        %257 = vmatpush1.msra.mxu0 0.0
        %258 = vmatprep.subr.mxu0 0.0
        %259 = vmatpush1.msra.mxu0 0.0
        %260 = vmatprep.subr.mxu0 0.0
        %261 = vmatpush1.msra.mxu0 0.0
        %262 = vmatprep.subr.mxu0 0.0
        %263 = vmatpush1.msra.mxu0 0.0
        %264 = vmatprep.subr.mxu0 0.0
        %265 = vmatpush1.msra.mxu0 0.0
        %266 = vmatprep.subr.mxu0 0.0
        %267 = vmatpush1.msra.mxu0 0.0
        %268 = vmatprep.subr.mxu0 0.0
        %269 = vmatpush1.msra.mxu0 0.0
        %270 = vmatprep.subr.mxu0 0.0
        %271 = vmatpush1.msra.mxu0 0.0
        %272 = vmatprep.subr.mxu0 0.0
        %273 = vmatpush1.msra.mxu0 0.0
        %274 = vmatprep.subr.mxu0 0.0
        %275 = vmatpush1.msra.mxu0 0.0
        %276 = vmatprep.subr.mxu0 0.0
        %277 = vmatpush1.msra.mxu0 0.0
        %278 = vmatprep.subr.mxu0 0.0
        %279 = vmatpush1.msra.mxu0 0.0
        %280 = vmatprep.subr.mxu0 0.0
        %281 = vmatpush1.msra.mxu0 0.0
        %282 = vmatprep.subr.mxu0 0.0
        %283 = vmatpush1.msra.mxu0 0.0
        %284 = vmatprep.subr.mxu0 0.0
        %285 = vmatpush1.msra.mxu0 0.0
        %286 = vmatprep.subr.mxu0 0.0
        %287 = vmatpush1.msra.mxu0 0.0
        %288 = vmatprep.subr.mxu0 0.0
        %289 = vmatpush1.msra.mxu0 0.0
        %290 = vmatprep.subr.mxu0 0.0
        %291 = vmatpush1.msra.mxu0 0.0
        %292 = vmatprep.subr.mxu0 0.0
        %293 = vmatpush1.msra.mxu0 0.0
        %294 = vmatprep.subr.mxu0 0.0
        %295 = vmatpush1.msra.mxu0 0.0
        %296 = vmatprep.subr.mxu0 0.0
        %297 = vmatpush1.msra.mxu0 0.0
        %298 = vmatprep.subr.mxu0 0.0
        %299 = vmatpush1.msra.mxu0 0.0
        %300 = vmatprep.mubr.f32.mxu0 0.0
        %301 = vmatmul.mubr.f32.gmra.mrb[0].mxu0 %v221
        %v302 = vpop.f32.mrb[0].mxu0
        %v303 = vadd.f32 %v202, %v302
        %v304 = vpop.f32.mrb[0].mxu0
        %305 = vmatprep.mubr.f32.mxu0 0.0
        %306 = vmatmul.mubr.f32.gmra.mrb[0].mxu0 %v224
        %v307 = vpop.f32.mrb[0].mxu0
        %v308 = vadd.f32 %v207, %v307
        %v309 = vpop.f32.mrb[0].mxu0
        %310 = vmatprep.mubr.f32.mxu0 0.0
        %311 = vmatmul.mubr.f32.gmra.mrb[0].mxu0 %v227
        %v312 = vpop.f32.mrb[0].mxu0
        %v313 = vadd.f32 %v212, %v312
        %v314 = vpop.f32.mrb[0].mxu0
        %315 = vmatprep.mubr.f32.mxu0 0.0
        %316 = vmatmul.mubr.f32.gmra.mrb[0].mxu0 %v230
        %v317 = vpop.f32.mrb[0].mxu0
        %v318 = vadd.f32 %v217, %v317
        %v319 = vpop.f32.mrb[0].mxu0
        %320 = vdwg.mxu0
        %321 = vst [vmem:[%s181] sm:$0xff] %v303
        %322 = vst [vmem:[%s181 + $0x8] sm:$0xff] %v308
        %323 = vst [vmem:[%s181 + $0x10] sm:$0xff] %v313
        %324 = vst [vmem:[%s181 + $0x18] sm:$0xff] %v318
        %s325 = sand.u32 %s106, 1
        %s326 = sand.u32 %s106, 1
        %s327 = smul.addr %s326, 32
        %s328 = scalar_lea.vmem [#allocation2], %s327
        // Predicated region
        $region33: #{diffusionnet_forward.5} parent=31 // pred_check
          %p329 = pneg %p116
        $region34: #{diffusionnet_forward.5} parent=31 // pred_check_branch
          %331 = sbr.rel (%p329) target = $region36
        $region35: #{diffusionnet_forward.5} parent=31 // pred_region
          %s332 = smul.addr %s18, 8
          %s333 = sadd.s32 %s19, %s332
          %s334 = smul.addr %s333, 8
          %s335 = scalar_lea.vmem %s3, %s334
          // Predicated region
          $region37: #{diffusionnet_forward.5} parent=35 // pred_check
            _
          $region38: #{diffusionnet_forward.5} parent=35 // pred_check_branch
            %337 = sbr.rel (0) target = $region40
          $region39: #{diffusionnet_forward.5} parent=35 // pred_region
            // Predicated region
            $region41: #{diffusionnet_forward.5} parent=39 // pred_check
              _
            $region42: #{diffusionnet_forward.5} parent=39 // pred_check_branch
              %339 = sbr.rel (0) target = $region44
            $region43: #{diffusionnet_forward.5} parent=39 // pred_region
              // Predicated region
              $region56: #{diffusionnet_forward.5} parent=43 // pred_check
                _
              $region57: #{diffusionnet_forward.5} parent=43 // pred_check_branch
                %360 = sbr.rel (0) target = $region59
              $region58: #{diffusionnet_forward.5} parent=43 // pred_region
                loop: start=0, step=1, limit=1
                $region60: #{diffusionnet_forward.5} parent=58 // loop_pre_header
                  _
                $region61: #{diffusionnet_forward.5} parent=58 // loop_header
                  %s362 = sphi 0, %s366
                  %p363 = scmp.ge.s32.totalorder %s362, 1
                  %s367 = sphi %s328, %s328
                  %s368 = sphi %s335, %s335
                $region62: #{diffusionnet_forward.5} parent=58 // loop_header_branch
                  %365 = sbr.rel (%p363) target = $region66
                $region63: #{diffusionnet_forward.5} parent=58 // loop_body
                  %v369 = vld [vmem:[%s367] sm:$0xff]
                  %370 = vst [vmem:[%s368] sm:$0xff] %v369
                  %v371 = vld [vmem:[%s367 + $0x8] sm:$0xff]
                  %372 = vst [vmem:[%s368 + $0x10] sm:$0xff] %v371
                  %v373 = vld [vmem:[%s367 + $0x10] sm:$0xff]
                  %374 = vst [vmem:[%s368 + $0x20] sm:$0xff] %v373
                  %v375 = vld [vmem:[%s367 + $0x18] sm:$0xff]
                  %376 = vst [vmem:[%s368 + $0x30] sm:$0xff] %v375
                $region64: #{diffusionnet_forward.5} parent=58 // loop_footer
                  %s366 = sadd.s32 1, %s362
                $region65: #{diffusionnet_forward.5} parent=58 // loop_footer_branch
                  %361 = sbr.rel target = $region61
                $region66: #{diffusionnet_forward.5} parent=58 // loop_exit
                  _
              $region59: #{diffusionnet_forward.5} parent=43 // pred_fallthru
                _
              // Predicated region
              $region67: #{diffusionnet_forward.5} parent=43 // pred_check
                _
              $region68: #{diffusionnet_forward.5} parent=43 // pred_check_branch
                %378 = sbr.rel target = $region70
              $region69: #{diffusionnet_forward.5} parent=43 // pred_region
                _
              $region70: #{diffusionnet_forward.5} parent=43 // pred_fallthru
                _
            $region44: #{diffusionnet_forward.5} parent=39 // pred_fallthru
              _
            // Predicated region
            $region45: #{diffusionnet_forward.5} parent=39 // pred_check
              _
            $region46: #{diffusionnet_forward.5} parent=39 // pred_check_branch
              %341 = sbr.rel target = $region48
            $region47: #{diffusionnet_forward.5} parent=39 // pred_region
              loop: start=0, step=1, limit=1
              $region49: #{diffusionnet_forward.5} parent=47 // loop_pre_header
                _
              $region50: #{diffusionnet_forward.5} parent=47 // loop_header
                %s344 = sphi 0, %s348
                %p345 = scmp.ge.s32.totalorder %s344, 1
                %s349 = sphi %s328, %s328
                %s350 = sphi %s335, %s335
              $region51: #{diffusionnet_forward.5} parent=47 // loop_header_branch
                %347 = sbr.rel (%p345) target = $region55
              $region52: #{diffusionnet_forward.5} parent=47 // loop_body
                %v351 = vld [vmem:[%s349] sm:$0xff]
                %352 = vst [vmem:[%s350] sm:$0xff] %v351
                %v353 = vld [vmem:[%s349 + $0x8] sm:$0xff]
                %354 = vst [vmem:[%s350 + $0x10] sm:$0xff] %v353
                %v355 = vld [vmem:[%s349 + $0x10] sm:$0xff]
                %356 = vst [vmem:[%s350 + $0x20] sm:$0xff] %v355
                %v357 = vld [vmem:[%s349 + $0x18] sm:$0xff]
                %358 = vst [vmem:[%s350 + $0x30] sm:$0xff] %v357
              $region53: #{diffusionnet_forward.5} parent=47 // loop_footer
                %s348 = sadd.s32 1, %s344
              $region54: #{diffusionnet_forward.5} parent=47 // loop_footer_branch
                %343 = sbr.rel target = $region50
              $region55: #{diffusionnet_forward.5} parent=47 // loop_exit
                _
            $region48: #{diffusionnet_forward.5} parent=39 // pred_fallthru
              _
          $region40: #{diffusionnet_forward.5} parent=35 // pred_fallthru
            _
          %379 = vnop
        $region36: #{diffusionnet_forward.5} parent=31 // pred_fallthru
          _
      $region32: #{diffusionnet_forward.5} parent=5 // pred_fallthru
        _
      %p380 = scmp.le.s32.totalorder 2, %s9
      // Predicated region
      $region71: #{diffusionnet_forward.5} parent=5 // pred_check
        %p381 = pneg %p380
      $region72: #{diffusionnet_forward.5} parent=5 // pred_check_branch
        %383 = sbr.rel (%p381) target = $region74
      $region73: #{diffusionnet_forward.5} parent=5 // pred_region
        %s384 = ssub.s32 %s9, 2
        // Predicated region
        $region75: #{diffusionnet_forward.5} parent=73 // pred_check
          %p385 = pneg %p122
        $region76: #{diffusionnet_forward.5} parent=73 // pred_check_branch
          %387 = sbr.rel (%p385) target = $region78
        $region77: #{diffusionnet_forward.5} parent=73 // pred_region
          %s388 = sand.u32 %s107, 1
          %s389 = sand.u32 %s107, 1
          %s390 = smul.addr %s389, 32
          %s391 = scalar_lea.vmem [#allocation2], %s390
        $region78: #{diffusionnet_forward.5} parent=73 // pred_fallthru
          _
      $region74: #{diffusionnet_forward.5} parent=5 // pred_fallthru
        _
    $region6: #{diffusionnet_forward.5} parent=1 // loop_footer
      %s13 = sadd.s32 1, %s9
    $region7: #{diffusionnet_forward.5} parent=1 // loop_footer_branch
      %8 = sbr.rel target = $region3
    $region8: #{diffusionnet_forward.5} parent=1 // loop_exit
      _

// kernel: diffusionnet_forward.6
$region0: #{diffusionnet_forward.6}
  #allocation0 [shape = 'u32[]', space=smem, size = 0x4, offset = 0x4, fixed_abs, tag = 'smem constant byte address 0x4 - core index']
  #allocation1 [shape = 'u32[144,128]{1,0:T(1,128)}', space=vmem, size = 0x12000, scoped, tag = 'internal scratch']
  %s0 = inlined_call_operand.vmem [shape: f32[2,32,256], index: 0, kind: input, shape index: {}]
  %s1 = inlined_call_operand.vmem [shape: f32[2,1,256], index: 1, kind: input, shape index: {}]
  %s2 = inlined_call_operand.vmem [shape: f32[2,1,32], index: 2, kind: input, shape index: {}]
  %s3 = inlined_call_operand.vmem [shape: f32[2,256,32], index: 3, kind: input, shape index: {}]
  %s4 = inlined_call_operand.vmem [shape: f32[2,32,256], index: 4, kind: input, shape index: {}]
  %s5 = inlined_call_operand.vmem [shape: f32[32,1], index: 5, kind: input, shape index: {}]
  %s6 = inlined_call_operand.vmem [shape: f32[2,32,256], index: 6, kind: output, shape index: {0}]
  %s7 = inlined_call_operand.vmem [shape: bf16[2,32,256], index: 7, kind: output, shape index: {1}]
  %8 = xla_tuple %s6, %s7
  %s9 = sld [smem:[#allocation0]]
  $region65: #{diffusionnet_forward.6} parent=0
    _
  %s11 = ssub.s32 1, %s9
  %s12 = scalar_select 0, %s11, %s9
  loop: start=0, step=1, limit=4
  $region2: #{diffusionnet_forward.6} parent=0 // loop_pre_header
    _
  $region3: #{diffusionnet_forward.6} parent=0 // loop_header
    %s14 = sphi 0, %s18
    %p15 = scmp.ge.s32.totalorder %s14, 4
    %s24 = sphi 0, %s26
    %s27 = sphi 0, %s24
    %s28 = sphi 0, %s27
    %s44 = sphi 0, %s28
    %s50 = sphi 0, %s52
    %s53 = sphi 0, %s50
    %s54 = sphi 0, %s53
    %s70 = sphi 0, %s54
    %s76 = sphi 0, %s78
    %s79 = sphi 0, %s76
    %s80 = sphi 0, %s79
    %s96 = sphi 0, %s80
    %s102 = sphi 0, %s104
    %s105 = sphi 0, %s102
    %s106 = sphi 0, %s105
    %s122 = sphi 0, %s106
    %s128 = sphi 0, %s130
    %s131 = sphi 0, %s128
    %s132 = sphi 0, %s131
    %s148 = sphi 0, %s132
    %s152 = sphi 0, %s152
    %s154 = sphi 0, %s152
    %s155 = sphi 0, %s154
    %s169 = sphi 0, %s155
    %s175 = sphi 0, %s177
    %s178 = sphi 0, %s175
    %s179 = sphi 0, %s178
    %s195 = sphi 0, %s179
    %s201 = sphi 0, %s203
    %s204 = sphi 0, %s201
    %s205 = sphi 0, %s204
    %s221 = sphi 0, %s205
  $region4: #{diffusionnet_forward.6} parent=0 // loop_header_branch
    %17 = sbr.rel (%p15) target = $region8
  $region5: #{diffusionnet_forward.6} parent=0 // loop_body
    %s19 = ssub.s32 %s14, 1
    %s20 = ssub.s32 %s14, 2
    %s21 = sadd.s32 %s14, 1
    %s22 = ssub.s32 %s14, %s21
    %p23 = scmp.eq.s32.totalorder %s22, 0
    %s25 = sadd.s32 %s24, 1
    %s26 = scalar_select %p23, %s24, %s25
    %p29 = pneg %p23
    %p30 = scmp.eq.s32.totalorder %s14, 1
    %p31 = por %p29, %p30
    %p32 = scmp.ne.s32.totalorder %s24, %s27
    %p33 = scmp.eq.s32.totalorder %s14, 0
    %p34 = por %p32, %p33
    %p35 = scmp.ne.s32.totalorder %s24, %s27
    %p36 = scmp.eq.s32.totalorder %s19, 1
    %p37 = por %p35, %p36
    %p38 = scmp.ne.s32.totalorder %s27, %s28
    %p39 = scmp.eq.s32.totalorder %s19, 0
    %p40 = por %p38, %p39
    %p41 = scmp.ne.s32.totalorder %s27, %s28
    %p42 = scmp.eq.s32.totalorder %s20, 1
    %p43 = por %p41, %p42
    %p45 = scmp.ne.s32.totalorder %s28, %s44
    %p46 = scmp.eq.s32.totalorder %s20, 0
    %p47 = por %p45, %p46
    %s48 = ssub.s32 %s14, %s21
    %p49 = scmp.eq.s32.totalorder %s48, 0
    %s51 = sadd.s32 %s50, 1
    %s52 = scalar_select %p49, %s50, %s51
    %p55 = pneg %p49
    %p56 = scmp.eq.s32.totalorder %s14, 1
    %p57 = por %p55, %p56
    %p58 = scmp.ne.s32.totalorder %s50, %s53
    %p59 = scmp.eq.s32.totalorder %s14, 0
    %p60 = por %p58, %p59
    %p61 = scmp.ne.s32.totalorder %s50, %s53
    %p62 = scmp.eq.s32.totalorder %s19, 1
    %p63 = por %p61, %p62
    %p64 = scmp.ne.s32.totalorder %s53, %s54
    %p65 = scmp.eq.s32.totalorder %s19, 0
    %p66 = por %p64, %p65
    %p67 = scmp.ne.s32.totalorder %s53, %s54
    %p68 = scmp.eq.s32.totalorder %s20, 1
    %p69 = por %p67, %p68
    %p71 = scmp.ne.s32.totalorder %s54, %s70
    %p72 = scmp.eq.s32.totalorder %s20, 0
    %p73 = por %p71, %p72
    %s74 = ssub.s32 %s14, %s21
    %p75 = scmp.eq.s32.totalorder %s74, 0
    %s77 = sadd.s32 %s76, 1
    %s78 = scalar_select %p75, %s76, %s77
    %p81 = pneg %p75
    %p82 = scmp.eq.s32.totalorder %s14, 1
    %p83 = por %p81, %p82
    %p84 = scmp.ne.s32.totalorder %s76, %s79
    %p85 = scmp.eq.s32.totalorder %s14, 0
    %p86 = por %p84, %p85
    %p87 = scmp.ne.s32.totalorder %s76, %s79
    %p88 = scmp.eq.s32.totalorder %s19, 1
    %p89 = por %p87, %p88
    %p90 = scmp.ne.s32.totalorder %s79, %s80
    %p91 = scmp.eq.s32.totalorder %s19, 0
    %p92 = por %p90, %p91
    %p93 = scmp.ne.s32.totalorder %s79, %s80
    %p94 = scmp.eq.s32.totalorder %s20, 1
    %p95 = por %p93, %p94
    %p97 = scmp.ne.s32.totalorder %s80, %s96
    %p98 = scmp.eq.s32.totalorder %s20, 0
    %p99 = por %p97, %p98
    %s100 = ssub.s32 %s14, %s21
    %p101 = scmp.eq.s32.totalorder %s100, 0
    %s103 = sadd.s32 %s102, 1
    %s104 = scalar_select %p101, %s102, %s103
    %p107 = pneg %p101
    %p108 = scmp.eq.s32.totalorder %s14, 1
    %p109 = por %p107, %p108
    %p110 = scmp.ne.s32.totalorder %s102, %s105
    %p111 = scmp.eq.s32.totalorder %s14, 0
    %p112 = por %p110, %p111
    %p113 = scmp.ne.s32.totalorder %s102, %s105
    %p114 = scmp.eq.s32.totalorder %s19, 1
    %p115 = por %p113, %p114
    %p116 = scmp.ne.s32.totalorder %s105, %s106
    %p117 = scmp.eq.s32.totalorder %s19, 0
    %p118 = por %p116, %p117
    %p119 = scmp.ne.s32.totalorder %s105, %s106
    %p120 = scmp.eq.s32.totalorder %s20, 1
    %p121 = por %p119, %p120
    %p123 = scmp.ne.s32.totalorder %s106, %s122
    %p124 = scmp.eq.s32.totalorder %s20, 0
    %p125 = por %p123, %p124
    %s126 = ssub.s32 %s14, %s21
    %p127 = scmp.eq.s32.totalorder %s126, 0
    %s129 = sadd.s32 %s128, 1
    %s130 = scalar_select %p127, %s128, %s129
    %p133 = pneg %p127
    %p134 = scmp.eq.s32.totalorder %s14, 1
    %p135 = por %p133, %p134
    %p136 = scmp.ne.s32.totalorder %s128, %s131
    %p137 = scmp.eq.s32.totalorder %s14, 0
    %p138 = por %p136, %p137
    %p139 = scmp.ne.s32.totalorder %s128, %s131
    %p140 = scmp.eq.s32.totalorder %s19, 1
    %p141 = por %p139, %p140
    %p142 = scmp.ne.s32.totalorder %s131, %s132
    %p143 = scmp.eq.s32.totalorder %s19, 0
    %p144 = por %p142, %p143
    %p145 = scmp.ne.s32.totalorder %s131, %s132
    %p146 = scmp.eq.s32.totalorder %s20, 1
    %p147 = por %p145, %p146
    %p149 = scmp.ne.s32.totalorder %s132, %s148
    %p150 = scmp.eq.s32.totalorder %s20, 0
    %p151 = por %p149, %p150
    %s153 = sadd.s32 %s152, 1
    %p156 = scmp.eq.s32.totalorder %s14, 1
    %p157 = scmp.ne.s32.totalorder %s152, %s154
    %p158 = scmp.eq.s32.totalorder %s14, 0
    %p159 = por %p157, %p158
    %p160 = scmp.ne.s32.totalorder %s152, %s154
    %p161 = scmp.eq.s32.totalorder %s19, 1
    %p162 = por %p160, %p161
    %p163 = scmp.ne.s32.totalorder %s154, %s155
    %p164 = scmp.eq.s32.totalorder %s19, 0
    %p165 = por %p163, %p164
    %p166 = scmp.ne.s32.totalorder %s154, %s155
    %p167 = scmp.eq.s32.totalorder %s20, 1
    %p168 = por %p166, %p167
    %p170 = scmp.ne.s32.totalorder %s155, %s169
    %p171 = scmp.eq.s32.totalorder %s20, 0
    %p172 = por %p170, %p171
    %s173 = ssub.s32 %s14, %s21
    %p174 = scmp.eq.s32.totalorder %s173, 0
    %s176 = sadd.s32 %s175, 1
    %s177 = scalar_select %p174, %s175, %s176
    %p180 = pneg %p174
    %p181 = scmp.eq.s32.totalorder %s14, 1
    %p182 = por %p180, %p181
    %p183 = scmp.ne.s32.totalorder %s175, %s178
    %p184 = scmp.eq.s32.totalorder %s14, 0
    %p185 = por %p183, %p184
    %p186 = scmp.ne.s32.totalorder %s175, %s178
    %p187 = scmp.eq.s32.totalorder %s19, 1
    %p188 = por %p186, %p187
    %p189 = scmp.ne.s32.totalorder %s178, %s179
    %p190 = scmp.eq.s32.totalorder %s19, 0
    %p191 = por %p189, %p190
    %p192 = scmp.ne.s32.totalorder %s178, %s179
    %p193 = scmp.eq.s32.totalorder %s20, 1
    %p194 = por %p192, %p193
    %p196 = scmp.ne.s32.totalorder %s179, %s195
    %p197 = scmp.eq.s32.totalorder %s20, 0
    %p198 = por %p196, %p197
    %s199 = ssub.s32 %s14, %s21
    %p200 = scmp.eq.s32.totalorder %s199, 0
    %s202 = sadd.s32 %s201, 1
    %s203 = scalar_select %p200, %s201, %s202
    %p206 = pneg %p200
    %p207 = scmp.eq.s32.totalorder %s14, 1
    %p208 = por %p206, %p207
    %p209 = scmp.ne.s32.totalorder %s201, %s204
    %p210 = scmp.eq.s32.totalorder %s14, 0
    %p211 = por %p209, %p210
    %p212 = scmp.ne.s32.totalorder %s201, %s204
    %p213 = scmp.eq.s32.totalorder %s19, 1
    %p214 = por %p212, %p213
    %p215 = scmp.ne.s32.totalorder %s204, %s205
    %p216 = scmp.eq.s32.totalorder %s19, 0
    %p217 = por %p215, %p216
    %p218 = scmp.ne.s32.totalorder %s204, %s205
    %p219 = scmp.eq.s32.totalorder %s20, 1
    %p220 = por %p218, %p219
    %p222 = scmp.ne.s32.totalorder %s205, %s221
    %p223 = scmp.eq.s32.totalorder %s20, 0
    %p224 = por %p222, %p223
    %p225 = scmp.le.s32.totalorder 1, %s14
    %p226 = scmp.lt.s32.totalorder %s14, 3
    %p227 = pnand %p225, %p226
    %p228 = pneg %p227
    // Predicated region
    $region9: #{diffusionnet_forward.6} parent=5 // pred_check
      _
    $region10: #{diffusionnet_forward.6} parent=5 // pred_check_branch
      %230 = sbr.rel (%p227) target = $region12
    $region11: #{diffusionnet_forward.6} parent=5 // pred_region
      %s231 = ssub.s32 %s14, 1
      // Predicated region
      $region13: #{diffusionnet_forward.6} parent=11 // pred_check
        %p232 = pneg %p165
      $region14: #{diffusionnet_forward.6} parent=11 // pred_check_branch
        %234 = sbr.rel (%p232) target = $region16
      $region15: #{diffusionnet_forward.6} parent=11 // pred_region
        _
      $region16: #{diffusionnet_forward.6} parent=11 // pred_fallthru
        _
    $region12: #{diffusionnet_forward.6} parent=5 // pred_fallthru
      _
    %p235 = scmp.lt.s32.totalorder %s14, 2
    // Predicated region
    $region17: #{diffusionnet_forward.6} parent=5 // pred_check
      %p236 = pneg %p235
    $region18: #{diffusionnet_forward.6} parent=5 // pred_check_branch
      %238 = sbr.rel (%p236) target = $region20
    $region19: #{diffusionnet_forward.6} parent=5 // pred_region
      // Predicated region
      $region21: #{diffusionnet_forward.6} parent=19 // pred_check
        %p239 = pneg %p34
      $region22: #{diffusionnet_forward.6} parent=19 // pred_check_branch
        %241 = sbr.rel (%p239) target = $region24
      $region23: #{diffusionnet_forward.6} parent=19 // pred_region
        %p242 = scmp.lt.s32.totalorder %s14, 1
        %s243 = scalar_select %p242, %s14, 1
        %s244 = smul.addr %s243, 8
        %s245 = smul.addr %s244, 8
        %s246 = scalar_lea.vmem %s0, %s245
      $region24: #{diffusionnet_forward.6} parent=19 // pred_fallthru
        _
      // Predicated region
      $region25: #{diffusionnet_forward.6} parent=19 // pred_check
        %p247 = pneg %p60
      $region26: #{diffusionnet_forward.6} parent=19 // pred_check_branch
        %249 = sbr.rel (%p247) target = $region28
      $region27: #{diffusionnet_forward.6} parent=19 // pred_region
        %p250 = scmp.lt.s32.totalorder %s14, 1
        %s251 = scalar_select %p250, %s14, 1
        %s252 = smul.addr %s251, 2
        %s253 = scalar_lea.vmem %s1, %s252
      $region28: #{diffusionnet_forward.6} parent=19 // pred_fallthru
        _
      // Predicated region
      $region29: #{diffusionnet_forward.6} parent=19 // pred_check
        %p254 = pneg %p86
      $region30: #{diffusionnet_forward.6} parent=19 // pred_check_branch
        %256 = sbr.rel (%p254) target = $region32
      $region31: #{diffusionnet_forward.6} parent=19 // pred_region
        %p257 = scmp.lt.s32.totalorder %s14, 1
        %s258 = scalar_select %p257, %s14, 1
        %s259 = scalar_lea.vmem %s2, %s258
      $region32: #{diffusionnet_forward.6} parent=19 // pred_fallthru
        _
      // Predicated region
      $region33: #{diffusionnet_forward.6} parent=19 // pred_check
        %p260 = pneg %p112
      $region34: #{diffusionnet_forward.6} parent=19 // pred_check_branch
        %262 = sbr.rel (%p260) target = $region36
      $region35: #{diffusionnet_forward.6} parent=19 // pred_region
        %p263 = scmp.lt.s32.totalorder %s14, 1
        %s264 = scalar_select %p263, %s14, 1
        %s265 = smul.addr %s264, 32
        %s266 = smul.addr %s265, 8
        %s267 = scalar_lea.vmem %s3, %s266
      $region36: #{diffusionnet_forward.6} parent=19 // pred_fallthru
        _
      // Predicated region
      $region37: #{diffusionnet_forward.6} parent=19 // pred_check
        %p268 = pneg %p138
      $region38: #{diffusionnet_forward.6} parent=19 // pred_check_branch
        %270 = sbr.rel (%p268) target = $region40
      $region39: #{diffusionnet_forward.6} parent=19 // pred_region
        %p271 = scmp.lt.s32.totalorder %s14, 1
        %s272 = scalar_select %p271, %s14, 1
        %s273 = smul.addr %s272, 8
        %s274 = smul.addr %s273, 8
        %s275 = scalar_lea.vmem %s4, %s274
      $region40: #{diffusionnet_forward.6} parent=19 // pred_fallthru
        _
    $region20: #{diffusionnet_forward.6} parent=5 // pred_fallthru
      _
    %p276 = scmp.le.s32.totalorder 1, %s14
    %p277 = scmp.lt.s32.totalorder %s14, 3
    %p278 = pnand %p276, %p277
    %p279 = pneg %p278
    // Predicated region
    $region41: #{diffusionnet_forward.6} parent=5 // pred_check
      _
    $region42: #{diffusionnet_forward.6} parent=5 // pred_check_branch
      %281 = sbr.rel (%p278) target = $region44
    $region43: #{diffusionnet_forward.6} parent=5 // pred_region
      %s282 = ssub.s32 %s14, 1
      %p283 = scmp.lt.s32.totalorder %s19, 1
      %s284 = scalar_select %p283, %s19, 1
      %s285 = smul.addr %s284, 8
      %s286 = smul.addr %s285, 8
      %s287 = scalar_lea.vmem %s0, %s286
      %p288 = pneg %p40
      %p289 = pneg %p37
      %p290 = scmp.lt.s32.totalorder %s19, 1
      %s291 = scalar_select %p290, %s19, 1
      %s292 = smul.addr %s291, 2
      %s293 = scalar_lea.vmem %s1, %s292
      %p294 = pneg %p66
      %p295 = pneg %p63
      %p296 = scmp.lt.s32.totalorder %s19, 1
      %s297 = scalar_select %p296, %s19, 1
      %s298 = scalar_lea.vmem %s2, %s297
      %p299 = pneg %p92
      %p300 = pneg %p89
      %p301 = scmp.lt.s32.totalorder %s19, 1
      %s302 = scalar_select %p301, %s19, 1
      %s303 = smul.addr %s302, 32
      %s304 = smul.addr %s303, 8
      %s305 = scalar_lea.vmem %s3, %s304
      %p306 = pneg %p118
      %p307 = pneg %p115
      %p308 = scmp.lt.s32.totalorder %s19, 1
      %s309 = scalar_select %p308, %s19, 1
      %s310 = smul.addr %s309, 8
      %s311 = smul.addr %s310, 8
      %s312 = scalar_lea.vmem %s4, %s311
      %p313 = pneg %p144
      %p314 = pneg %p141
      %p315 = pneg %p165
      %p316 = pneg %p162
      %p317 = pneg %p191
      %p318 = pneg %p188
      %p319 = scmp.lt.s32.totalorder %s19, 1
      %s320 = scalar_select %p319, %s19, 1
      %s321 = smul.addr %s320, 8
      %s322 = smul.addr %s321, 8
      %s323 = scalar_lea.vmem %s6, %s322
      %p324 = pneg %p217
      %p325 = pneg %p214
      %p326 = scmp.lt.s32.totalorder %s19, 1
      %s327 = scalar_select %p326, %s19, 1
      %s328 = smul.addr %s327, 8
      %s329 = smul.addr %s328, 4
      %s330 = scalar_lea.vmem %s7, %s329
      %p331 = scmp.lt.s32.totalorder %s19, 1
      %s332 = scalar_select %p331, %s19, 1
      %s333 = smul.addr %s332, 8
      %s334 = smul.addr %s333, 8
      %s335 = scalar_lea.vmem %s0, %s334
      %p336 = scmp.lt.s32.totalorder %s19, 1
      %s337 = scalar_select %p336, %s19, 1
      %s338 = smul.addr %s337, 2
      %s339 = scalar_lea.vmem %s1, %s338
      %p340 = scmp.lt.s32.totalorder %s19, 1
      %s341 = scalar_select %p340, %s19, 1
      %s342 = scalar_lea.vmem %s2, %s341
      %p343 = scmp.lt.s32.totalorder %s19, 1
      %s344 = scalar_select %p343, %s19, 1
      %s345 = smul.addr %s344, 32
      %s346 = smul.addr %s345, 8
      %s347 = scalar_lea.vmem %s3, %s346
      %p348 = scmp.lt.s32.totalorder %s19, 1
      %s349 = scalar_select %p348, %s19, 1
      %s350 = smul.addr %s349, 8
      %s351 = smul.addr %s350, 8
      %s352 = scalar_lea.vmem %s4, %s351
      %p353 = scmp.lt.s32.totalorder %s19, 1
      %s354 = scalar_select %p353, %s19, 1
      %s355 = smul.addr %s354, 8
      %s356 = smul.addr %s355, 8
      %s357 = scalar_lea.vmem %s6, %s356
      %p358 = scmp.lt.s32.totalorder %s19, 1
      %s359 = scalar_select %p358, %s19, 1
      %s360 = smul.addr %s359, 8
      %s361 = smul.addr %s360, 4
      %s362 = scalar_lea.vmem %s7, %s361
      %v363 = vld [vmem:[%s335] sm:$0xff]
      %v364 = vld [vmem:[%s335 + $0x8] sm:$0xff]
      %v365 = vld [vmem:[%s335 + $0x10] sm:$0xff]
      %v366 = vld [vmem:[%s335 + $0x18] sm:$0xff]
      %v367 = vld [vmem:[%s335 + $0x20] sm:$0xff]
      %v368 = vld [vmem:[%s335 + $0x28] sm:$0xff]
      %v369 = vld [vmem:[%s335 + $0x30] sm:$0xff]
      %v370 = vld [vmem:[%s335 + $0x38] sm:$0xff]
      %v371 = vld [vmem:[%s339] sm:$0x3]
      %v373 = vlaneseq
      %v374 = vshrl.u32 %v373, 7
      %v375 = vsub.s32 0, %v374
      %v376 = vrot.slane %v371, %v375
      %v377 = vlaneseq
      %v378 = vshrl.u32 %v377, 7
      %v379 = vsub.s32 1, %v378
      %v380 = vrot.slane %v371, %v379
      %v383 = vmul.f32 %v363, %v376
      %v384 = vmul.f32 %v364, %v380
      %v385 = vmul.f32 %v365, %v376
      %v386 = vmul.f32 %v366, %v380
      %v387 = vmul.f32 %v367, %v376
      %v388 = vmul.f32 %v368, %v380
      %v389 = vmul.f32 %v369, %v376
      %v390 = vmul.f32 %v370, %v380
      %v391 = vld [vmem:[%s347] sm:$0xff]
      %v392 = vld [vmem:[%s347 + $0x8] sm:$0xff]
      %v393 = vld [vmem:[%s347 + $0x10] sm:$0xff]
      %v394 = vld [vmem:[%s347 + $0x18] sm:$0xff]
      %v395 = vld [vmem:[%s347 + $0x20] sm:$0xff]
      %v396 = vld [vmem:[%s347 + $0x28] sm:$0xff]
      %v397 = vld [vmem:[%s347 + $0x30] sm:$0xff]
      %v398 = vld [vmem:[%s347 + $0x38] sm:$0xff]
      %v399 = vld [vmem:[%s347 + $0x40] sm:$0xff]
      %v400 = vld [vmem:[%s347 + $0x48] sm:$0xff]
      %v401 = vld [vmem:[%s347 + $0x50] sm:$0xff]
      %v402 = vld [vmem:[%s347 + $0x58] sm:$0xff]
      %v403 = vld [vmem:[%s347 + $0x60] sm:$0xff]
      %v404 = vld [vmem:[%s347 + $0x68] sm:$0xff]
      %v405 = vld [vmem:[%s347 + $0x70] sm:$0xff]
      %v406 = vld [vmem:[%s347 + $0x78] sm:$0xff]
      %v407 = vld [vmem:[%s347 + $0x80] sm:$0xff]
      %v408 = vld [vmem:[%s347 + $0x88] sm:$0xff]
      %v409 = vld [vmem:[%s347 + $0x90] sm:$0xff]
      %v410 = vld [vmem:[%s347 + $0x98] sm:$0xff]
      %v411 = vld [vmem:[%s347 + $0xa0] sm:$0xff]
      %v412 = vld [vmem:[%s347 + $0xa8] sm:$0xff]
      %v413 = vld [vmem:[%s347 + $0xb0] sm:$0xff]
      %v414 = vld [vmem:[%s347 + $0xb8] sm:$0xff]
      %v415 = vld [vmem:[%s347 + $0xc0] sm:$0xff]
      %v416 = vld [vmem:[%s347 + $0xc8] sm:$0xff]
      %v417 = vld [vmem:[%s347 + $0xd0] sm:$0xff]
      %v418 = vld [vmem:[%s347 + $0xd8] sm:$0xff]
      %v419 = vld [vmem:[%s347 + $0xe0] sm:$0xff]
      %v420 = vld [vmem:[%s347 + $0xe8] sm:$0xff]
      %v421 = vld [vmem:[%s347 + $0xf0] sm:$0xff]
      %v422 = vld [vmem:[%s347 + $0xf8] sm:$0xff]
      %423 = vmatprep.subr.mxu0 0.0
      %424 = vmatpush1.msra.mxu0 %v391
      %425 = vmatprep.subr.mxu0 0.0
      %426 = vmatpush1.msra.mxu0 %v392
      %427 = vmatprep.subr.mxu0 0.0
      %428 = vmatpush1.msra.mxu0 %v393
      %429 = vmatprep.subr.mxu0 0.0
      %430 = vmatpush1.msra.mxu0 %v394
      %431 = vmatprep.subr.mxu0 0.0
      %432 = vmatpush1.msra.mxu0 %v395
      %433 = vmatprep.subr.mxu0 0.0
      %434 = vmatpush1.msra.mxu0 %v396
      %435 = vmatprep.subr.mxu0 0.0
      %436 = vmatpush1.msra.mxu0 %v397
      %437 = vmatprep.subr.mxu0 0.0
      %438 = vmatpush1.msra.mxu0 %v398
      %439 = vmatprep.subr.mxu0 0.0
      %440 = vmatpush1.msra.mxu0 %v399
      %441 = vmatprep.subr.mxu0 0.0
      %442 = vmatpush1.msra.mxu0 %v400
      %443 = vmatprep.subr.mxu0 0.0
      %444 = vmatpush1.msra.mxu0 %v401
      %445 = vmatprep.subr.mxu0 0.0
      %446 = vmatpush1.msra.mxu0 %v402
      %447 = vmatprep.subr.mxu0 0.0
      %448 = vmatpush1.msra.mxu0 %v403
      %449 = vmatprep.subr.mxu0 0.0
      %450 = vmatpush1.msra.mxu0 %v404
      %451 = vmatprep.subr.mxu0 0.0
      %452 = vmatpush1.msra.mxu0 %v405
      %453 = vmatprep.subr.mxu0 0.0
      %454 = vmatpush1.msra.mxu0 %v406
      %455 = vmatprep.subr.mxu0 0.0
      %456 = vmatpush1.msra.mxu0 %v407
      %457 = vmatprep.subr.mxu0 0.0
      %458 = vmatpush1.msra.mxu0 %v408
      %459 = vmatprep.subr.mxu0 0.0
      %460 = vmatpush1.msra.mxu0 %v409
      %461 = vmatprep.subr.mxu0 0.0
      %462 = vmatpush1.msra.mxu0 %v410
      %463 = vmatprep.subr.mxu0 0.0
      %464 = vmatpush1.msra.mxu0 %v411
      %465 = vmatprep.subr.mxu0 0.0
      %466 = vmatpush1.msra.mxu0 %v412
      %467 = vmatprep.subr.mxu0 0.0
      %468 = vmatpush1.msra.mxu0 %v413
      %469 = vmatprep.subr.mxu0 0.0
      %470 = vmatpush1.msra.mxu0 %v414
      %471 = vmatprep.subr.mxu0 0.0
      %472 = vmatpush1.msra.mxu0 %v415
      %473 = vmatprep.subr.mxu0 0.0
      %474 = vmatpush1.msra.mxu0 %v416
      %475 = vmatprep.subr.mxu0 0.0
      %476 = vmatpush1.msra.mxu0 %v417
      %477 = vmatprep.subr.mxu0 0.0
      %478 = vmatpush1.msra.mxu0 %v418
      %479 = vmatprep.subr.mxu0 0.0
      %480 = vmatpush1.msra.mxu0 %v419
      %481 = vmatprep.subr.mxu0 0.0
      %482 = vmatpush1.msra.mxu0 %v420
      %483 = vmatprep.subr.mxu0 0.0
      %484 = vmatpush1.msra.mxu0 %v421
      %485 = vmatprep.subr.mxu0 0.0
      %486 = vmatpush1.msra.mxu0 %v422
      %487 = vmatprep.mubr.f32.mxu0 %v384
      %488 = vmatmul.mubr.f32.gmra.mrb[0].mxu0 %v383
      %v489 = vpop.f32.mrb[0].mxu0
      %v490 = vadd.f32 0.0, %v489
      %v491 = vpop.f32.mrb[0].mxu0
      %492 = vmatprep.mubr.f32.mxu0 %v386
      %493 = vmatmul.mubr.f32.gmra.mrb[0].mxu0 %v385
      %v494 = vpop.f32.mrb[0].mxu0
      %v495 = vadd.f32 0.0, %v494
      %v496 = vpop.f32.mrb[0].mxu0
      %497 = vmatprep.mubr.f32.mxu0 %v388
      %498 = vmatmul.mubr.f32.gmra.mrb[0].mxu0 %v387
      %v499 = vpop.f32.mrb[0].mxu0
      %v500 = vadd.f32 0.0, %v499
      %v501 = vpop.f32.mrb[0].mxu0
      %502 = vmatprep.mubr.f32.mxu0 %v390
      %503 = vmatmul.mubr.f32.gmra.mrb[0].mxu0 %v389
      %v504 = vpop.f32.mrb[0].mxu0
      %v505 = vadd.f32 0.0, %v504
      %v506 = vpop.f32.mrb[0].mxu0
      %507 = vdwg.mxu0
      %v508 = vld [vmem:[%s5] sm:$0xff]
      %v509 = vld [vmem:[%s5 + $0x8] sm:$0xff]
      %v510 = vld [vmem:[%s5 + $0x10] sm:$0xff]
      %v511 = vld [vmem:[%s5 + $0x18] sm:$0xff]
      %v512 = vsub.f32 0.0, %v508
      %v513 = vsub.f32 0.0, %v509
      %v514 = vsub.f32 0.0, %v510
      %v515 = vsub.f32 0.0, %v511
      %v516 = vld [vmem:[%s342] sm:$0x1]
      %518 = vset.pattern.permute.xlu0 0
      %519 = vperm.xlu0 %518, %v512
      %v520 = vpop.permute.xlu0 %519
      %523 = vset.pattern.permute.xlu0 0
      %524 = vperm.xlu0 %523, %v513
      %v525 = vpop.permute.xlu0 %524
      %528 = vset.pattern.permute.xlu0 0
      %529 = vperm.xlu0 %528, %v514
      %v530 = vpop.permute.xlu0 %529
      %533 = vset.pattern.permute.xlu0 0
      %534 = vperm.xlu0 %533, %v515
      %v535 = vpop.permute.xlu0 %534
      %v538 = vlaneseq
      %v539 = vshrl.u32 %v538, 7
      %v540 = vsub.s32 0, %v539
      %v541 = vrot.slane %v516, %v540
      %v543 = vmul.f32 %v520, %v541
      %v544 = vmul.f32 %v525, %v541
      %v545 = vmul.f32 %v530, %v541
      %v546 = vmul.f32 %v535, %v541
      %v547 = vmul.f32 %v543, 1.442695
      %v548 = vpow.pop %v547
      %v549 = vmul.f32 %v544, 1.442695
      %v550 = vpow.pop %v549
      %v551 = vmul.f32 %v545, 1.442695
      %v552 = vpow.pop %v551
      %v553 = vmul.f32 %v546, 1.442695
      %v554 = vpow.pop %v553
      %v555 = vmul.f32 %v548, %v490
      %v556 = vmul.f32 %v550, %v495
      %v557 = vmul.f32 %v552, %v500
      %v558 = vmul.f32 %v554, %v505
      %v559 = vld [vmem:[%s352] sm:$0xff]
      %v560 = vld [vmem:[%s352 + $0x8] sm:$0xff]
      %v561 = vld [vmem:[%s352 + $0x10] sm:$0xff]
      %v562 = vld [vmem:[%s352 + $0x18] sm:$0xff]
      %v563 = vld [vmem:[%s352 + $0x20] sm:$0xff]
      %v564 = vld [vmem:[%s352 + $0x28] sm:$0xff]
      %v565 = vld [vmem:[%s352 + $0x30] sm:$0xff]
      %v566 = vld [vmem:[%s352 + $0x38] sm:$0xff]
      %vm567 = vcmask 261120
      %v569 = vsel %vm567, %v555, 0
      %v572 = vsel %vm567, %v556, 0
      %v575 = vsel %vm567, %v557, 0
      %v578 = vsel %vm567, %v558, 0
      %580 = vmatprep.subr.mxu0 %v560
      %581 = vmatpush1.msra.mxu0 %v559
      %582 = vmatprep.subr.mxu0 %v562
      %583 = vmatpush1.msra.mxu0 %v561
      %584 = vmatprep.subr.mxu0 %v564
      %585 = vmatpush1.msra.mxu0 %v563
      %586 = vmatprep.subr.mxu0 %v566
      %587 = vmatpush1.msra.mxu0 %v565
      %588 = vmatprep.subr.mxu0 0.0
      %589 = vmatpush1.msra.mxu0 0.0
      %590 = vmatprep.subr.mxu0 0.0
      %591 = vmatpush1.msra.mxu0 0.0
      %592 = vmatprep.subr.mxu0 0.0
      %593 = vmatpush1.msra.mxu0 0.0
      %594 = vmatprep.subr.mxu0 0.0
      %595 = vmatpush1.msra.mxu0 0.0
      %596 = vmatprep.subr.mxu0 0.0
      %597 = vmatpush1.msra.mxu0 0.0
      %598 = vmatprep.subr.mxu0 0.0
      %599 = vmatpush1.msra.mxu0 0.0
      %600 = vmatprep.subr.mxu0 0.0
      %601 = vmatpush1.msra.mxu0 0.0
      %602 = vmatprep.subr.mxu0 0.0
      %603 = vmatpush1.msra.mxu0 0.0
      %604 = vmatprep.subr.mxu0 0.0
      %605 = vmatpush1.msra.mxu0 0.0
      %606 = vmatprep.subr.mxu0 0.0
      %607 = vmatpush1.msra.mxu0 0.0
      %608 = vmatprep.subr.mxu0 0.0
      %609 = vmatpush1.msra.mxu0 0.0
      %610 = vmatprep.subr.mxu0 0.0
      %611 = vmatpush1.msra.mxu0 0.0
      %612 = vmatprep.subr.mxu0 0.0
      %613 = vmatpush1.msra.mxu0 0.0
      %614 = vmatprep.subr.mxu0 0.0
      %615 = vmatpush1.msra.mxu0 0.0
      %616 = vmatprep.subr.mxu0 0.0
      %617 = vmatpush1.msra.mxu0 0.0
      %618 = vmatprep.subr.mxu0 0.0
      %619 = vmatpush1.msra.mxu0 0.0
      %620 = vmatprep.subr.mxu0 0.0
      %621 = vmatpush1.msra.mxu0 0.0
      %622 = vmatprep.subr.mxu0 0.0
      %623 = vmatpush1.msra.mxu0 0.0
      %624 = vmatprep.subr.mxu0 0.0
      %625 = vmatpush1.msra.mxu0 0.0
      %626 = vmatprep.subr.mxu0 0.0
      %627 = vmatpush1.msra.mxu0 0.0
      %628 = vmatprep.subr.mxu0 0.0
      %629 = vmatpush1.msra.mxu0 0.0
      %630 = vmatprep.subr.mxu0 0.0
      %631 = vmatpush1.msra.mxu0 0.0
      %632 = vmatprep.subr.mxu0 0.0
      %633 = vmatpush1.msra.mxu0 0.0
      %634 = vmatprep.subr.mxu0 0.0
      %635 = vmatpush1.msra.mxu0 0.0
      %636 = vmatprep.subr.mxu0 0.0
      %637 = vmatpush1.msra.mxu0 0.0
      %638 = vmatprep.subr.mxu0 0.0
      %639 = vmatpush1.msra.mxu0 0.0
      %640 = vmatprep.subr.mxu0 0.0
      %641 = vmatpush1.msra.mxu0 0.0
      %642 = vmatprep.subr.mxu0 0.0
      %643 = vmatpush1.msra.mxu0 0.0
      %644 = vmatprep.mubr.f32.mxu0 0.0
      %645 = vmatmul.mubr.f32.gmra.mrb[0].mxu0 %v569
      %v646 = vpop.f32.mrb[0].mxu0
      %v647 = vadd.f32 0.0, %v646
      %v648 = vpop.f32.mrb[0].mxu0
      %v649 = vadd.f32 0.0, %v648
      %650 = vmatprep.mubr.f32.mxu0 0.0
      %651 = vmatmul.mubr.f32.gmra.mrb[0].mxu0 %v572
      %v652 = vpop.f32.mrb[0].mxu0
      %v653 = vadd.f32 0.0, %v652
      %v654 = vpop.f32.mrb[0].mxu0
      %v655 = vadd.f32 0.0, %v654
      %656 = vmatprep.mubr.f32.mxu0 0.0
      %657 = vmatmul.mubr.f32.gmra.mrb[0].mxu0 %v575
      %v658 = vpop.f32.mrb[0].mxu0
      %v659 = vadd.f32 0.0, %v658
      %v660 = vpop.f32.mrb[0].mxu0
      %v661 = vadd.f32 0.0, %v660
      %662 = vmatprep.mubr.f32.mxu0 0.0
      %663 = vmatmul.mubr.f32.gmra.mrb[0].mxu0 %v578
      %v664 = vpop.f32.mrb[0].mxu0
      %v665 = vadd.f32 0.0, %v664
      %v666 = vpop.f32.mrb[0].mxu0
      %v667 = vadd.f32 0.0, %v666
      %668 = vdwg.mxu0
      %669 = vst [vmem:[%s357] sm:$0xff] %v647
      %670 = vst [vmem:[%s357 + $0x8] sm:$0xff] %v649
      %671 = vst [vmem:[%s357 + $0x10] sm:$0xff] %v653
      %672 = vst [vmem:[%s357 + $0x18] sm:$0xff] %v655
      %673 = vst [vmem:[%s357 + $0x20] sm:$0xff] %v659
      %674 = vst [vmem:[%s357 + $0x28] sm:$0xff] %v661
      %675 = vst [vmem:[%s357 + $0x30] sm:$0xff] %v665
      %676 = vst [vmem:[%s357 + $0x38] sm:$0xff] %v667
      %v677 = vpack.c.bf16 %v653, %v647
      %v678 = vpack.c.bf16 %v655, %v649
      %v679 = vpack.c.bf16 %v665, %v659
      %v680 = vpack.c.bf16 %v667, %v661
      %v685 = vunpack.c.l.b16 %v677
      %v686 = vunpack.c.l.b16 %v678
      %v687 = vunpack.c.h.b16 %v677
      %v688 = vunpack.c.h.b16 %v678
      %v689 = vunpack.c.l.b16 %v679
      %v690 = vunpack.c.l.b16 %v680
      %v691 = vunpack.c.h.b16 %v679
      %v692 = vunpack.c.h.b16 %v680
      %v693 = vpack.c.b16 %v686, %v685
      %v694 = vpack.c.b16 %v688, %v687
      %v695 = vpack.c.b16 %v690, %v689
      %v696 = vpack.c.b16 %v692, %v691
      %701 = vst [vmem:[%s362] sm:$0xff] %v693
      %702 = vst [vmem:[%s362 + $0x8] sm:$0xff] %v694
      %703 = vst [vmem:[%s362 + $0x10] sm:$0xff] %v695
      %704 = vst [vmem:[%s362 + $0x18] sm:$0xff] %v696
      %p705 = scmp.lt.s32.totalorder %s19, 1
      %s706 = scalar_select %p705, %s19, 1
      %s707 = smul.addr %s706, 8
      %s708 = smul.addr %s707, 8
      %s709 = scalar_lea.vmem %s6, %s708
      %p710 = scmp.lt.s32.totalorder %s19, 1
      %s711 = scalar_select %p710, %s19, 1
      %s712 = smul.addr %s711, 8
      %s713 = smul.addr %s712, 4
      %s714 = scalar_lea.vmem %s7, %s713
      // Predicated region
      $region45: #{diffusionnet_forward.6} parent=43 // pred_check
        %p715 = pneg %p188
      $region46: #{diffusionnet_forward.6} parent=43 // pred_check_branch
        %717 = sbr.rel (%p715) target = $region48
      $region47: #{diffusionnet_forward.6} parent=43 // pred_region
        _
      $region48: #{diffusionnet_forward.6} parent=43 // pred_fallthru
        _
      // Predicated region
      $region49: #{diffusionnet_forward.6} parent=43 // pred_check
        %p718 = pneg %p214
      $region50: #{diffusionnet_forward.6} parent=43 // pred_check_branch
        %720 = sbr.rel (%p718) target = $region52
      $region51: #{diffusionnet_forward.6} parent=43 // pred_region
        _
      $region52: #{diffusionnet_forward.6} parent=43 // pred_fallthru
        _
    $region44: #{diffusionnet_forward.6} parent=5 // pred_fallthru
      _
    %p721 = scmp.le.s32.totalorder 2, %s14
    // Predicated region
    $region53: #{diffusionnet_forward.6} parent=5 // pred_check
      %p722 = pneg %p721
    $region54: #{diffusionnet_forward.6} parent=5 // pred_check_branch
      %724 = sbr.rel (%p722) target = $region56
    $region55: #{diffusionnet_forward.6} parent=5 // pred_region
      %s725 = ssub.s32 %s14, 2
      // Predicated region
      $region57: #{diffusionnet_forward.6} parent=55 // pred_check
        %p726 = pneg %p194
      $region58: #{diffusionnet_forward.6} parent=55 // pred_check_branch
        %728 = sbr.rel (%p726) target = $region60
      $region59: #{diffusionnet_forward.6} parent=55 // pred_region
        %p729 = scmp.lt.s32.totalorder %s20, 1
        %s730 = scalar_select %p729, %s20, 1
        %s731 = smul.addr %s730, 8
        %s732 = smul.addr %s731, 8
        %s733 = scalar_lea.vmem %s6, %s732
      $region60: #{diffusionnet_forward.6} parent=55 // pred_fallthru
        _
      // Predicated region
      $region61: #{diffusionnet_forward.6} parent=55 // pred_check
        %p734 = pneg %p220
      $region62: #{diffusionnet_forward.6} parent=55 // pred_check_branch
        %736 = sbr.rel (%p734) target = $region64
      $region63: #{diffusionnet_forward.6} parent=55 // pred_region
        %p737 = scmp.lt.s32.totalorder %s20, 1
        %s738 = scalar_select %p737, %s20, 1
        %s739 = smul.addr %s738, 8
        %s740 = smul.addr %s739, 4
        %s741 = scalar_lea.vmem %s7, %s740
      $region64: #{diffusionnet_forward.6} parent=55 // pred_fallthru
        _
    $region56: #{diffusionnet_forward.6} parent=5 // pred_fallthru
      _
  $region6: #{diffusionnet_forward.6} parent=0 // loop_footer
    %s18 = sadd.s32 1, %s14
  $region7: #{diffusionnet_forward.6} parent=0 // loop_footer_branch
    %13 = sbr.rel target = $region3
  $region8: #{diffusionnet_forward.6} parent=0 // loop_exit
    _

// kernel: diffusionnet_forward.7
$region0: #{diffusionnet_forward.7}
  #allocation0 [shape = 'u32[]', space=smem, size = 0x4, offset = 0x4, fixed_abs, tag = 'smem constant byte address 0x4 - core index']
  #allocation1 [shape = 'u32[144,128]{1,0:T(1,128)}', space=vmem, size = 0x12000, scoped, tag = 'internal scratch']
  %s0 = inlined_call_operand.vmem [shape: f32[2,32,256], index: 0, kind: input, shape index: {}]
  %s1 = inlined_call_operand.vmem [shape: f32[2,32,256], index: 1, kind: input, shape index: {}]
  %s2 = inlined_call_operand.vmem [shape: bf16[2,32,256], index: 2, kind: input, shape index: {}]
  %s3 = inlined_call_operand.vmem [shape: bf16[2,256,256], index: 3, kind: input, shape index: {}]
  %s4 = inlined_call_operand.vmem [shape: bf16[2,256,256], index: 4, kind: input, shape index: {}]
  %s5 = inlined_call_operand.vmem [shape: f32[64,64], index: 5, kind: input, shape index: {}]
  %s6 = inlined_call_operand.vmem [shape: f32[32,96], index: 6, kind: input, shape index: {}]
  %s7 = inlined_call_operand.vmem [shape: f32[32,1], index: 7, kind: input, shape index: {}]
  %s8 = inlined_call_operand.vmem [shape: f32[32,32], index: 8, kind: input, shape index: {}]
  %s9 = inlined_call_operand.vmem [shape: f32[32,1], index: 9, kind: input, shape index: {}]
  %s10 = inlined_call_operand.vmem [shape: f32[32,32], index: 10, kind: input, shape index: {}]
  %s11 = inlined_call_operand.vmem [shape: f32[32,1], index: 11, kind: input, shape index: {}]
  %s12 = inlined_call_operand.vmem [shape: f32[2,32,256], index: 12, kind: output, shape index: {}]
  %s13 = sld [smem:[#allocation0]]
  $region273: #{diffusionnet_forward.7} parent=0
    _
  %s15 = ssub.s32 1, %s13
  %s16 = scalar_select 0, %s15, %s13
  $region1: #{diffusionnet_forward.7} parent=0
    #allocation2 [shape = 'u8[32768]{0}', space=vmem, size = 0x8000, scoped, tag = 'input window, operand 0']
    #allocation3 [shape = 'u8[32768]{0}', space=vmem, size = 0x8000, scoped, tag = 'input window, operand 1']
    #allocation4 [shape = 'u8[131072]{0}', space=vmem, size = 0x20000, scoped, tag = 'input window, operand 3']
    #allocation5 [shape = 'u8[131072]{0}', space=vmem, size = 0x20000, scoped, tag = 'input window, operand 4']
    #allocation6 [shape = 'u8[32768]{0}', space=vmem, size = 0x8000, scoped, tag = 'output window, operand 0']
    loop: start=0, step=1, limit=6
    $region2: #{diffusionnet_forward.7} parent=1 // loop_pre_header
      _
    $region3: #{diffusionnet_forward.7} parent=1 // loop_header
      %s18 = sphi 0, %s22
      %p19 = scmp.ge.s32.totalorder %s18, 6
      %s25 = sphi 0, %s37
      %s26 = sphi 0, %s33
      %s27 = sphi 0, %s25
      %s28 = sphi 0, %s26
      %s29 = sphi 0, %s27
      %s30 = sphi 0, %s28
      %s42 = sphi 0, %s44
      %s45 = sphi 0, %s42
      %s46 = sphi 0, %s45
      %s62 = sphi 0, %s46
      %s70 = sphi 0, %s72
      %s73 = sphi 0, %s70
      %s74 = sphi 0, %s73
      %s90 = sphi 0, %s74
      %s96 = sphi 0, %s98
      %s99 = sphi 0, %s96
      %s100 = sphi 0, %s99
      %s116 = sphi 0, %s100
      %s124 = sphi 0, %s126
      %s127 = sphi 0, %s124
      %s128 = sphi 0, %s127
      %s144 = sphi 0, %s128
      %s152 = sphi 0, %s154
      %s155 = sphi 0, %s152
      %s156 = sphi 0, %s155
      %s172 = sphi 0, %s156
      %s176 = sphi 0, %s176
      %s178 = sphi 0, %s176
      %s179 = sphi 0, %s178
      %s193 = sphi 0, %s179
      %s197 = sphi 0, %s197
      %s199 = sphi 0, %s197
      %s200 = sphi 0, %s199
      %s214 = sphi 0, %s200
      %s218 = sphi 0, %s218
      %s220 = sphi 0, %s218
      %s221 = sphi 0, %s220
      %s235 = sphi 0, %s221
      %s239 = sphi 0, %s239
      %s241 = sphi 0, %s239
      %s242 = sphi 0, %s241
      %s256 = sphi 0, %s242
      %s260 = sphi 0, %s260
      %s262 = sphi 0, %s260
      %s263 = sphi 0, %s262
      %s277 = sphi 0, %s263
      %s281 = sphi 0, %s281
      %s283 = sphi 0, %s281
      %s284 = sphi 0, %s283
      %s298 = sphi 0, %s284
      %s302 = sphi 0, %s302
      %s304 = sphi 0, %s302
      %s305 = sphi 0, %s304
      %s319 = sphi 0, %s305
      %s327 = sphi 0, %s329
      %s330 = sphi 0, %s327
      %s331 = sphi 0, %s330
      %s347 = sphi 0, %s331
    $region4: #{diffusionnet_forward.7} parent=1 // loop_header_branch
      %21 = sbr.rel (%p19) target = $region8
    $region5: #{diffusionnet_forward.7} parent=1 // loop_body
      %s23 = ssub.s32 %s18, 1
      %s24 = ssub.s32 %s18, 2
      %s31 = sadd.s32 1, %s26
      %p32 = scmp.ge.s32.totalorder %s31, 2
      %s33 = scalar_select %p32, 0, %s31
      %s34 = sadd.s32 1, %s25
      %s35 = scalar_select %p32, %s34, %s25
      %p36 = scmp.ge.s32.totalorder %s35, 2
      %s37 = scalar_select %p36, 0, %s35
      %s38 = ssub.s32 %s25, %s37
      %s39 = ssub.s32 %s26, %s33
      %s40 = sor.u32 %s38, %s39
      %p41 = scmp.eq.s32.totalorder %s40, 0
      %s43 = sadd.s32 %s42, 1
      %s44 = scalar_select %p41, %s42, %s43
      %p47 = pneg %p41
      %p48 = scmp.eq.s32.totalorder %s18, 3
      %p49 = por %p47, %p48
      %p50 = scmp.ne.s32.totalorder %s42, %s45
      %p51 = scmp.eq.s32.totalorder %s18, 0
      %p52 = por %p50, %p51
      %p53 = scmp.ne.s32.totalorder %s42, %s45
      %p54 = scmp.eq.s32.totalorder %s23, 3
      %p55 = por %p53, %p54
      %p56 = scmp.ne.s32.totalorder %s45, %s46
      %p57 = scmp.eq.s32.totalorder %s23, 0
      %p58 = por %p56, %p57
      %p59 = scmp.ne.s32.totalorder %s45, %s46
      %p60 = scmp.eq.s32.totalorder %s24, 3
      %p61 = por %p59, %p60
      %p63 = scmp.ne.s32.totalorder %s46, %s62
      %p64 = scmp.eq.s32.totalorder %s24, 0
      %p65 = por %p63, %p64
      %s66 = ssub.s32 %s25, %s37
      %s67 = ssub.s32 %s26, %s33
      %s68 = sor.u32 %s66, %s67
      %p69 = scmp.eq.s32.totalorder %s68, 0
      %s71 = sadd.s32 %s70, 1
      %s72 = scalar_select %p69, %s70, %s71
      %p75 = pneg %p69
      %p76 = scmp.eq.s32.totalorder %s18, 3
      %p77 = por %p75, %p76
      %p78 = scmp.ne.s32.totalorder %s70, %s73
      %p79 = scmp.eq.s32.totalorder %s18, 0
      %p80 = por %p78, %p79
      %p81 = scmp.ne.s32.totalorder %s70, %s73
      %p82 = scmp.eq.s32.totalorder %s23, 3
      %p83 = por %p81, %p82
      %p84 = scmp.ne.s32.totalorder %s73, %s74
      %p85 = scmp.eq.s32.totalorder %s23, 0
      %p86 = por %p84, %p85
      %p87 = scmp.ne.s32.totalorder %s73, %s74
      %p88 = scmp.eq.s32.totalorder %s24, 3
      %p89 = por %p87, %p88
      %p91 = scmp.ne.s32.totalorder %s74, %s90
      %p92 = scmp.eq.s32.totalorder %s24, 0
      %p93 = por %p91, %p92
      %s94 = ssub.s32 %s25, %s37
      %p95 = scmp.eq.s32.totalorder %s94, 0
      %s97 = sadd.s32 %s96, 1
      %s98 = scalar_select %p95, %s96, %s97
      %p101 = pneg %p95
      %p102 = scmp.eq.s32.totalorder %s18, 3
      %p103 = por %p101, %p102
      %p104 = scmp.ne.s32.totalorder %s96, %s99
      %p105 = scmp.eq.s32.totalorder %s18, 0
      %p106 = por %p104, %p105
      %p107 = scmp.ne.s32.totalorder %s96, %s99
      %p108 = scmp.eq.s32.totalorder %s23, 3
      %p109 = por %p107, %p108
      %p110 = scmp.ne.s32.totalorder %s99, %s100
      %p111 = scmp.eq.s32.totalorder %s23, 0
      %p112 = por %p110, %p111
      %p113 = scmp.ne.s32.totalorder %s99, %s100
      %p114 = scmp.eq.s32.totalorder %s24, 3
      %p115 = por %p113, %p114
      %p117 = scmp.ne.s32.totalorder %s100, %s116
      %p118 = scmp.eq.s32.totalorder %s24, 0
      %p119 = por %p117, %p118
      %s120 = ssub.s32 %s25, %s37
      %s121 = ssub.s32 %s26, %s33
      %s122 = sor.u32 %s120, %s121
      %p123 = scmp.eq.s32.totalorder %s122, 0
      %s125 = sadd.s32 %s124, 1
      %s126 = scalar_select %p123, %s124, %s125
      %p129 = pneg %p123
      %p130 = scmp.eq.s32.totalorder %s18, 3
      %p131 = por %p129, %p130
      %p132 = scmp.ne.s32.totalorder %s124, %s127
      %p133 = scmp.eq.s32.totalorder %s18, 0
      %p134 = por %p132, %p133
      %p135 = scmp.ne.s32.totalorder %s124, %s127
      %p136 = scmp.eq.s32.totalorder %s23, 3
      %p137 = por %p135, %p136
      %p138 = scmp.ne.s32.totalorder %s127, %s128
      %p139 = scmp.eq.s32.totalorder %s23, 0
      %p140 = por %p138, %p139
      %p141 = scmp.ne.s32.totalorder %s127, %s128
      %p142 = scmp.eq.s32.totalorder %s24, 3
      %p143 = por %p141, %p142
      %p145 = scmp.ne.s32.totalorder %s128, %s144
      %p146 = scmp.eq.s32.totalorder %s24, 0
      %p147 = por %p145, %p146
      %s148 = ssub.s32 %s25, %s37
      %s149 = ssub.s32 %s26, %s33
      %s150 = sor.u32 %s148, %s149
      %p151 = scmp.eq.s32.totalorder %s150, 0
      %s153 = sadd.s32 %s152, 1
      %s154 = scalar_select %p151, %s152, %s153
      %p157 = pneg %p151
      %p158 = scmp.eq.s32.totalorder %s18, 3
      %p159 = por %p157, %p158
      %p160 = scmp.ne.s32.totalorder %s152, %s155
      %p161 = scmp.eq.s32.totalorder %s18, 0
      %p162 = por %p160, %p161
      %p163 = scmp.ne.s32.totalorder %s152, %s155
      %p164 = scmp.eq.s32.totalorder %s23, 3
      %p165 = por %p163, %p164
      %p166 = scmp.ne.s32.totalorder %s155, %s156
      %p167 = scmp.eq.s32.totalorder %s23, 0
      %p168 = por %p166, %p167
      %p169 = scmp.ne.s32.totalorder %s155, %s156
      %p170 = scmp.eq.s32.totalorder %s24, 3
      %p171 = por %p169, %p170
      %p173 = scmp.ne.s32.totalorder %s156, %s172
      %p174 = scmp.eq.s32.totalorder %s24, 0
      %p175 = por %p173, %p174
      %s177 = sadd.s32 %s176, 1
      %p180 = scmp.eq.s32.totalorder %s18, 3
      %p181 = scmp.ne.s32.totalorder %s176, %s178
      %p182 = scmp.eq.s32.totalorder %s18, 0
      %p183 = por %p181, %p182
      %p184 = scmp.ne.s32.totalorder %s176, %s178
      %p185 = scmp.eq.s32.totalorder %s23, 3
      %p186 = por %p184, %p185
      %p187 = scmp.ne.s32.totalorder %s178, %s179
      %p188 = scmp.eq.s32.totalorder %s23, 0
      %p189 = por %p187, %p188
      %p190 = scmp.ne.s32.totalorder %s178, %s179
      %p191 = scmp.eq.s32.totalorder %s24, 3
      %p192 = por %p190, %p191
      %p194 = scmp.ne.s32.totalorder %s179, %s193
      %p195 = scmp.eq.s32.totalorder %s24, 0
      %p196 = por %p194, %p195
      %s198 = sadd.s32 %s197, 1
      %p201 = scmp.eq.s32.totalorder %s18, 3
      %p202 = scmp.ne.s32.totalorder %s197, %s199
      %p203 = scmp.eq.s32.totalorder %s18, 0
      %p204 = por %p202, %p203
      %p205 = scmp.ne.s32.totalorder %s197, %s199
      %p206 = scmp.eq.s32.totalorder %s23, 3
      %p207 = por %p205, %p206
      %p208 = scmp.ne.s32.totalorder %s199, %s200
      %p209 = scmp.eq.s32.totalorder %s23, 0
      %p210 = por %p208, %p209
      %p211 = scmp.ne.s32.totalorder %s199, %s200
      %p212 = scmp.eq.s32.totalorder %s24, 3
      %p213 = por %p211, %p212
      %p215 = scmp.ne.s32.totalorder %s200, %s214
      %p216 = scmp.eq.s32.totalorder %s24, 0
      %p217 = por %p215, %p216
      %s219 = sadd.s32 %s218, 1
      %p222 = scmp.eq.s32.totalorder %s18, 3
      %p223 = scmp.ne.s32.totalorder %s218, %s220
      %p224 = scmp.eq.s32.totalorder %s18, 0
      %p225 = por %p223, %p224
      %p226 = scmp.ne.s32.totalorder %s218, %s220
      %p227 = scmp.eq.s32.totalorder %s23, 3
      %p228 = por %p226, %p227
      %p229 = scmp.ne.s32.totalorder %s220, %s221
      %p230 = scmp.eq.s32.totalorder %s23, 0
      %p231 = por %p229, %p230
      %p232 = scmp.ne.s32.totalorder %s220, %s221
      %p233 = scmp.eq.s32.totalorder %s24, 3
      %p234 = por %p232, %p233
      %p236 = scmp.ne.s32.totalorder %s221, %s235
      %p237 = scmp.eq.s32.totalorder %s24, 0
      %p238 = por %p236, %p237
      %s240 = sadd.s32 %s239, 1
      %p243 = scmp.eq.s32.totalorder %s18, 3
      %p244 = scmp.ne.s32.totalorder %s239, %s241
      %p245 = scmp.eq.s32.totalorder %s18, 0
      %p246 = por %p244, %p245
      %p247 = scmp.ne.s32.totalorder %s239, %s241
      %p248 = scmp.eq.s32.totalorder %s23, 3
      %p249 = por %p247, %p248
      %p250 = scmp.ne.s32.totalorder %s241, %s242
      %p251 = scmp.eq.s32.totalorder %s23, 0
      %p252 = por %p250, %p251
      %p253 = scmp.ne.s32.totalorder %s241, %s242
      %p254 = scmp.eq.s32.totalorder %s24, 3
      %p255 = por %p253, %p254
      %p257 = scmp.ne.s32.totalorder %s242, %s256
      %p258 = scmp.eq.s32.totalorder %s24, 0
      %p259 = por %p257, %p258
      %s261 = sadd.s32 %s260, 1
      %p264 = scmp.eq.s32.totalorder %s18, 3
      %p265 = scmp.ne.s32.totalorder %s260, %s262
      %p266 = scmp.eq.s32.totalorder %s18, 0
      %p267 = por %p265, %p266
      %p268 = scmp.ne.s32.totalorder %s260, %s262
      %p269 = scmp.eq.s32.totalorder %s23, 3
      %p270 = por %p268, %p269
      %p271 = scmp.ne.s32.totalorder %s262, %s263
      %p272 = scmp.eq.s32.totalorder %s23, 0
      %p273 = por %p271, %p272
      %p274 = scmp.ne.s32.totalorder %s262, %s263
      %p275 = scmp.eq.s32.totalorder %s24, 3
      %p276 = por %p274, %p275
      %p278 = scmp.ne.s32.totalorder %s263, %s277
      %p279 = scmp.eq.s32.totalorder %s24, 0
      %p280 = por %p278, %p279
      %s282 = sadd.s32 %s281, 1
      %p285 = scmp.eq.s32.totalorder %s18, 3
      %p286 = scmp.ne.s32.totalorder %s281, %s283
      %p287 = scmp.eq.s32.totalorder %s18, 0
      %p288 = por %p286, %p287
      %p289 = scmp.ne.s32.totalorder %s281, %s283
      %p290 = scmp.eq.s32.totalorder %s23, 3
      %p291 = por %p289, %p290
      %p292 = scmp.ne.s32.totalorder %s283, %s284
      %p293 = scmp.eq.s32.totalorder %s23, 0
      %p294 = por %p292, %p293
      %p295 = scmp.ne.s32.totalorder %s283, %s284
      %p296 = scmp.eq.s32.totalorder %s24, 3
      %p297 = por %p295, %p296
      %p299 = scmp.ne.s32.totalorder %s284, %s298
      %p300 = scmp.eq.s32.totalorder %s24, 0
      %p301 = por %p299, %p300
      %s303 = sadd.s32 %s302, 1
      %p306 = scmp.eq.s32.totalorder %s18, 3
      %p307 = scmp.ne.s32.totalorder %s302, %s304
      %p308 = scmp.eq.s32.totalorder %s18, 0
      %p309 = por %p307, %p308
      %p310 = scmp.ne.s32.totalorder %s302, %s304
      %p311 = scmp.eq.s32.totalorder %s23, 3
      %p312 = por %p310, %p311
      %p313 = scmp.ne.s32.totalorder %s304, %s305
      %p314 = scmp.eq.s32.totalorder %s23, 0
      %p315 = por %p313, %p314
      %p316 = scmp.ne.s32.totalorder %s304, %s305
      %p317 = scmp.eq.s32.totalorder %s24, 3
      %p318 = por %p316, %p317
      %p320 = scmp.ne.s32.totalorder %s305, %s319
      %p321 = scmp.eq.s32.totalorder %s24, 0
      %p322 = por %p320, %p321
      %s323 = ssub.s32 %s25, %s37
      %s324 = ssub.s32 %s26, %s33
      %s325 = sor.u32 %s323, %s324
      %p326 = scmp.eq.s32.totalorder %s325, 0
      %s328 = sadd.s32 %s327, 1
      %s329 = scalar_select %p326, %s327, %s328
      %p332 = pneg %p326
      %p333 = scmp.eq.s32.totalorder %s18, 3
      %p334 = por %p332, %p333
      %p335 = scmp.ne.s32.totalorder %s327, %s330
      %p336 = scmp.eq.s32.totalorder %s18, 0
      %p337 = por %p335, %p336
      %p338 = scmp.ne.s32.totalorder %s327, %s330
      %p339 = scmp.eq.s32.totalorder %s23, 3
      %p340 = por %p338, %p339
      %p341 = scmp.ne.s32.totalorder %s330, %s331
      %p342 = scmp.eq.s32.totalorder %s23, 0
      %p343 = por %p341, %p342
      %p344 = scmp.ne.s32.totalorder %s330, %s331
      %p345 = scmp.eq.s32.totalorder %s24, 3
      %p346 = por %p344, %p345
      %p348 = scmp.ne.s32.totalorder %s331, %s347
      %p349 = scmp.eq.s32.totalorder %s24, 0
      %p350 = por %p348, %p349
      %p351 = scmp.le.s32.totalorder 1, %s18
      %p352 = scmp.lt.s32.totalorder %s18, 5
      %p353 = pnand %p351, %p352
      %p354 = pneg %p353
      // Predicated region
      $region9: #{diffusionnet_forward.7} parent=5 // pred_check
        _
      $region10: #{diffusionnet_forward.7} parent=5 // pred_check_branch
        %356 = sbr.rel (%p353) target = $region12
      $region11: #{diffusionnet_forward.7} parent=5 // pred_region
        %s357 = ssub.s32 %s18, 1
        // Predicated region
        $region13: #{diffusionnet_forward.7} parent=11 // pred_check
          %p358 = pneg %p189
        $region14: #{diffusionnet_forward.7} parent=11 // pred_check_branch
          %360 = sbr.rel (%p358) target = $region16
        $region15: #{diffusionnet_forward.7} parent=11 // pred_region
          _
        $region16: #{diffusionnet_forward.7} parent=11 // pred_fallthru
          _
        // Predicated region
        $region17: #{diffusionnet_forward.7} parent=11 // pred_check
          %p361 = pneg %p210
        $region18: #{diffusionnet_forward.7} parent=11 // pred_check_branch
          %363 = sbr.rel (%p361) target = $region20
        $region19: #{diffusionnet_forward.7} parent=11 // pred_region
          _
        $region20: #{diffusionnet_forward.7} parent=11 // pred_fallthru
          _
        // Predicated region
        $region21: #{diffusionnet_forward.7} parent=11 // pred_check
          %p364 = pneg %p231
        $region22: #{diffusionnet_forward.7} parent=11 // pred_check_branch
          %366 = sbr.rel (%p364) target = $region24
        $region23: #{diffusionnet_forward.7} parent=11 // pred_region
          _
        $region24: #{diffusionnet_forward.7} parent=11 // pred_fallthru
          _
        // Predicated region
        $region25: #{diffusionnet_forward.7} parent=11 // pred_check
          %p367 = pneg %p252
        $region26: #{diffusionnet_forward.7} parent=11 // pred_check_branch
          %369 = sbr.rel (%p367) target = $region28
        $region27: #{diffusionnet_forward.7} parent=11 // pred_region
          _
        $region28: #{diffusionnet_forward.7} parent=11 // pred_fallthru
          _
        // Predicated region
        $region29: #{diffusionnet_forward.7} parent=11 // pred_check
          %p370 = pneg %p273
        $region30: #{diffusionnet_forward.7} parent=11 // pred_check_branch
          %372 = sbr.rel (%p370) target = $region32
        $region31: #{diffusionnet_forward.7} parent=11 // pred_region
          _
        $region32: #{diffusionnet_forward.7} parent=11 // pred_fallthru
          _
        // Predicated region
        $region33: #{diffusionnet_forward.7} parent=11 // pred_check
          %p373 = pneg %p294
        $region34: #{diffusionnet_forward.7} parent=11 // pred_check_branch
          %375 = sbr.rel (%p373) target = $region36
        $region35: #{diffusionnet_forward.7} parent=11 // pred_region
          _
        $region36: #{diffusionnet_forward.7} parent=11 // pred_fallthru
          _
        // Predicated region
        $region37: #{diffusionnet_forward.7} parent=11 // pred_check
          %p376 = pneg %p315
        $region38: #{diffusionnet_forward.7} parent=11 // pred_check_branch
          %378 = sbr.rel (%p376) target = $region40
        $region39: #{diffusionnet_forward.7} parent=11 // pred_region
          _
        $region40: #{diffusionnet_forward.7} parent=11 // pred_fallthru
          _
      $region12: #{diffusionnet_forward.7} parent=5 // pred_fallthru
        _
      %p379 = scmp.lt.s32.totalorder %s18, 4
      // Predicated region
      $region41: #{diffusionnet_forward.7} parent=5 // pred_check
        %p380 = pneg %p379
      $region42: #{diffusionnet_forward.7} parent=5 // pred_check_branch
        %382 = sbr.rel (%p380) target = $region44
      $region43: #{diffusionnet_forward.7} parent=5 // pred_region
        // Predicated region
        $region45: #{diffusionnet_forward.7} parent=43 // pred_check
          %p383 = pneg %p52
        $region46: #{diffusionnet_forward.7} parent=43 // pred_check_branch
          %385 = sbr.rel (%p383) target = $region48
        $region47: #{diffusionnet_forward.7} parent=43 // pred_region
          %s386 = sand.u32 %s42, 1
          %s387 = sand.u32 %s42, 1
          %s388 = smul.addr %s387, 32
          %s389 = scalar_lea.vmem [#allocation2], %s388
          %s390 = smul.addr %s25, 8
          %s391 = sadd.s32 %s26, %s390
          %s392 = smul.addr %s391, 8
          %s393 = scalar_lea.vmem %s0, %s392
          // Predicated region
          $region49: #{diffusionnet_forward.7} parent=47 // pred_check
            _
          $region50: #{diffusionnet_forward.7} parent=47 // pred_check_branch
            %395 = sbr.rel (0) target = $region52
          $region51: #{diffusionnet_forward.7} parent=47 // pred_region
            // Predicated region
            $region53: #{diffusionnet_forward.7} parent=51 // pred_check
              _
            $region54: #{diffusionnet_forward.7} parent=51 // pred_check_branch
              %397 = sbr.rel (0) target = $region56
            $region55: #{diffusionnet_forward.7} parent=51 // pred_region
              // Predicated region
              $region68: #{diffusionnet_forward.7} parent=55 // pred_check
                _
              $region69: #{diffusionnet_forward.7} parent=55 // pred_check_branch
                %418 = sbr.rel (0) target = $region71
              $region70: #{diffusionnet_forward.7} parent=55 // pred_region
                loop: start=0, step=1, limit=1
                $region72: #{diffusionnet_forward.7} parent=70 // loop_pre_header
                  _
                $region73: #{diffusionnet_forward.7} parent=70 // loop_header
                  %s420 = sphi 0, %s424
                  %p421 = scmp.ge.s32.totalorder %s420, 1
                  %s425 = sphi %s393, %s393
                  %s426 = sphi %s389, %s389
                $region74: #{diffusionnet_forward.7} parent=70 // loop_header_branch
                  %423 = sbr.rel (%p421) target = $region78
                $region75: #{diffusionnet_forward.7} parent=70 // loop_body
                  %v427 = vld [vmem:[%s425] sm:$0xff]
                  %428 = vst [vmem:[%s426] sm:$0xff] %v427
                  %v429 = vld [vmem:[%s425 + $0x10] sm:$0xff]
                  %430 = vst [vmem:[%s426 + $0x8] sm:$0xff] %v429
                  %v431 = vld [vmem:[%s425 + $0x20] sm:$0xff]
                  %432 = vst [vmem:[%s426 + $0x10] sm:$0xff] %v431
                  %v433 = vld [vmem:[%s425 + $0x30] sm:$0xff]
                  %434 = vst [vmem:[%s426 + $0x18] sm:$0xff] %v433
                $region76: #{diffusionnet_forward.7} parent=70 // loop_footer
                  %s424 = sadd.s32 1, %s420
                $region77: #{diffusionnet_forward.7} parent=70 // loop_footer_branch
                  %419 = sbr.rel target = $region73
                $region78: #{diffusionnet_forward.7} parent=70 // loop_exit
                  _
              $region71: #{diffusionnet_forward.7} parent=55 // pred_fallthru
                _
              // Predicated region
              $region79: #{diffusionnet_forward.7} parent=55 // pred_check
                _
              $region80: #{diffusionnet_forward.7} parent=55 // pred_check_branch
                %436 = sbr.rel target = $region82
              $region81: #{diffusionnet_forward.7} parent=55 // pred_region
                _
              $region82: #{diffusionnet_forward.7} parent=55 // pred_fallthru
                _
            $region56: #{diffusionnet_forward.7} parent=51 // pred_fallthru
              _
            // Predicated region
            $region57: #{diffusionnet_forward.7} parent=51 // pred_check
              _
            $region58: #{diffusionnet_forward.7} parent=51 // pred_check_branch
              %399 = sbr.rel target = $region60
            $region59: #{diffusionnet_forward.7} parent=51 // pred_region
              loop: start=0, step=1, limit=1
              $region61: #{diffusionnet_forward.7} parent=59 // loop_pre_header
                _
              $region62: #{diffusionnet_forward.7} parent=59 // loop_header
                %s402 = sphi 0, %s406
                %p403 = scmp.ge.s32.totalorder %s402, 1
                %s407 = sphi %s393, %s393
                %s408 = sphi %s389, %s389
              $region63: #{diffusionnet_forward.7} parent=59 // loop_header_branch
                %405 = sbr.rel (%p403) target = $region67
              $region64: #{diffusionnet_forward.7} parent=59 // loop_body
                %v409 = vld [vmem:[%s407] sm:$0xff]
                %410 = vst [vmem:[%s408] sm:$0xff] %v409
                %v411 = vld [vmem:[%s407 + $0x10] sm:$0xff]
                %412 = vst [vmem:[%s408 + $0x8] sm:$0xff] %v411
                %v413 = vld [vmem:[%s407 + $0x20] sm:$0xff]
                %414 = vst [vmem:[%s408 + $0x10] sm:$0xff] %v413
                %v415 = vld [vmem:[%s407 + $0x30] sm:$0xff]
                %416 = vst [vmem:[%s408 + $0x18] sm:$0xff] %v415
              $region65: #{diffusionnet_forward.7} parent=59 // loop_footer
                %s406 = sadd.s32 1, %s402
              $region66: #{diffusionnet_forward.7} parent=59 // loop_footer_branch
                %401 = sbr.rel target = $region62
              $region67: #{diffusionnet_forward.7} parent=59 // loop_exit
                _
            $region60: #{diffusionnet_forward.7} parent=51 // pred_fallthru
              _
          $region52: #{diffusionnet_forward.7} parent=47 // pred_fallthru
            _
          %437 = vnop
        $region48: #{diffusionnet_forward.7} parent=43 // pred_fallthru
          _
        // Predicated region
        $region83: #{diffusionnet_forward.7} parent=43 // pred_check
          %p438 = pneg %p80
        $region84: #{diffusionnet_forward.7} parent=43 // pred_check_branch
          %440 = sbr.rel (%p438) target = $region86
        $region85: #{diffusionnet_forward.7} parent=43 // pred_region
          %s441 = sand.u32 %s70, 1
          %s442 = sand.u32 %s70, 1
          %s443 = smul.addr %s442, 32
          %s444 = scalar_lea.vmem [#allocation3], %s443
          %s445 = smul.addr %s25, 8
          %s446 = sadd.s32 %s26, %s445
          %s447 = smul.addr %s446, 8
          %s448 = scalar_lea.vmem %s1, %s447
          // Predicated region
          $region87: #{diffusionnet_forward.7} parent=85 // pred_check
            _
          $region88: #{diffusionnet_forward.7} parent=85 // pred_check_branch
            %450 = sbr.rel (0) target = $region90
          $region89: #{diffusionnet_forward.7} parent=85 // pred_region
            // Predicated region
            $region91: #{diffusionnet_forward.7} parent=89 // pred_check
              _
            $region92: #{diffusionnet_forward.7} parent=89 // pred_check_branch
              %452 = sbr.rel (0) target = $region94
            $region93: #{diffusionnet_forward.7} parent=89 // pred_region
              // Predicated region
              $region106: #{diffusionnet_forward.7} parent=93 // pred_check
                _
              $region107: #{diffusionnet_forward.7} parent=93 // pred_check_branch
                %473 = sbr.rel (0) target = $region109
              $region108: #{diffusionnet_forward.7} parent=93 // pred_region
                loop: start=0, step=1, limit=1
                $region110: #{diffusionnet_forward.7} parent=108 // loop_pre_header
                  _
                $region111: #{diffusionnet_forward.7} parent=108 // loop_header
                  %s475 = sphi 0, %s479
                  %p476 = scmp.ge.s32.totalorder %s475, 1
                  %s480 = sphi %s448, %s448
                  %s481 = sphi %s444, %s444
                $region112: #{diffusionnet_forward.7} parent=108 // loop_header_branch
                  %478 = sbr.rel (%p476) target = $region116
                $region113: #{diffusionnet_forward.7} parent=108 // loop_body
                  %v482 = vld [vmem:[%s480] sm:$0xff]
                  %483 = vst [vmem:[%s481] sm:$0xff] %v482
                  %v484 = vld [vmem:[%s480 + $0x10] sm:$0xff]
                  %485 = vst [vmem:[%s481 + $0x8] sm:$0xff] %v484
                  %v486 = vld [vmem:[%s480 + $0x20] sm:$0xff]
                  %487 = vst [vmem:[%s481 + $0x10] sm:$0xff] %v486
                  %v488 = vld [vmem:[%s480 + $0x30] sm:$0xff]
                  %489 = vst [vmem:[%s481 + $0x18] sm:$0xff] %v488
                $region114: #{diffusionnet_forward.7} parent=108 // loop_footer
                  %s479 = sadd.s32 1, %s475
                $region115: #{diffusionnet_forward.7} parent=108 // loop_footer_branch
                  %474 = sbr.rel target = $region111
                $region116: #{diffusionnet_forward.7} parent=108 // loop_exit
                  _
              $region109: #{diffusionnet_forward.7} parent=93 // pred_fallthru
                _
              // Predicated region
              $region117: #{diffusionnet_forward.7} parent=93 // pred_check
                _
              $region118: #{diffusionnet_forward.7} parent=93 // pred_check_branch
                %491 = sbr.rel target = $region120
              $region119: #{diffusionnet_forward.7} parent=93 // pred_region
                _
              $region120: #{diffusionnet_forward.7} parent=93 // pred_fallthru
                _
            $region94: #{diffusionnet_forward.7} parent=89 // pred_fallthru
              _
            // Predicated region
            $region95: #{diffusionnet_forward.7} parent=89 // pred_check
              _
            $region96: #{diffusionnet_forward.7} parent=89 // pred_check_branch
              %454 = sbr.rel target = $region98
            $region97: #{diffusionnet_forward.7} parent=89 // pred_region
              loop: start=0, step=1, limit=1
              $region99: #{diffusionnet_forward.7} parent=97 // loop_pre_header
                _
              $region100: #{diffusionnet_forward.7} parent=97 // loop_header
                %s457 = sphi 0, %s461
                %p458 = scmp.ge.s32.totalorder %s457, 1
                %s462 = sphi %s448, %s448
                %s463 = sphi %s444, %s444
              $region101: #{diffusionnet_forward.7} parent=97 // loop_header_branch
                %460 = sbr.rel (%p458) target = $region105
              $region102: #{diffusionnet_forward.7} parent=97 // loop_body
                %v464 = vld [vmem:[%s462] sm:$0xff]
                %465 = vst [vmem:[%s463] sm:$0xff] %v464
                %v466 = vld [vmem:[%s462 + $0x10] sm:$0xff]
                %467 = vst [vmem:[%s463 + $0x8] sm:$0xff] %v466
                %v468 = vld [vmem:[%s462 + $0x20] sm:$0xff]
                %469 = vst [vmem:[%s463 + $0x10] sm:$0xff] %v468
                %v470 = vld [vmem:[%s462 + $0x30] sm:$0xff]
                %471 = vst [vmem:[%s463 + $0x18] sm:$0xff] %v470
              $region103: #{diffusionnet_forward.7} parent=97 // loop_footer
                %s461 = sadd.s32 1, %s457
              $region104: #{diffusionnet_forward.7} parent=97 // loop_footer_branch
                %456 = sbr.rel target = $region100
              $region105: #{diffusionnet_forward.7} parent=97 // loop_exit
                _
            $region98: #{diffusionnet_forward.7} parent=89 // pred_fallthru
              _
          $region90: #{diffusionnet_forward.7} parent=85 // pred_fallthru
            _
          %492 = vnop
        $region86: #{diffusionnet_forward.7} parent=43 // pred_fallthru
          _
        // Predicated region
        $region121: #{diffusionnet_forward.7} parent=43 // pred_check
          %p493 = pneg %p106
        $region122: #{diffusionnet_forward.7} parent=43 // pred_check_branch
          %495 = sbr.rel (%p493) target = $region124
        $region123: #{diffusionnet_forward.7} parent=43 // pred_region
          %p496 = scmp.lt.s32.totalorder %s25, 1
          %s497 = scalar_select %p496, %s25, 1
          %s498 = smul.addr %s497, 8
          %s499 = smul.addr %s498, 4
          %s500 = scalar_lea.vmem %s2, %s499
        $region124: #{diffusionnet_forward.7} parent=43 // pred_fallthru
          _
        // Predicated region
        $region125: #{diffusionnet_forward.7} parent=43 // pred_check
          %p501 = pneg %p134
        $region126: #{diffusionnet_forward.7} parent=43 // pred_check_branch
          %503 = sbr.rel (%p501) target = $region128
        $region127: #{diffusionnet_forward.7} parent=43 // pred_region
          %s504 = sand.u32 %s124, 1
          %s505 = sand.u32 %s124, 1
          %s506 = smul.addr %s505, 128
          %s507 = scalar_lea.vmem [#allocation4], %s506
          %s508 = smul.addr %s25, 64
          %s509 = sadd.s32 %s26, %s508
          %s510 = smul.addr %s509, 4
          %s511 = scalar_lea.vmem %s3, %s510
          // Predicated region
          $region129: #{diffusionnet_forward.7} parent=127 // pred_check
            _
          $region130: #{diffusionnet_forward.7} parent=127 // pred_check_branch
            %513 = sbr.rel (0) target = $region132
          $region131: #{diffusionnet_forward.7} parent=127 // pred_region
            // Predicated region
            $region133: #{diffusionnet_forward.7} parent=131 // pred_check
              _
            $region134: #{diffusionnet_forward.7} parent=131 // pred_check_branch
              %515 = sbr.rel target = $region136
            $region135: #{diffusionnet_forward.7} parent=131 // pred_region
              // Predicated region
              $region148: #{diffusionnet_forward.7} parent=135 // pred_check
                _
              $region149: #{diffusionnet_forward.7} parent=135 // pred_check_branch
                %592 = sbr.rel (0) target = $region151
              $region150: #{diffusionnet_forward.7} parent=135 // pred_region
                loop: start=0, step=1, limit=1
                $region152: #{diffusionnet_forward.7} parent=150 // loop_pre_header
                  _
                $region153: #{diffusionnet_forward.7} parent=150 // loop_header
                  %s594 = sphi 0, %s598
                  %p595 = scmp.ge.s32.totalorder %s594, 1
                  %s599 = sphi %s511, %s511
                  %s600 = sphi %s507, %s507
                $region154: #{diffusionnet_forward.7} parent=150 // loop_header_branch
                  %597 = sbr.rel (%p595) target = $region158
                $region155: #{diffusionnet_forward.7} parent=150 // loop_body
                  _
                $region156: #{diffusionnet_forward.7} parent=150 // loop_footer
                  %s598 = sadd.s32 1, %s594
                $region157: #{diffusionnet_forward.7} parent=150 // loop_footer_branch
                  %593 = sbr.rel target = $region153
                $region158: #{diffusionnet_forward.7} parent=150 // loop_exit
                  _
                loop: start=0, step=1, limit=1
                $region159: #{diffusionnet_forward.7} parent=150 // loop_pre_header
                  _
                $region160: #{diffusionnet_forward.7} parent=150 // loop_header
                  %s603 = sphi 0, %s607
                  %p604 = scmp.ge.s32.totalorder %s603, 1
                  %s608 = sphi %s511, %s511
                  %s609 = sphi %s507, %s507
                $region161: #{diffusionnet_forward.7} parent=150 // loop_header_branch
                  %606 = sbr.rel (%p604) target = $region165
                $region162: #{diffusionnet_forward.7} parent=150 // loop_body
                  %v610 = vld [vmem:[%s608] sm:$0xf]
                  %611 = vst [vmem:[%s609] sm:$0xf] %v610
                  %v612 = vld [vmem:[%s608 + $0x8] sm:$0xf]
                  %613 = vst [vmem:[%s609 + $0x4] sm:$0xf] %v612
                  %v614 = vld [vmem:[%s608 + $0x10] sm:$0xf]
                  %615 = vst [vmem:[%s609 + $0x8] sm:$0xf] %v614
                  %v616 = vld [vmem:[%s608 + $0x18] sm:$0xf]
                  %617 = vst [vmem:[%s609 + $0xc] sm:$0xf] %v616
                  %v618 = vld [vmem:[%s608 + $0x20] sm:$0xf]
                  %619 = vst [vmem:[%s609 + $0x10] sm:$0xf] %v618
                  %v620 = vld [vmem:[%s608 + $0x28] sm:$0xf]
                  %621 = vst [vmem:[%s609 + $0x14] sm:$0xf] %v620
                  %v622 = vld [vmem:[%s608 + $0x30] sm:$0xf]
                  %623 = vst [vmem:[%s609 + $0x18] sm:$0xf] %v622
                  %v624 = vld [vmem:[%s608 + $0x38] sm:$0xf]
                  %625 = vst [vmem:[%s609 + $0x1c] sm:$0xf] %v624
                  %v626 = vld [vmem:[%s608 + $0x40] sm:$0xf]
                  %627 = vst [vmem:[%s609 + $0x20] sm:$0xf] %v626
                  %v628 = vld [vmem:[%s608 + $0x48] sm:$0xf]
                  %629 = vst [vmem:[%s609 + $0x24] sm:$0xf] %v628
                  %v630 = vld [vmem:[%s608 + $0x50] sm:$0xf]
                  %631 = vst [vmem:[%s609 + $0x28] sm:$0xf] %v630
                  %v632 = vld [vmem:[%s608 + $0x58] sm:$0xf]
                  %633 = vst [vmem:[%s609 + $0x2c] sm:$0xf] %v632
                  %v634 = vld [vmem:[%s608 + $0x60] sm:$0xf]
                  %635 = vst [vmem:[%s609 + $0x30] sm:$0xf] %v634
                  %v636 = vld [vmem:[%s608 + $0x68] sm:$0xf]
                  %637 = vst [vmem:[%s609 + $0x34] sm:$0xf] %v636
                  %v638 = vld [vmem:[%s608 + $0x70] sm:$0xf]
                  %639 = vst [vmem:[%s609 + $0x38] sm:$0xf] %v638
                  %v640 = vld [vmem:[%s608 + $0x78] sm:$0xf]
                  %641 = vst [vmem:[%s609 + $0x3c] sm:$0xf] %v640
                  %v642 = vld [vmem:[%s608 + $0x80] sm:$0xf]
                  %643 = vst [vmem:[%s609 + $0x40] sm:$0xf] %v642
                  %v644 = vld [vmem:[%s608 + $0x88] sm:$0xf]
                  %645 = vst [vmem:[%s609 + $0x44] sm:$0xf] %v644
                  %v646 = vld [vmem:[%s608 + $0x90] sm:$0xf]
                  %647 = vst [vmem:[%s609 + $0x48] sm:$0xf] %v646
                  %v648 = vld [vmem:[%s608 + $0x98] sm:$0xf]
                  %649 = vst [vmem:[%s609 + $0x4c] sm:$0xf] %v648
                  %v650 = vld [vmem:[%s608 + $0xa0] sm:$0xf]
                  %651 = vst [vmem:[%s609 + $0x50] sm:$0xf] %v650
                  %v652 = vld [vmem:[%s608 + $0xa8] sm:$0xf]
                  %653 = vst [vmem:[%s609 + $0x54] sm:$0xf] %v652
                  %v654 = vld [vmem:[%s608 + $0xb0] sm:$0xf]
                  %655 = vst [vmem:[%s609 + $0x58] sm:$0xf] %v654
                  %v656 = vld [vmem:[%s608 + $0xb8] sm:$0xf]
                  %657 = vst [vmem:[%s609 + $0x5c] sm:$0xf] %v656
                  %v658 = vld [vmem:[%s608 + $0xc0] sm:$0xf]
                  %659 = vst [vmem:[%s609 + $0x60] sm:$0xf] %v658
                  %v660 = vld [vmem:[%s608 + $0xc8] sm:$0xf]
                  %661 = vst [vmem:[%s609 + $0x64] sm:$0xf] %v660
                  %v662 = vld [vmem:[%s608 + $0xd0] sm:$0xf]
                  %663 = vst [vmem:[%s609 + $0x68] sm:$0xf] %v662
                  %v664 = vld [vmem:[%s608 + $0xd8] sm:$0xf]
                  %665 = vst [vmem:[%s609 + $0x6c] sm:$0xf] %v664
                  %v666 = vld [vmem:[%s608 + $0xe0] sm:$0xf]
                  %667 = vst [vmem:[%s609 + $0x70] sm:$0xf] %v666
                  %v668 = vld [vmem:[%s608 + $0xe8] sm:$0xf]
                  %669 = vst [vmem:[%s609 + $0x74] sm:$0xf] %v668
                  %v670 = vld [vmem:[%s608 + $0xf0] sm:$0xf]
                  %671 = vst [vmem:[%s609 + $0x78] sm:$0xf] %v670
                  %v672 = vld [vmem:[%s608 + $0xf8] sm:$0xf]
                  %673 = vst [vmem:[%s609 + $0x7c] sm:$0xf] %v672
                $region163: #{diffusionnet_forward.7} parent=150 // loop_footer
                  %s607 = sadd.s32 1, %s603
                $region164: #{diffusionnet_forward.7} parent=150 // loop_footer_branch
                  %602 = sbr.rel target = $region160
                $region165: #{diffusionnet_forward.7} parent=150 // loop_exit
                  _
              $region151: #{diffusionnet_forward.7} parent=135 // pred_fallthru
                _
            $region136: #{diffusionnet_forward.7} parent=131 // pred_fallthru
              _
            // Predicated region
            $region137: #{diffusionnet_forward.7} parent=131 // pred_check
              _
            $region138: #{diffusionnet_forward.7} parent=131 // pred_check_branch
              %517 = sbr.rel (0) target = $region140
            $region139: #{diffusionnet_forward.7} parent=131 // pred_region
              loop: start=0, step=1, limit=1
              $region141: #{diffusionnet_forward.7} parent=139 // loop_pre_header
                _
              $region142: #{diffusionnet_forward.7} parent=139 // loop_header
                %s520 = sphi 0, %s524
                %p521 = scmp.ge.s32.totalorder %s520, 1
                %s525 = sphi %s511, %s511
                %s526 = sphi %s507, %s507
              $region143: #{diffusionnet_forward.7} parent=139 // loop_header_branch
                %523 = sbr.rel (%p521) target = $region147
              $region144: #{diffusionnet_forward.7} parent=139 // loop_body
                %v527 = vld [vmem:[%s525] sm:$0xf]
                %528 = vst [vmem:[%s526] sm:$0xf] %v527
                %v529 = vld [vmem:[%s525 + $0x8] sm:$0xf]
                %530 = vst [vmem:[%s526 + $0x4] sm:$0xf] %v529
                %v531 = vld [vmem:[%s525 + $0x10] sm:$0xf]
                %532 = vst [vmem:[%s526 + $0x8] sm:$0xf] %v531
                %v533 = vld [vmem:[%s525 + $0x18] sm:$0xf]
                %534 = vst [vmem:[%s526 + $0xc] sm:$0xf] %v533
                %v535 = vld [vmem:[%s525 + $0x20] sm:$0xf]
                %536 = vst [vmem:[%s526 + $0x10] sm:$0xf] %v535
                %v537 = vld [vmem:[%s525 + $0x28] sm:$0xf]
                %538 = vst [vmem:[%s526 + $0x14] sm:$0xf] %v537
                %v539 = vld [vmem:[%s525 + $0x30] sm:$0xf]
                %540 = vst [vmem:[%s526 + $0x18] sm:$0xf] %v539
                %v541 = vld [vmem:[%s525 + $0x38] sm:$0xf]
                %542 = vst [vmem:[%s526 + $0x1c] sm:$0xf] %v541
                %v543 = vld [vmem:[%s525 + $0x40] sm:$0xf]
                %544 = vst [vmem:[%s526 + $0x20] sm:$0xf] %v543
                %v545 = vld [vmem:[%s525 + $0x48] sm:$0xf]
                %546 = vst [vmem:[%s526 + $0x24] sm:$0xf] %v545
                %v547 = vld [vmem:[%s525 + $0x50] sm:$0xf]
                %548 = vst [vmem:[%s526 + $0x28] sm:$0xf] %v547
                %v549 = vld [vmem:[%s525 + $0x58] sm:$0xf]
                %550 = vst [vmem:[%s526 + $0x2c] sm:$0xf] %v549
                %v551 = vld [vmem:[%s525 + $0x60] sm:$0xf]
                %552 = vst [vmem:[%s526 + $0x30] sm:$0xf] %v551
                %v553 = vld [vmem:[%s525 + $0x68] sm:$0xf]
                %554 = vst [vmem:[%s526 + $0x34] sm:$0xf] %v553
                %v555 = vld [vmem:[%s525 + $0x70] sm:$0xf]
                %556 = vst [vmem:[%s526 + $0x38] sm:$0xf] %v555
                %v557 = vld [vmem:[%s525 + $0x78] sm:$0xf]
                %558 = vst [vmem:[%s526 + $0x3c] sm:$0xf] %v557
                %v559 = vld [vmem:[%s525 + $0x80] sm:$0xf]
                %560 = vst [vmem:[%s526 + $0x40] sm:$0xf] %v559
                %v561 = vld [vmem:[%s525 + $0x88] sm:$0xf]
                %562 = vst [vmem:[%s526 + $0x44] sm:$0xf] %v561
                %v563 = vld [vmem:[%s525 + $0x90] sm:$0xf]
                %564 = vst [vmem:[%s526 + $0x48] sm:$0xf] %v563
                %v565 = vld [vmem:[%s525 + $0x98] sm:$0xf]
                %566 = vst [vmem:[%s526 + $0x4c] sm:$0xf] %v565
                %v567 = vld [vmem:[%s525 + $0xa0] sm:$0xf]
                %568 = vst [vmem:[%s526 + $0x50] sm:$0xf] %v567
                %v569 = vld [vmem:[%s525 + $0xa8] sm:$0xf]
                %570 = vst [vmem:[%s526 + $0x54] sm:$0xf] %v569
                %v571 = vld [vmem:[%s525 + $0xb0] sm:$0xf]
                %572 = vst [vmem:[%s526 + $0x58] sm:$0xf] %v571
                %v573 = vld [vmem:[%s525 + $0xb8] sm:$0xf]
                %574 = vst [vmem:[%s526 + $0x5c] sm:$0xf] %v573
                %v575 = vld [vmem:[%s525 + $0xc0] sm:$0xf]
                %576 = vst [vmem:[%s526 + $0x60] sm:$0xf] %v575
                %v577 = vld [vmem:[%s525 + $0xc8] sm:$0xf]
                %578 = vst [vmem:[%s526 + $0x64] sm:$0xf] %v577
                %v579 = vld [vmem:[%s525 + $0xd0] sm:$0xf]
                %580 = vst [vmem:[%s526 + $0x68] sm:$0xf] %v579
                %v581 = vld [vmem:[%s525 + $0xd8] sm:$0xf]
                %582 = vst [vmem:[%s526 + $0x6c] sm:$0xf] %v581
                %v583 = vld [vmem:[%s525 + $0xe0] sm:$0xf]
                %584 = vst [vmem:[%s526 + $0x70] sm:$0xf] %v583
                %v585 = vld [vmem:[%s525 + $0xe8] sm:$0xf]
                %586 = vst [vmem:[%s526 + $0x74] sm:$0xf] %v585
                %v587 = vld [vmem:[%s525 + $0xf0] sm:$0xf]
                %588 = vst [vmem:[%s526 + $0x78] sm:$0xf] %v587
                %v589 = vld [vmem:[%s525 + $0xf8] sm:$0xf]
                %590 = vst [vmem:[%s526 + $0x7c] sm:$0xf] %v589
              $region145: #{diffusionnet_forward.7} parent=139 // loop_footer
                %s524 = sadd.s32 1, %s520
              $region146: #{diffusionnet_forward.7} parent=139 // loop_footer_branch
                %519 = sbr.rel target = $region142
              $region147: #{diffusionnet_forward.7} parent=139 // loop_exit
                _
            $region140: #{diffusionnet_forward.7} parent=131 // pred_fallthru
              _
          $region132: #{diffusionnet_forward.7} parent=127 // pred_fallthru
            _
          %674 = vnop
        $region128: #{diffusionnet_forward.7} parent=43 // pred_fallthru
          _
        // Predicated region
        $region166: #{diffusionnet_forward.7} parent=43 // pred_check
          %p675 = pneg %p162
        $region167: #{diffusionnet_forward.7} parent=43 // pred_check_branch
          %677 = sbr.rel (%p675) target = $region169
        $region168: #{diffusionnet_forward.7} parent=43 // pred_region
          %s678 = sand.u32 %s152, 1
          %s679 = sand.u32 %s152, 1
          %s680 = smul.addr %s679, 128
          %s681 = scalar_lea.vmem [#allocation5], %s680
          %s682 = smul.addr %s25, 64
          %s683 = sadd.s32 %s26, %s682
          %s684 = smul.addr %s683, 4
          %s685 = scalar_lea.vmem %s4, %s684
          // Predicated region
          $region170: #{diffusionnet_forward.7} parent=168 // pred_check
            _
          $region171: #{diffusionnet_forward.7} parent=168 // pred_check_branch
            %687 = sbr.rel (0) target = $region173
          $region172: #{diffusionnet_forward.7} parent=168 // pred_region
            // Predicated region
            $region174: #{diffusionnet_forward.7} parent=172 // pred_check
              _
            $region175: #{diffusionnet_forward.7} parent=172 // pred_check_branch
              %689 = sbr.rel target = $region177
            $region176: #{diffusionnet_forward.7} parent=172 // pred_region
              // Predicated region
              $region189: #{diffusionnet_forward.7} parent=176 // pred_check
                _
              $region190: #{diffusionnet_forward.7} parent=176 // pred_check_branch
                %766 = sbr.rel (0) target = $region192
              $region191: #{diffusionnet_forward.7} parent=176 // pred_region
                loop: start=0, step=1, limit=1
                $region193: #{diffusionnet_forward.7} parent=191 // loop_pre_header
                  _
                $region194: #{diffusionnet_forward.7} parent=191 // loop_header
                  %s768 = sphi 0, %s772
                  %p769 = scmp.ge.s32.totalorder %s768, 1
                  %s773 = sphi %s685, %s685
                  %s774 = sphi %s681, %s681
                $region195: #{diffusionnet_forward.7} parent=191 // loop_header_branch
                  %771 = sbr.rel (%p769) target = $region199
                $region196: #{diffusionnet_forward.7} parent=191 // loop_body
                  _
                $region197: #{diffusionnet_forward.7} parent=191 // loop_footer
                  %s772 = sadd.s32 1, %s768
                $region198: #{diffusionnet_forward.7} parent=191 // loop_footer_branch
                  %767 = sbr.rel target = $region194
                $region199: #{diffusionnet_forward.7} parent=191 // loop_exit
                  _
                loop: start=0, step=1, limit=1
                $region200: #{diffusionnet_forward.7} parent=191 // loop_pre_header
                  _
                $region201: #{diffusionnet_forward.7} parent=191 // loop_header
                  %s777 = sphi 0, %s781
                  %p778 = scmp.ge.s32.totalorder %s777, 1
                  %s782 = sphi %s685, %s685
                  %s783 = sphi %s681, %s681
                $region202: #{diffusionnet_forward.7} parent=191 // loop_header_branch
                  %780 = sbr.rel (%p778) target = $region206
                $region203: #{diffusionnet_forward.7} parent=191 // loop_body
                  %v784 = vld [vmem:[%s782] sm:$0xf]
                  %785 = vst [vmem:[%s783] sm:$0xf] %v784
                  %v786 = vld [vmem:[%s782 + $0x8] sm:$0xf]
                  %787 = vst [vmem:[%s783 + $0x4] sm:$0xf] %v786
                  %v788 = vld [vmem:[%s782 + $0x10] sm:$0xf]
                  %789 = vst [vmem:[%s783 + $0x8] sm:$0xf] %v788
                  %v790 = vld [vmem:[%s782 + $0x18] sm:$0xf]
                  %791 = vst [vmem:[%s783 + $0xc] sm:$0xf] %v790
                  %v792 = vld [vmem:[%s782 + $0x20] sm:$0xf]
                  %793 = vst [vmem:[%s783 + $0x10] sm:$0xf] %v792
                  %v794 = vld [vmem:[%s782 + $0x28] sm:$0xf]
                  %795 = vst [vmem:[%s783 + $0x14] sm:$0xf] %v794
                  %v796 = vld [vmem:[%s782 + $0x30] sm:$0xf]
                  %797 = vst [vmem:[%s783 + $0x18] sm:$0xf] %v796
                  %v798 = vld [vmem:[%s782 + $0x38] sm:$0xf]
                  %799 = vst [vmem:[%s783 + $0x1c] sm:$0xf] %v798
                  %v800 = vld [vmem:[%s782 + $0x40] sm:$0xf]
                  %801 = vst [vmem:[%s783 + $0x20] sm:$0xf] %v800
                  %v802 = vld [vmem:[%s782 + $0x48] sm:$0xf]
                  %803 = vst [vmem:[%s783 + $0x24] sm:$0xf] %v802
                  %v804 = vld [vmem:[%s782 + $0x50] sm:$0xf]
                  %805 = vst [vmem:[%s783 + $0x28] sm:$0xf] %v804
                  %v806 = vld [vmem:[%s782 + $0x58] sm:$0xf]
                  %807 = vst [vmem:[%s783 + $0x2c] sm:$0xf] %v806
                  %v808 = vld [vmem:[%s782 + $0x60] sm:$0xf]
                  %809 = vst [vmem:[%s783 + $0x30] sm:$0xf] %v808
                  %v810 = vld [vmem:[%s782 + $0x68] sm:$0xf]
                  %811 = vst [vmem:[%s783 + $0x34] sm:$0xf] %v810
                  %v812 = vld [vmem:[%s782 + $0x70] sm:$0xf]
                  %813 = vst [vmem:[%s783 + $0x38] sm:$0xf] %v812
                  %v814 = vld [vmem:[%s782 + $0x78] sm:$0xf]
                  %815 = vst [vmem:[%s783 + $0x3c] sm:$0xf] %v814
                  %v816 = vld [vmem:[%s782 + $0x80] sm:$0xf]
                  %817 = vst [vmem:[%s783 + $0x40] sm:$0xf] %v816
                  %v818 = vld [vmem:[%s782 + $0x88] sm:$0xf]
                  %819 = vst [vmem:[%s783 + $0x44] sm:$0xf] %v818
                  %v820 = vld [vmem:[%s782 + $0x90] sm:$0xf]
                  %821 = vst [vmem:[%s783 + $0x48] sm:$0xf] %v820
                  %v822 = vld [vmem:[%s782 + $0x98] sm:$0xf]
                  %823 = vst [vmem:[%s783 + $0x4c] sm:$0xf] %v822
                  %v824 = vld [vmem:[%s782 + $0xa0] sm:$0xf]
                  %825 = vst [vmem:[%s783 + $0x50] sm:$0xf] %v824
                  %v826 = vld [vmem:[%s782 + $0xa8] sm:$0xf]
                  %827 = vst [vmem:[%s783 + $0x54] sm:$0xf] %v826
                  %v828 = vld [vmem:[%s782 + $0xb0] sm:$0xf]
                  %829 = vst [vmem:[%s783 + $0x58] sm:$0xf] %v828
                  %v830 = vld [vmem:[%s782 + $0xb8] sm:$0xf]
                  %831 = vst [vmem:[%s783 + $0x5c] sm:$0xf] %v830
                  %v832 = vld [vmem:[%s782 + $0xc0] sm:$0xf]
                  %833 = vst [vmem:[%s783 + $0x60] sm:$0xf] %v832
                  %v834 = vld [vmem:[%s782 + $0xc8] sm:$0xf]
                  %835 = vst [vmem:[%s783 + $0x64] sm:$0xf] %v834
                  %v836 = vld [vmem:[%s782 + $0xd0] sm:$0xf]
                  %837 = vst [vmem:[%s783 + $0x68] sm:$0xf] %v836
                  %v838 = vld [vmem:[%s782 + $0xd8] sm:$0xf]
                  %839 = vst [vmem:[%s783 + $0x6c] sm:$0xf] %v838
                  %v840 = vld [vmem:[%s782 + $0xe0] sm:$0xf]
                  %841 = vst [vmem:[%s783 + $0x70] sm:$0xf] %v840
                  %v842 = vld [vmem:[%s782 + $0xe8] sm:$0xf]
                  %843 = vst [vmem:[%s783 + $0x74] sm:$0xf] %v842
                  %v844 = vld [vmem:[%s782 + $0xf0] sm:$0xf]
                  %845 = vst [vmem:[%s783 + $0x78] sm:$0xf] %v844
                  %v846 = vld [vmem:[%s782 + $0xf8] sm:$0xf]
                  %847 = vst [vmem:[%s783 + $0x7c] sm:$0xf] %v846
                $region204: #{diffusionnet_forward.7} parent=191 // loop_footer
                  %s781 = sadd.s32 1, %s777
                $region205: #{diffusionnet_forward.7} parent=191 // loop_footer_branch
                  %776 = sbr.rel target = $region201
                $region206: #{diffusionnet_forward.7} parent=191 // loop_exit
                  _
              $region192: #{diffusionnet_forward.7} parent=176 // pred_fallthru
                _
            $region177: #{diffusionnet_forward.7} parent=172 // pred_fallthru
              _
            // Predicated region
            $region178: #{diffusionnet_forward.7} parent=172 // pred_check
              _
            $region179: #{diffusionnet_forward.7} parent=172 // pred_check_branch
              %691 = sbr.rel (0) target = $region181
            $region180: #{diffusionnet_forward.7} parent=172 // pred_region
              loop: start=0, step=1, limit=1
              $region182: #{diffusionnet_forward.7} parent=180 // loop_pre_header
                _
              $region183: #{diffusionnet_forward.7} parent=180 // loop_header
                %s694 = sphi 0, %s698
                %p695 = scmp.ge.s32.totalorder %s694, 1
                %s699 = sphi %s685, %s685
                %s700 = sphi %s681, %s681
              $region184: #{diffusionnet_forward.7} parent=180 // loop_header_branch
                %697 = sbr.rel (%p695) target = $region188
              $region185: #{diffusionnet_forward.7} parent=180 // loop_body
                %v701 = vld [vmem:[%s699] sm:$0xf]
                %702 = vst [vmem:[%s700] sm:$0xf] %v701
                %v703 = vld [vmem:[%s699 + $0x8] sm:$0xf]
                %704 = vst [vmem:[%s700 + $0x4] sm:$0xf] %v703
                %v705 = vld [vmem:[%s699 + $0x10] sm:$0xf]
                %706 = vst [vmem:[%s700 + $0x8] sm:$0xf] %v705
                %v707 = vld [vmem:[%s699 + $0x18] sm:$0xf]
                %708 = vst [vmem:[%s700 + $0xc] sm:$0xf] %v707
                %v709 = vld [vmem:[%s699 + $0x20] sm:$0xf]
                %710 = vst [vmem:[%s700 + $0x10] sm:$0xf] %v709
                %v711 = vld [vmem:[%s699 + $0x28] sm:$0xf]
                %712 = vst [vmem:[%s700 + $0x14] sm:$0xf] %v711
                %v713 = vld [vmem:[%s699 + $0x30] sm:$0xf]
                %714 = vst [vmem:[%s700 + $0x18] sm:$0xf] %v713
                %v715 = vld [vmem:[%s699 + $0x38] sm:$0xf]
                %716 = vst [vmem:[%s700 + $0x1c] sm:$0xf] %v715
                %v717 = vld [vmem:[%s699 + $0x40] sm:$0xf]
                %718 = vst [vmem:[%s700 + $0x20] sm:$0xf] %v717
                %v719 = vld [vmem:[%s699 + $0x48] sm:$0xf]
                %720 = vst [vmem:[%s700 + $0x24] sm:$0xf] %v719
                %v721 = vld [vmem:[%s699 + $0x50] sm:$0xf]
                %722 = vst [vmem:[%s700 + $0x28] sm:$0xf] %v721
                %v723 = vld [vmem:[%s699 + $0x58] sm:$0xf]
                %724 = vst [vmem:[%s700 + $0x2c] sm:$0xf] %v723
                %v725 = vld [vmem:[%s699 + $0x60] sm:$0xf]
                %726 = vst [vmem:[%s700 + $0x30] sm:$0xf] %v725
                %v727 = vld [vmem:[%s699 + $0x68] sm:$0xf]
                %728 = vst [vmem:[%s700 + $0x34] sm:$0xf] %v727
                %v729 = vld [vmem:[%s699 + $0x70] sm:$0xf]
                %730 = vst [vmem:[%s700 + $0x38] sm:$0xf] %v729
                %v731 = vld [vmem:[%s699 + $0x78] sm:$0xf]
                %732 = vst [vmem:[%s700 + $0x3c] sm:$0xf] %v731
                %v733 = vld [vmem:[%s699 + $0x80] sm:$0xf]
                %734 = vst [vmem:[%s700 + $0x40] sm:$0xf] %v733
                %v735 = vld [vmem:[%s699 + $0x88] sm:$0xf]
                %736 = vst [vmem:[%s700 + $0x44] sm:$0xf] %v735
                %v737 = vld [vmem:[%s699 + $0x90] sm:$0xf]
                %738 = vst [vmem:[%s700 + $0x48] sm:$0xf] %v737
                %v739 = vld [vmem:[%s699 + $0x98] sm:$0xf]
                %740 = vst [vmem:[%s700 + $0x4c] sm:$0xf] %v739
                %v741 = vld [vmem:[%s699 + $0xa0] sm:$0xf]
                %742 = vst [vmem:[%s700 + $0x50] sm:$0xf] %v741
                %v743 = vld [vmem:[%s699 + $0xa8] sm:$0xf]
                %744 = vst [vmem:[%s700 + $0x54] sm:$0xf] %v743
                %v745 = vld [vmem:[%s699 + $0xb0] sm:$0xf]
                %746 = vst [vmem:[%s700 + $0x58] sm:$0xf] %v745
                %v747 = vld [vmem:[%s699 + $0xb8] sm:$0xf]
                %748 = vst [vmem:[%s700 + $0x5c] sm:$0xf] %v747
                %v749 = vld [vmem:[%s699 + $0xc0] sm:$0xf]
                %750 = vst [vmem:[%s700 + $0x60] sm:$0xf] %v749
                %v751 = vld [vmem:[%s699 + $0xc8] sm:$0xf]
                %752 = vst [vmem:[%s700 + $0x64] sm:$0xf] %v751
                %v753 = vld [vmem:[%s699 + $0xd0] sm:$0xf]
                %754 = vst [vmem:[%s700 + $0x68] sm:$0xf] %v753
                %v755 = vld [vmem:[%s699 + $0xd8] sm:$0xf]
                %756 = vst [vmem:[%s700 + $0x6c] sm:$0xf] %v755
                %v757 = vld [vmem:[%s699 + $0xe0] sm:$0xf]
                %758 = vst [vmem:[%s700 + $0x70] sm:$0xf] %v757
                %v759 = vld [vmem:[%s699 + $0xe8] sm:$0xf]
                %760 = vst [vmem:[%s700 + $0x74] sm:$0xf] %v759
                %v761 = vld [vmem:[%s699 + $0xf0] sm:$0xf]
                %762 = vst [vmem:[%s700 + $0x78] sm:$0xf] %v761
                %v763 = vld [vmem:[%s699 + $0xf8] sm:$0xf]
                %764 = vst [vmem:[%s700 + $0x7c] sm:$0xf] %v763
              $region186: #{diffusionnet_forward.7} parent=180 // loop_footer
                %s698 = sadd.s32 1, %s694
              $region187: #{diffusionnet_forward.7} parent=180 // loop_footer_branch
                %693 = sbr.rel target = $region183
              $region188: #{diffusionnet_forward.7} parent=180 // loop_exit
                _
            $region181: #{diffusionnet_forward.7} parent=172 // pred_fallthru
              _
          $region173: #{diffusionnet_forward.7} parent=168 // pred_fallthru
            _
          %848 = vnop
        $region169: #{diffusionnet_forward.7} parent=43 // pred_fallthru
          _
      $region44: #{diffusionnet_forward.7} parent=5 // pred_fallthru
        _
      %p849 = scmp.le.s32.totalorder 1, %s18
      %p850 = scmp.lt.s32.totalorder %s18, 5
      %p851 = pnand %p849, %p850
      %p852 = pneg %p851
      // Predicated region
      $region207: #{diffusionnet_forward.7} parent=5 // pred_check
        _
      $region208: #{diffusionnet_forward.7} parent=5 // pred_check_branch
        %854 = sbr.rel (%p851) target = $region210
      $region209: #{diffusionnet_forward.7} parent=5 // pred_region
        %s855 = ssub.s32 %s18, 1
        %s856 = sand.u32 %s45, 1
        %s857 = sand.u32 %s45, 1
        %s858 = smul.addr %s857, 32
        %s859 = scalar_lea.vmem [#allocation2], %s858
        // Predicated region
        $region211: #{diffusionnet_forward.7} parent=209 // pred_check
          %p860 = pneg %p58
        $region212: #{diffusionnet_forward.7} parent=209 // pred_check_branch
          %862 = sbr.rel (%p860) target = $region214
        $region213: #{diffusionnet_forward.7} parent=209 // pred_region
          _
        $region214: #{diffusionnet_forward.7} parent=209 // pred_fallthru
          _
        %s863 = sand.u32 %s73, 1
        %s864 = sand.u32 %s73, 1
        %s865 = smul.addr %s864, 32
        %s866 = scalar_lea.vmem [#allocation3], %s865
        // Predicated region
        $region215: #{diffusionnet_forward.7} parent=209 // pred_check
          %p867 = pneg %p86
        $region216: #{diffusionnet_forward.7} parent=209 // pred_check_branch
          %869 = sbr.rel (%p867) target = $region218
        $region217: #{diffusionnet_forward.7} parent=209 // pred_region
          _
        $region218: #{diffusionnet_forward.7} parent=209 // pred_fallthru
          _
        %s870 = sand.u32 %s127, 1
        %s871 = sand.u32 %s127, 1
        %s872 = smul.addr %s871, 128
        %s873 = scalar_lea.vmem [#allocation4], %s872
        // Predicated region
        $region219: #{diffusionnet_forward.7} parent=209 // pred_check
          %p874 = pneg %p140
        $region220: #{diffusionnet_forward.7} parent=209 // pred_check_branch
          %876 = sbr.rel (%p874) target = $region222
        $region221: #{diffusionnet_forward.7} parent=209 // pred_region
          _
        $region222: #{diffusionnet_forward.7} parent=209 // pred_fallthru
          _
        %s877 = sand.u32 %s155, 1
        %s878 = sand.u32 %s155, 1
        %s879 = smul.addr %s878, 128
        %s880 = scalar_lea.vmem [#allocation5], %s879
        // Predicated region
        $region223: #{diffusionnet_forward.7} parent=209 // pred_check
          %p881 = pneg %p168
        $region224: #{diffusionnet_forward.7} parent=209 // pred_check_branch
          %883 = sbr.rel (%p881) target = $region226
        $region225: #{diffusionnet_forward.7} parent=209 // pred_region
          _
        $region226: #{diffusionnet_forward.7} parent=209 // pred_fallthru
          _
        %s884 = sand.u32 %s45, 1
        %s885 = sand.u32 %s45, 1
        %s886 = smul.addr %s885, 32
        %s887 = scalar_lea.vmem [#allocation2], %s886
        %p888 = pneg %p58
        %p889 = pneg %p55
        %s890 = sand.u32 %s73, 1
        %s891 = sand.u32 %s73, 1
        %s892 = smul.addr %s891, 32
        %s893 = scalar_lea.vmem [#allocation3], %s892
        %p894 = pneg %p86
        %p895 = pneg %p83
        %p896 = scmp.lt.s32.totalorder %s27, 1
        %s897 = scalar_select %p896, %s27, 1
        %s898 = smul.addr %s897, 8
        %s899 = smul.addr %s898, 4
        %s900 = scalar_lea.vmem %s2, %s899
        %p901 = pneg %p112
        %p902 = pneg %p109
        %s903 = sand.u32 %s127, 1
        %s904 = sand.u32 %s127, 1
        %s905 = smul.addr %s904, 128
        %s906 = scalar_lea.vmem [#allocation4], %s905
        %p907 = pneg %p140
        %p908 = pneg %p137
        %s909 = sand.u32 %s155, 1
        %s910 = sand.u32 %s155, 1
        %s911 = smul.addr %s910, 128
        %s912 = scalar_lea.vmem [#allocation5], %s911
        %p913 = pneg %p168
        %p914 = pneg %p165
        %p915 = pneg %p189
        %p916 = pneg %p186
        %p917 = pneg %p210
        %p918 = pneg %p207
        %p919 = pneg %p231
        %p920 = pneg %p228
        %p921 = pneg %p252
        %p922 = pneg %p249
        %p923 = pneg %p273
        %p924 = pneg %p270
        %p925 = pneg %p294
        %p926 = pneg %p291
        %p927 = pneg %p315
        %p928 = pneg %p312
        %p929 = pneg %p343
        %p930 = pneg %p340
        %s931 = sand.u32 %s330, 1
        %s932 = sand.u32 %s330, 1
        %s933 = smul.addr %s932, 32
        %s934 = scalar_lea.vmem [#allocation6], %s933
        %p935 = scmp.lt.s32.totalorder %s27, 1
        %s936 = scalar_select %p935, %s27, 1
        %s937 = smul.addr %s936, 8
        %s938 = smul.addr %s937, 4
        %s939 = scalar_lea.vmem %s2, %s938
        %v941 = vld [vmem:[%s939] sm:$0xff]
        %v942 = vld [vmem:[%s939 + $0x8] sm:$0xff]
        %v943 = vld [vmem:[%s939 + $0x10] sm:$0xff]
        %v944 = vld [vmem:[%s939 + $0x18] sm:$0xff]
        %v945 = vld [vmem:[%s873] sm:$0xf]
        %v946 = vld [vmem:[%s873 + $0x4] sm:$0xf]
        %v947 = vld [vmem:[%s873 + $0x8] sm:$0xf]
        %v948 = vld [vmem:[%s873 + $0xc] sm:$0xf]
        %v949 = vld [vmem:[%s873 + $0x10] sm:$0xf]
        %v950 = vld [vmem:[%s873 + $0x14] sm:$0xf]
        %v951 = vld [vmem:[%s873 + $0x18] sm:$0xf]
        %v952 = vld [vmem:[%s873 + $0x1c] sm:$0xf]
        %v953 = vld [vmem:[%s873 + $0x20] sm:$0xf]
        %v954 = vld [vmem:[%s873 + $0x24] sm:$0xf]
        %v955 = vld [vmem:[%s873 + $0x28] sm:$0xf]
        %v956 = vld [vmem:[%s873 + $0x2c] sm:$0xf]
        %v957 = vld [vmem:[%s873 + $0x30] sm:$0xf]
        %v958 = vld [vmem:[%s873 + $0x34] sm:$0xf]
        %v959 = vld [vmem:[%s873 + $0x38] sm:$0xf]
        %v960 = vld [vmem:[%s873 + $0x3c] sm:$0xf]
        %v961 = vld [vmem:[%s873 + $0x40] sm:$0xf]
        %v962 = vld [vmem:[%s873 + $0x44] sm:$0xf]
        %v963 = vld [vmem:[%s873 + $0x48] sm:$0xf]
        %v964 = vld [vmem:[%s873 + $0x4c] sm:$0xf]
        %v965 = vld [vmem:[%s873 + $0x50] sm:$0xf]
        %v966 = vld [vmem:[%s873 + $0x54] sm:$0xf]
        %v967 = vld [vmem:[%s873 + $0x58] sm:$0xf]
        %v968 = vld [vmem:[%s873 + $0x5c] sm:$0xf]
        %v969 = vld [vmem:[%s873 + $0x60] sm:$0xf]
        %v970 = vld [vmem:[%s873 + $0x64] sm:$0xf]
        %v971 = vld [vmem:[%s873 + $0x68] sm:$0xf]
        %v972 = vld [vmem:[%s873 + $0x6c] sm:$0xf]
        %v973 = vld [vmem:[%s873 + $0x70] sm:$0xf]
        %v974 = vld [vmem:[%s873 + $0x74] sm:$0xf]
        %v975 = vld [vmem:[%s873 + $0x78] sm:$0xf]
        %v976 = vld [vmem:[%s873 + $0x7c] sm:$0xf]
        %v981 = vunpack.c.l.b16 %v941
        %v982 = vunpack.c.h.b16 %v941
        %v983 = vunpack.c.l.b16 %v942
        %v984 = vunpack.c.h.b16 %v942
        %v985 = vunpack.c.l.b16 %v943
        %v986 = vunpack.c.h.b16 %v943
        %v987 = vunpack.c.l.b16 %v944
        %v988 = vunpack.c.h.b16 %v944
        %v989 = vpack.c.b16 %v983, %v981
        %v990 = vpack.c.b16 %v984, %v982
        %v991 = vpack.c.b16 %v987, %v985
        %v992 = vpack.c.b16 %v988, %v986
        %v1029 = vunpack.c.l.b16 %v945
        %v1030 = vunpack.c.l.b16 %v946
        %v1031 = vunpack.c.l.b16 %v947
        %v1032 = vunpack.c.l.b16 %v948
        %v1033 = vunpack.c.l.b16 %v949
        %v1034 = vunpack.c.l.b16 %v950
        %v1035 = vunpack.c.l.b16 %v951
        %v1036 = vunpack.c.l.b16 %v952
        %v1037 = vunpack.c.l.b16 %v953
        %v1038 = vunpack.c.l.b16 %v954
        %v1039 = vunpack.c.l.b16 %v955
        %v1040 = vunpack.c.l.b16 %v956
        %v1041 = vunpack.c.l.b16 %v957
        %v1042 = vunpack.c.l.b16 %v958
        %v1043 = vunpack.c.l.b16 %v959
        %v1044 = vunpack.c.l.b16 %v960
        %v1045 = vunpack.c.l.b16 %v961
        %v1046 = vunpack.c.l.b16 %v962
        %v1047 = vunpack.c.l.b16 %v963
        %v1048 = vunpack.c.l.b16 %v964
        %v1049 = vunpack.c.l.b16 %v965
        %v1050 = vunpack.c.l.b16 %v966
        %v1051 = vunpack.c.l.b16 %v967
        %v1052 = vunpack.c.l.b16 %v968
        %v1053 = vunpack.c.l.b16 %v969
        %v1054 = vunpack.c.l.b16 %v970
        %v1055 = vunpack.c.l.b16 %v971
        %v1056 = vunpack.c.l.b16 %v972
        %v1057 = vunpack.c.l.b16 %v973
        %v1058 = vunpack.c.l.b16 %v974
        %v1059 = vunpack.c.l.b16 %v975
        %v1060 = vunpack.c.l.b16 %v976
        %v1061 = vpack.c.b16 %v1030, %v1029
        %v1062 = vpack.c.b16 %v1032, %v1031
        %v1063 = vpack.c.b16 %v1034, %v1033
        %v1064 = vpack.c.b16 %v1036, %v1035
        %v1065 = vpack.c.b16 %v1038, %v1037
        %v1066 = vpack.c.b16 %v1040, %v1039
        %v1067 = vpack.c.b16 %v1042, %v1041
        %v1068 = vpack.c.b16 %v1044, %v1043
        %v1069 = vpack.c.b16 %v1046, %v1045
        %v1070 = vpack.c.b16 %v1048, %v1047
        %v1071 = vpack.c.b16 %v1050, %v1049
        %v1072 = vpack.c.b16 %v1052, %v1051
        %v1073 = vpack.c.b16 %v1054, %v1053
        %v1074 = vpack.c.b16 %v1056, %v1055
        %v1075 = vpack.c.b16 %v1058, %v1057
        %v1076 = vpack.c.b16 %v1060, %v1059
        %1093 = vmatprep.subr.bf16.mxu0 0
        %1094 = vmatpush1.bf16.msra.mxu0 %v1061
        %1095 = vmatprep.subr.bf16.mxu0 0
        %1096 = vmatpush1.bf16.msra.mxu0 %v1062
        %1097 = vmatprep.subr.bf16.mxu0 0
        %1098 = vmatpush1.bf16.msra.mxu0 %v1063
        %1099 = vmatprep.subr.bf16.mxu0 0
        %1100 = vmatpush1.bf16.msra.mxu0 %v1064
        %1101 = vmatprep.subr.bf16.mxu0 0
        %1102 = vmatpush1.bf16.msra.mxu0 %v1065
        %1103 = vmatprep.subr.bf16.mxu0 0
        %1104 = vmatpush1.bf16.msra.mxu0 %v1066
        %1105 = vmatprep.subr.bf16.mxu0 0
        %1106 = vmatpush1.bf16.msra.mxu0 %v1067
        %1107 = vmatprep.subr.bf16.mxu0 0
        %1108 = vmatpush1.bf16.msra.mxu0 %v1068
        %1109 = vmatprep.subr.bf16.mxu0 0
        %1110 = vmatpush1.bf16.msra.mxu0 %v1069
        %1111 = vmatprep.subr.bf16.mxu0 0
        %1112 = vmatpush1.bf16.msra.mxu0 %v1070
        %1113 = vmatprep.subr.bf16.mxu0 0
        %1114 = vmatpush1.bf16.msra.mxu0 %v1071
        %1115 = vmatprep.subr.bf16.mxu0 0
        %1116 = vmatpush1.bf16.msra.mxu0 %v1072
        %1117 = vmatprep.subr.bf16.mxu0 0
        %1118 = vmatpush1.bf16.msra.mxu0 %v1073
        %1119 = vmatprep.subr.bf16.mxu0 0
        %1120 = vmatpush1.bf16.msra.mxu0 %v1074
        %1121 = vmatprep.subr.bf16.mxu0 0
        %1122 = vmatpush1.bf16.msra.mxu0 %v1075
        %1123 = vmatprep.subr.bf16.mxu0 0
        %1124 = vmatpush1.bf16.msra.mxu0 %v1076
        %1125 = vmatprep.mubr.bf16.mxu0 %v990
        %1126 = vmatmul.mubr.bf16.gmra.mrb[0].mxu0 %v989
        %v1127 = vpop.f32.mrb[0].mxu0
        %v1128 = vadd.f32 0.0, %v1127
        %v1129 = vpop.f32.mrb[0].mxu0
        %v1130 = vpop.f32.mrb[0].mxu0
        %v1131 = vadd.f32 0.0, %v1130
        %v1132 = vpop.f32.mrb[0].mxu0
        %1133 = vmatprep.mubr.bf16.mxu0 %v992
        %1134 = vmatmul.mubr.bf16.gmra.mrb[0].mxu0 %v991
        %v1135 = vpop.f32.mrb[0].mxu0
        %v1136 = vadd.f32 0.0, %v1135
        %v1137 = vpop.f32.mrb[0].mxu0
        %v1138 = vpop.f32.mrb[0].mxu0
        %v1139 = vadd.f32 0.0, %v1138
        %v1140 = vpop.f32.mrb[0].mxu0
        %1141 = vdwg.mxu0
        %v1142 = vld [vmem:[%s880] sm:$0xf]
        %v1143 = vld [vmem:[%s880 + $0x4] sm:$0xf]
        %v1144 = vld [vmem:[%s880 + $0x8] sm:$0xf]
        %v1145 = vld [vmem:[%s880 + $0xc] sm:$0xf]
        %v1146 = vld [vmem:[%s880 + $0x10] sm:$0xf]
        %v1147 = vld [vmem:[%s880 + $0x14] sm:$0xf]
        %v1148 = vld [vmem:[%s880 + $0x18] sm:$0xf]
        %v1149 = vld [vmem:[%s880 + $0x1c] sm:$0xf]
        %v1150 = vld [vmem:[%s880 + $0x20] sm:$0xf]
        %v1151 = vld [vmem:[%s880 + $0x24] sm:$0xf]
        %v1152 = vld [vmem:[%s880 + $0x28] sm:$0xf]
        %v1153 = vld [vmem:[%s880 + $0x2c] sm:$0xf]
        %v1154 = vld [vmem:[%s880 + $0x30] sm:$0xf]
        %v1155 = vld [vmem:[%s880 + $0x34] sm:$0xf]
        %v1156 = vld [vmem:[%s880 + $0x38] sm:$0xf]
        %v1157 = vld [vmem:[%s880 + $0x3c] sm:$0xf]
        %v1158 = vld [vmem:[%s880 + $0x40] sm:$0xf]
        %v1159 = vld [vmem:[%s880 + $0x44] sm:$0xf]
        %v1160 = vld [vmem:[%s880 + $0x48] sm:$0xf]
        %v1161 = vld [vmem:[%s880 + $0x4c] sm:$0xf]
        %v1162 = vld [vmem:[%s880 + $0x50] sm:$0xf]
        %v1163 = vld [vmem:[%s880 + $0x54] sm:$0xf]
        %v1164 = vld [vmem:[%s880 + $0x58] sm:$0xf]
        %v1165 = vld [vmem:[%s880 + $0x5c] sm:$0xf]
        %v1166 = vld [vmem:[%s880 + $0x60] sm:$0xf]
        %v1167 = vld [vmem:[%s880 + $0x64] sm:$0xf]
        %v1168 = vld [vmem:[%s880 + $0x68] sm:$0xf]
        %v1169 = vld [vmem:[%s880 + $0x6c] sm:$0xf]
        %v1170 = vld [vmem:[%s880 + $0x70] sm:$0xf]
        %v1171 = vld [vmem:[%s880 + $0x74] sm:$0xf]
        %v1172 = vld [vmem:[%s880 + $0x78] sm:$0xf]
        %v1173 = vld [vmem:[%s880 + $0x7c] sm:$0xf]
        %v1206 = vunpack.c.l.b16 %v1142
        %v1207 = vunpack.c.l.b16 %v1143
        %v1208 = vunpack.c.l.b16 %v1144
        %v1209 = vunpack.c.l.b16 %v1145
        %v1210 = vunpack.c.l.b16 %v1146
        %v1211 = vunpack.c.l.b16 %v1147
        %v1212 = vunpack.c.l.b16 %v1148
        %v1213 = vunpack.c.l.b16 %v1149
        %v1214 = vunpack.c.l.b16 %v1150
        %v1215 = vunpack.c.l.b16 %v1151
        %v1216 = vunpack.c.l.b16 %v1152
        %v1217 = vunpack.c.l.b16 %v1153
        %v1218 = vunpack.c.l.b16 %v1154
        %v1219 = vunpack.c.l.b16 %v1155
        %v1220 = vunpack.c.l.b16 %v1156
        %v1221 = vunpack.c.l.b16 %v1157
        %v1222 = vunpack.c.l.b16 %v1158
        %v1223 = vunpack.c.l.b16 %v1159
        %v1224 = vunpack.c.l.b16 %v1160
        %v1225 = vunpack.c.l.b16 %v1161
        %v1226 = vunpack.c.l.b16 %v1162
        %v1227 = vunpack.c.l.b16 %v1163
        %v1228 = vunpack.c.l.b16 %v1164
        %v1229 = vunpack.c.l.b16 %v1165
        %v1230 = vunpack.c.l.b16 %v1166
        %v1231 = vunpack.c.l.b16 %v1167
        %v1232 = vunpack.c.l.b16 %v1168
        %v1233 = vunpack.c.l.b16 %v1169
        %v1234 = vunpack.c.l.b16 %v1170
        %v1235 = vunpack.c.l.b16 %v1171
        %v1236 = vunpack.c.l.b16 %v1172
        %v1237 = vunpack.c.l.b16 %v1173
        %v1238 = vpack.c.b16 %v1207, %v1206
        %v1239 = vpack.c.b16 %v1209, %v1208
        %v1240 = vpack.c.b16 %v1211, %v1210
        %v1241 = vpack.c.b16 %v1213, %v1212
        %v1242 = vpack.c.b16 %v1215, %v1214
        %v1243 = vpack.c.b16 %v1217, %v1216
        %v1244 = vpack.c.b16 %v1219, %v1218
        %v1245 = vpack.c.b16 %v1221, %v1220
        %v1246 = vpack.c.b16 %v1223, %v1222
        %v1247 = vpack.c.b16 %v1225, %v1224
        %v1248 = vpack.c.b16 %v1227, %v1226
        %v1249 = vpack.c.b16 %v1229, %v1228
        %v1250 = vpack.c.b16 %v1231, %v1230
        %v1251 = vpack.c.b16 %v1233, %v1232
        %v1252 = vpack.c.b16 %v1235, %v1234
        %v1253 = vpack.c.b16 %v1237, %v1236
        %1270 = vmatprep.subr.bf16.mxu0 0
        %1271 = vmatpush1.bf16.msra.mxu0 %v1238
        %1272 = vmatprep.subr.bf16.mxu0 0
        %1273 = vmatpush1.bf16.msra.mxu0 %v1239
        %1274 = vmatprep.subr.bf16.mxu0 0
        %1275 = vmatpush1.bf16.msra.mxu0 %v1240
        %1276 = vmatprep.subr.bf16.mxu0 0
        %1277 = vmatpush1.bf16.msra.mxu0 %v1241
        %1278 = vmatprep.subr.bf16.mxu0 0
        %1279 = vmatpush1.bf16.msra.mxu0 %v1242
        %1280 = vmatprep.subr.bf16.mxu0 0
        %1281 = vmatpush1.bf16.msra.mxu0 %v1243
        %1282 = vmatprep.subr.bf16.mxu0 0
        %1283 = vmatpush1.bf16.msra.mxu0 %v1244
        %1284 = vmatprep.subr.bf16.mxu0 0
        %1285 = vmatpush1.bf16.msra.mxu0 %v1245
        %1286 = vmatprep.subr.bf16.mxu0 0
        %1287 = vmatpush1.bf16.msra.mxu0 %v1246
        %1288 = vmatprep.subr.bf16.mxu0 0
        %1289 = vmatpush1.bf16.msra.mxu0 %v1247
        %1290 = vmatprep.subr.bf16.mxu0 0
        %1291 = vmatpush1.bf16.msra.mxu0 %v1248
        %1292 = vmatprep.subr.bf16.mxu0 0
        %1293 = vmatpush1.bf16.msra.mxu0 %v1249
        %1294 = vmatprep.subr.bf16.mxu0 0
        %1295 = vmatpush1.bf16.msra.mxu0 %v1250
        %1296 = vmatprep.subr.bf16.mxu0 0
        %1297 = vmatpush1.bf16.msra.mxu0 %v1251
        %1298 = vmatprep.subr.bf16.mxu0 0
        %1299 = vmatpush1.bf16.msra.mxu0 %v1252
        %1300 = vmatprep.subr.bf16.mxu0 0
        %1301 = vmatpush1.bf16.msra.mxu0 %v1253
        %1302 = vmatprep.mubr.bf16.mxu0 %v990
        %1303 = vmatmul.mubr.bf16.gmra.mrb[0].mxu0 %v989
        %v1304 = vpop.f32.mrb[0].mxu0
        %v1305 = vadd.f32 0.0, %v1304
        %v1306 = vpop.f32.mrb[0].mxu0
        %v1307 = vpop.f32.mrb[0].mxu0
        %v1308 = vadd.f32 0.0, %v1307
        %v1309 = vpop.f32.mrb[0].mxu0
        %1310 = vmatprep.mubr.bf16.mxu0 %v992
        %1311 = vmatmul.mubr.bf16.gmra.mrb[0].mxu0 %v991
        %v1312 = vpop.f32.mrb[0].mxu0
        %v1313 = vadd.f32 0.0, %v1312
        %v1314 = vpop.f32.mrb[0].mxu0
        %v1315 = vpop.f32.mrb[0].mxu0
        %v1316 = vadd.f32 0.0, %v1315
        %v1317 = vpop.f32.mrb[0].mxu0
        %1318 = vdwg.mxu0
        %v1319 = vld [vmem:[%s5] sm:$0xff]
        %v1320 = vld [vmem:[%s5 + $0x8] sm:$0xff]
        %v1321 = vld [vmem:[%s5 + $0x10] sm:$0xff]
        %v1322 = vld [vmem:[%s5 + $0x18] sm:$0xff]
        %v1323 = vld [vmem:[%s5 + $0x20] sm:$0xff]
        %v1324 = vld [vmem:[%s5 + $0x28] sm:$0xff]
        %v1325 = vld [vmem:[%s5 + $0x30] sm:$0xff]
        %v1326 = vld [vmem:[%s5 + $0x38] sm:$0xff]
        %vm1327 = vcmask 523264
        %v1329 = vsel %vm1327, %v1319, 0
        %v1332 = vsel %vm1327, %v1320, 0
        %v1335 = vsel %vm1327, %v1321, 0
        %v1338 = vsel %vm1327, %v1322, 0
        %v1341 = vsel %vm1327, %v1323, 0
        %v1344 = vsel %vm1327, %v1324, 0
        %v1347 = vsel %vm1327, %v1325, 0
        %v1350 = vsel %vm1327, %v1326, 0
        %1352 = vmatprep.subr.mxu0 0.0
        %1353 = vmatpush1.msra.mxu0 %v1128
        %1354 = vmatprep.subr.mxu0 0.0
        %1355 = vmatpush1.msra.mxu0 %v1131
        %1356 = vmatprep.subr.mxu0 0.0
        %1357 = vmatpush1.msra.mxu0 %v1136
        %1358 = vmatprep.subr.mxu0 0.0
        %1359 = vmatpush1.msra.mxu0 %v1139
        %1360 = vmatprep.subr.mxu0 0.0
        %1361 = vmatpush1.msra.mxu0 %v1305
        %1362 = vmatprep.subr.mxu0 0.0
        %1363 = vmatpush1.msra.mxu0 %v1308
        %1364 = vmatprep.subr.mxu0 0.0
        %1365 = vmatpush1.msra.mxu0 %v1313
        %1366 = vmatprep.subr.mxu0 0.0
        %1367 = vmatpush1.msra.mxu0 %v1316
        %1368 = vmatprep.subr.mxu0 0.0
        %1369 = vmatpush1.msra.mxu0 0.0
        %1370 = vmatprep.subr.mxu0 0.0
        %1371 = vmatpush1.msra.mxu0 0.0
        %1372 = vmatprep.subr.mxu0 0.0
        %1373 = vmatpush1.msra.mxu0 0.0
        %1374 = vmatprep.subr.mxu0 0.0
        %1375 = vmatpush1.msra.mxu0 0.0
        %1376 = vmatprep.subr.mxu0 0.0
        %1377 = vmatpush1.msra.mxu0 0.0
        %1378 = vmatprep.subr.mxu0 0.0
        %1379 = vmatpush1.msra.mxu0 0.0
        %1380 = vmatprep.subr.mxu0 0.0
        %1381 = vmatpush1.msra.mxu0 0.0
        %1382 = vmatprep.subr.mxu0 0.0
        %1383 = vmatpush1.msra.mxu0 0.0
        %1384 = vmatprep.subr.mxu0 0.0
        %1385 = vmatpush1.msra.mxu0 0.0
        %1386 = vmatprep.subr.mxu0 0.0
        %1387 = vmatpush1.msra.mxu0 0.0
        %1388 = vmatprep.subr.mxu0 0.0
        %1389 = vmatpush1.msra.mxu0 0.0
        %1390 = vmatprep.subr.mxu0 0.0
        %1391 = vmatpush1.msra.mxu0 0.0
        %1392 = vmatprep.subr.mxu0 0.0
        %1393 = vmatpush1.msra.mxu0 0.0
        %1394 = vmatprep.subr.mxu0 0.0
        %1395 = vmatpush1.msra.mxu0 0.0
        %1396 = vmatprep.subr.mxu0 0.0
        %1397 = vmatpush1.msra.mxu0 0.0
        %1398 = vmatprep.subr.mxu0 0.0
        %1399 = vmatpush1.msra.mxu0 0.0
        %1400 = vmatprep.subr.mxu0 0.0
        %1401 = vmatpush1.msra.mxu0 0.0
        %1402 = vmatprep.subr.mxu0 0.0
        %1403 = vmatpush1.msra.mxu0 0.0
        %1404 = vmatprep.subr.mxu0 0.0
        %1405 = vmatpush1.msra.mxu0 0.0
        %1406 = vmatprep.subr.mxu0 0.0
        %1407 = vmatpush1.msra.mxu0 0.0
        %1408 = vmatprep.subr.mxu0 0.0
        %1409 = vmatpush1.msra.mxu0 0.0
        %1410 = vmatprep.subr.mxu0 0.0
        %1411 = vmatpush1.msra.mxu0 0.0
        %1412 = vmatprep.subr.mxu0 0.0
        %1413 = vmatpush1.msra.mxu0 0.0
        %1414 = vmatprep.subr.mxu0 0.0
        %1415 = vmatpush1.msra.mxu0 0.0
        %1416 = vmatprep.mubr.f32.mxu0 0.0
        %1417 = vmatmul.mubr.f32.gmra.mrb[0].mxu0 %v1329
        %v1418 = vpop.f32.mrb[0].mxu0
        %v1419 = vadd.f32 0.0, %v1418
        %v1420 = vpop.f32.mrb[0].mxu0
        %1421 = vmatprep.mubr.f32.mxu0 0.0
        %1422 = vmatmul.mubr.f32.gmra.mrb[0].mxu0 %v1332
        %v1423 = vpop.f32.mrb[0].mxu0
        %v1424 = vadd.f32 0.0, %v1423
        %v1425 = vpop.f32.mrb[0].mxu0
        %1426 = vmatprep.mubr.f32.mxu0 0.0
        %1427 = vmatmul.mubr.f32.gmra.mrb[0].mxu0 %v1335
        %v1428 = vpop.f32.mrb[0].mxu0
        %v1429 = vadd.f32 0.0, %v1428
        %v1430 = vpop.f32.mrb[0].mxu0
        %1431 = vmatprep.mubr.f32.mxu0 0.0
        %1432 = vmatmul.mubr.f32.gmra.mrb[0].mxu0 %v1338
        %v1433 = vpop.f32.mrb[0].mxu0
        %v1434 = vadd.f32 0.0, %v1433
        %v1435 = vpop.f32.mrb[0].mxu0
        %1436 = vmatprep.mubr.f32.mxu0 0.0
        %1437 = vmatmul.mubr.f32.gmra.mrb[0].mxu0 %v1341
        %v1438 = vpop.f32.mrb[0].mxu0
        %v1439 = vadd.f32 0.0, %v1438
        %v1440 = vpop.f32.mrb[0].mxu0
        %1441 = vmatprep.mubr.f32.mxu0 0.0
        %1442 = vmatmul.mubr.f32.gmra.mrb[0].mxu0 %v1344
        %v1443 = vpop.f32.mrb[0].mxu0
        %v1444 = vadd.f32 0.0, %v1443
        %v1445 = vpop.f32.mrb[0].mxu0
        %1446 = vmatprep.mubr.f32.mxu0 0.0
        %1447 = vmatmul.mubr.f32.gmra.mrb[0].mxu0 %v1347
        %v1448 = vpop.f32.mrb[0].mxu0
        %v1449 = vadd.f32 0.0, %v1448
        %v1450 = vpop.f32.mrb[0].mxu0
        %1451 = vmatprep.mubr.f32.mxu0 0.0
        %1452 = vmatmul.mubr.f32.gmra.mrb[0].mxu0 %v1350
        %v1453 = vpop.f32.mrb[0].mxu0
        %v1454 = vadd.f32 0.0, %v1453
        %v1455 = vpop.f32.mrb[0].mxu0
        %1456 = vdwg.mxu0
        %v1457 = vmul.f32 %v1128, %v1419
        %v1458 = vmul.f32 %v1131, %v1424
        %v1459 = vmul.f32 %v1136, %v1429
        %v1460 = vmul.f32 %v1139, %v1434
        %v1461 = vmul.f32 %v1305, %v1439
        %v1462 = vmul.f32 %v1308, %v1444
        %v1463 = vmul.f32 %v1313, %v1449
        %v1464 = vmul.f32 %v1316, %v1454
        %v1465 = vadd.f32 %v1457, %v1461
        %v1466 = vadd.f32 %v1458, %v1462
        %v1467 = vadd.f32 %v1459, %v1463
        %v1468 = vadd.f32 %v1460, %v1464
        %v1469 = vtanh.pop %v1465
        %v1470 = vtanh.pop %v1466
        %v1471 = vtanh.pop %v1467
        %v1472 = vtanh.pop %v1468
        %v1473 = vld [vmem:[%s859] sm:$0xff]
        %v1474 = vld [vmem:[%s859 + $0x8] sm:$0xff]
        %v1475 = vld [vmem:[%s859 + $0x10] sm:$0xff]
        %v1476 = vld [vmem:[%s859 + $0x18] sm:$0xff]
        %v1477 = vld [vmem:[%s866] sm:$0xff]
        %v1478 = vld [vmem:[%s866 + $0x8] sm:$0xff]
        %v1479 = vld [vmem:[%s866 + $0x10] sm:$0xff]
        %v1480 = vld [vmem:[%s866 + $0x18] sm:$0xff]
        %v1481 = vld [vmem:[%s6] sm:$0xff]
        %v1482 = vld [vmem:[%s6 + $0x8] sm:$0xff]
        %v1483 = vld [vmem:[%s6 + $0x10] sm:$0xff]
        %v1484 = vld [vmem:[%s6 + $0x18] sm:$0xff]
        %v1485 = vld [vmem:[%s7] sm:$0xff]
        %v1486 = vld [vmem:[%s7 + $0x8] sm:$0xff]
        %v1487 = vld [vmem:[%s7 + $0x10] sm:$0xff]
        %v1488 = vld [vmem:[%s7 + $0x18] sm:$0xff]
        %1490 = vset.pattern.permute.xlu0 0
        %1491 = vperm.xlu0 %1490, %v1485
        %v1492 = vpop.permute.xlu0 %1491
        %1495 = vset.pattern.permute.xlu0 0
        %1496 = vperm.xlu0 %1495, %v1486
        %v1497 = vpop.permute.xlu0 %1496
        %1500 = vset.pattern.permute.xlu0 0
        %1501 = vperm.xlu0 %1500, %v1487
        %v1502 = vpop.permute.xlu0 %1501
        %1505 = vset.pattern.permute.xlu0 0
        %1506 = vperm.xlu0 %1505, %v1488
        %v1507 = vpop.permute.xlu0 %1506
        %vm1509 = vcmask 785408
        %v1511 = vsel %vm1509, %v1481, 0
        %v1514 = vsel %vm1509, %v1482, 0
        %v1517 = vsel %vm1509, %v1483, 0
        %v1520 = vsel %vm1509, %v1484, 0
        %1522 = vmatprep.subr.mxu0 0.0
        %1523 = vmatpush1.msra.mxu0 %v1473
        %1524 = vmatprep.subr.mxu0 0.0
        %1525 = vmatpush1.msra.mxu0 %v1474
        %1526 = vmatprep.subr.mxu0 0.0
        %1527 = vmatpush1.msra.mxu0 %v1475
        %1528 = vmatprep.subr.mxu0 0.0
        %1529 = vmatpush1.msra.mxu0 %v1476
        %1530 = vmatprep.subr.mxu0 0.0
        %1531 = vmatpush1.msra.mxu0 %v1477
        %1532 = vmatprep.subr.mxu0 0.0
        %1533 = vmatpush1.msra.mxu0 %v1478
        %1534 = vmatprep.subr.mxu0 0.0
        %1535 = vmatpush1.msra.mxu0 %v1479
        %1536 = vmatprep.subr.mxu0 0.0
        %1537 = vmatpush1.msra.mxu0 %v1480
        %1538 = vmatprep.subr.mxu0 0.0
        %1539 = vmatpush1.msra.mxu0 %v1469
        %1540 = vmatprep.subr.mxu0 0.0
        %1541 = vmatpush1.msra.mxu0 %v1470
        %1542 = vmatprep.subr.mxu0 0.0
        %1543 = vmatpush1.msra.mxu0 %v1471
        %1544 = vmatprep.subr.mxu0 0.0
        %1545 = vmatpush1.msra.mxu0 %v1472
        %1546 = vmatprep.subr.mxu0 0.0
        %1547 = vmatpush1.msra.mxu0 0.0
        %1548 = vmatprep.subr.mxu0 0.0
        %1549 = vmatpush1.msra.mxu0 0.0
        %1550 = vmatprep.subr.mxu0 0.0
        %1551 = vmatpush1.msra.mxu0 0.0
        %1552 = vmatprep.subr.mxu0 0.0
        %1553 = vmatpush1.msra.mxu0 0.0
        %1554 = vmatprep.subr.mxu0 0.0
        %1555 = vmatpush1.msra.mxu0 0.0
        %1556 = vmatprep.subr.mxu0 0.0
        %1557 = vmatpush1.msra.mxu0 0.0
        %1558 = vmatprep.subr.mxu0 0.0
        %1559 = vmatpush1.msra.mxu0 0.0
        %1560 = vmatprep.subr.mxu0 0.0
        %1561 = vmatpush1.msra.mxu0 0.0
        %1562 = vmatprep.subr.mxu0 0.0
        %1563 = vmatpush1.msra.mxu0 0.0
        %1564 = vmatprep.subr.mxu0 0.0
        %1565 = vmatpush1.msra.mxu0 0.0
        %1566 = vmatprep.subr.mxu0 0.0
        %1567 = vmatpush1.msra.mxu0 0.0
        %1568 = vmatprep.subr.mxu0 0.0
        %1569 = vmatpush1.msra.mxu0 0.0
        %1570 = vmatprep.subr.mxu0 0.0
        %1571 = vmatpush1.msra.mxu0 0.0
        %1572 = vmatprep.subr.mxu0 0.0
        %1573 = vmatpush1.msra.mxu0 0.0
        %1574 = vmatprep.subr.mxu0 0.0
        %1575 = vmatpush1.msra.mxu0 0.0
        %1576 = vmatprep.subr.mxu0 0.0
        %1577 = vmatpush1.msra.mxu0 0.0
        %1578 = vmatprep.subr.mxu0 0.0
        %1579 = vmatpush1.msra.mxu0 0.0
        %1580 = vmatprep.subr.mxu0 0.0
        %1581 = vmatpush1.msra.mxu0 0.0
        %1582 = vmatprep.subr.mxu0 0.0
        %1583 = vmatpush1.msra.mxu0 0.0
        %1584 = vmatprep.subr.mxu0 0.0
        %1585 = vmatpush1.msra.mxu0 0.0
        %1586 = vmatprep.mubr.f32.mxu0 0.0
        %1587 = vmatmul.mubr.f32.gmra.mrb[0].mxu0 %v1511
        %v1588 = vpop.f32.mrb[0].mxu0
        %v1589 = vadd.f32 %v1492, %v1588
        %v1590 = vpop.f32.mrb[0].mxu0
        %1591 = vmatprep.mubr.f32.mxu0 0.0
        %1592 = vmatmul.mubr.f32.gmra.mrb[0].mxu0 %v1514
        %v1593 = vpop.f32.mrb[0].mxu0
        %v1594 = vadd.f32 %v1497, %v1593
        %v1595 = vpop.f32.mrb[0].mxu0
        %1596 = vmatprep.mubr.f32.mxu0 0.0
        %1597 = vmatmul.mubr.f32.gmra.mrb[0].mxu0 %v1517
        %v1598 = vpop.f32.mrb[0].mxu0
        %v1599 = vadd.f32 %v1502, %v1598
        %v1600 = vpop.f32.mrb[0].mxu0
        %1601 = vmatprep.mubr.f32.mxu0 0.0
        %1602 = vmatmul.mubr.f32.gmra.mrb[0].mxu0 %v1520
        %v1603 = vpop.f32.mrb[0].mxu0
        %v1604 = vadd.f32 %v1507, %v1603
        %v1605 = vpop.f32.mrb[0].mxu0
        %1606 = vdwg.mxu0
        %v1607 = vmax.f32 %v1589, 0.0
        %v1608 = vmax.f32 %v1594, 0.0
        %v1609 = vmax.f32 %v1599, 0.0
        %v1610 = vmax.f32 %v1604, 0.0
        %v1611 = vld [vmem:[%s8] sm:$0xff]
        %v1612 = vld [vmem:[%s8 + $0x8] sm:$0xff]
        %v1613 = vld [vmem:[%s8 + $0x10] sm:$0xff]
        %v1614 = vld [vmem:[%s8 + $0x18] sm:$0xff]
        %v1615 = vld [vmem:[%s9] sm:$0xff]
        %v1616 = vld [vmem:[%s9 + $0x8] sm:$0xff]
        %v1617 = vld [vmem:[%s9 + $0x10] sm:$0xff]
        %v1618 = vld [vmem:[%s9 + $0x18] sm:$0xff]
        %1620 = vset.pattern.permute.xlu0 0
        %1621 = vperm.xlu0 %1620, %v1615
        %v1622 = vpop.permute.xlu0 %1621
        %1625 = vset.pattern.permute.xlu0 0
        %1626 = vperm.xlu0 %1625, %v1616
        %v1627 = vpop.permute.xlu0 %1626
        %1630 = vset.pattern.permute.xlu0 0
        %1631 = vperm.xlu0 %1630, %v1617
        %v1632 = vpop.permute.xlu0 %1631
        %1635 = vset.pattern.permute.xlu0 0
        %1636 = vperm.xlu0 %1635, %v1618
        %v1637 = vpop.permute.xlu0 %1636
        %vm1639 = vcmask 261120
        %v1641 = vsel %vm1639, %v1611, 0
        %v1644 = vsel %vm1639, %v1612, 0
        %v1647 = vsel %vm1639, %v1613, 0
        %v1650 = vsel %vm1639, %v1614, 0
        %1652 = vmatprep.subr.mxu0 0.0
        %1653 = vmatpush1.msra.mxu0 %v1607
        %1654 = vmatprep.subr.mxu0 0.0
        %1655 = vmatpush1.msra.mxu0 %v1608
        %1656 = vmatprep.subr.mxu0 0.0
        %1657 = vmatpush1.msra.mxu0 %v1609
        %1658 = vmatprep.subr.mxu0 0.0
        %1659 = vmatpush1.msra.mxu0 %v1610
        %1660 = vmatprep.subr.mxu0 0.0
        %1661 = vmatpush1.msra.mxu0 0.0
        %1662 = vmatprep.subr.mxu0 0.0
        %1663 = vmatpush1.msra.mxu0 0.0
        %1664 = vmatprep.subr.mxu0 0.0
        %1665 = vmatpush1.msra.mxu0 0.0
        %1666 = vmatprep.subr.mxu0 0.0
        %1667 = vmatpush1.msra.mxu0 0.0
        %1668 = vmatprep.subr.mxu0 0.0
        %1669 = vmatpush1.msra.mxu0 0.0
        %1670 = vmatprep.subr.mxu0 0.0
        %1671 = vmatpush1.msra.mxu0 0.0
        %1672 = vmatprep.subr.mxu0 0.0
        %1673 = vmatpush1.msra.mxu0 0.0
        %1674 = vmatprep.subr.mxu0 0.0
        %1675 = vmatpush1.msra.mxu0 0.0
        %1676 = vmatprep.subr.mxu0 0.0
        %1677 = vmatpush1.msra.mxu0 0.0
        %1678 = vmatprep.subr.mxu0 0.0
        %1679 = vmatpush1.msra.mxu0 0.0
        %1680 = vmatprep.subr.mxu0 0.0
        %1681 = vmatpush1.msra.mxu0 0.0
        %1682 = vmatprep.subr.mxu0 0.0
        %1683 = vmatpush1.msra.mxu0 0.0
        %1684 = vmatprep.subr.mxu0 0.0
        %1685 = vmatpush1.msra.mxu0 0.0
        %1686 = vmatprep.subr.mxu0 0.0
        %1687 = vmatpush1.msra.mxu0 0.0
        %1688 = vmatprep.subr.mxu0 0.0
        %1689 = vmatpush1.msra.mxu0 0.0
        %1690 = vmatprep.subr.mxu0 0.0
        %1691 = vmatpush1.msra.mxu0 0.0
        %1692 = vmatprep.subr.mxu0 0.0
        %1693 = vmatpush1.msra.mxu0 0.0
        %1694 = vmatprep.subr.mxu0 0.0
        %1695 = vmatpush1.msra.mxu0 0.0
        %1696 = vmatprep.subr.mxu0 0.0
        %1697 = vmatpush1.msra.mxu0 0.0
        %1698 = vmatprep.subr.mxu0 0.0
        %1699 = vmatpush1.msra.mxu0 0.0
        %1700 = vmatprep.subr.mxu0 0.0
        %1701 = vmatpush1.msra.mxu0 0.0
        %1702 = vmatprep.subr.mxu0 0.0
        %1703 = vmatpush1.msra.mxu0 0.0
        %1704 = vmatprep.subr.mxu0 0.0
        %1705 = vmatpush1.msra.mxu0 0.0
        %1706 = vmatprep.subr.mxu0 0.0
        %1707 = vmatpush1.msra.mxu0 0.0
        %1708 = vmatprep.subr.mxu0 0.0
        %1709 = vmatpush1.msra.mxu0 0.0
        %1710 = vmatprep.subr.mxu0 0.0
        %1711 = vmatpush1.msra.mxu0 0.0
        %1712 = vmatprep.subr.mxu0 0.0
        %1713 = vmatpush1.msra.mxu0 0.0
        %1714 = vmatprep.subr.mxu0 0.0
        %1715 = vmatpush1.msra.mxu0 0.0
        %1716 = vmatprep.mubr.f32.mxu0 0.0
        %1717 = vmatmul.mubr.f32.gmra.mrb[0].mxu0 %v1641
        %v1718 = vpop.f32.mrb[0].mxu0
        %v1719 = vadd.f32 %v1622, %v1718
        %v1720 = vpop.f32.mrb[0].mxu0
        %1721 = vmatprep.mubr.f32.mxu0 0.0
        %1722 = vmatmul.mubr.f32.gmra.mrb[0].mxu0 %v1644
        %v1723 = vpop.f32.mrb[0].mxu0
        %v1724 = vadd.f32 %v1627, %v1723
        %v1725 = vpop.f32.mrb[0].mxu0
        %1726 = vmatprep.mubr.f32.mxu0 0.0
        %1727 = vmatmul.mubr.f32.gmra.mrb[0].mxu0 %v1647
        %v1728 = vpop.f32.mrb[0].mxu0
        %v1729 = vadd.f32 %v1632, %v1728
        %v1730 = vpop.f32.mrb[0].mxu0
        %1731 = vmatprep.mubr.f32.mxu0 0.0
        %1732 = vmatmul.mubr.f32.gmra.mrb[0].mxu0 %v1650
        %v1733 = vpop.f32.mrb[0].mxu0
        %v1734 = vadd.f32 %v1637, %v1733
        %v1735 = vpop.f32.mrb[0].mxu0
        %1736 = vdwg.mxu0
        %v1737 = vmax.f32 %v1719, 0.0
        %v1738 = vmax.f32 %v1724, 0.0
        %v1739 = vmax.f32 %v1729, 0.0
        %v1740 = vmax.f32 %v1734, 0.0
        %v1741 = vld [vmem:[%s10] sm:$0xff]
        %v1742 = vld [vmem:[%s10 + $0x8] sm:$0xff]
        %v1743 = vld [vmem:[%s10 + $0x10] sm:$0xff]
        %v1744 = vld [vmem:[%s10 + $0x18] sm:$0xff]
        %v1745 = vld [vmem:[%s11] sm:$0xff]
        %v1746 = vld [vmem:[%s11 + $0x8] sm:$0xff]
        %v1747 = vld [vmem:[%s11 + $0x10] sm:$0xff]
        %v1748 = vld [vmem:[%s11 + $0x18] sm:$0xff]
        %1750 = vset.pattern.permute.xlu0 0
        %1751 = vperm.xlu0 %1750, %v1745
        %v1752 = vpop.permute.xlu0 %1751
        %1755 = vset.pattern.permute.xlu0 0
        %1756 = vperm.xlu0 %1755, %v1746
        %v1757 = vpop.permute.xlu0 %1756
        %1760 = vset.pattern.permute.xlu0 0
        %1761 = vperm.xlu0 %1760, %v1747
        %v1762 = vpop.permute.xlu0 %1761
        %1765 = vset.pattern.permute.xlu0 0
        %1766 = vperm.xlu0 %1765, %v1748
        %v1767 = vpop.permute.xlu0 %1766
        %v1770 = vsel %vm1639, %v1741, 0
        %v1773 = vsel %vm1639, %v1742, 0
        %v1776 = vsel %vm1639, %v1743, 0
        %v1779 = vsel %vm1639, %v1744, 0
        %1781 = vmatprep.subr.mxu0 0.0
        %1782 = vmatpush1.msra.mxu0 %v1737
        %1783 = vmatprep.subr.mxu0 0.0
        %1784 = vmatpush1.msra.mxu0 %v1738
        %1785 = vmatprep.subr.mxu0 0.0
        %1786 = vmatpush1.msra.mxu0 %v1739
        %1787 = vmatprep.subr.mxu0 0.0
        %1788 = vmatpush1.msra.mxu0 %v1740
        %1789 = vmatprep.subr.mxu0 0.0
        %1790 = vmatpush1.msra.mxu0 0.0
        %1791 = vmatprep.subr.mxu0 0.0
        %1792 = vmatpush1.msra.mxu0 0.0
        %1793 = vmatprep.subr.mxu0 0.0
        %1794 = vmatpush1.msra.mxu0 0.0
        %1795 = vmatprep.subr.mxu0 0.0
        %1796 = vmatpush1.msra.mxu0 0.0
        %1797 = vmatprep.subr.mxu0 0.0
        %1798 = vmatpush1.msra.mxu0 0.0
        %1799 = vmatprep.subr.mxu0 0.0
        %1800 = vmatpush1.msra.mxu0 0.0
        %1801 = vmatprep.subr.mxu0 0.0
        %1802 = vmatpush1.msra.mxu0 0.0
        %1803 = vmatprep.subr.mxu0 0.0
        %1804 = vmatpush1.msra.mxu0 0.0
        %1805 = vmatprep.subr.mxu0 0.0
        %1806 = vmatpush1.msra.mxu0 0.0
        %1807 = vmatprep.subr.mxu0 0.0
        %1808 = vmatpush1.msra.mxu0 0.0
        %1809 = vmatprep.subr.mxu0 0.0
        %1810 = vmatpush1.msra.mxu0 0.0
        %1811 = vmatprep.subr.mxu0 0.0
        %1812 = vmatpush1.msra.mxu0 0.0
        %1813 = vmatprep.subr.mxu0 0.0
        %1814 = vmatpush1.msra.mxu0 0.0
        %1815 = vmatprep.subr.mxu0 0.0
        %1816 = vmatpush1.msra.mxu0 0.0
        %1817 = vmatprep.subr.mxu0 0.0
        %1818 = vmatpush1.msra.mxu0 0.0
        %1819 = vmatprep.subr.mxu0 0.0
        %1820 = vmatpush1.msra.mxu0 0.0
        %1821 = vmatprep.subr.mxu0 0.0
        %1822 = vmatpush1.msra.mxu0 0.0
        %1823 = vmatprep.subr.mxu0 0.0
        %1824 = vmatpush1.msra.mxu0 0.0
        %1825 = vmatprep.subr.mxu0 0.0
        %1826 = vmatpush1.msra.mxu0 0.0
        %1827 = vmatprep.subr.mxu0 0.0
        %1828 = vmatpush1.msra.mxu0 0.0
        %1829 = vmatprep.subr.mxu0 0.0
        %1830 = vmatpush1.msra.mxu0 0.0
        %1831 = vmatprep.subr.mxu0 0.0
        %1832 = vmatpush1.msra.mxu0 0.0
        %1833 = vmatprep.subr.mxu0 0.0
        %1834 = vmatpush1.msra.mxu0 0.0
        %1835 = vmatprep.subr.mxu0 0.0
        %1836 = vmatpush1.msra.mxu0 0.0
        %1837 = vmatprep.subr.mxu0 0.0
        %1838 = vmatpush1.msra.mxu0 0.0
        %1839 = vmatprep.subr.mxu0 0.0
        %1840 = vmatpush1.msra.mxu0 0.0
        %1841 = vmatprep.subr.mxu0 0.0
        %1842 = vmatpush1.msra.mxu0 0.0
        %1843 = vmatprep.subr.mxu0 0.0
        %1844 = vmatpush1.msra.mxu0 0.0
        %1845 = vmatprep.mubr.f32.mxu0 0.0
        %1846 = vmatmul.mubr.f32.gmra.mrb[0].mxu0 %v1770
        %v1847 = vpop.f32.mrb[0].mxu0
        %v1848 = vadd.f32 %v1752, %v1847
        %v1849 = vpop.f32.mrb[0].mxu0
        %1850 = vmatprep.mubr.f32.mxu0 0.0
        %1851 = vmatmul.mubr.f32.gmra.mrb[0].mxu0 %v1773
        %v1852 = vpop.f32.mrb[0].mxu0
        %v1853 = vadd.f32 %v1757, %v1852
        %v1854 = vpop.f32.mrb[0].mxu0
        %1855 = vmatprep.mubr.f32.mxu0 0.0
        %1856 = vmatmul.mubr.f32.gmra.mrb[0].mxu0 %v1776
        %v1857 = vpop.f32.mrb[0].mxu0
        %v1858 = vadd.f32 %v1762, %v1857
        %v1859 = vpop.f32.mrb[0].mxu0
        %1860 = vmatprep.mubr.f32.mxu0 0.0
        %1861 = vmatmul.mubr.f32.gmra.mrb[0].mxu0 %v1779
        %v1862 = vpop.f32.mrb[0].mxu0
        %v1863 = vadd.f32 %v1767, %v1862
        %v1864 = vpop.f32.mrb[0].mxu0
        %1865 = vdwg.mxu0
        %v1866 = vadd.f32 %v1848, %v1473
        %v1867 = vadd.f32 %v1853, %v1474
        %v1868 = vadd.f32 %v1858, %v1475
        %v1869 = vadd.f32 %v1863, %v1476
        %1870 = vst [vmem:[%s934] sm:$0xff] %v1866
        %1871 = vst [vmem:[%s934 + $0x8] sm:$0xff] %v1867
        %1872 = vst [vmem:[%s934 + $0x10] sm:$0xff] %v1868
        %1873 = vst [vmem:[%s934 + $0x18] sm:$0xff] %v1869
        %s1874 = sand.u32 %s330, 1
        %s1875 = sand.u32 %s330, 1
        %s1876 = smul.addr %s1875, 32
        %s1877 = scalar_lea.vmem [#allocation6], %s1876
        // Predicated region
        $region227: #{diffusionnet_forward.7} parent=209 // pred_check
          %p1878 = pneg %p340
        $region228: #{diffusionnet_forward.7} parent=209 // pred_check_branch
          %1880 = sbr.rel (%p1878) target = $region230
        $region229: #{diffusionnet_forward.7} parent=209 // pred_region
          %s1881 = smul.addr %s27, 8
          %s1882 = sadd.s32 %s28, %s1881
          %s1883 = smul.addr %s1882, 8
          %s1884 = scalar_lea.vmem %s12, %s1883
          // Predicated region
          $region231: #{diffusionnet_forward.7} parent=229 // pred_check
            _
          $region232: #{diffusionnet_forward.7} parent=229 // pred_check_branch
            %1886 = sbr.rel (0) target = $region234
          $region233: #{diffusionnet_forward.7} parent=229 // pred_region
            // Predicated region
            $region235: #{diffusionnet_forward.7} parent=233 // pred_check
              _
            $region236: #{diffusionnet_forward.7} parent=233 // pred_check_branch
              %1888 = sbr.rel (0) target = $region238
            $region237: #{diffusionnet_forward.7} parent=233 // pred_region
              // Predicated region
              $region250: #{diffusionnet_forward.7} parent=237 // pred_check
                _
              $region251: #{diffusionnet_forward.7} parent=237 // pred_check_branch
                %1909 = sbr.rel (0) target = $region253
              $region252: #{diffusionnet_forward.7} parent=237 // pred_region
                loop: start=0, step=1, limit=1
                $region254: #{diffusionnet_forward.7} parent=252 // loop_pre_header
                  _
                $region255: #{diffusionnet_forward.7} parent=252 // loop_header
                  %s1911 = sphi 0, %s1915
                  %p1912 = scmp.ge.s32.totalorder %s1911, 1
                  %s1916 = sphi %s1877, %s1877
                  %s1917 = sphi %s1884, %s1884
                $region256: #{diffusionnet_forward.7} parent=252 // loop_header_branch
                  %1914 = sbr.rel (%p1912) target = $region260
                $region257: #{diffusionnet_forward.7} parent=252 // loop_body
                  %v1918 = vld [vmem:[%s1916] sm:$0xff]
                  %1919 = vst [vmem:[%s1917] sm:$0xff] %v1918
                  %v1920 = vld [vmem:[%s1916 + $0x8] sm:$0xff]
                  %1921 = vst [vmem:[%s1917 + $0x10] sm:$0xff] %v1920
                  %v1922 = vld [vmem:[%s1916 + $0x10] sm:$0xff]
                  %1923 = vst [vmem:[%s1917 + $0x20] sm:$0xff] %v1922
                  %v1924 = vld [vmem:[%s1916 + $0x18] sm:$0xff]
                  %1925 = vst [vmem:[%s1917 + $0x30] sm:$0xff] %v1924
                $region258: #{diffusionnet_forward.7} parent=252 // loop_footer
                  %s1915 = sadd.s32 1, %s1911
                $region259: #{diffusionnet_forward.7} parent=252 // loop_footer_branch
                  %1910 = sbr.rel target = $region255
                $region260: #{diffusionnet_forward.7} parent=252 // loop_exit
                  _
              $region253: #{diffusionnet_forward.7} parent=237 // pred_fallthru
                _
              // Predicated region
              $region261: #{diffusionnet_forward.7} parent=237 // pred_check
                _
              $region262: #{diffusionnet_forward.7} parent=237 // pred_check_branch
                %1927 = sbr.rel target = $region264
              $region263: #{diffusionnet_forward.7} parent=237 // pred_region
                _
              $region264: #{diffusionnet_forward.7} parent=237 // pred_fallthru
                _
            $region238: #{diffusionnet_forward.7} parent=233 // pred_fallthru
              _
            // Predicated region
            $region239: #{diffusionnet_forward.7} parent=233 // pred_check
              _
            $region240: #{diffusionnet_forward.7} parent=233 // pred_check_branch
              %1890 = sbr.rel target = $region242
            $region241: #{diffusionnet_forward.7} parent=233 // pred_region
              loop: start=0, step=1, limit=1
              $region243: #{diffusionnet_forward.7} parent=241 // loop_pre_header
                _
              $region244: #{diffusionnet_forward.7} parent=241 // loop_header
                %s1893 = sphi 0, %s1897
                %p1894 = scmp.ge.s32.totalorder %s1893, 1
                %s1898 = sphi %s1877, %s1877
                %s1899 = sphi %s1884, %s1884
              $region245: #{diffusionnet_forward.7} parent=241 // loop_header_branch
                %1896 = sbr.rel (%p1894) target = $region249
              $region246: #{diffusionnet_forward.7} parent=241 // loop_body
                %v1900 = vld [vmem:[%s1898] sm:$0xff]
                %1901 = vst [vmem:[%s1899] sm:$0xff] %v1900
                %v1902 = vld [vmem:[%s1898 + $0x8] sm:$0xff]
                %1903 = vst [vmem:[%s1899 + $0x10] sm:$0xff] %v1902
                %v1904 = vld [vmem:[%s1898 + $0x10] sm:$0xff]
                %1905 = vst [vmem:[%s1899 + $0x20] sm:$0xff] %v1904
                %v1906 = vld [vmem:[%s1898 + $0x18] sm:$0xff]
                %1907 = vst [vmem:[%s1899 + $0x30] sm:$0xff] %v1906
              $region247: #{diffusionnet_forward.7} parent=241 // loop_footer
                %s1897 = sadd.s32 1, %s1893
              $region248: #{diffusionnet_forward.7} parent=241 // loop_footer_branch
                %1892 = sbr.rel target = $region244
              $region249: #{diffusionnet_forward.7} parent=241 // loop_exit
                _
            $region242: #{diffusionnet_forward.7} parent=233 // pred_fallthru
              _
          $region234: #{diffusionnet_forward.7} parent=229 // pred_fallthru
            _
          %1928 = vnop
        $region230: #{diffusionnet_forward.7} parent=209 // pred_fallthru
          _
      $region210: #{diffusionnet_forward.7} parent=5 // pred_fallthru
        _
      %p1929 = scmp.le.s32.totalorder 2, %s18
      // Predicated region
      $region265: #{diffusionnet_forward.7} parent=5 // pred_check
        %p1930 = pneg %p1929
      $region266: #{diffusionnet_forward.7} parent=5 // pred_check_branch
        %1932 = sbr.rel (%p1930) target = $region268
      $region267: #{diffusionnet_forward.7} parent=5 // pred_region
        %s1933 = ssub.s32 %s18, 2
        // Predicated region
        $region269: #{diffusionnet_forward.7} parent=267 // pred_check
          %p1934 = pneg %p346
        $region270: #{diffusionnet_forward.7} parent=267 // pred_check_branch
          %1936 = sbr.rel (%p1934) target = $region272
        $region271: #{diffusionnet_forward.7} parent=267 // pred_region
          %s1937 = sand.u32 %s331, 1
          %s1938 = sand.u32 %s331, 1
          %s1939 = smul.addr %s1938, 32
          %s1940 = scalar_lea.vmem [#allocation6], %s1939
        $region272: #{diffusionnet_forward.7} parent=267 // pred_fallthru
          _
      $region268: #{diffusionnet_forward.7} parent=5 // pred_fallthru
        _
    $region6: #{diffusionnet_forward.7} parent=1 // loop_footer
      %s22 = sadd.s32 1, %s18
    $region7: #{diffusionnet_forward.7} parent=1 // loop_footer_branch
      %17 = sbr.rel target = $region3
    $region8: #{diffusionnet_forward.7} parent=1 // loop_exit
      _

// kernel: diffusionnet_forward.9
$region0: #{diffusionnet_forward.9}
  #allocation0 [shape = 'u32[]', space=smem, size = 0x4, offset = 0x4, fixed_abs, tag = 'smem constant byte address 0x4 - core index']
  #allocation1 [shape = 'u32[144,128]{1,0:T(1,128)}', space=vmem, size = 0x12000, scoped, tag = 'internal scratch']
  %s0 = inlined_call_operand.vmem [shape: f32[2,32,256], index: 0, kind: input, shape index: {}]
  %s1 = inlined_call_operand.vmem [shape: f32[2,32,256], index: 1, kind: input, shape index: {}]
  %s2 = inlined_call_operand.vmem [shape: bf16[2,32,256], index: 2, kind: input, shape index: {}]
  %s3 = inlined_call_operand.vmem [shape: bf16[2,256,256], index: 3, kind: input, shape index: {}]
  %s4 = inlined_call_operand.vmem [shape: bf16[2,256,256], index: 4, kind: input, shape index: {}]
  %s5 = inlined_call_operand.vmem [shape: f32[64,64], index: 5, kind: input, shape index: {}]
  %s6 = inlined_call_operand.vmem [shape: f32[32,96], index: 6, kind: input, shape index: {}]
  %s7 = inlined_call_operand.vmem [shape: f32[32,1], index: 7, kind: input, shape index: {}]
  %s8 = inlined_call_operand.vmem [shape: f32[32,32], index: 8, kind: input, shape index: {}]
  %s9 = inlined_call_operand.vmem [shape: f32[32,1], index: 9, kind: input, shape index: {}]
  %s10 = inlined_call_operand.vmem [shape: f32[32,32], index: 10, kind: input, shape index: {}]
  %s11 = inlined_call_operand.vmem [shape: f32[32,1], index: 11, kind: input, shape index: {}]
  %s12 = inlined_call_operand.vmem [shape: f32[5,32], index: 12, kind: input, shape index: {}]
  %s13 = inlined_call_operand.vmem [shape: f32[5,1], index: 13, kind: input, shape index: {}]
  %s14 = inlined_call_operand.vmem [shape: f32[2,1,256], index: 14, kind: input, shape index: {}]
  %s15 = inlined_call_operand.vmem [shape: f32[2,5,256], index: 15, kind: output, shape index: {}]
  %s16 = sld [smem:[#allocation0]]
  $region251: #{diffusionnet_forward.9} parent=0
    _
  %s18 = ssub.s32 1, %s16
  %s19 = scalar_select 0, %s18, %s16
  $region1: #{diffusionnet_forward.9} parent=0
    #allocation2 [shape = 'u8[32768]{0}', space=vmem, size = 0x8000, scoped, tag = 'input window, operand 0']
    #allocation3 [shape = 'u8[32768]{0}', space=vmem, size = 0x8000, scoped, tag = 'input window, operand 1']
    #allocation4 [shape = 'u8[131072]{0}', space=vmem, size = 0x20000, scoped, tag = 'input window, operand 3']
    #allocation5 [shape = 'u8[131072]{0}', space=vmem, size = 0x20000, scoped, tag = 'input window, operand 4']
    loop: start=0, step=1, limit=6
    $region2: #{diffusionnet_forward.9} parent=1 // loop_pre_header
      _
    $region3: #{diffusionnet_forward.9} parent=1 // loop_header
      %s21 = sphi 0, %s25
      %p22 = scmp.ge.s32.totalorder %s21, 6
      %s28 = sphi 0, %s40
      %s29 = sphi 0, %s36
      %s30 = sphi 0, %s28
      %s31 = sphi 0, %s29
      %s32 = sphi 0, %s30
      %s33 = sphi 0, %s31
      %s45 = sphi 0, %s47
      %s48 = sphi 0, %s45
      %s49 = sphi 0, %s48
      %s65 = sphi 0, %s49
      %s73 = sphi 0, %s75
      %s76 = sphi 0, %s73
      %s77 = sphi 0, %s76
      %s93 = sphi 0, %s77
      %s99 = sphi 0, %s101
      %s102 = sphi 0, %s99
      %s103 = sphi 0, %s102
      %s119 = sphi 0, %s103
      %s127 = sphi 0, %s129
      %s130 = sphi 0, %s127
      %s131 = sphi 0, %s130
      %s147 = sphi 0, %s131
      %s155 = sphi 0, %s157
      %s158 = sphi 0, %s155
      %s159 = sphi 0, %s158
      %s175 = sphi 0, %s159
      %s179 = sphi 0, %s179
      %s181 = sphi 0, %s179
      %s182 = sphi 0, %s181
      %s196 = sphi 0, %s182
      %s200 = sphi 0, %s200
      %s202 = sphi 0, %s200
      %s203 = sphi 0, %s202
      %s217 = sphi 0, %s203
      %s221 = sphi 0, %s221
      %s223 = sphi 0, %s221
      %s224 = sphi 0, %s223
      %s238 = sphi 0, %s224
      %s242 = sphi 0, %s242
      %s244 = sphi 0, %s242
      %s245 = sphi 0, %s244
      %s259 = sphi 0, %s245
      %s263 = sphi 0, %s263
      %s265 = sphi 0, %s263
      %s266 = sphi 0, %s265
      %s280 = sphi 0, %s266
      %s284 = sphi 0, %s284
      %s286 = sphi 0, %s284
      %s287 = sphi 0, %s286
      %s301 = sphi 0, %s287
      %s305 = sphi 0, %s305
      %s307 = sphi 0, %s305
      %s308 = sphi 0, %s307
      %s322 = sphi 0, %s308
      %s326 = sphi 0, %s326
      %s328 = sphi 0, %s326
      %s329 = sphi 0, %s328
      %s343 = sphi 0, %s329
      %s347 = sphi 0, %s347
      %s349 = sphi 0, %s347
      %s350 = sphi 0, %s349
      %s364 = sphi 0, %s350
      %s372 = sphi 0, %s374
      %s375 = sphi 0, %s372
      %s376 = sphi 0, %s375
      %s392 = sphi 0, %s376
      %s400 = sphi 0, %s402
      %s403 = sphi 0, %s400
      %s404 = sphi 0, %s403
      %s420 = sphi 0, %s404
    $region4: #{diffusionnet_forward.9} parent=1 // loop_header_branch
      %24 = sbr.rel (%p22) target = $region8
    $region5: #{diffusionnet_forward.9} parent=1 // loop_body
      %s26 = ssub.s32 %s21, 1
      %s27 = ssub.s32 %s21, 2
      %s34 = sadd.s32 1, %s29
      %p35 = scmp.ge.s32.totalorder %s34, 2
      %s36 = scalar_select %p35, 0, %s34
      %s37 = sadd.s32 1, %s28
      %s38 = scalar_select %p35, %s37, %s28
      %p39 = scmp.ge.s32.totalorder %s38, 2
      %s40 = scalar_select %p39, 0, %s38
      %s41 = ssub.s32 %s28, %s40
      %s42 = ssub.s32 %s29, %s36
      %s43 = sor.u32 %s41, %s42
      %p44 = scmp.eq.s32.totalorder %s43, 0
      %s46 = sadd.s32 %s45, 1
      %s47 = scalar_select %p44, %s45, %s46
      %p50 = pneg %p44
      %p51 = scmp.eq.s32.totalorder %s21, 3
      %p52 = por %p50, %p51
      %p53 = scmp.ne.s32.totalorder %s45, %s48
      %p54 = scmp.eq.s32.totalorder %s21, 0
      %p55 = por %p53, %p54
      %p56 = scmp.ne.s32.totalorder %s45, %s48
      %p57 = scmp.eq.s32.totalorder %s26, 3
      %p58 = por %p56, %p57
      %p59 = scmp.ne.s32.totalorder %s48, %s49
      %p60 = scmp.eq.s32.totalorder %s26, 0
      %p61 = por %p59, %p60
      %p62 = scmp.ne.s32.totalorder %s48, %s49
      %p63 = scmp.eq.s32.totalorder %s27, 3
      %p64 = por %p62, %p63
      %p66 = scmp.ne.s32.totalorder %s49, %s65
      %p67 = scmp.eq.s32.totalorder %s27, 0
      %p68 = por %p66, %p67
      %s69 = ssub.s32 %s28, %s40
      %s70 = ssub.s32 %s29, %s36
      %s71 = sor.u32 %s69, %s70
      %p72 = scmp.eq.s32.totalorder %s71, 0
      %s74 = sadd.s32 %s73, 1
      %s75 = scalar_select %p72, %s73, %s74
      %p78 = pneg %p72
      %p79 = scmp.eq.s32.totalorder %s21, 3
      %p80 = por %p78, %p79
      %p81 = scmp.ne.s32.totalorder %s73, %s76
      %p82 = scmp.eq.s32.totalorder %s21, 0
      %p83 = por %p81, %p82
      %p84 = scmp.ne.s32.totalorder %s73, %s76
      %p85 = scmp.eq.s32.totalorder %s26, 3
      %p86 = por %p84, %p85
      %p87 = scmp.ne.s32.totalorder %s76, %s77
      %p88 = scmp.eq.s32.totalorder %s26, 0
      %p89 = por %p87, %p88
      %p90 = scmp.ne.s32.totalorder %s76, %s77
      %p91 = scmp.eq.s32.totalorder %s27, 3
      %p92 = por %p90, %p91
      %p94 = scmp.ne.s32.totalorder %s77, %s93
      %p95 = scmp.eq.s32.totalorder %s27, 0
      %p96 = por %p94, %p95
      %s97 = ssub.s32 %s28, %s40
      %p98 = scmp.eq.s32.totalorder %s97, 0
      %s100 = sadd.s32 %s99, 1
      %s101 = scalar_select %p98, %s99, %s100
      %p104 = pneg %p98
      %p105 = scmp.eq.s32.totalorder %s21, 3
      %p106 = por %p104, %p105
      %p107 = scmp.ne.s32.totalorder %s99, %s102
      %p108 = scmp.eq.s32.totalorder %s21, 0
      %p109 = por %p107, %p108
      %p110 = scmp.ne.s32.totalorder %s99, %s102
      %p111 = scmp.eq.s32.totalorder %s26, 3
      %p112 = por %p110, %p111
      %p113 = scmp.ne.s32.totalorder %s102, %s103
      %p114 = scmp.eq.s32.totalorder %s26, 0
      %p115 = por %p113, %p114
      %p116 = scmp.ne.s32.totalorder %s102, %s103
      %p117 = scmp.eq.s32.totalorder %s27, 3
      %p118 = por %p116, %p117
      %p120 = scmp.ne.s32.totalorder %s103, %s119
      %p121 = scmp.eq.s32.totalorder %s27, 0
      %p122 = por %p120, %p121
      %s123 = ssub.s32 %s28, %s40
      %s124 = ssub.s32 %s29, %s36
      %s125 = sor.u32 %s123, %s124
      %p126 = scmp.eq.s32.totalorder %s125, 0
      %s128 = sadd.s32 %s127, 1
      %s129 = scalar_select %p126, %s127, %s128
      %p132 = pneg %p126
      %p133 = scmp.eq.s32.totalorder %s21, 3
      %p134 = por %p132, %p133
      %p135 = scmp.ne.s32.totalorder %s127, %s130
      %p136 = scmp.eq.s32.totalorder %s21, 0
      %p137 = por %p135, %p136
      %p138 = scmp.ne.s32.totalorder %s127, %s130
      %p139 = scmp.eq.s32.totalorder %s26, 3
      %p140 = por %p138, %p139
      %p141 = scmp.ne.s32.totalorder %s130, %s131
      %p142 = scmp.eq.s32.totalorder %s26, 0
      %p143 = por %p141, %p142
      %p144 = scmp.ne.s32.totalorder %s130, %s131
      %p145 = scmp.eq.s32.totalorder %s27, 3
      %p146 = por %p144, %p145
      %p148 = scmp.ne.s32.totalorder %s131, %s147
      %p149 = scmp.eq.s32.totalorder %s27, 0
      %p150 = por %p148, %p149
      %s151 = ssub.s32 %s28, %s40
      %s152 = ssub.s32 %s29, %s36
      %s153 = sor.u32 %s151, %s152
      %p154 = scmp.eq.s32.totalorder %s153, 0
      %s156 = sadd.s32 %s155, 1
      %s157 = scalar_select %p154, %s155, %s156
      %p160 = pneg %p154
      %p161 = scmp.eq.s32.totalorder %s21, 3
      %p162 = por %p160, %p161
      %p163 = scmp.ne.s32.totalorder %s155, %s158
      %p164 = scmp.eq.s32.totalorder %s21, 0
      %p165 = por %p163, %p164
      %p166 = scmp.ne.s32.totalorder %s155, %s158
      %p167 = scmp.eq.s32.totalorder %s26, 3
      %p168 = por %p166, %p167
      %p169 = scmp.ne.s32.totalorder %s158, %s159
      %p170 = scmp.eq.s32.totalorder %s26, 0
      %p171 = por %p169, %p170
      %p172 = scmp.ne.s32.totalorder %s158, %s159
      %p173 = scmp.eq.s32.totalorder %s27, 3
      %p174 = por %p172, %p173
      %p176 = scmp.ne.s32.totalorder %s159, %s175
      %p177 = scmp.eq.s32.totalorder %s27, 0
      %p178 = por %p176, %p177
      %s180 = sadd.s32 %s179, 1
      %p183 = scmp.eq.s32.totalorder %s21, 3
      %p184 = scmp.ne.s32.totalorder %s179, %s181
      %p185 = scmp.eq.s32.totalorder %s21, 0
      %p186 = por %p184, %p185
      %p187 = scmp.ne.s32.totalorder %s179, %s181
      %p188 = scmp.eq.s32.totalorder %s26, 3
      %p189 = por %p187, %p188
      %p190 = scmp.ne.s32.totalorder %s181, %s182
      %p191 = scmp.eq.s32.totalorder %s26, 0
      %p192 = por %p190, %p191
      %p193 = scmp.ne.s32.totalorder %s181, %s182
      %p194 = scmp.eq.s32.totalorder %s27, 3
      %p195 = por %p193, %p194
      %p197 = scmp.ne.s32.totalorder %s182, %s196
      %p198 = scmp.eq.s32.totalorder %s27, 0
      %p199 = por %p197, %p198
      %s201 = sadd.s32 %s200, 1
      %p204 = scmp.eq.s32.totalorder %s21, 3
      %p205 = scmp.ne.s32.totalorder %s200, %s202
      %p206 = scmp.eq.s32.totalorder %s21, 0
      %p207 = por %p205, %p206
      %p208 = scmp.ne.s32.totalorder %s200, %s202
      %p209 = scmp.eq.s32.totalorder %s26, 3
      %p210 = por %p208, %p209
      %p211 = scmp.ne.s32.totalorder %s202, %s203
      %p212 = scmp.eq.s32.totalorder %s26, 0
      %p213 = por %p211, %p212
      %p214 = scmp.ne.s32.totalorder %s202, %s203
      %p215 = scmp.eq.s32.totalorder %s27, 3
      %p216 = por %p214, %p215
      %p218 = scmp.ne.s32.totalorder %s203, %s217
      %p219 = scmp.eq.s32.totalorder %s27, 0
      %p220 = por %p218, %p219
      %s222 = sadd.s32 %s221, 1
      %p225 = scmp.eq.s32.totalorder %s21, 3
      %p226 = scmp.ne.s32.totalorder %s221, %s223
      %p227 = scmp.eq.s32.totalorder %s21, 0
      %p228 = por %p226, %p227
      %p229 = scmp.ne.s32.totalorder %s221, %s223
      %p230 = scmp.eq.s32.totalorder %s26, 3
      %p231 = por %p229, %p230
      %p232 = scmp.ne.s32.totalorder %s223, %s224
      %p233 = scmp.eq.s32.totalorder %s26, 0
      %p234 = por %p232, %p233
      %p235 = scmp.ne.s32.totalorder %s223, %s224
      %p236 = scmp.eq.s32.totalorder %s27, 3
      %p237 = por %p235, %p236
      %p239 = scmp.ne.s32.totalorder %s224, %s238
      %p240 = scmp.eq.s32.totalorder %s27, 0
      %p241 = por %p239, %p240
      %s243 = sadd.s32 %s242, 1
      %p246 = scmp.eq.s32.totalorder %s21, 3
      %p247 = scmp.ne.s32.totalorder %s242, %s244
      %p248 = scmp.eq.s32.totalorder %s21, 0
      %p249 = por %p247, %p248
      %p250 = scmp.ne.s32.totalorder %s242, %s244
      %p251 = scmp.eq.s32.totalorder %s26, 3
      %p252 = por %p250, %p251
      %p253 = scmp.ne.s32.totalorder %s244, %s245
      %p254 = scmp.eq.s32.totalorder %s26, 0
      %p255 = por %p253, %p254
      %p256 = scmp.ne.s32.totalorder %s244, %s245
      %p257 = scmp.eq.s32.totalorder %s27, 3
      %p258 = por %p256, %p257
      %p260 = scmp.ne.s32.totalorder %s245, %s259
      %p261 = scmp.eq.s32.totalorder %s27, 0
      %p262 = por %p260, %p261
      %s264 = sadd.s32 %s263, 1
      %p267 = scmp.eq.s32.totalorder %s21, 3
      %p268 = scmp.ne.s32.totalorder %s263, %s265
      %p269 = scmp.eq.s32.totalorder %s21, 0
      %p270 = por %p268, %p269
      %p271 = scmp.ne.s32.totalorder %s263, %s265
      %p272 = scmp.eq.s32.totalorder %s26, 3
      %p273 = por %p271, %p272
      %p274 = scmp.ne.s32.totalorder %s265, %s266
      %p275 = scmp.eq.s32.totalorder %s26, 0
      %p276 = por %p274, %p275
      %p277 = scmp.ne.s32.totalorder %s265, %s266
      %p278 = scmp.eq.s32.totalorder %s27, 3
      %p279 = por %p277, %p278
      %p281 = scmp.ne.s32.totalorder %s266, %s280
      %p282 = scmp.eq.s32.totalorder %s27, 0
      %p283 = por %p281, %p282
      %s285 = sadd.s32 %s284, 1
      %p288 = scmp.eq.s32.totalorder %s21, 3
      %p289 = scmp.ne.s32.totalorder %s284, %s286
      %p290 = scmp.eq.s32.totalorder %s21, 0
      %p291 = por %p289, %p290
      %p292 = scmp.ne.s32.totalorder %s284, %s286
      %p293 = scmp.eq.s32.totalorder %s26, 3
      %p294 = por %p292, %p293
      %p295 = scmp.ne.s32.totalorder %s286, %s287
      %p296 = scmp.eq.s32.totalorder %s26, 0
      %p297 = por %p295, %p296
      %p298 = scmp.ne.s32.totalorder %s286, %s287
      %p299 = scmp.eq.s32.totalorder %s27, 3
      %p300 = por %p298, %p299
      %p302 = scmp.ne.s32.totalorder %s287, %s301
      %p303 = scmp.eq.s32.totalorder %s27, 0
      %p304 = por %p302, %p303
      %s306 = sadd.s32 %s305, 1
      %p309 = scmp.eq.s32.totalorder %s21, 3
      %p310 = scmp.ne.s32.totalorder %s305, %s307
      %p311 = scmp.eq.s32.totalorder %s21, 0
      %p312 = por %p310, %p311
      %p313 = scmp.ne.s32.totalorder %s305, %s307
      %p314 = scmp.eq.s32.totalorder %s26, 3
      %p315 = por %p313, %p314
      %p316 = scmp.ne.s32.totalorder %s307, %s308
      %p317 = scmp.eq.s32.totalorder %s26, 0
      %p318 = por %p316, %p317
      %p319 = scmp.ne.s32.totalorder %s307, %s308
      %p320 = scmp.eq.s32.totalorder %s27, 3
      %p321 = por %p319, %p320
      %p323 = scmp.ne.s32.totalorder %s308, %s322
      %p324 = scmp.eq.s32.totalorder %s27, 0
      %p325 = por %p323, %p324
      %s327 = sadd.s32 %s326, 1
      %p330 = scmp.eq.s32.totalorder %s21, 3
      %p331 = scmp.ne.s32.totalorder %s326, %s328
      %p332 = scmp.eq.s32.totalorder %s21, 0
      %p333 = por %p331, %p332
      %p334 = scmp.ne.s32.totalorder %s326, %s328
      %p335 = scmp.eq.s32.totalorder %s26, 3
      %p336 = por %p334, %p335
      %p337 = scmp.ne.s32.totalorder %s328, %s329
      %p338 = scmp.eq.s32.totalorder %s26, 0
      %p339 = por %p337, %p338
      %p340 = scmp.ne.s32.totalorder %s328, %s329
      %p341 = scmp.eq.s32.totalorder %s27, 3
      %p342 = por %p340, %p341
      %p344 = scmp.ne.s32.totalorder %s329, %s343
      %p345 = scmp.eq.s32.totalorder %s27, 0
      %p346 = por %p344, %p345
      %s348 = sadd.s32 %s347, 1
      %p351 = scmp.eq.s32.totalorder %s21, 3
      %p352 = scmp.ne.s32.totalorder %s347, %s349
      %p353 = scmp.eq.s32.totalorder %s21, 0
      %p354 = por %p352, %p353
      %p355 = scmp.ne.s32.totalorder %s347, %s349
      %p356 = scmp.eq.s32.totalorder %s26, 3
      %p357 = por %p355, %p356
      %p358 = scmp.ne.s32.totalorder %s349, %s350
      %p359 = scmp.eq.s32.totalorder %s26, 0
      %p360 = por %p358, %p359
      %p361 = scmp.ne.s32.totalorder %s349, %s350
      %p362 = scmp.eq.s32.totalorder %s27, 3
      %p363 = por %p361, %p362
      %p365 = scmp.ne.s32.totalorder %s350, %s364
      %p366 = scmp.eq.s32.totalorder %s27, 0
      %p367 = por %p365, %p366
      %s368 = ssub.s32 %s28, %s40
      %s369 = ssub.s32 %s29, %s36
      %s370 = sor.u32 %s368, %s369
      %p371 = scmp.eq.s32.totalorder %s370, 0
      %s373 = sadd.s32 %s372, 1
      %s374 = scalar_select %p371, %s372, %s373
      %p377 = pneg %p371
      %p378 = scmp.eq.s32.totalorder %s21, 3
      %p379 = por %p377, %p378
      %p380 = scmp.ne.s32.totalorder %s372, %s375
      %p381 = scmp.eq.s32.totalorder %s21, 0
      %p382 = por %p380, %p381
      %p383 = scmp.ne.s32.totalorder %s372, %s375
      %p384 = scmp.eq.s32.totalorder %s26, 3
      %p385 = por %p383, %p384
      %p386 = scmp.ne.s32.totalorder %s375, %s376
      %p387 = scmp.eq.s32.totalorder %s26, 0
      %p388 = por %p386, %p387
      %p389 = scmp.ne.s32.totalorder %s375, %s376
      %p390 = scmp.eq.s32.totalorder %s27, 3
      %p391 = por %p389, %p390
      %p393 = scmp.ne.s32.totalorder %s376, %s392
      %p394 = scmp.eq.s32.totalorder %s27, 0
      %p395 = por %p393, %p394
      %s396 = ssub.s32 %s28, %s40
      %s397 = ssub.s32 %s29, %s36
      %s398 = sor.u32 %s396, %s397
      %p399 = scmp.eq.s32.totalorder %s398, 0
      %s401 = sadd.s32 %s400, 1
      %s402 = scalar_select %p399, %s400, %s401
      %p405 = pneg %p399
      %p406 = scmp.eq.s32.totalorder %s21, 3
      %p407 = por %p405, %p406
      %p408 = scmp.ne.s32.totalorder %s400, %s403
      %p409 = scmp.eq.s32.totalorder %s21, 0
      %p410 = por %p408, %p409
      %p411 = scmp.ne.s32.totalorder %s400, %s403
      %p412 = scmp.eq.s32.totalorder %s26, 3
      %p413 = por %p411, %p412
      %p414 = scmp.ne.s32.totalorder %s403, %s404
      %p415 = scmp.eq.s32.totalorder %s26, 0
      %p416 = por %p414, %p415
      %p417 = scmp.ne.s32.totalorder %s403, %s404
      %p418 = scmp.eq.s32.totalorder %s27, 3
      %p419 = por %p417, %p418
      %p421 = scmp.ne.s32.totalorder %s404, %s420
      %p422 = scmp.eq.s32.totalorder %s27, 0
      %p423 = por %p421, %p422
      %p424 = scmp.le.s32.totalorder 1, %s21
      %p425 = scmp.lt.s32.totalorder %s21, 5
      %p426 = pnand %p424, %p425
      %p427 = pneg %p426
      // Predicated region
      $region9: #{diffusionnet_forward.9} parent=5 // pred_check
        _
      $region10: #{diffusionnet_forward.9} parent=5 // pred_check_branch
        %429 = sbr.rel (%p426) target = $region12
      $region11: #{diffusionnet_forward.9} parent=5 // pred_region
        %s430 = ssub.s32 %s21, 1
        // Predicated region
        $region13: #{diffusionnet_forward.9} parent=11 // pred_check
          %p431 = pneg %p192
        $region14: #{diffusionnet_forward.9} parent=11 // pred_check_branch
          %433 = sbr.rel (%p431) target = $region16
        $region15: #{diffusionnet_forward.9} parent=11 // pred_region
          _
        $region16: #{diffusionnet_forward.9} parent=11 // pred_fallthru
          _
        // Predicated region
        $region17: #{diffusionnet_forward.9} parent=11 // pred_check
          %p434 = pneg %p213
        $region18: #{diffusionnet_forward.9} parent=11 // pred_check_branch
          %436 = sbr.rel (%p434) target = $region20
        $region19: #{diffusionnet_forward.9} parent=11 // pred_region
          _
        $region20: #{diffusionnet_forward.9} parent=11 // pred_fallthru
          _
        // Predicated region
        $region21: #{diffusionnet_forward.9} parent=11 // pred_check
          %p437 = pneg %p234
        $region22: #{diffusionnet_forward.9} parent=11 // pred_check_branch
          %439 = sbr.rel (%p437) target = $region24
        $region23: #{diffusionnet_forward.9} parent=11 // pred_region
          _
        $region24: #{diffusionnet_forward.9} parent=11 // pred_fallthru
          _
        // Predicated region
        $region25: #{diffusionnet_forward.9} parent=11 // pred_check
          %p440 = pneg %p255
        $region26: #{diffusionnet_forward.9} parent=11 // pred_check_branch
          %442 = sbr.rel (%p440) target = $region28
        $region27: #{diffusionnet_forward.9} parent=11 // pred_region
          _
        $region28: #{diffusionnet_forward.9} parent=11 // pred_fallthru
          _
        // Predicated region
        $region29: #{diffusionnet_forward.9} parent=11 // pred_check
          %p443 = pneg %p276
        $region30: #{diffusionnet_forward.9} parent=11 // pred_check_branch
          %445 = sbr.rel (%p443) target = $region32
        $region31: #{diffusionnet_forward.9} parent=11 // pred_region
          _
        $region32: #{diffusionnet_forward.9} parent=11 // pred_fallthru
          _
        // Predicated region
        $region33: #{diffusionnet_forward.9} parent=11 // pred_check
          %p446 = pneg %p297
        $region34: #{diffusionnet_forward.9} parent=11 // pred_check_branch
          %448 = sbr.rel (%p446) target = $region36
        $region35: #{diffusionnet_forward.9} parent=11 // pred_region
          _
        $region36: #{diffusionnet_forward.9} parent=11 // pred_fallthru
          _
        // Predicated region
        $region37: #{diffusionnet_forward.9} parent=11 // pred_check
          %p449 = pneg %p318
        $region38: #{diffusionnet_forward.9} parent=11 // pred_check_branch
          %451 = sbr.rel (%p449) target = $region40
        $region39: #{diffusionnet_forward.9} parent=11 // pred_region
          _
        $region40: #{diffusionnet_forward.9} parent=11 // pred_fallthru
          _
        // Predicated region
        $region41: #{diffusionnet_forward.9} parent=11 // pred_check
          %p452 = pneg %p339
        $region42: #{diffusionnet_forward.9} parent=11 // pred_check_branch
          %454 = sbr.rel (%p452) target = $region44
        $region43: #{diffusionnet_forward.9} parent=11 // pred_region
          _
        $region44: #{diffusionnet_forward.9} parent=11 // pred_fallthru
          _
        // Predicated region
        $region45: #{diffusionnet_forward.9} parent=11 // pred_check
          %p455 = pneg %p360
        $region46: #{diffusionnet_forward.9} parent=11 // pred_check_branch
          %457 = sbr.rel (%p455) target = $region48
        $region47: #{diffusionnet_forward.9} parent=11 // pred_region
          _
        $region48: #{diffusionnet_forward.9} parent=11 // pred_fallthru
          _
      $region12: #{diffusionnet_forward.9} parent=5 // pred_fallthru
        _
      %p458 = scmp.lt.s32.totalorder %s21, 4
      // Predicated region
      $region49: #{diffusionnet_forward.9} parent=5 // pred_check
        %p459 = pneg %p458
      $region50: #{diffusionnet_forward.9} parent=5 // pred_check_branch
        %461 = sbr.rel (%p459) target = $region52
      $region51: #{diffusionnet_forward.9} parent=5 // pred_region
        // Predicated region
        $region53: #{diffusionnet_forward.9} parent=51 // pred_check
          %p462 = pneg %p55
        $region54: #{diffusionnet_forward.9} parent=51 // pred_check_branch
          %464 = sbr.rel (%p462) target = $region56
        $region55: #{diffusionnet_forward.9} parent=51 // pred_region
          %s465 = sand.u32 %s45, 1
          %s466 = sand.u32 %s45, 1
          %s467 = smul.addr %s466, 32
          %s468 = scalar_lea.vmem [#allocation2], %s467
          %s469 = smul.addr %s28, 8
          %s470 = sadd.s32 %s29, %s469
          %s471 = smul.addr %s470, 8
          %s472 = scalar_lea.vmem %s0, %s471
          // Predicated region
          $region57: #{diffusionnet_forward.9} parent=55 // pred_check
            _
          $region58: #{diffusionnet_forward.9} parent=55 // pred_check_branch
            %474 = sbr.rel (0) target = $region60
          $region59: #{diffusionnet_forward.9} parent=55 // pred_region
            // Predicated region
            $region61: #{diffusionnet_forward.9} parent=59 // pred_check
              _
            $region62: #{diffusionnet_forward.9} parent=59 // pred_check_branch
              %476 = sbr.rel (0) target = $region64
            $region63: #{diffusionnet_forward.9} parent=59 // pred_region
              // Predicated region
              $region76: #{diffusionnet_forward.9} parent=63 // pred_check
                _
              $region77: #{diffusionnet_forward.9} parent=63 // pred_check_branch
                %497 = sbr.rel (0) target = $region79
              $region78: #{diffusionnet_forward.9} parent=63 // pred_region
                loop: start=0, step=1, limit=1
                $region80: #{diffusionnet_forward.9} parent=78 // loop_pre_header
                  _
                $region81: #{diffusionnet_forward.9} parent=78 // loop_header
                  %s499 = sphi 0, %s503
                  %p500 = scmp.ge.s32.totalorder %s499, 1
                  %s504 = sphi %s472, %s472
                  %s505 = sphi %s468, %s468
                $region82: #{diffusionnet_forward.9} parent=78 // loop_header_branch
                  %502 = sbr.rel (%p500) target = $region86
                $region83: #{diffusionnet_forward.9} parent=78 // loop_body
                  %v506 = vld [vmem:[%s504] sm:$0xff]
                  %507 = vst [vmem:[%s505] sm:$0xff] %v506
                  %v508 = vld [vmem:[%s504 + $0x10] sm:$0xff]
                  %509 = vst [vmem:[%s505 + $0x8] sm:$0xff] %v508
                  %v510 = vld [vmem:[%s504 + $0x20] sm:$0xff]
                  %511 = vst [vmem:[%s505 + $0x10] sm:$0xff] %v510
                  %v512 = vld [vmem:[%s504 + $0x30] sm:$0xff]
                  %513 = vst [vmem:[%s505 + $0x18] sm:$0xff] %v512
                $region84: #{diffusionnet_forward.9} parent=78 // loop_footer
                  %s503 = sadd.s32 1, %s499
                $region85: #{diffusionnet_forward.9} parent=78 // loop_footer_branch
                  %498 = sbr.rel target = $region81
                $region86: #{diffusionnet_forward.9} parent=78 // loop_exit
                  _
              $region79: #{diffusionnet_forward.9} parent=63 // pred_fallthru
                _
              // Predicated region
              $region87: #{diffusionnet_forward.9} parent=63 // pred_check
                _
              $region88: #{diffusionnet_forward.9} parent=63 // pred_check_branch
                %515 = sbr.rel target = $region90
              $region89: #{diffusionnet_forward.9} parent=63 // pred_region
                _
              $region90: #{diffusionnet_forward.9} parent=63 // pred_fallthru
                _
            $region64: #{diffusionnet_forward.9} parent=59 // pred_fallthru
              _
            // Predicated region
            $region65: #{diffusionnet_forward.9} parent=59 // pred_check
              _
            $region66: #{diffusionnet_forward.9} parent=59 // pred_check_branch
              %478 = sbr.rel target = $region68
            $region67: #{diffusionnet_forward.9} parent=59 // pred_region
              loop: start=0, step=1, limit=1
              $region69: #{diffusionnet_forward.9} parent=67 // loop_pre_header
                _
              $region70: #{diffusionnet_forward.9} parent=67 // loop_header
                %s481 = sphi 0, %s485
                %p482 = scmp.ge.s32.totalorder %s481, 1
                %s486 = sphi %s472, %s472
                %s487 = sphi %s468, %s468
              $region71: #{diffusionnet_forward.9} parent=67 // loop_header_branch
                %484 = sbr.rel (%p482) target = $region75
              $region72: #{diffusionnet_forward.9} parent=67 // loop_body
                %v488 = vld [vmem:[%s486] sm:$0xff]
                %489 = vst [vmem:[%s487] sm:$0xff] %v488
                %v490 = vld [vmem:[%s486 + $0x10] sm:$0xff]
                %491 = vst [vmem:[%s487 + $0x8] sm:$0xff] %v490
                %v492 = vld [vmem:[%s486 + $0x20] sm:$0xff]
                %493 = vst [vmem:[%s487 + $0x10] sm:$0xff] %v492
                %v494 = vld [vmem:[%s486 + $0x30] sm:$0xff]
                %495 = vst [vmem:[%s487 + $0x18] sm:$0xff] %v494
              $region73: #{diffusionnet_forward.9} parent=67 // loop_footer
                %s485 = sadd.s32 1, %s481
              $region74: #{diffusionnet_forward.9} parent=67 // loop_footer_branch
                %480 = sbr.rel target = $region70
              $region75: #{diffusionnet_forward.9} parent=67 // loop_exit
                _
            $region68: #{diffusionnet_forward.9} parent=59 // pred_fallthru
              _
          $region60: #{diffusionnet_forward.9} parent=55 // pred_fallthru
            _
          %516 = vnop
        $region56: #{diffusionnet_forward.9} parent=51 // pred_fallthru
          _
        // Predicated region
        $region91: #{diffusionnet_forward.9} parent=51 // pred_check
          %p517 = pneg %p83
        $region92: #{diffusionnet_forward.9} parent=51 // pred_check_branch
          %519 = sbr.rel (%p517) target = $region94
        $region93: #{diffusionnet_forward.9} parent=51 // pred_region
          %s520 = sand.u32 %s73, 1
          %s521 = sand.u32 %s73, 1
          %s522 = smul.addr %s521, 32
          %s523 = scalar_lea.vmem [#allocation3], %s522
          %s524 = smul.addr %s28, 8
          %s525 = sadd.s32 %s29, %s524
          %s526 = smul.addr %s525, 8
          %s527 = scalar_lea.vmem %s1, %s526
          // Predicated region
          $region95: #{diffusionnet_forward.9} parent=93 // pred_check
            _
          $region96: #{diffusionnet_forward.9} parent=93 // pred_check_branch
            %529 = sbr.rel (0) target = $region98
          $region97: #{diffusionnet_forward.9} parent=93 // pred_region
            // Predicated region
            $region99: #{diffusionnet_forward.9} parent=97 // pred_check
              _
            $region100: #{diffusionnet_forward.9} parent=97 // pred_check_branch
              %531 = sbr.rel (0) target = $region102
            $region101: #{diffusionnet_forward.9} parent=97 // pred_region
              // Predicated region
              $region114: #{diffusionnet_forward.9} parent=101 // pred_check
                _
              $region115: #{diffusionnet_forward.9} parent=101 // pred_check_branch
                %552 = sbr.rel (0) target = $region117
              $region116: #{diffusionnet_forward.9} parent=101 // pred_region
                loop: start=0, step=1, limit=1
                $region118: #{diffusionnet_forward.9} parent=116 // loop_pre_header
                  _
                $region119: #{diffusionnet_forward.9} parent=116 // loop_header
                  %s554 = sphi 0, %s558
                  %p555 = scmp.ge.s32.totalorder %s554, 1
                  %s559 = sphi %s527, %s527
                  %s560 = sphi %s523, %s523
                $region120: #{diffusionnet_forward.9} parent=116 // loop_header_branch
                  %557 = sbr.rel (%p555) target = $region124
                $region121: #{diffusionnet_forward.9} parent=116 // loop_body
                  %v561 = vld [vmem:[%s559] sm:$0xff]
                  %562 = vst [vmem:[%s560] sm:$0xff] %v561
                  %v563 = vld [vmem:[%s559 + $0x10] sm:$0xff]
                  %564 = vst [vmem:[%s560 + $0x8] sm:$0xff] %v563
                  %v565 = vld [vmem:[%s559 + $0x20] sm:$0xff]
                  %566 = vst [vmem:[%s560 + $0x10] sm:$0xff] %v565
                  %v567 = vld [vmem:[%s559 + $0x30] sm:$0xff]
                  %568 = vst [vmem:[%s560 + $0x18] sm:$0xff] %v567
                $region122: #{diffusionnet_forward.9} parent=116 // loop_footer
                  %s558 = sadd.s32 1, %s554
                $region123: #{diffusionnet_forward.9} parent=116 // loop_footer_branch
                  %553 = sbr.rel target = $region119
                $region124: #{diffusionnet_forward.9} parent=116 // loop_exit
                  _
              $region117: #{diffusionnet_forward.9} parent=101 // pred_fallthru
                _
              // Predicated region
              $region125: #{diffusionnet_forward.9} parent=101 // pred_check
                _
              $region126: #{diffusionnet_forward.9} parent=101 // pred_check_branch
                %570 = sbr.rel target = $region128
              $region127: #{diffusionnet_forward.9} parent=101 // pred_region
                _
              $region128: #{diffusionnet_forward.9} parent=101 // pred_fallthru
                _
            $region102: #{diffusionnet_forward.9} parent=97 // pred_fallthru
              _
            // Predicated region
            $region103: #{diffusionnet_forward.9} parent=97 // pred_check
              _
            $region104: #{diffusionnet_forward.9} parent=97 // pred_check_branch
              %533 = sbr.rel target = $region106
            $region105: #{diffusionnet_forward.9} parent=97 // pred_region
              loop: start=0, step=1, limit=1
              $region107: #{diffusionnet_forward.9} parent=105 // loop_pre_header
                _
              $region108: #{diffusionnet_forward.9} parent=105 // loop_header
                %s536 = sphi 0, %s540
                %p537 = scmp.ge.s32.totalorder %s536, 1
                %s541 = sphi %s527, %s527
                %s542 = sphi %s523, %s523
              $region109: #{diffusionnet_forward.9} parent=105 // loop_header_branch
                %539 = sbr.rel (%p537) target = $region113
              $region110: #{diffusionnet_forward.9} parent=105 // loop_body
                %v543 = vld [vmem:[%s541] sm:$0xff]
                %544 = vst [vmem:[%s542] sm:$0xff] %v543
                %v545 = vld [vmem:[%s541 + $0x10] sm:$0xff]
                %546 = vst [vmem:[%s542 + $0x8] sm:$0xff] %v545
                %v547 = vld [vmem:[%s541 + $0x20] sm:$0xff]
                %548 = vst [vmem:[%s542 + $0x10] sm:$0xff] %v547
                %v549 = vld [vmem:[%s541 + $0x30] sm:$0xff]
                %550 = vst [vmem:[%s542 + $0x18] sm:$0xff] %v549
              $region111: #{diffusionnet_forward.9} parent=105 // loop_footer
                %s540 = sadd.s32 1, %s536
              $region112: #{diffusionnet_forward.9} parent=105 // loop_footer_branch
                %535 = sbr.rel target = $region108
              $region113: #{diffusionnet_forward.9} parent=105 // loop_exit
                _
            $region106: #{diffusionnet_forward.9} parent=97 // pred_fallthru
              _
          $region98: #{diffusionnet_forward.9} parent=93 // pred_fallthru
            _
          %571 = vnop
        $region94: #{diffusionnet_forward.9} parent=51 // pred_fallthru
          _
        // Predicated region
        $region129: #{diffusionnet_forward.9} parent=51 // pred_check
          %p572 = pneg %p109
        $region130: #{diffusionnet_forward.9} parent=51 // pred_check_branch
          %574 = sbr.rel (%p572) target = $region132
        $region131: #{diffusionnet_forward.9} parent=51 // pred_region
          %p575 = scmp.lt.s32.totalorder %s28, 1
          %s576 = scalar_select %p575, %s28, 1
          %s577 = smul.addr %s576, 8
          %s578 = smul.addr %s577, 4
          %s579 = scalar_lea.vmem %s2, %s578
        $region132: #{diffusionnet_forward.9} parent=51 // pred_fallthru
          _
        // Predicated region
        $region133: #{diffusionnet_forward.9} parent=51 // pred_check
          %p580 = pneg %p137
        $region134: #{diffusionnet_forward.9} parent=51 // pred_check_branch
          %582 = sbr.rel (%p580) target = $region136
        $region135: #{diffusionnet_forward.9} parent=51 // pred_region
          %s583 = sand.u32 %s127, 1
          %s584 = sand.u32 %s127, 1
          %s585 = smul.addr %s584, 128
          %s586 = scalar_lea.vmem [#allocation4], %s585
          %s587 = smul.addr %s28, 64
          %s588 = sadd.s32 %s29, %s587
          %s589 = smul.addr %s588, 4
          %s590 = scalar_lea.vmem %s3, %s589
          // Predicated region
          $region137: #{diffusionnet_forward.9} parent=135 // pred_check
            _
          $region138: #{diffusionnet_forward.9} parent=135 // pred_check_branch
            %592 = sbr.rel (0) target = $region140
          $region139: #{diffusionnet_forward.9} parent=135 // pred_region
            // Predicated region
            $region141: #{diffusionnet_forward.9} parent=139 // pred_check
              _
            $region142: #{diffusionnet_forward.9} parent=139 // pred_check_branch
              %594 = sbr.rel target = $region144
            $region143: #{diffusionnet_forward.9} parent=139 // pred_region
              // Predicated region
              $region156: #{diffusionnet_forward.9} parent=143 // pred_check
                _
              $region157: #{diffusionnet_forward.9} parent=143 // pred_check_branch
                %671 = sbr.rel (0) target = $region159
              $region158: #{diffusionnet_forward.9} parent=143 // pred_region
                loop: start=0, step=1, limit=1
                $region160: #{diffusionnet_forward.9} parent=158 // loop_pre_header
                  _
                $region161: #{diffusionnet_forward.9} parent=158 // loop_header
                  %s673 = sphi 0, %s677
                  %p674 = scmp.ge.s32.totalorder %s673, 1
                  %s678 = sphi %s590, %s590
                  %s679 = sphi %s586, %s586
                $region162: #{diffusionnet_forward.9} parent=158 // loop_header_branch
                  %676 = sbr.rel (%p674) target = $region166
                $region163: #{diffusionnet_forward.9} parent=158 // loop_body
                  _
                $region164: #{diffusionnet_forward.9} parent=158 // loop_footer
                  %s677 = sadd.s32 1, %s673
                $region165: #{diffusionnet_forward.9} parent=158 // loop_footer_branch
                  %672 = sbr.rel target = $region161
                $region166: #{diffusionnet_forward.9} parent=158 // loop_exit
                  _
                loop: start=0, step=1, limit=1
                $region167: #{diffusionnet_forward.9} parent=158 // loop_pre_header
                  _
                $region168: #{diffusionnet_forward.9} parent=158 // loop_header
                  %s682 = sphi 0, %s686
                  %p683 = scmp.ge.s32.totalorder %s682, 1
                  %s687 = sphi %s590, %s590
                  %s688 = sphi %s586, %s586
                $region169: #{diffusionnet_forward.9} parent=158 // loop_header_branch
                  %685 = sbr.rel (%p683) target = $region173
                $region170: #{diffusionnet_forward.9} parent=158 // loop_body
                  %v689 = vld [vmem:[%s687] sm:$0xf]
                  %690 = vst [vmem:[%s688] sm:$0xf] %v689
                  %v691 = vld [vmem:[%s687 + $0x8] sm:$0xf]
                  %692 = vst [vmem:[%s688 + $0x4] sm:$0xf] %v691
                  %v693 = vld [vmem:[%s687 + $0x10] sm:$0xf]
                  %694 = vst [vmem:[%s688 + $0x8] sm:$0xf] %v693
                  %v695 = vld [vmem:[%s687 + $0x18] sm:$0xf]
                  %696 = vst [vmem:[%s688 + $0xc] sm:$0xf] %v695
                  %v697 = vld [vmem:[%s687 + $0x20] sm:$0xf]
                  %698 = vst [vmem:[%s688 + $0x10] sm:$0xf] %v697
                  %v699 = vld [vmem:[%s687 + $0x28] sm:$0xf]
                  %700 = vst [vmem:[%s688 + $0x14] sm:$0xf] %v699
                  %v701 = vld [vmem:[%s687 + $0x30] sm:$0xf]
                  %702 = vst [vmem:[%s688 + $0x18] sm:$0xf] %v701
                  %v703 = vld [vmem:[%s687 + $0x38] sm:$0xf]
                  %704 = vst [vmem:[%s688 + $0x1c] sm:$0xf] %v703
                  %v705 = vld [vmem:[%s687 + $0x40] sm:$0xf]
                  %706 = vst [vmem:[%s688 + $0x20] sm:$0xf] %v705
                  %v707 = vld [vmem:[%s687 + $0x48] sm:$0xf]
                  %708 = vst [vmem:[%s688 + $0x24] sm:$0xf] %v707
                  %v709 = vld [vmem:[%s687 + $0x50] sm:$0xf]
                  %710 = vst [vmem:[%s688 + $0x28] sm:$0xf] %v709
                  %v711 = vld [vmem:[%s687 + $0x58] sm:$0xf]
                  %712 = vst [vmem:[%s688 + $0x2c] sm:$0xf] %v711
                  %v713 = vld [vmem:[%s687 + $0x60] sm:$0xf]
                  %714 = vst [vmem:[%s688 + $0x30] sm:$0xf] %v713
                  %v715 = vld [vmem:[%s687 + $0x68] sm:$0xf]
                  %716 = vst [vmem:[%s688 + $0x34] sm:$0xf] %v715
                  %v717 = vld [vmem:[%s687 + $0x70] sm:$0xf]
                  %718 = vst [vmem:[%s688 + $0x38] sm:$0xf] %v717
                  %v719 = vld [vmem:[%s687 + $0x78] sm:$0xf]
                  %720 = vst [vmem:[%s688 + $0x3c] sm:$0xf] %v719
                  %v721 = vld [vmem:[%s687 + $0x80] sm:$0xf]
                  %722 = vst [vmem:[%s688 + $0x40] sm:$0xf] %v721
                  %v723 = vld [vmem:[%s687 + $0x88] sm:$0xf]
                  %724 = vst [vmem:[%s688 + $0x44] sm:$0xf] %v723
                  %v725 = vld [vmem:[%s687 + $0x90] sm:$0xf]
                  %726 = vst [vmem:[%s688 + $0x48] sm:$0xf] %v725
                  %v727 = vld [vmem:[%s687 + $0x98] sm:$0xf]
                  %728 = vst [vmem:[%s688 + $0x4c] sm:$0xf] %v727
                  %v729 = vld [vmem:[%s687 + $0xa0] sm:$0xf]
                  %730 = vst [vmem:[%s688 + $0x50] sm:$0xf] %v729
                  %v731 = vld [vmem:[%s687 + $0xa8] sm:$0xf]
                  %732 = vst [vmem:[%s688 + $0x54] sm:$0xf] %v731
                  %v733 = vld [vmem:[%s687 + $0xb0] sm:$0xf]
                  %734 = vst [vmem:[%s688 + $0x58] sm:$0xf] %v733
                  %v735 = vld [vmem:[%s687 + $0xb8] sm:$0xf]
                  %736 = vst [vmem:[%s688 + $0x5c] sm:$0xf] %v735
                  %v737 = vld [vmem:[%s687 + $0xc0] sm:$0xf]
                  %738 = vst [vmem:[%s688 + $0x60] sm:$0xf] %v737
                  %v739 = vld [vmem:[%s687 + $0xc8] sm:$0xf]
                  %740 = vst [vmem:[%s688 + $0x64] sm:$0xf] %v739
                  %v741 = vld [vmem:[%s687 + $0xd0] sm:$0xf]
                  %742 = vst [vmem:[%s688 + $0x68] sm:$0xf] %v741
                  %v743 = vld [vmem:[%s687 + $0xd8] sm:$0xf]
                  %744 = vst [vmem:[%s688 + $0x6c] sm:$0xf] %v743
                  %v745 = vld [vmem:[%s687 + $0xe0] sm:$0xf]
                  %746 = vst [vmem:[%s688 + $0x70] sm:$0xf] %v745
                  %v747 = vld [vmem:[%s687 + $0xe8] sm:$0xf]
                  %748 = vst [vmem:[%s688 + $0x74] sm:$0xf] %v747
                  %v749 = vld [vmem:[%s687 + $0xf0] sm:$0xf]
                  %750 = vst [vmem:[%s688 + $0x78] sm:$0xf] %v749
                  %v751 = vld [vmem:[%s687 + $0xf8] sm:$0xf]
                  %752 = vst [vmem:[%s688 + $0x7c] sm:$0xf] %v751
                $region171: #{diffusionnet_forward.9} parent=158 // loop_footer
                  %s686 = sadd.s32 1, %s682
                $region172: #{diffusionnet_forward.9} parent=158 // loop_footer_branch
                  %681 = sbr.rel target = $region168
                $region173: #{diffusionnet_forward.9} parent=158 // loop_exit
                  _
              $region159: #{diffusionnet_forward.9} parent=143 // pred_fallthru
                _
            $region144: #{diffusionnet_forward.9} parent=139 // pred_fallthru
              _
            // Predicated region
            $region145: #{diffusionnet_forward.9} parent=139 // pred_check
              _
            $region146: #{diffusionnet_forward.9} parent=139 // pred_check_branch
              %596 = sbr.rel (0) target = $region148
            $region147: #{diffusionnet_forward.9} parent=139 // pred_region
              loop: start=0, step=1, limit=1
              $region149: #{diffusionnet_forward.9} parent=147 // loop_pre_header
                _
              $region150: #{diffusionnet_forward.9} parent=147 // loop_header
                %s599 = sphi 0, %s603
                %p600 = scmp.ge.s32.totalorder %s599, 1
                %s604 = sphi %s590, %s590
                %s605 = sphi %s586, %s586
              $region151: #{diffusionnet_forward.9} parent=147 // loop_header_branch
                %602 = sbr.rel (%p600) target = $region155
              $region152: #{diffusionnet_forward.9} parent=147 // loop_body
                %v606 = vld [vmem:[%s604] sm:$0xf]
                %607 = vst [vmem:[%s605] sm:$0xf] %v606
                %v608 = vld [vmem:[%s604 + $0x8] sm:$0xf]
                %609 = vst [vmem:[%s605 + $0x4] sm:$0xf] %v608
                %v610 = vld [vmem:[%s604 + $0x10] sm:$0xf]
                %611 = vst [vmem:[%s605 + $0x8] sm:$0xf] %v610
                %v612 = vld [vmem:[%s604 + $0x18] sm:$0xf]
                %613 = vst [vmem:[%s605 + $0xc] sm:$0xf] %v612
                %v614 = vld [vmem:[%s604 + $0x20] sm:$0xf]
                %615 = vst [vmem:[%s605 + $0x10] sm:$0xf] %v614
                %v616 = vld [vmem:[%s604 + $0x28] sm:$0xf]
                %617 = vst [vmem:[%s605 + $0x14] sm:$0xf] %v616
                %v618 = vld [vmem:[%s604 + $0x30] sm:$0xf]
                %619 = vst [vmem:[%s605 + $0x18] sm:$0xf] %v618
                %v620 = vld [vmem:[%s604 + $0x38] sm:$0xf]
                %621 = vst [vmem:[%s605 + $0x1c] sm:$0xf] %v620
                %v622 = vld [vmem:[%s604 + $0x40] sm:$0xf]
                %623 = vst [vmem:[%s605 + $0x20] sm:$0xf] %v622
                %v624 = vld [vmem:[%s604 + $0x48] sm:$0xf]
                %625 = vst [vmem:[%s605 + $0x24] sm:$0xf] %v624
                %v626 = vld [vmem:[%s604 + $0x50] sm:$0xf]
                %627 = vst [vmem:[%s605 + $0x28] sm:$0xf] %v626
                %v628 = vld [vmem:[%s604 + $0x58] sm:$0xf]
                %629 = vst [vmem:[%s605 + $0x2c] sm:$0xf] %v628
                %v630 = vld [vmem:[%s604 + $0x60] sm:$0xf]
                %631 = vst [vmem:[%s605 + $0x30] sm:$0xf] %v630
                %v632 = vld [vmem:[%s604 + $0x68] sm:$0xf]
                %633 = vst [vmem:[%s605 + $0x34] sm:$0xf] %v632
                %v634 = vld [vmem:[%s604 + $0x70] sm:$0xf]
                %635 = vst [vmem:[%s605 + $0x38] sm:$0xf] %v634
                %v636 = vld [vmem:[%s604 + $0x78] sm:$0xf]
                %637 = vst [vmem:[%s605 + $0x3c] sm:$0xf] %v636
                %v638 = vld [vmem:[%s604 + $0x80] sm:$0xf]
                %639 = vst [vmem:[%s605 + $0x40] sm:$0xf] %v638
                %v640 = vld [vmem:[%s604 + $0x88] sm:$0xf]
                %641 = vst [vmem:[%s605 + $0x44] sm:$0xf] %v640
                %v642 = vld [vmem:[%s604 + $0x90] sm:$0xf]
                %643 = vst [vmem:[%s605 + $0x48] sm:$0xf] %v642
                %v644 = vld [vmem:[%s604 + $0x98] sm:$0xf]
                %645 = vst [vmem:[%s605 + $0x4c] sm:$0xf] %v644
                %v646 = vld [vmem:[%s604 + $0xa0] sm:$0xf]
                %647 = vst [vmem:[%s605 + $0x50] sm:$0xf] %v646
                %v648 = vld [vmem:[%s604 + $0xa8] sm:$0xf]
                %649 = vst [vmem:[%s605 + $0x54] sm:$0xf] %v648
                %v650 = vld [vmem:[%s604 + $0xb0] sm:$0xf]
                %651 = vst [vmem:[%s605 + $0x58] sm:$0xf] %v650
                %v652 = vld [vmem:[%s604 + $0xb8] sm:$0xf]
                %653 = vst [vmem:[%s605 + $0x5c] sm:$0xf] %v652
                %v654 = vld [vmem:[%s604 + $0xc0] sm:$0xf]
                %655 = vst [vmem:[%s605 + $0x60] sm:$0xf] %v654
                %v656 = vld [vmem:[%s604 + $0xc8] sm:$0xf]
                %657 = vst [vmem:[%s605 + $0x64] sm:$0xf] %v656
                %v658 = vld [vmem:[%s604 + $0xd0] sm:$0xf]
                %659 = vst [vmem:[%s605 + $0x68] sm:$0xf] %v658
                %v660 = vld [vmem:[%s604 + $0xd8] sm:$0xf]
                %661 = vst [vmem:[%s605 + $0x6c] sm:$0xf] %v660
                %v662 = vld [vmem:[%s604 + $0xe0] sm:$0xf]
                %663 = vst [vmem:[%s605 + $0x70] sm:$0xf] %v662
                %v664 = vld [vmem:[%s604 + $0xe8] sm:$0xf]
                %665 = vst [vmem:[%s605 + $0x74] sm:$0xf] %v664
                %v666 = vld [vmem:[%s604 + $0xf0] sm:$0xf]
                %667 = vst [vmem:[%s605 + $0x78] sm:$0xf] %v666
                %v668 = vld [vmem:[%s604 + $0xf8] sm:$0xf]
                %669 = vst [vmem:[%s605 + $0x7c] sm:$0xf] %v668
              $region153: #{diffusionnet_forward.9} parent=147 // loop_footer
                %s603 = sadd.s32 1, %s599
              $region154: #{diffusionnet_forward.9} parent=147 // loop_footer_branch
                %598 = sbr.rel target = $region150
              $region155: #{diffusionnet_forward.9} parent=147 // loop_exit
                _
            $region148: #{diffusionnet_forward.9} parent=139 // pred_fallthru
              _
          $region140: #{diffusionnet_forward.9} parent=135 // pred_fallthru
            _
          %753 = vnop
        $region136: #{diffusionnet_forward.9} parent=51 // pred_fallthru
          _
        // Predicated region
        $region174: #{diffusionnet_forward.9} parent=51 // pred_check
          %p754 = pneg %p165
        $region175: #{diffusionnet_forward.9} parent=51 // pred_check_branch
          %756 = sbr.rel (%p754) target = $region177
        $region176: #{diffusionnet_forward.9} parent=51 // pred_region
          %s757 = sand.u32 %s155, 1
          %s758 = sand.u32 %s155, 1
          %s759 = smul.addr %s758, 128
          %s760 = scalar_lea.vmem [#allocation5], %s759
          %s761 = smul.addr %s28, 64
          %s762 = sadd.s32 %s29, %s761
          %s763 = smul.addr %s762, 4
          %s764 = scalar_lea.vmem %s4, %s763
          // Predicated region
          $region178: #{diffusionnet_forward.9} parent=176 // pred_check
            _
          $region179: #{diffusionnet_forward.9} parent=176 // pred_check_branch
            %766 = sbr.rel (0) target = $region181
          $region180: #{diffusionnet_forward.9} parent=176 // pred_region
            // Predicated region
            $region182: #{diffusionnet_forward.9} parent=180 // pred_check
              _
            $region183: #{diffusionnet_forward.9} parent=180 // pred_check_branch
              %768 = sbr.rel target = $region185
            $region184: #{diffusionnet_forward.9} parent=180 // pred_region
              // Predicated region
              $region197: #{diffusionnet_forward.9} parent=184 // pred_check
                _
              $region198: #{diffusionnet_forward.9} parent=184 // pred_check_branch
                %845 = sbr.rel (0) target = $region200
              $region199: #{diffusionnet_forward.9} parent=184 // pred_region
                loop: start=0, step=1, limit=1
                $region201: #{diffusionnet_forward.9} parent=199 // loop_pre_header
                  _
                $region202: #{diffusionnet_forward.9} parent=199 // loop_header
                  %s847 = sphi 0, %s851
                  %p848 = scmp.ge.s32.totalorder %s847, 1
                  %s852 = sphi %s764, %s764
                  %s853 = sphi %s760, %s760
                $region203: #{diffusionnet_forward.9} parent=199 // loop_header_branch
                  %850 = sbr.rel (%p848) target = $region207
                $region204: #{diffusionnet_forward.9} parent=199 // loop_body
                  _
                $region205: #{diffusionnet_forward.9} parent=199 // loop_footer
                  %s851 = sadd.s32 1, %s847
                $region206: #{diffusionnet_forward.9} parent=199 // loop_footer_branch
                  %846 = sbr.rel target = $region202
                $region207: #{diffusionnet_forward.9} parent=199 // loop_exit
                  _
                loop: start=0, step=1, limit=1
                $region208: #{diffusionnet_forward.9} parent=199 // loop_pre_header
                  _
                $region209: #{diffusionnet_forward.9} parent=199 // loop_header
                  %s856 = sphi 0, %s860
                  %p857 = scmp.ge.s32.totalorder %s856, 1
                  %s861 = sphi %s764, %s764
                  %s862 = sphi %s760, %s760
                $region210: #{diffusionnet_forward.9} parent=199 // loop_header_branch
                  %859 = sbr.rel (%p857) target = $region214
                $region211: #{diffusionnet_forward.9} parent=199 // loop_body
                  %v863 = vld [vmem:[%s861] sm:$0xf]
                  %864 = vst [vmem:[%s862] sm:$0xf] %v863
                  %v865 = vld [vmem:[%s861 + $0x8] sm:$0xf]
                  %866 = vst [vmem:[%s862 + $0x4] sm:$0xf] %v865
                  %v867 = vld [vmem:[%s861 + $0x10] sm:$0xf]
                  %868 = vst [vmem:[%s862 + $0x8] sm:$0xf] %v867
                  %v869 = vld [vmem:[%s861 + $0x18] sm:$0xf]
                  %870 = vst [vmem:[%s862 + $0xc] sm:$0xf] %v869
                  %v871 = vld [vmem:[%s861 + $0x20] sm:$0xf]
                  %872 = vst [vmem:[%s862 + $0x10] sm:$0xf] %v871
                  %v873 = vld [vmem:[%s861 + $0x28] sm:$0xf]
                  %874 = vst [vmem:[%s862 + $0x14] sm:$0xf] %v873
                  %v875 = vld [vmem:[%s861 + $0x30] sm:$0xf]
                  %876 = vst [vmem:[%s862 + $0x18] sm:$0xf] %v875
                  %v877 = vld [vmem:[%s861 + $0x38] sm:$0xf]
                  %878 = vst [vmem:[%s862 + $0x1c] sm:$0xf] %v877
                  %v879 = vld [vmem:[%s861 + $0x40] sm:$0xf]
                  %880 = vst [vmem:[%s862 + $0x20] sm:$0xf] %v879
                  %v881 = vld [vmem:[%s861 + $0x48] sm:$0xf]
                  %882 = vst [vmem:[%s862 + $0x24] sm:$0xf] %v881
                  %v883 = vld [vmem:[%s861 + $0x50] sm:$0xf]
                  %884 = vst [vmem:[%s862 + $0x28] sm:$0xf] %v883
                  %v885 = vld [vmem:[%s861 + $0x58] sm:$0xf]
                  %886 = vst [vmem:[%s862 + $0x2c] sm:$0xf] %v885
                  %v887 = vld [vmem:[%s861 + $0x60] sm:$0xf]
                  %888 = vst [vmem:[%s862 + $0x30] sm:$0xf] %v887
                  %v889 = vld [vmem:[%s861 + $0x68] sm:$0xf]
                  %890 = vst [vmem:[%s862 + $0x34] sm:$0xf] %v889
                  %v891 = vld [vmem:[%s861 + $0x70] sm:$0xf]
                  %892 = vst [vmem:[%s862 + $0x38] sm:$0xf] %v891
                  %v893 = vld [vmem:[%s861 + $0x78] sm:$0xf]
                  %894 = vst [vmem:[%s862 + $0x3c] sm:$0xf] %v893
                  %v895 = vld [vmem:[%s861 + $0x80] sm:$0xf]
                  %896 = vst [vmem:[%s862 + $0x40] sm:$0xf] %v895
                  %v897 = vld [vmem:[%s861 + $0x88] sm:$0xf]
                  %898 = vst [vmem:[%s862 + $0x44] sm:$0xf] %v897
                  %v899 = vld [vmem:[%s861 + $0x90] sm:$0xf]
                  %900 = vst [vmem:[%s862 + $0x48] sm:$0xf] %v899
                  %v901 = vld [vmem:[%s861 + $0x98] sm:$0xf]
                  %902 = vst [vmem:[%s862 + $0x4c] sm:$0xf] %v901
                  %v903 = vld [vmem:[%s861 + $0xa0] sm:$0xf]
                  %904 = vst [vmem:[%s862 + $0x50] sm:$0xf] %v903
                  %v905 = vld [vmem:[%s861 + $0xa8] sm:$0xf]
                  %906 = vst [vmem:[%s862 + $0x54] sm:$0xf] %v905
                  %v907 = vld [vmem:[%s861 + $0xb0] sm:$0xf]
                  %908 = vst [vmem:[%s862 + $0x58] sm:$0xf] %v907
                  %v909 = vld [vmem:[%s861 + $0xb8] sm:$0xf]
                  %910 = vst [vmem:[%s862 + $0x5c] sm:$0xf] %v909
                  %v911 = vld [vmem:[%s861 + $0xc0] sm:$0xf]
                  %912 = vst [vmem:[%s862 + $0x60] sm:$0xf] %v911
                  %v913 = vld [vmem:[%s861 + $0xc8] sm:$0xf]
                  %914 = vst [vmem:[%s862 + $0x64] sm:$0xf] %v913
                  %v915 = vld [vmem:[%s861 + $0xd0] sm:$0xf]
                  %916 = vst [vmem:[%s862 + $0x68] sm:$0xf] %v915
                  %v917 = vld [vmem:[%s861 + $0xd8] sm:$0xf]
                  %918 = vst [vmem:[%s862 + $0x6c] sm:$0xf] %v917
                  %v919 = vld [vmem:[%s861 + $0xe0] sm:$0xf]
                  %920 = vst [vmem:[%s862 + $0x70] sm:$0xf] %v919
                  %v921 = vld [vmem:[%s861 + $0xe8] sm:$0xf]
                  %922 = vst [vmem:[%s862 + $0x74] sm:$0xf] %v921
                  %v923 = vld [vmem:[%s861 + $0xf0] sm:$0xf]
                  %924 = vst [vmem:[%s862 + $0x78] sm:$0xf] %v923
                  %v925 = vld [vmem:[%s861 + $0xf8] sm:$0xf]
                  %926 = vst [vmem:[%s862 + $0x7c] sm:$0xf] %v925
                $region212: #{diffusionnet_forward.9} parent=199 // loop_footer
                  %s860 = sadd.s32 1, %s856
                $region213: #{diffusionnet_forward.9} parent=199 // loop_footer_branch
                  %855 = sbr.rel target = $region209
                $region214: #{diffusionnet_forward.9} parent=199 // loop_exit
                  _
              $region200: #{diffusionnet_forward.9} parent=184 // pred_fallthru
                _
            $region185: #{diffusionnet_forward.9} parent=180 // pred_fallthru
              _
            // Predicated region
            $region186: #{diffusionnet_forward.9} parent=180 // pred_check
              _
            $region187: #{diffusionnet_forward.9} parent=180 // pred_check_branch
              %770 = sbr.rel (0) target = $region189
            $region188: #{diffusionnet_forward.9} parent=180 // pred_region
              loop: start=0, step=1, limit=1
              $region190: #{diffusionnet_forward.9} parent=188 // loop_pre_header
                _
              $region191: #{diffusionnet_forward.9} parent=188 // loop_header
                %s773 = sphi 0, %s777
                %p774 = scmp.ge.s32.totalorder %s773, 1
                %s778 = sphi %s764, %s764
                %s779 = sphi %s760, %s760
              $region192: #{diffusionnet_forward.9} parent=188 // loop_header_branch
                %776 = sbr.rel (%p774) target = $region196
              $region193: #{diffusionnet_forward.9} parent=188 // loop_body
                %v780 = vld [vmem:[%s778] sm:$0xf]
                %781 = vst [vmem:[%s779] sm:$0xf] %v780
                %v782 = vld [vmem:[%s778 + $0x8] sm:$0xf]
                %783 = vst [vmem:[%s779 + $0x4] sm:$0xf] %v782
                %v784 = vld [vmem:[%s778 + $0x10] sm:$0xf]
                %785 = vst [vmem:[%s779 + $0x8] sm:$0xf] %v784
                %v786 = vld [vmem:[%s778 + $0x18] sm:$0xf]
                %787 = vst [vmem:[%s779 + $0xc] sm:$0xf] %v786
                %v788 = vld [vmem:[%s778 + $0x20] sm:$0xf]
                %789 = vst [vmem:[%s779 + $0x10] sm:$0xf] %v788
                %v790 = vld [vmem:[%s778 + $0x28] sm:$0xf]
                %791 = vst [vmem:[%s779 + $0x14] sm:$0xf] %v790
                %v792 = vld [vmem:[%s778 + $0x30] sm:$0xf]
                %793 = vst [vmem:[%s779 + $0x18] sm:$0xf] %v792
                %v794 = vld [vmem:[%s778 + $0x38] sm:$0xf]
                %795 = vst [vmem:[%s779 + $0x1c] sm:$0xf] %v794
                %v796 = vld [vmem:[%s778 + $0x40] sm:$0xf]
                %797 = vst [vmem:[%s779 + $0x20] sm:$0xf] %v796
                %v798 = vld [vmem:[%s778 + $0x48] sm:$0xf]
                %799 = vst [vmem:[%s779 + $0x24] sm:$0xf] %v798
                %v800 = vld [vmem:[%s778 + $0x50] sm:$0xf]
                %801 = vst [vmem:[%s779 + $0x28] sm:$0xf] %v800
                %v802 = vld [vmem:[%s778 + $0x58] sm:$0xf]
                %803 = vst [vmem:[%s779 + $0x2c] sm:$0xf] %v802
                %v804 = vld [vmem:[%s778 + $0x60] sm:$0xf]
                %805 = vst [vmem:[%s779 + $0x30] sm:$0xf] %v804
                %v806 = vld [vmem:[%s778 + $0x68] sm:$0xf]
                %807 = vst [vmem:[%s779 + $0x34] sm:$0xf] %v806
                %v808 = vld [vmem:[%s778 + $0x70] sm:$0xf]
                %809 = vst [vmem:[%s779 + $0x38] sm:$0xf] %v808
                %v810 = vld [vmem:[%s778 + $0x78] sm:$0xf]
                %811 = vst [vmem:[%s779 + $0x3c] sm:$0xf] %v810
                %v812 = vld [vmem:[%s778 + $0x80] sm:$0xf]
                %813 = vst [vmem:[%s779 + $0x40] sm:$0xf] %v812
                %v814 = vld [vmem:[%s778 + $0x88] sm:$0xf]
                %815 = vst [vmem:[%s779 + $0x44] sm:$0xf] %v814
                %v816 = vld [vmem:[%s778 + $0x90] sm:$0xf]
                %817 = vst [vmem:[%s779 + $0x48] sm:$0xf] %v816
                %v818 = vld [vmem:[%s778 + $0x98] sm:$0xf]
                %819 = vst [vmem:[%s779 + $0x4c] sm:$0xf] %v818
                %v820 = vld [vmem:[%s778 + $0xa0] sm:$0xf]
                %821 = vst [vmem:[%s779 + $0x50] sm:$0xf] %v820
                %v822 = vld [vmem:[%s778 + $0xa8] sm:$0xf]
                %823 = vst [vmem:[%s779 + $0x54] sm:$0xf] %v822
                %v824 = vld [vmem:[%s778 + $0xb0] sm:$0xf]
                %825 = vst [vmem:[%s779 + $0x58] sm:$0xf] %v824
                %v826 = vld [vmem:[%s778 + $0xb8] sm:$0xf]
                %827 = vst [vmem:[%s779 + $0x5c] sm:$0xf] %v826
                %v828 = vld [vmem:[%s778 + $0xc0] sm:$0xf]
                %829 = vst [vmem:[%s779 + $0x60] sm:$0xf] %v828
                %v830 = vld [vmem:[%s778 + $0xc8] sm:$0xf]
                %831 = vst [vmem:[%s779 + $0x64] sm:$0xf] %v830
                %v832 = vld [vmem:[%s778 + $0xd0] sm:$0xf]
                %833 = vst [vmem:[%s779 + $0x68] sm:$0xf] %v832
                %v834 = vld [vmem:[%s778 + $0xd8] sm:$0xf]
                %835 = vst [vmem:[%s779 + $0x6c] sm:$0xf] %v834
                %v836 = vld [vmem:[%s778 + $0xe0] sm:$0xf]
                %837 = vst [vmem:[%s779 + $0x70] sm:$0xf] %v836
                %v838 = vld [vmem:[%s778 + $0xe8] sm:$0xf]
                %839 = vst [vmem:[%s779 + $0x74] sm:$0xf] %v838
                %v840 = vld [vmem:[%s778 + $0xf0] sm:$0xf]
                %841 = vst [vmem:[%s779 + $0x78] sm:$0xf] %v840
                %v842 = vld [vmem:[%s778 + $0xf8] sm:$0xf]
                %843 = vst [vmem:[%s779 + $0x7c] sm:$0xf] %v842
              $region194: #{diffusionnet_forward.9} parent=188 // loop_footer
                %s777 = sadd.s32 1, %s773
              $region195: #{diffusionnet_forward.9} parent=188 // loop_footer_branch
                %772 = sbr.rel target = $region191
              $region196: #{diffusionnet_forward.9} parent=188 // loop_exit
                _
            $region189: #{diffusionnet_forward.9} parent=180 // pred_fallthru
              _
          $region181: #{diffusionnet_forward.9} parent=176 // pred_fallthru
            _
          %927 = vnop
        $region177: #{diffusionnet_forward.9} parent=51 // pred_fallthru
          _
        // Predicated region
        $region215: #{diffusionnet_forward.9} parent=51 // pred_check
          %p928 = pneg %p382
        $region216: #{diffusionnet_forward.9} parent=51 // pred_check_branch
          %930 = sbr.rel (%p928) target = $region218
        $region217: #{diffusionnet_forward.9} parent=51 // pred_region
          %p931 = scmp.lt.s32.totalorder %s28, 1
          %s932 = scalar_select %p931, %s28, 1
          %p933 = scmp.lt.s32.totalorder %s29, 1
          %s934 = scalar_select %p933, %s29, 1
          %s935 = smul.addr %s932, 2
          %s936 = sadd.s32 %s934, %s935
          %s937 = scalar_lea.vmem %s14, %s936
        $region218: #{diffusionnet_forward.9} parent=51 // pred_fallthru
          _
      $region52: #{diffusionnet_forward.9} parent=5 // pred_fallthru
        _
      %p938 = scmp.le.s32.totalorder 1, %s21
      %p939 = scmp.lt.s32.totalorder %s21, 5
      %p940 = pnand %p938, %p939
      %p941 = pneg %p940
      // Predicated region
      $region219: #{diffusionnet_forward.9} parent=5 // pred_check
        _
      $region220: #{diffusionnet_forward.9} parent=5 // pred_check_branch
        %943 = sbr.rel (%p940) target = $region222
      $region221: #{diffusionnet_forward.9} parent=5 // pred_region
        %s944 = ssub.s32 %s21, 1
        %s945 = sand.u32 %s48, 1
        %s946 = sand.u32 %s48, 1
        %s947 = smul.addr %s946, 32
        %s948 = scalar_lea.vmem [#allocation2], %s947
        // Predicated region
        $region223: #{diffusionnet_forward.9} parent=221 // pred_check
          %p949 = pneg %p61
        $region224: #{diffusionnet_forward.9} parent=221 // pred_check_branch
          %951 = sbr.rel (%p949) target = $region226
        $region225: #{diffusionnet_forward.9} parent=221 // pred_region
          _
        $region226: #{diffusionnet_forward.9} parent=221 // pred_fallthru
          _
        %s952 = sand.u32 %s76, 1
        %s953 = sand.u32 %s76, 1
        %s954 = smul.addr %s953, 32
        %s955 = scalar_lea.vmem [#allocation3], %s954
        // Predicated region
        $region227: #{diffusionnet_forward.9} parent=221 // pred_check
          %p956 = pneg %p89
        $region228: #{diffusionnet_forward.9} parent=221 // pred_check_branch
          %958 = sbr.rel (%p956) target = $region230
        $region229: #{diffusionnet_forward.9} parent=221 // pred_region
          _
        $region230: #{diffusionnet_forward.9} parent=221 // pred_fallthru
          _
        %s959 = sand.u32 %s130, 1
        %s960 = sand.u32 %s130, 1
        %s961 = smul.addr %s960, 128
        %s962 = scalar_lea.vmem [#allocation4], %s961
        // Predicated region
        $region231: #{diffusionnet_forward.9} parent=221 // pred_check
          %p963 = pneg %p143
        $region232: #{diffusionnet_forward.9} parent=221 // pred_check_branch
          %965 = sbr.rel (%p963) target = $region234
        $region233: #{diffusionnet_forward.9} parent=221 // pred_region
          _
        $region234: #{diffusionnet_forward.9} parent=221 // pred_fallthru
          _
        %s966 = sand.u32 %s158, 1
        %s967 = sand.u32 %s158, 1
        %s968 = smul.addr %s967, 128
        %s969 = scalar_lea.vmem [#allocation5], %s968
        // Predicated region
        $region235: #{diffusionnet_forward.9} parent=221 // pred_check
          %p970 = pneg %p171
        $region236: #{diffusionnet_forward.9} parent=221 // pred_check_branch
          %972 = sbr.rel (%p970) target = $region238
        $region237: #{diffusionnet_forward.9} parent=221 // pred_region
          _
        $region238: #{diffusionnet_forward.9} parent=221 // pred_fallthru
          _
        %s973 = sand.u32 %s48, 1
        %s974 = sand.u32 %s48, 1
        %s975 = smul.addr %s974, 32
        %s976 = scalar_lea.vmem [#allocation2], %s975
        %p977 = pneg %p61
        %p978 = pneg %p58
        %s979 = sand.u32 %s76, 1
        %s980 = sand.u32 %s76, 1
        %s981 = smul.addr %s980, 32
        %s982 = scalar_lea.vmem [#allocation3], %s981
        %p983 = pneg %p89
        %p984 = pneg %p86
        %p985 = scmp.lt.s32.totalorder %s30, 1
        %s986 = scalar_select %p985, %s30, 1
        %s987 = smul.addr %s986, 8
        %s988 = smul.addr %s987, 4
        %s989 = scalar_lea.vmem %s2, %s988
        %p990 = pneg %p115
        %p991 = pneg %p112
        %s992 = sand.u32 %s130, 1
        %s993 = sand.u32 %s130, 1
        %s994 = smul.addr %s993, 128
        %s995 = scalar_lea.vmem [#allocation4], %s994
        %p996 = pneg %p143
        %p997 = pneg %p140
        %s998 = sand.u32 %s158, 1
        %s999 = sand.u32 %s158, 1
        %s1000 = smul.addr %s999, 128
        %s1001 = scalar_lea.vmem [#allocation5], %s1000
        %p1002 = pneg %p171
        %p1003 = pneg %p168
        %p1004 = pneg %p192
        %p1005 = pneg %p189
        %p1006 = pneg %p213
        %p1007 = pneg %p210
        %p1008 = pneg %p234
        %p1009 = pneg %p231
        %p1010 = pneg %p255
        %p1011 = pneg %p252
        %p1012 = pneg %p276
        %p1013 = pneg %p273
        %p1014 = pneg %p297
        %p1015 = pneg %p294
        %p1016 = pneg %p318
        %p1017 = pneg %p315
        %p1018 = pneg %p339
        %p1019 = pneg %p336
        %p1020 = pneg %p360
        %p1021 = pneg %p357
        %p1022 = scmp.lt.s32.totalorder %s30, 1
        %s1023 = scalar_select %p1022, %s30, 1
        %p1024 = scmp.lt.s32.totalorder %s31, 1
        %s1025 = scalar_select %p1024, %s31, 1
        %s1026 = smul.addr %s1023, 2
        %s1027 = sadd.s32 %s1025, %s1026
        %s1028 = scalar_lea.vmem %s14, %s1027
        %p1029 = pneg %p388
        %p1030 = pneg %p385
        %p1031 = pneg %p416
        %p1032 = pneg %p413
        %p1033 = scmp.lt.s32.totalorder %s30, 1
        %s1034 = scalar_select %p1033, %s30, 1
        %p1035 = scmp.lt.s32.totalorder %s31, 1
        %s1036 = scalar_select %p1035, %s31, 1
        %s1037 = smul.addr %s1034, 2
        %s1038 = sadd.s32 %s1036, %s1037
        %s1039 = smul.addr %s1038, 8
        %s1040 = scalar_lea.vmem %s15, %s1039
        %p1041 = scmp.lt.s32.totalorder %s30, 1
        %s1042 = scalar_select %p1041, %s30, 1
        %s1043 = smul.addr %s1042, 8
        %s1044 = smul.addr %s1043, 4
        %s1045 = scalar_lea.vmem %s2, %s1044
        %p1046 = scmp.lt.s32.totalorder %s30, 1
        %s1047 = scalar_select %p1046, %s30, 1
        %p1048 = scmp.lt.s32.totalorder %s31, 1
        %s1049 = scalar_select %p1048, %s31, 1
        %s1050 = smul.addr %s1047, 2
        %s1051 = sadd.s32 %s1049, %s1050
        %s1052 = scalar_lea.vmem %s14, %s1051
        %p1053 = scmp.lt.s32.totalorder %s30, 1
        %s1054 = scalar_select %p1053, %s30, 1
        %p1055 = scmp.lt.s32.totalorder %s31, 1
        %s1056 = scalar_select %p1055, %s31, 1
        %s1057 = smul.addr %s1054, 2
        %s1058 = sadd.s32 %s1056, %s1057
        %s1059 = smul.addr %s1058, 8
        %s1060 = scalar_lea.vmem %s15, %s1059
        %v1062 = vld [vmem:[%s1045] sm:$0xff]
        %v1063 = vld [vmem:[%s1045 + $0x8] sm:$0xff]
        %v1064 = vld [vmem:[%s1045 + $0x10] sm:$0xff]
        %v1065 = vld [vmem:[%s1045 + $0x18] sm:$0xff]
        %v1066 = vld [vmem:[%s962] sm:$0xf]
        %v1067 = vld [vmem:[%s962 + $0x4] sm:$0xf]
        %v1068 = vld [vmem:[%s962 + $0x8] sm:$0xf]
        %v1069 = vld [vmem:[%s962 + $0xc] sm:$0xf]
        %v1070 = vld [vmem:[%s962 + $0x10] sm:$0xf]
        %v1071 = vld [vmem:[%s962 + $0x14] sm:$0xf]
        %v1072 = vld [vmem:[%s962 + $0x18] sm:$0xf]
        %v1073 = vld [vmem:[%s962 + $0x1c] sm:$0xf]
        %v1074 = vld [vmem:[%s962 + $0x20] sm:$0xf]
        %v1075 = vld [vmem:[%s962 + $0x24] sm:$0xf]
        %v1076 = vld [vmem:[%s962 + $0x28] sm:$0xf]
        %v1077 = vld [vmem:[%s962 + $0x2c] sm:$0xf]
        %v1078 = vld [vmem:[%s962 + $0x30] sm:$0xf]
        %v1079 = vld [vmem:[%s962 + $0x34] sm:$0xf]
        %v1080 = vld [vmem:[%s962 + $0x38] sm:$0xf]
        %v1081 = vld [vmem:[%s962 + $0x3c] sm:$0xf]
        %v1082 = vld [vmem:[%s962 + $0x40] sm:$0xf]
        %v1083 = vld [vmem:[%s962 + $0x44] sm:$0xf]
        %v1084 = vld [vmem:[%s962 + $0x48] sm:$0xf]
        %v1085 = vld [vmem:[%s962 + $0x4c] sm:$0xf]
        %v1086 = vld [vmem:[%s962 + $0x50] sm:$0xf]
        %v1087 = vld [vmem:[%s962 + $0x54] sm:$0xf]
        %v1088 = vld [vmem:[%s962 + $0x58] sm:$0xf]
        %v1089 = vld [vmem:[%s962 + $0x5c] sm:$0xf]
        %v1090 = vld [vmem:[%s962 + $0x60] sm:$0xf]
        %v1091 = vld [vmem:[%s962 + $0x64] sm:$0xf]
        %v1092 = vld [vmem:[%s962 + $0x68] sm:$0xf]
        %v1093 = vld [vmem:[%s962 + $0x6c] sm:$0xf]
        %v1094 = vld [vmem:[%s962 + $0x70] sm:$0xf]
        %v1095 = vld [vmem:[%s962 + $0x74] sm:$0xf]
        %v1096 = vld [vmem:[%s962 + $0x78] sm:$0xf]
        %v1097 = vld [vmem:[%s962 + $0x7c] sm:$0xf]
        %v1102 = vunpack.c.l.b16 %v1062
        %v1103 = vunpack.c.h.b16 %v1062
        %v1104 = vunpack.c.l.b16 %v1063
        %v1105 = vunpack.c.h.b16 %v1063
        %v1106 = vunpack.c.l.b16 %v1064
        %v1107 = vunpack.c.h.b16 %v1064
        %v1108 = vunpack.c.l.b16 %v1065
        %v1109 = vunpack.c.h.b16 %v1065
        %v1110 = vpack.c.b16 %v1104, %v1102
        %v1111 = vpack.c.b16 %v1105, %v1103
        %v1112 = vpack.c.b16 %v1108, %v1106
        %v1113 = vpack.c.b16 %v1109, %v1107
        %v1150 = vunpack.c.l.b16 %v1066
        %v1151 = vunpack.c.l.b16 %v1067
        %v1152 = vunpack.c.l.b16 %v1068
        %v1153 = vunpack.c.l.b16 %v1069
        %v1154 = vunpack.c.l.b16 %v1070
        %v1155 = vunpack.c.l.b16 %v1071
        %v1156 = vunpack.c.l.b16 %v1072
        %v1157 = vunpack.c.l.b16 %v1073
        %v1158 = vunpack.c.l.b16 %v1074
        %v1159 = vunpack.c.l.b16 %v1075
        %v1160 = vunpack.c.l.b16 %v1076
        %v1161 = vunpack.c.l.b16 %v1077
        %v1162 = vunpack.c.l.b16 %v1078
        %v1163 = vunpack.c.l.b16 %v1079
        %v1164 = vunpack.c.l.b16 %v1080
        %v1165 = vunpack.c.l.b16 %v1081
        %v1166 = vunpack.c.l.b16 %v1082
        %v1167 = vunpack.c.l.b16 %v1083
        %v1168 = vunpack.c.l.b16 %v1084
        %v1169 = vunpack.c.l.b16 %v1085
        %v1170 = vunpack.c.l.b16 %v1086
        %v1171 = vunpack.c.l.b16 %v1087
        %v1172 = vunpack.c.l.b16 %v1088
        %v1173 = vunpack.c.l.b16 %v1089
        %v1174 = vunpack.c.l.b16 %v1090
        %v1175 = vunpack.c.l.b16 %v1091
        %v1176 = vunpack.c.l.b16 %v1092
        %v1177 = vunpack.c.l.b16 %v1093
        %v1178 = vunpack.c.l.b16 %v1094
        %v1179 = vunpack.c.l.b16 %v1095
        %v1180 = vunpack.c.l.b16 %v1096
        %v1181 = vunpack.c.l.b16 %v1097
        %v1182 = vpack.c.b16 %v1151, %v1150
        %v1183 = vpack.c.b16 %v1153, %v1152
        %v1184 = vpack.c.b16 %v1155, %v1154
        %v1185 = vpack.c.b16 %v1157, %v1156
        %v1186 = vpack.c.b16 %v1159, %v1158
        %v1187 = vpack.c.b16 %v1161, %v1160
        %v1188 = vpack.c.b16 %v1163, %v1162
        %v1189 = vpack.c.b16 %v1165, %v1164
        %v1190 = vpack.c.b16 %v1167, %v1166
        %v1191 = vpack.c.b16 %v1169, %v1168
        %v1192 = vpack.c.b16 %v1171, %v1170
        %v1193 = vpack.c.b16 %v1173, %v1172
        %v1194 = vpack.c.b16 %v1175, %v1174
        %v1195 = vpack.c.b16 %v1177, %v1176
        %v1196 = vpack.c.b16 %v1179, %v1178
        %v1197 = vpack.c.b16 %v1181, %v1180
        %1214 = vmatprep.subr.bf16.mxu0 0
        %1215 = vmatpush1.bf16.msra.mxu0 %v1182
        %1216 = vmatprep.subr.bf16.mxu0 0
        %1217 = vmatpush1.bf16.msra.mxu0 %v1183
        %1218 = vmatprep.subr.bf16.mxu0 0
        %1219 = vmatpush1.bf16.msra.mxu0 %v1184
        %1220 = vmatprep.subr.bf16.mxu0 0
        %1221 = vmatpush1.bf16.msra.mxu0 %v1185
        %1222 = vmatprep.subr.bf16.mxu0 0
        %1223 = vmatpush1.bf16.msra.mxu0 %v1186
        %1224 = vmatprep.subr.bf16.mxu0 0
        %1225 = vmatpush1.bf16.msra.mxu0 %v1187
        %1226 = vmatprep.subr.bf16.mxu0 0
        %1227 = vmatpush1.bf16.msra.mxu0 %v1188
        %1228 = vmatprep.subr.bf16.mxu0 0
        %1229 = vmatpush1.bf16.msra.mxu0 %v1189
        %1230 = vmatprep.subr.bf16.mxu0 0
        %1231 = vmatpush1.bf16.msra.mxu0 %v1190
        %1232 = vmatprep.subr.bf16.mxu0 0
        %1233 = vmatpush1.bf16.msra.mxu0 %v1191
        %1234 = vmatprep.subr.bf16.mxu0 0
        %1235 = vmatpush1.bf16.msra.mxu0 %v1192
        %1236 = vmatprep.subr.bf16.mxu0 0
        %1237 = vmatpush1.bf16.msra.mxu0 %v1193
        %1238 = vmatprep.subr.bf16.mxu0 0
        %1239 = vmatpush1.bf16.msra.mxu0 %v1194
        %1240 = vmatprep.subr.bf16.mxu0 0
        %1241 = vmatpush1.bf16.msra.mxu0 %v1195
        %1242 = vmatprep.subr.bf16.mxu0 0
        %1243 = vmatpush1.bf16.msra.mxu0 %v1196
        %1244 = vmatprep.subr.bf16.mxu0 0
        %1245 = vmatpush1.bf16.msra.mxu0 %v1197
        %1246 = vmatprep.mubr.bf16.mxu0 %v1111
        %1247 = vmatmul.mubr.bf16.gmra.mrb[0].mxu0 %v1110
        %v1248 = vpop.f32.mrb[0].mxu0
        %v1249 = vadd.f32 0.0, %v1248
        %v1250 = vpop.f32.mrb[0].mxu0
        %v1251 = vpop.f32.mrb[0].mxu0
        %v1252 = vadd.f32 0.0, %v1251
        %v1253 = vpop.f32.mrb[0].mxu0
        %1254 = vmatprep.mubr.bf16.mxu0 %v1113
        %1255 = vmatmul.mubr.bf16.gmra.mrb[0].mxu0 %v1112
        %v1256 = vpop.f32.mrb[0].mxu0
        %v1257 = vadd.f32 0.0, %v1256
        %v1258 = vpop.f32.mrb[0].mxu0
        %v1259 = vpop.f32.mrb[0].mxu0
        %v1260 = vadd.f32 0.0, %v1259
        %v1261 = vpop.f32.mrb[0].mxu0
        %1262 = vdwg.mxu0
        %v1263 = vld [vmem:[%s969] sm:$0xf]
        %v1264 = vld [vmem:[%s969 + $0x4] sm:$0xf]
        %v1265 = vld [vmem:[%s969 + $0x8] sm:$0xf]
        %v1266 = vld [vmem:[%s969 + $0xc] sm:$0xf]
        %v1267 = vld [vmem:[%s969 + $0x10] sm:$0xf]
        %v1268 = vld [vmem:[%s969 + $0x14] sm:$0xf]
        %v1269 = vld [vmem:[%s969 + $0x18] sm:$0xf]
        %v1270 = vld [vmem:[%s969 + $0x1c] sm:$0xf]
        %v1271 = vld [vmem:[%s969 + $0x20] sm:$0xf]
        %v1272 = vld [vmem:[%s969 + $0x24] sm:$0xf]
        %v1273 = vld [vmem:[%s969 + $0x28] sm:$0xf]
        %v1274 = vld [vmem:[%s969 + $0x2c] sm:$0xf]
        %v1275 = vld [vmem:[%s969 + $0x30] sm:$0xf]
        %v1276 = vld [vmem:[%s969 + $0x34] sm:$0xf]
        %v1277 = vld [vmem:[%s969 + $0x38] sm:$0xf]
        %v1278 = vld [vmem:[%s969 + $0x3c] sm:$0xf]
        %v1279 = vld [vmem:[%s969 + $0x40] sm:$0xf]
        %v1280 = vld [vmem:[%s969 + $0x44] sm:$0xf]
        %v1281 = vld [vmem:[%s969 + $0x48] sm:$0xf]
        %v1282 = vld [vmem:[%s969 + $0x4c] sm:$0xf]
        %v1283 = vld [vmem:[%s969 + $0x50] sm:$0xf]
        %v1284 = vld [vmem:[%s969 + $0x54] sm:$0xf]
        %v1285 = vld [vmem:[%s969 + $0x58] sm:$0xf]
        %v1286 = vld [vmem:[%s969 + $0x5c] sm:$0xf]
        %v1287 = vld [vmem:[%s969 + $0x60] sm:$0xf]
        %v1288 = vld [vmem:[%s969 + $0x64] sm:$0xf]
        %v1289 = vld [vmem:[%s969 + $0x68] sm:$0xf]
        %v1290 = vld [vmem:[%s969 + $0x6c] sm:$0xf]
        %v1291 = vld [vmem:[%s969 + $0x70] sm:$0xf]
        %v1292 = vld [vmem:[%s969 + $0x74] sm:$0xf]
        %v1293 = vld [vmem:[%s969 + $0x78] sm:$0xf]
        %v1294 = vld [vmem:[%s969 + $0x7c] sm:$0xf]
        %v1327 = vunpack.c.l.b16 %v1263
        %v1328 = vunpack.c.l.b16 %v1264
        %v1329 = vunpack.c.l.b16 %v1265
        %v1330 = vunpack.c.l.b16 %v1266
        %v1331 = vunpack.c.l.b16 %v1267
        %v1332 = vunpack.c.l.b16 %v1268
        %v1333 = vunpack.c.l.b16 %v1269
        %v1334 = vunpack.c.l.b16 %v1270
        %v1335 = vunpack.c.l.b16 %v1271
        %v1336 = vunpack.c.l.b16 %v1272
        %v1337 = vunpack.c.l.b16 %v1273
        %v1338 = vunpack.c.l.b16 %v1274
        %v1339 = vunpack.c.l.b16 %v1275
        %v1340 = vunpack.c.l.b16 %v1276
        %v1341 = vunpack.c.l.b16 %v1277
        %v1342 = vunpack.c.l.b16 %v1278
        %v1343 = vunpack.c.l.b16 %v1279
        %v1344 = vunpack.c.l.b16 %v1280
        %v1345 = vunpack.c.l.b16 %v1281
        %v1346 = vunpack.c.l.b16 %v1282
        %v1347 = vunpack.c.l.b16 %v1283
        %v1348 = vunpack.c.l.b16 %v1284
        %v1349 = vunpack.c.l.b16 %v1285
        %v1350 = vunpack.c.l.b16 %v1286
        %v1351 = vunpack.c.l.b16 %v1287
        %v1352 = vunpack.c.l.b16 %v1288
        %v1353 = vunpack.c.l.b16 %v1289
        %v1354 = vunpack.c.l.b16 %v1290
        %v1355 = vunpack.c.l.b16 %v1291
        %v1356 = vunpack.c.l.b16 %v1292
        %v1357 = vunpack.c.l.b16 %v1293
        %v1358 = vunpack.c.l.b16 %v1294
        %v1359 = vpack.c.b16 %v1328, %v1327
        %v1360 = vpack.c.b16 %v1330, %v1329
        %v1361 = vpack.c.b16 %v1332, %v1331
        %v1362 = vpack.c.b16 %v1334, %v1333
        %v1363 = vpack.c.b16 %v1336, %v1335
        %v1364 = vpack.c.b16 %v1338, %v1337
        %v1365 = vpack.c.b16 %v1340, %v1339
        %v1366 = vpack.c.b16 %v1342, %v1341
        %v1367 = vpack.c.b16 %v1344, %v1343
        %v1368 = vpack.c.b16 %v1346, %v1345
        %v1369 = vpack.c.b16 %v1348, %v1347
        %v1370 = vpack.c.b16 %v1350, %v1349
        %v1371 = vpack.c.b16 %v1352, %v1351
        %v1372 = vpack.c.b16 %v1354, %v1353
        %v1373 = vpack.c.b16 %v1356, %v1355
        %v1374 = vpack.c.b16 %v1358, %v1357
        %1391 = vmatprep.subr.bf16.mxu0 0
        %1392 = vmatpush1.bf16.msra.mxu0 %v1359
        %1393 = vmatprep.subr.bf16.mxu0 0
        %1394 = vmatpush1.bf16.msra.mxu0 %v1360
        %1395 = vmatprep.subr.bf16.mxu0 0
        %1396 = vmatpush1.bf16.msra.mxu0 %v1361
        %1397 = vmatprep.subr.bf16.mxu0 0
        %1398 = vmatpush1.bf16.msra.mxu0 %v1362
        %1399 = vmatprep.subr.bf16.mxu0 0
        %1400 = vmatpush1.bf16.msra.mxu0 %v1363
        %1401 = vmatprep.subr.bf16.mxu0 0
        %1402 = vmatpush1.bf16.msra.mxu0 %v1364
        %1403 = vmatprep.subr.bf16.mxu0 0
        %1404 = vmatpush1.bf16.msra.mxu0 %v1365
        %1405 = vmatprep.subr.bf16.mxu0 0
        %1406 = vmatpush1.bf16.msra.mxu0 %v1366
        %1407 = vmatprep.subr.bf16.mxu0 0
        %1408 = vmatpush1.bf16.msra.mxu0 %v1367
        %1409 = vmatprep.subr.bf16.mxu0 0
        %1410 = vmatpush1.bf16.msra.mxu0 %v1368
        %1411 = vmatprep.subr.bf16.mxu0 0
        %1412 = vmatpush1.bf16.msra.mxu0 %v1369
        %1413 = vmatprep.subr.bf16.mxu0 0
        %1414 = vmatpush1.bf16.msra.mxu0 %v1370
        %1415 = vmatprep.subr.bf16.mxu0 0
        %1416 = vmatpush1.bf16.msra.mxu0 %v1371
        %1417 = vmatprep.subr.bf16.mxu0 0
        %1418 = vmatpush1.bf16.msra.mxu0 %v1372
        %1419 = vmatprep.subr.bf16.mxu0 0
        %1420 = vmatpush1.bf16.msra.mxu0 %v1373
        %1421 = vmatprep.subr.bf16.mxu0 0
        %1422 = vmatpush1.bf16.msra.mxu0 %v1374
        %1423 = vmatprep.mubr.bf16.mxu0 %v1111
        %1424 = vmatmul.mubr.bf16.gmra.mrb[0].mxu0 %v1110
        %v1425 = vpop.f32.mrb[0].mxu0
        %v1426 = vadd.f32 0.0, %v1425
        %v1427 = vpop.f32.mrb[0].mxu0
        %v1428 = vpop.f32.mrb[0].mxu0
        %v1429 = vadd.f32 0.0, %v1428
        %v1430 = vpop.f32.mrb[0].mxu0
        %1431 = vmatprep.mubr.bf16.mxu0 %v1113
        %1432 = vmatmul.mubr.bf16.gmra.mrb[0].mxu0 %v1112
        %v1433 = vpop.f32.mrb[0].mxu0
        %v1434 = vadd.f32 0.0, %v1433
        %v1435 = vpop.f32.mrb[0].mxu0
        %v1436 = vpop.f32.mrb[0].mxu0
        %v1437 = vadd.f32 0.0, %v1436
        %v1438 = vpop.f32.mrb[0].mxu0
        %1439 = vdwg.mxu0
        %v1440 = vld [vmem:[%s5] sm:$0xff]
        %v1441 = vld [vmem:[%s5 + $0x8] sm:$0xff]
        %v1442 = vld [vmem:[%s5 + $0x10] sm:$0xff]
        %v1443 = vld [vmem:[%s5 + $0x18] sm:$0xff]
        %v1444 = vld [vmem:[%s5 + $0x20] sm:$0xff]
        %v1445 = vld [vmem:[%s5 + $0x28] sm:$0xff]
        %v1446 = vld [vmem:[%s5 + $0x30] sm:$0xff]
        %v1447 = vld [vmem:[%s5 + $0x38] sm:$0xff]
        %vm1448 = vcmask 523264
        %v1450 = vsel %vm1448, %v1440, 0
        %v1453 = vsel %vm1448, %v1441, 0
        %v1456 = vsel %vm1448, %v1442, 0
        %v1459 = vsel %vm1448, %v1443, 0
        %v1462 = vsel %vm1448, %v1444, 0
        %v1465 = vsel %vm1448, %v1445, 0
        %v1468 = vsel %vm1448, %v1446, 0
        %v1471 = vsel %vm1448, %v1447, 0
        %1473 = vmatprep.subr.mxu0 0.0
        %1474 = vmatpush1.msra.mxu0 %v1249
        %1475 = vmatprep.subr.mxu0 0.0
        %1476 = vmatpush1.msra.mxu0 %v1252
        %1477 = vmatprep.subr.mxu0 0.0
        %1478 = vmatpush1.msra.mxu0 %v1257
        %1479 = vmatprep.subr.mxu0 0.0
        %1480 = vmatpush1.msra.mxu0 %v1260
        %1481 = vmatprep.subr.mxu0 0.0
        %1482 = vmatpush1.msra.mxu0 %v1426
        %1483 = vmatprep.subr.mxu0 0.0
        %1484 = vmatpush1.msra.mxu0 %v1429
        %1485 = vmatprep.subr.mxu0 0.0
        %1486 = vmatpush1.msra.mxu0 %v1434
        %1487 = vmatprep.subr.mxu0 0.0
        %1488 = vmatpush1.msra.mxu0 %v1437
        %1489 = vmatprep.subr.mxu0 0.0
        %1490 = vmatpush1.msra.mxu0 0.0
        %1491 = vmatprep.subr.mxu0 0.0
        %1492 = vmatpush1.msra.mxu0 0.0
        %1493 = vmatprep.subr.mxu0 0.0
        %1494 = vmatpush1.msra.mxu0 0.0
        %1495 = vmatprep.subr.mxu0 0.0
        %1496 = vmatpush1.msra.mxu0 0.0
        %1497 = vmatprep.subr.mxu0 0.0
        %1498 = vmatpush1.msra.mxu0 0.0
        %1499 = vmatprep.subr.mxu0 0.0
        %1500 = vmatpush1.msra.mxu0 0.0
        %1501 = vmatprep.subr.mxu0 0.0
        %1502 = vmatpush1.msra.mxu0 0.0
        %1503 = vmatprep.subr.mxu0 0.0
        %1504 = vmatpush1.msra.mxu0 0.0
        %1505 = vmatprep.subr.mxu0 0.0
        %1506 = vmatpush1.msra.mxu0 0.0
        %1507 = vmatprep.subr.mxu0 0.0
        %1508 = vmatpush1.msra.mxu0 0.0
        %1509 = vmatprep.subr.mxu0 0.0
        %1510 = vmatpush1.msra.mxu0 0.0
        %1511 = vmatprep.subr.mxu0 0.0
        %1512 = vmatpush1.msra.mxu0 0.0
        %1513 = vmatprep.subr.mxu0 0.0
        %1514 = vmatpush1.msra.mxu0 0.0
        %1515 = vmatprep.subr.mxu0 0.0
        %1516 = vmatpush1.msra.mxu0 0.0
        %1517 = vmatprep.subr.mxu0 0.0
        %1518 = vmatpush1.msra.mxu0 0.0
        %1519 = vmatprep.subr.mxu0 0.0
        %1520 = vmatpush1.msra.mxu0 0.0
        %1521 = vmatprep.subr.mxu0 0.0
        %1522 = vmatpush1.msra.mxu0 0.0
        %1523 = vmatprep.subr.mxu0 0.0
        %1524 = vmatpush1.msra.mxu0 0.0
        %1525 = vmatprep.subr.mxu0 0.0
        %1526 = vmatpush1.msra.mxu0 0.0
        %1527 = vmatprep.subr.mxu0 0.0
        %1528 = vmatpush1.msra.mxu0 0.0
        %1529 = vmatprep.subr.mxu0 0.0
        %1530 = vmatpush1.msra.mxu0 0.0
        %1531 = vmatprep.subr.mxu0 0.0
        %1532 = vmatpush1.msra.mxu0 0.0
        %1533 = vmatprep.subr.mxu0 0.0
        %1534 = vmatpush1.msra.mxu0 0.0
        %1535 = vmatprep.subr.mxu0 0.0
        %1536 = vmatpush1.msra.mxu0 0.0
        %1537 = vmatprep.mubr.f32.mxu0 0.0
        %1538 = vmatmul.mubr.f32.gmra.mrb[0].mxu0 %v1450
        %v1539 = vpop.f32.mrb[0].mxu0
        %v1540 = vadd.f32 0.0, %v1539
        %v1541 = vpop.f32.mrb[0].mxu0
        %1542 = vmatprep.mubr.f32.mxu0 0.0
        %1543 = vmatmul.mubr.f32.gmra.mrb[0].mxu0 %v1453
        %v1544 = vpop.f32.mrb[0].mxu0
        %v1545 = vadd.f32 0.0, %v1544
        %v1546 = vpop.f32.mrb[0].mxu0
        %1547 = vmatprep.mubr.f32.mxu0 0.0
        %1548 = vmatmul.mubr.f32.gmra.mrb[0].mxu0 %v1456
        %v1549 = vpop.f32.mrb[0].mxu0
        %v1550 = vadd.f32 0.0, %v1549
        %v1551 = vpop.f32.mrb[0].mxu0
        %1552 = vmatprep.mubr.f32.mxu0 0.0
        %1553 = vmatmul.mubr.f32.gmra.mrb[0].mxu0 %v1459
        %v1554 = vpop.f32.mrb[0].mxu0
        %v1555 = vadd.f32 0.0, %v1554
        %v1556 = vpop.f32.mrb[0].mxu0
        %1557 = vmatprep.mubr.f32.mxu0 0.0
        %1558 = vmatmul.mubr.f32.gmra.mrb[0].mxu0 %v1462
        %v1559 = vpop.f32.mrb[0].mxu0
        %v1560 = vadd.f32 0.0, %v1559
        %v1561 = vpop.f32.mrb[0].mxu0
        %1562 = vmatprep.mubr.f32.mxu0 0.0
        %1563 = vmatmul.mubr.f32.gmra.mrb[0].mxu0 %v1465
        %v1564 = vpop.f32.mrb[0].mxu0
        %v1565 = vadd.f32 0.0, %v1564
        %v1566 = vpop.f32.mrb[0].mxu0
        %1567 = vmatprep.mubr.f32.mxu0 0.0
        %1568 = vmatmul.mubr.f32.gmra.mrb[0].mxu0 %v1468
        %v1569 = vpop.f32.mrb[0].mxu0
        %v1570 = vadd.f32 0.0, %v1569
        %v1571 = vpop.f32.mrb[0].mxu0
        %1572 = vmatprep.mubr.f32.mxu0 0.0
        %1573 = vmatmul.mubr.f32.gmra.mrb[0].mxu0 %v1471
        %v1574 = vpop.f32.mrb[0].mxu0
        %v1575 = vadd.f32 0.0, %v1574
        %v1576 = vpop.f32.mrb[0].mxu0
        %1577 = vdwg.mxu0
        %v1578 = vmul.f32 %v1249, %v1540
        %v1579 = vmul.f32 %v1252, %v1545
        %v1580 = vmul.f32 %v1257, %v1550
        %v1581 = vmul.f32 %v1260, %v1555
        %v1582 = vmul.f32 %v1426, %v1560
        %v1583 = vmul.f32 %v1429, %v1565
        %v1584 = vmul.f32 %v1434, %v1570
        %v1585 = vmul.f32 %v1437, %v1575
        %v1586 = vadd.f32 %v1578, %v1582
        %v1587 = vadd.f32 %v1579, %v1583
        %v1588 = vadd.f32 %v1580, %v1584
        %v1589 = vadd.f32 %v1581, %v1585
        %v1590 = vtanh.pop %v1586
        %v1591 = vtanh.pop %v1587
        %v1592 = vtanh.pop %v1588
        %v1593 = vtanh.pop %v1589
        %v1594 = vld [vmem:[%s948] sm:$0xff]
        %v1595 = vld [vmem:[%s948 + $0x8] sm:$0xff]
        %v1596 = vld [vmem:[%s948 + $0x10] sm:$0xff]
        %v1597 = vld [vmem:[%s948 + $0x18] sm:$0xff]
        %v1598 = vld [vmem:[%s955] sm:$0xff]
        %v1599 = vld [vmem:[%s955 + $0x8] sm:$0xff]
        %v1600 = vld [vmem:[%s955 + $0x10] sm:$0xff]
        %v1601 = vld [vmem:[%s955 + $0x18] sm:$0xff]
        %v1602 = vld [vmem:[%s6] sm:$0xff]
        %v1603 = vld [vmem:[%s6 + $0x8] sm:$0xff]
        %v1604 = vld [vmem:[%s6 + $0x10] sm:$0xff]
        %v1605 = vld [vmem:[%s6 + $0x18] sm:$0xff]
        %v1606 = vld [vmem:[%s7] sm:$0xff]
        %v1607 = vld [vmem:[%s7 + $0x8] sm:$0xff]
        %v1608 = vld [vmem:[%s7 + $0x10] sm:$0xff]
        %v1609 = vld [vmem:[%s7 + $0x18] sm:$0xff]
        %1611 = vset.pattern.permute.xlu0 0
        %1612 = vperm.xlu0 %1611, %v1606
        %v1613 = vpop.permute.xlu0 %1612
        %1616 = vset.pattern.permute.xlu0 0
        %1617 = vperm.xlu0 %1616, %v1607
        %v1618 = vpop.permute.xlu0 %1617
        %1621 = vset.pattern.permute.xlu0 0
        %1622 = vperm.xlu0 %1621, %v1608
        %v1623 = vpop.permute.xlu0 %1622
        %1626 = vset.pattern.permute.xlu0 0
        %1627 = vperm.xlu0 %1626, %v1609
        %v1628 = vpop.permute.xlu0 %1627
        %vm1630 = vcmask 785408
        %v1632 = vsel %vm1630, %v1602, 0
        %v1635 = vsel %vm1630, %v1603, 0
        %v1638 = vsel %vm1630, %v1604, 0
        %v1641 = vsel %vm1630, %v1605, 0
        %1643 = vmatprep.subr.mxu0 0.0
        %1644 = vmatpush1.msra.mxu0 %v1594
        %1645 = vmatprep.subr.mxu0 0.0
        %1646 = vmatpush1.msra.mxu0 %v1595
        %1647 = vmatprep.subr.mxu0 0.0
        %1648 = vmatpush1.msra.mxu0 %v1596
        %1649 = vmatprep.subr.mxu0 0.0
        %1650 = vmatpush1.msra.mxu0 %v1597
        %1651 = vmatprep.subr.mxu0 0.0
        %1652 = vmatpush1.msra.mxu0 %v1598
        %1653 = vmatprep.subr.mxu0 0.0
        %1654 = vmatpush1.msra.mxu0 %v1599
        %1655 = vmatprep.subr.mxu0 0.0
        %1656 = vmatpush1.msra.mxu0 %v1600
        %1657 = vmatprep.subr.mxu0 0.0
        %1658 = vmatpush1.msra.mxu0 %v1601
        %1659 = vmatprep.subr.mxu0 0.0
        %1660 = vmatpush1.msra.mxu0 %v1590
        %1661 = vmatprep.subr.mxu0 0.0
        %1662 = vmatpush1.msra.mxu0 %v1591
        %1663 = vmatprep.subr.mxu0 0.0
        %1664 = vmatpush1.msra.mxu0 %v1592
        %1665 = vmatprep.subr.mxu0 0.0
        %1666 = vmatpush1.msra.mxu0 %v1593
        %1667 = vmatprep.subr.mxu0 0.0
        %1668 = vmatpush1.msra.mxu0 0.0
        %1669 = vmatprep.subr.mxu0 0.0
        %1670 = vmatpush1.msra.mxu0 0.0
        %1671 = vmatprep.subr.mxu0 0.0
        %1672 = vmatpush1.msra.mxu0 0.0
        %1673 = vmatprep.subr.mxu0 0.0
        %1674 = vmatpush1.msra.mxu0 0.0
        %1675 = vmatprep.subr.mxu0 0.0
        %1676 = vmatpush1.msra.mxu0 0.0
        %1677 = vmatprep.subr.mxu0 0.0
        %1678 = vmatpush1.msra.mxu0 0.0
        %1679 = vmatprep.subr.mxu0 0.0
        %1680 = vmatpush1.msra.mxu0 0.0
        %1681 = vmatprep.subr.mxu0 0.0
        %1682 = vmatpush1.msra.mxu0 0.0
        %1683 = vmatprep.subr.mxu0 0.0
        %1684 = vmatpush1.msra.mxu0 0.0
        %1685 = vmatprep.subr.mxu0 0.0
        %1686 = vmatpush1.msra.mxu0 0.0
        %1687 = vmatprep.subr.mxu0 0.0
        %1688 = vmatpush1.msra.mxu0 0.0
        %1689 = vmatprep.subr.mxu0 0.0
        %1690 = vmatpush1.msra.mxu0 0.0
        %1691 = vmatprep.subr.mxu0 0.0
        %1692 = vmatpush1.msra.mxu0 0.0
        %1693 = vmatprep.subr.mxu0 0.0
        %1694 = vmatpush1.msra.mxu0 0.0
        %1695 = vmatprep.subr.mxu0 0.0
        %1696 = vmatpush1.msra.mxu0 0.0
        %1697 = vmatprep.subr.mxu0 0.0
        %1698 = vmatpush1.msra.mxu0 0.0
        %1699 = vmatprep.subr.mxu0 0.0
        %1700 = vmatpush1.msra.mxu0 0.0
        %1701 = vmatprep.subr.mxu0 0.0
        %1702 = vmatpush1.msra.mxu0 0.0
        %1703 = vmatprep.subr.mxu0 0.0
        %1704 = vmatpush1.msra.mxu0 0.0
        %1705 = vmatprep.subr.mxu0 0.0
        %1706 = vmatpush1.msra.mxu0 0.0
        %1707 = vmatprep.mubr.f32.mxu0 0.0
        %1708 = vmatmul.mubr.f32.gmra.mrb[0].mxu0 %v1632
        %v1709 = vpop.f32.mrb[0].mxu0
        %v1710 = vadd.f32 %v1613, %v1709
        %v1711 = vpop.f32.mrb[0].mxu0
        %1712 = vmatprep.mubr.f32.mxu0 0.0
        %1713 = vmatmul.mubr.f32.gmra.mrb[0].mxu0 %v1635
        %v1714 = vpop.f32.mrb[0].mxu0
        %v1715 = vadd.f32 %v1618, %v1714
        %v1716 = vpop.f32.mrb[0].mxu0
        %1717 = vmatprep.mubr.f32.mxu0 0.0
        %1718 = vmatmul.mubr.f32.gmra.mrb[0].mxu0 %v1638
        %v1719 = vpop.f32.mrb[0].mxu0
        %v1720 = vadd.f32 %v1623, %v1719
        %v1721 = vpop.f32.mrb[0].mxu0
        %1722 = vmatprep.mubr.f32.mxu0 0.0
        %1723 = vmatmul.mubr.f32.gmra.mrb[0].mxu0 %v1641
        %v1724 = vpop.f32.mrb[0].mxu0
        %v1725 = vadd.f32 %v1628, %v1724
        %v1726 = vpop.f32.mrb[0].mxu0
        %1727 = vdwg.mxu0
        %v1728 = vmax.f32 %v1710, 0.0
        %v1729 = vmax.f32 %v1715, 0.0
        %v1730 = vmax.f32 %v1720, 0.0
        %v1731 = vmax.f32 %v1725, 0.0
        %v1732 = vld [vmem:[%s8] sm:$0xff]
        %v1733 = vld [vmem:[%s8 + $0x8] sm:$0xff]
        %v1734 = vld [vmem:[%s8 + $0x10] sm:$0xff]
        %v1735 = vld [vmem:[%s8 + $0x18] sm:$0xff]
        %v1736 = vld [vmem:[%s9] sm:$0xff]
        %v1737 = vld [vmem:[%s9 + $0x8] sm:$0xff]
        %v1738 = vld [vmem:[%s9 + $0x10] sm:$0xff]
        %v1739 = vld [vmem:[%s9 + $0x18] sm:$0xff]
        %1741 = vset.pattern.permute.xlu0 0
        %1742 = vperm.xlu0 %1741, %v1736
        %v1743 = vpop.permute.xlu0 %1742
        %1746 = vset.pattern.permute.xlu0 0
        %1747 = vperm.xlu0 %1746, %v1737
        %v1748 = vpop.permute.xlu0 %1747
        %1751 = vset.pattern.permute.xlu0 0
        %1752 = vperm.xlu0 %1751, %v1738
        %v1753 = vpop.permute.xlu0 %1752
        %1756 = vset.pattern.permute.xlu0 0
        %1757 = vperm.xlu0 %1756, %v1739
        %v1758 = vpop.permute.xlu0 %1757
        %vm1760 = vcmask 261120
        %v1762 = vsel %vm1760, %v1732, 0
        %v1765 = vsel %vm1760, %v1733, 0
        %v1768 = vsel %vm1760, %v1734, 0
        %v1771 = vsel %vm1760, %v1735, 0
        %1773 = vmatprep.subr.mxu0 0.0
        %1774 = vmatpush1.msra.mxu0 %v1728
        %1775 = vmatprep.subr.mxu0 0.0
        %1776 = vmatpush1.msra.mxu0 %v1729
        %1777 = vmatprep.subr.mxu0 0.0
        %1778 = vmatpush1.msra.mxu0 %v1730
        %1779 = vmatprep.subr.mxu0 0.0
        %1780 = vmatpush1.msra.mxu0 %v1731
        %1781 = vmatprep.subr.mxu0 0.0
        %1782 = vmatpush1.msra.mxu0 0.0
        %1783 = vmatprep.subr.mxu0 0.0
        %1784 = vmatpush1.msra.mxu0 0.0
        %1785 = vmatprep.subr.mxu0 0.0
        %1786 = vmatpush1.msra.mxu0 0.0
        %1787 = vmatprep.subr.mxu0 0.0
        %1788 = vmatpush1.msra.mxu0 0.0
        %1789 = vmatprep.subr.mxu0 0.0
        %1790 = vmatpush1.msra.mxu0 0.0
        %1791 = vmatprep.subr.mxu0 0.0
        %1792 = vmatpush1.msra.mxu0 0.0
        %1793 = vmatprep.subr.mxu0 0.0
        %1794 = vmatpush1.msra.mxu0 0.0
        %1795 = vmatprep.subr.mxu0 0.0
        %1796 = vmatpush1.msra.mxu0 0.0
        %1797 = vmatprep.subr.mxu0 0.0
        %1798 = vmatpush1.msra.mxu0 0.0
        %1799 = vmatprep.subr.mxu0 0.0
        %1800 = vmatpush1.msra.mxu0 0.0
        %1801 = vmatprep.subr.mxu0 0.0
        %1802 = vmatpush1.msra.mxu0 0.0
        %1803 = vmatprep.subr.mxu0 0.0
        %1804 = vmatpush1.msra.mxu0 0.0
        %1805 = vmatprep.subr.mxu0 0.0
        %1806 = vmatpush1.msra.mxu0 0.0
        %1807 = vmatprep.subr.mxu0 0.0
        %1808 = vmatpush1.msra.mxu0 0.0
        %1809 = vmatprep.subr.mxu0 0.0
        %1810 = vmatpush1.msra.mxu0 0.0
        %1811 = vmatprep.subr.mxu0 0.0
        %1812 = vmatpush1.msra.mxu0 0.0
        %1813 = vmatprep.subr.mxu0 0.0
        %1814 = vmatpush1.msra.mxu0 0.0
        %1815 = vmatprep.subr.mxu0 0.0
        %1816 = vmatpush1.msra.mxu0 0.0
        %1817 = vmatprep.subr.mxu0 0.0
        %1818 = vmatpush1.msra.mxu0 0.0
        %1819 = vmatprep.subr.mxu0 0.0
        %1820 = vmatpush1.msra.mxu0 0.0
        %1821 = vmatprep.subr.mxu0 0.0
        %1822 = vmatpush1.msra.mxu0 0.0
        %1823 = vmatprep.subr.mxu0 0.0
        %1824 = vmatpush1.msra.mxu0 0.0
        %1825 = vmatprep.subr.mxu0 0.0
        %1826 = vmatpush1.msra.mxu0 0.0
        %1827 = vmatprep.subr.mxu0 0.0
        %1828 = vmatpush1.msra.mxu0 0.0
        %1829 = vmatprep.subr.mxu0 0.0
        %1830 = vmatpush1.msra.mxu0 0.0
        %1831 = vmatprep.subr.mxu0 0.0
        %1832 = vmatpush1.msra.mxu0 0.0
        %1833 = vmatprep.subr.mxu0 0.0
        %1834 = vmatpush1.msra.mxu0 0.0
        %1835 = vmatprep.subr.mxu0 0.0
        %1836 = vmatpush1.msra.mxu0 0.0
        %1837 = vmatprep.mubr.f32.mxu0 0.0
        %1838 = vmatmul.mubr.f32.gmra.mrb[0].mxu0 %v1762
        %v1839 = vpop.f32.mrb[0].mxu0
        %v1840 = vadd.f32 %v1743, %v1839
        %v1841 = vpop.f32.mrb[0].mxu0
        %1842 = vmatprep.mubr.f32.mxu0 0.0
        %1843 = vmatmul.mubr.f32.gmra.mrb[0].mxu0 %v1765
        %v1844 = vpop.f32.mrb[0].mxu0
        %v1845 = vadd.f32 %v1748, %v1844
        %v1846 = vpop.f32.mrb[0].mxu0
        %1847 = vmatprep.mubr.f32.mxu0 0.0
        %1848 = vmatmul.mubr.f32.gmra.mrb[0].mxu0 %v1768
        %v1849 = vpop.f32.mrb[0].mxu0
        %v1850 = vadd.f32 %v1753, %v1849
        %v1851 = vpop.f32.mrb[0].mxu0
        %1852 = vmatprep.mubr.f32.mxu0 0.0
        %1853 = vmatmul.mubr.f32.gmra.mrb[0].mxu0 %v1771
        %v1854 = vpop.f32.mrb[0].mxu0
        %v1855 = vadd.f32 %v1758, %v1854
        %v1856 = vpop.f32.mrb[0].mxu0
        %1857 = vdwg.mxu0
        %v1858 = vmax.f32 %v1840, 0.0
        %v1859 = vmax.f32 %v1845, 0.0
        %v1860 = vmax.f32 %v1850, 0.0
        %v1861 = vmax.f32 %v1855, 0.0
        %v1862 = vld [vmem:[%s10] sm:$0xff]
        %v1863 = vld [vmem:[%s10 + $0x8] sm:$0xff]
        %v1864 = vld [vmem:[%s10 + $0x10] sm:$0xff]
        %v1865 = vld [vmem:[%s10 + $0x18] sm:$0xff]
        %v1866 = vld [vmem:[%s11] sm:$0xff]
        %v1867 = vld [vmem:[%s11 + $0x8] sm:$0xff]
        %v1868 = vld [vmem:[%s11 + $0x10] sm:$0xff]
        %v1869 = vld [vmem:[%s11 + $0x18] sm:$0xff]
        %1871 = vset.pattern.permute.xlu0 0
        %1872 = vperm.xlu0 %1871, %v1866
        %v1873 = vpop.permute.xlu0 %1872
        %1876 = vset.pattern.permute.xlu0 0
        %1877 = vperm.xlu0 %1876, %v1867
        %v1878 = vpop.permute.xlu0 %1877
        %1881 = vset.pattern.permute.xlu0 0
        %1882 = vperm.xlu0 %1881, %v1868
        %v1883 = vpop.permute.xlu0 %1882
        %1886 = vset.pattern.permute.xlu0 0
        %1887 = vperm.xlu0 %1886, %v1869
        %v1888 = vpop.permute.xlu0 %1887
        %v1891 = vsel %vm1760, %v1862, 0
        %v1894 = vsel %vm1760, %v1863, 0
        %v1897 = vsel %vm1760, %v1864, 0
        %v1900 = vsel %vm1760, %v1865, 0
        %1902 = vmatprep.subr.mxu0 0.0
        %1903 = vmatpush1.msra.mxu0 %v1858
        %1904 = vmatprep.subr.mxu0 0.0
        %1905 = vmatpush1.msra.mxu0 %v1859
        %1906 = vmatprep.subr.mxu0 0.0
        %1907 = vmatpush1.msra.mxu0 %v1860
        %1908 = vmatprep.subr.mxu0 0.0
        %1909 = vmatpush1.msra.mxu0 %v1861
        %1910 = vmatprep.subr.mxu0 0.0
        %1911 = vmatpush1.msra.mxu0 0.0
        %1912 = vmatprep.subr.mxu0 0.0
        %1913 = vmatpush1.msra.mxu0 0.0
        %1914 = vmatprep.subr.mxu0 0.0
        %1915 = vmatpush1.msra.mxu0 0.0
        %1916 = vmatprep.subr.mxu0 0.0
        %1917 = vmatpush1.msra.mxu0 0.0
        %1918 = vmatprep.subr.mxu0 0.0
        %1919 = vmatpush1.msra.mxu0 0.0
        %1920 = vmatprep.subr.mxu0 0.0
        %1921 = vmatpush1.msra.mxu0 0.0
        %1922 = vmatprep.subr.mxu0 0.0
        %1923 = vmatpush1.msra.mxu0 0.0
        %1924 = vmatprep.subr.mxu0 0.0
        %1925 = vmatpush1.msra.mxu0 0.0
        %1926 = vmatprep.subr.mxu0 0.0
        %1927 = vmatpush1.msra.mxu0 0.0
        %1928 = vmatprep.subr.mxu0 0.0
        %1929 = vmatpush1.msra.mxu0 0.0
        %1930 = vmatprep.subr.mxu0 0.0
        %1931 = vmatpush1.msra.mxu0 0.0
        %1932 = vmatprep.subr.mxu0 0.0
        %1933 = vmatpush1.msra.mxu0 0.0
        %1934 = vmatprep.subr.mxu0 0.0
        %1935 = vmatpush1.msra.mxu0 0.0
        %1936 = vmatprep.subr.mxu0 0.0
        %1937 = vmatpush1.msra.mxu0 0.0
        %1938 = vmatprep.subr.mxu0 0.0
        %1939 = vmatpush1.msra.mxu0 0.0
        %1940 = vmatprep.subr.mxu0 0.0
        %1941 = vmatpush1.msra.mxu0 0.0
        %1942 = vmatprep.subr.mxu0 0.0
        %1943 = vmatpush1.msra.mxu0 0.0
        %1944 = vmatprep.subr.mxu0 0.0
        %1945 = vmatpush1.msra.mxu0 0.0
        %1946 = vmatprep.subr.mxu0 0.0
        %1947 = vmatpush1.msra.mxu0 0.0
        %1948 = vmatprep.subr.mxu0 0.0
        %1949 = vmatpush1.msra.mxu0 0.0
        %1950 = vmatprep.subr.mxu0 0.0
        %1951 = vmatpush1.msra.mxu0 0.0
        %1952 = vmatprep.subr.mxu0 0.0
        %1953 = vmatpush1.msra.mxu0 0.0
        %1954 = vmatprep.subr.mxu0 0.0
        %1955 = vmatpush1.msra.mxu0 0.0
        %1956 = vmatprep.subr.mxu0 0.0
        %1957 = vmatpush1.msra.mxu0 0.0
        %1958 = vmatprep.subr.mxu0 0.0
        %1959 = vmatpush1.msra.mxu0 0.0
        %1960 = vmatprep.subr.mxu0 0.0
        %1961 = vmatpush1.msra.mxu0 0.0
        %1962 = vmatprep.subr.mxu0 0.0
        %1963 = vmatpush1.msra.mxu0 0.0
        %1964 = vmatprep.subr.mxu0 0.0
        %1965 = vmatpush1.msra.mxu0 0.0
        %1966 = vmatprep.mubr.f32.mxu0 0.0
        %1967 = vmatmul.mubr.f32.gmra.mrb[0].mxu0 %v1891
        %v1968 = vpop.f32.mrb[0].mxu0
        %v1969 = vadd.f32 %v1873, %v1968
        %v1970 = vpop.f32.mrb[0].mxu0
        %1971 = vmatprep.mubr.f32.mxu0 0.0
        %1972 = vmatmul.mubr.f32.gmra.mrb[0].mxu0 %v1894
        %v1973 = vpop.f32.mrb[0].mxu0
        %v1974 = vadd.f32 %v1878, %v1973
        %v1975 = vpop.f32.mrb[0].mxu0
        %1976 = vmatprep.mubr.f32.mxu0 0.0
        %1977 = vmatmul.mubr.f32.gmra.mrb[0].mxu0 %v1897
        %v1978 = vpop.f32.mrb[0].mxu0
        %v1979 = vadd.f32 %v1883, %v1978
        %v1980 = vpop.f32.mrb[0].mxu0
        %1981 = vmatprep.mubr.f32.mxu0 0.0
        %1982 = vmatmul.mubr.f32.gmra.mrb[0].mxu0 %v1900
        %v1983 = vpop.f32.mrb[0].mxu0
        %v1984 = vadd.f32 %v1888, %v1983
        %v1985 = vpop.f32.mrb[0].mxu0
        %1986 = vdwg.mxu0
        %v1987 = vadd.f32 %v1969, %v1594
        %v1988 = vadd.f32 %v1974, %v1595
        %v1989 = vadd.f32 %v1979, %v1596
        %v1990 = vadd.f32 %v1984, %v1597
        %v1991 = vld [vmem:[%s12] sm:$0x1f]
        %v1992 = vld [vmem:[%s13] sm:$0x1f]
        %1994 = vset.pattern.permute.xlu0 0
        %1995 = vperm.xlu0 %1994, %v1992
        %v1996 = vpop.permute.xlu0 %1995
        %v1999 = vsel %vm1760, %v1991, 0
        %2001 = vmatprep.subr.mxu0 0.0
        %2002 = vmatpush1.msra.mxu0 %v1987
        %2003 = vmatprep.subr.mxu0 0.0
        %2004 = vmatpush1.msra.mxu0 %v1988
        %2005 = vmatprep.subr.mxu0 0.0
        %2006 = vmatpush1.msra.mxu0 %v1989
        %2007 = vmatprep.subr.mxu0 0.0
        %2008 = vmatpush1.msra.mxu0 %v1990
        %2009 = vmatprep.subr.mxu0 0.0
        %2010 = vmatpush1.msra.mxu0 0.0
        %2011 = vmatprep.subr.mxu0 0.0
        %2012 = vmatpush1.msra.mxu0 0.0
        %2013 = vmatprep.subr.mxu0 0.0
        %2014 = vmatpush1.msra.mxu0 0.0
        %2015 = vmatprep.subr.mxu0 0.0
        %2016 = vmatpush1.msra.mxu0 0.0
        %2017 = vmatprep.subr.mxu0 0.0
        %2018 = vmatpush1.msra.mxu0 0.0
        %2019 = vmatprep.subr.mxu0 0.0
        %2020 = vmatpush1.msra.mxu0 0.0
        %2021 = vmatprep.subr.mxu0 0.0
        %2022 = vmatpush1.msra.mxu0 0.0
        %2023 = vmatprep.subr.mxu0 0.0
        %2024 = vmatpush1.msra.mxu0 0.0
        %2025 = vmatprep.subr.mxu0 0.0
        %2026 = vmatpush1.msra.mxu0 0.0
        %2027 = vmatprep.subr.mxu0 0.0
        %2028 = vmatpush1.msra.mxu0 0.0
        %2029 = vmatprep.subr.mxu0 0.0
        %2030 = vmatpush1.msra.mxu0 0.0
        %2031 = vmatprep.subr.mxu0 0.0
        %2032 = vmatpush1.msra.mxu0 0.0
        %2033 = vmatprep.subr.mxu0 0.0
        %2034 = vmatpush1.msra.mxu0 0.0
        %2035 = vmatprep.subr.mxu0 0.0
        %2036 = vmatpush1.msra.mxu0 0.0
        %2037 = vmatprep.subr.mxu0 0.0
        %2038 = vmatpush1.msra.mxu0 0.0
        %2039 = vmatprep.subr.mxu0 0.0
        %2040 = vmatpush1.msra.mxu0 0.0
        %2041 = vmatprep.subr.mxu0 0.0
        %2042 = vmatpush1.msra.mxu0 0.0
        %2043 = vmatprep.subr.mxu0 0.0
        %2044 = vmatpush1.msra.mxu0 0.0
        %2045 = vmatprep.subr.mxu0 0.0
        %2046 = vmatpush1.msra.mxu0 0.0
        %2047 = vmatprep.subr.mxu0 0.0
        %2048 = vmatpush1.msra.mxu0 0.0
        %2049 = vmatprep.subr.mxu0 0.0
        %2050 = vmatpush1.msra.mxu0 0.0
        %2051 = vmatprep.subr.mxu0 0.0
        %2052 = vmatpush1.msra.mxu0 0.0
        %2053 = vmatprep.subr.mxu0 0.0
        %2054 = vmatpush1.msra.mxu0 0.0
        %2055 = vmatprep.subr.mxu0 0.0
        %2056 = vmatpush1.msra.mxu0 0.0
        %2057 = vmatprep.subr.mxu0 0.0
        %2058 = vmatpush1.msra.mxu0 0.0
        %2059 = vmatprep.subr.mxu0 0.0
        %2060 = vmatpush1.msra.mxu0 0.0
        %2061 = vmatprep.subr.mxu0 0.0
        %2062 = vmatpush1.msra.mxu0 0.0
        %2063 = vmatprep.subr.mxu0 0.0
        %2064 = vmatpush1.msra.mxu0 0.0
        %2065 = vmatprep.mubr.f32.mxu0 0.0
        %2066 = vmatmul.mubr.f32.gmra.mrb[0].mxu0 %v1999
        %v2067 = vpop.f32.mrb[0].mxu0
        %v2068 = vadd.f32 %v1996, %v2067
        %v2069 = vpop.f32.mrb[0].mxu0
        %2070 = vdwg.mxu0
        %v2071 = vld [vmem:[%s1052] sm:$0x1]
        %v2073 = vlaneseq
        %v2074 = vshrl.u32 %v2073, 7
        %v2075 = vsub.s32 0, %v2074
        %v2076 = vrot.slane %v2071, %v2075
        %v2078 = vmul.f32 %v2068, %v2076
        %2079 = vst [vmem:[%s1060] sm:$0x1f] %v2078
        %p2080 = scmp.lt.s32.totalorder %s30, 1
        %s2081 = scalar_select %p2080, %s30, 1
        %p2082 = scmp.lt.s32.totalorder %s31, 1
        %s2083 = scalar_select %p2082, %s31, 1
        %s2084 = smul.addr %s2081, 2
        %s2085 = sadd.s32 %s2083, %s2084
        %s2086 = smul.addr %s2085, 8
        %s2087 = scalar_lea.vmem %s15, %s2086
        // Predicated region
        $region239: #{diffusionnet_forward.9} parent=221 // pred_check
          %p2088 = pneg %p413
        $region240: #{diffusionnet_forward.9} parent=221 // pred_check_branch
          %2090 = sbr.rel (%p2088) target = $region242
        $region241: #{diffusionnet_forward.9} parent=221 // pred_region
          _
        $region242: #{diffusionnet_forward.9} parent=221 // pred_fallthru
          _
      $region222: #{diffusionnet_forward.9} parent=5 // pred_fallthru
        _
      %p2091 = scmp.le.s32.totalorder 2, %s21
      // Predicated region
      $region243: #{diffusionnet_forward.9} parent=5 // pred_check
        %p2092 = pneg %p2091
      $region244: #{diffusionnet_forward.9} parent=5 // pred_check_branch
        %2094 = sbr.rel (%p2092) target = $region246
      $region245: #{diffusionnet_forward.9} parent=5 // pred_region
        %s2095 = ssub.s32 %s21, 2
        // Predicated region
        $region247: #{diffusionnet_forward.9} parent=245 // pred_check
          %p2096 = pneg %p419
        $region248: #{diffusionnet_forward.9} parent=245 // pred_check_branch
          %2098 = sbr.rel (%p2096) target = $region250
        $region249: #{diffusionnet_forward.9} parent=245 // pred_region
          %p2099 = scmp.lt.s32.totalorder %s32, 1
          %s2100 = scalar_select %p2099, %s32, 1
          %p2101 = scmp.lt.s32.totalorder %s33, 1
          %s2102 = scalar_select %p2101, %s33, 1
          %s2103 = smul.addr %s2100, 2
          %s2104 = sadd.s32 %s2102, %s2103
          %s2105 = smul.addr %s2104, 8
          %s2106 = scalar_lea.vmem %s15, %s2105
        $region250: #{diffusionnet_forward.9} parent=245 // pred_fallthru
          _
      $region246: #{diffusionnet_forward.9} parent=5 // pred_fallthru
        _
    $region6: #{diffusionnet_forward.9} parent=1 // loop_footer
      %s25 = sadd.s32 1, %s21
    $region7: #{diffusionnet_forward.9} parent=1 // loop_footer_branch
      %20 = sbr.rel target = $region3
    $region8: #{diffusionnet_forward.9} parent=1 // loop_exit
      _

</llo_original>
